<compile_context>
chip_gen: v7x
topology: tpu7x:2x2x1
jax: 0.10.0
libtpu: 0.0.40
codegen_flags: <defaults>
</compile_context>

<pallas_src>
import functools

import jax
import jax.numpy as jnp
import numpy as np
from jax.experimental import pallas as pl
from jax.experimental.pallas import tpu as pltpu


def _nextvlad_kernel(x_ref, w_ref, cent_ref, o_ref, feat_ref, wgt_ref, *,
                     group, approx):
    """One grid step: a block of B images, fully fused NextVLAD forward."""
    B, K, d = o_ref.shape
    BM, D = x_ref.shape
    M = BM // B
    G = group
    ED = feat_ref.shape[-1]
    GK = wgt_ref.shape[-1]
    mxu_dtype = feat_ref.dtype

    w_big = w_ref[...]                       # (D, ED+GK+G), VMEM-resident across the grid
    cent = cent_ref[...]                     # (K, d) f32 centroids, lane-dense on d

    # ---- whole-block fused projection: one weight-stationary MXU pass ------------
    x = x_ref[...]                           # (B*M, D) tokens, channels on lanes
    nsq = jnp.sum(x * x, axis=-1, keepdims=True)
    # F.normalize(p=2, dim=1): x / max(||x||, 1e-12) == x * rsqrt(max(||x||^2, 1e-24))
    xn = x * jax.lax.rsqrt(jnp.maximum(nsq, 1e-24))
    #   proj[:, :ED]       = linear1(xn)                  (grouped VLAD features)
    #   proj[:, ED:ED+GK]  = soft-assign 1x1-conv logits  (block-diagonal fold)
    #   proj[:, ED+GK:]    = linear2 attention logits
    proj = jnp.dot(xn.astype(mxu_dtype), w_big,
                   preferred_element_type=jnp.float32)          # (BM, ED+GK+G) f32

    feat_ref[...] = proj[:, :ED].astype(mxu_dtype)

    # Attention gates: sigmoid as EUP exp + EUP reciprocal, all-f32 vector math.
    att = pl.reciprocal(1.0 + jnp.exp(-proj[:, ED + GK:]), approx=approx)   # (BM, G)

    # Hoisted softmax stabilisation: one cross-lane max + one EUP exp over the whole
    # lane-dense (BM, GK) slab (a per-row global max is valid for every group).
    logits = proj[:, ED:ED + GK]
    e = jnp.exp(logits - jnp.max(logits, axis=-1, keepdims=True))           # (BM, GK)

    pieces = []
    for g in range(G):                       # static unroll: only per-group sum/recip/gate
        e_g = e[:, g * K:(g + 1) * K]
        inv = pl.reciprocal(jnp.sum(e_g, axis=-1, keepdims=True), approx=approx)
        pieces.append(e_g * inv * att[:, g:g + 1])
    # Single full-width store of the combined (soft-assign * attention) weights.
    wgt_ref[...] = jnp.concatenate(pieces, axis=-1).astype(mxu_dtype)       # (BM, GK)

    # ---- per-image aggregation: lane-dense (K, d) accumulation --------------------
    # Phantom "ones" feature block: its aggregate is the per-cluster weight mass,
    # already broadcast over the d lanes (avoids any (1,K)->(K,1) relayout).
    ones_md = jnp.ones((M, d), mxu_dtype)
    dn = (((0,), (0,)), ((), ()))            # contract over the token (sublane) dim

    @pl.loop(0, B, unroll=B <= 2)            # bounded live range: one image at a time
    def _(b):
        off = b * M
        if M % 128 == 0:
            off = pl.multiple_of(off, 128)
        elif M % 8 == 0:
            off = pl.multiple_of(off, 8)
        w_im = wgt_ref[pl.ds(off, M), :]     # (M, GK)
        f_im = feat_ref[pl.ds(off, M), :]    # (M, ED)

        agg = jnp.zeros((K, d), jnp.float32)
        wsum_mk = jnp.zeros((M, K), jnp.float32)
        for g in range(G):                   # static unroll over groups
            w_g = w_im[:, g * K:(g + 1) * K]
            # TODO(synk): both operands contract over the sublane (token) dim; check the
            # bundle dump for per-group vxpose and pre-transpose once per image if Mosaic
            # does not use the MXU's transposed-lhs path.
            agg = agg + jax.lax.dot_general(
                w_g, f_im[:, g * d:(g + 1) * d], dn,
                preferred_element_type=jnp.float32)                         # (K, d)
            wsum_mk = wsum_mk + w_g.astype(jnp.float32)

        wsum_kd = jax.lax.dot_general(       # every column == sum_{m,g} w[m, g, k]
            wsum_mk.astype(mxu_dtype), ones_md, dn,
            preferred_element_type=jnp.float32)                             # (K, d)
        # vlad[k, j] = agg[k, j] - centroids[k, j] * wsum[k]
        o_ref[b] = agg - cent * wsum_kd


def _pick_block_b(N, M, D, ED, GK, G, in_itemsize, mxu_itemsize,
                  vmem_budget_bytes=12 * 1024 * 1024):
    """Largest per-step image count that keeps the VMEM working set under budget
    (conservative enough for v5e's 16 MiB default scoped limit and v7x's 64 MiB VMEM)."""
    per_img = M * (2 * D * in_itemsize            # double-buffered input tile
                   + (ED + GK + G) * 4            # f32 projection temporary
                   + (ED + GK) * mxu_itemsize)    # feature + weight scratch
    cap = max(1, int(vmem_budget_bytes // max(per_img, 1)))
    return int(max(1, min(8, N, cap)))


def nextvlad_forward(x_nchw, params, *, expansion, group, num_clusters,
                     block_b=None, mxu_dtype=jnp.bfloat16, approx_recip=True,
                     vmem_limit_bytes=None):
    """NextVLAD forward: x (N, dim, H, W) -> vlad (N, num_clusters, expansion*dim//group)."""
    N, D, H, W = x_nchw.shape
    M = H * W
    E, G, K = expansion, group, num_clusters
    ED = E * D
    d = ED // G
    GK = G * K
    hp = jax.lax.Precision.HIGHEST

    # ---- host-side weight composition (f32 HIGHEST, single cast at the end) ------
    w1t = params['w1'].astype(jnp.float32).T                  # (dim, ED)  linear1, no bias
    w2t = params['w2'].astype(jnp.float32).T                  # (ED, G)    linear2, no bias
    wc = params['wc'].astype(jnp.float32)                     # (K, d)     1x1 conv, no bias
    # Block-diagonal soft-assign weight: assign[g*d + j, g*K + k] = wc[k, j].
    w_assign = jnp.einsum('gh,jk->gjhk', jnp.eye(G, dtype=jnp.float32),
                          wc.T).reshape(ED, GK)
    # Fold linear1 into the assign/attention projections (exact by associativity):
    # one MXU push per token slab with contraction depth dim instead of E*dim.
    w_big = jnp.concatenate(
        [w1t,
         jnp.dot(w1t, w_assign, precision=hp),
         jnp.dot(w1t, w2t, precision=hp)], axis=1).astype(mxu_dtype)   # (dim, ED+GK+G)
    cent = params['centroids'].astype(jnp.float32)             # (K, d)

    # ---- token layout + per-step batching -----------------------------------------
    x_tok = jnp.transpose(x_nchw, (0, 2, 3, 1)).reshape(N, M, D)
    if block_b is None:
        block_b = _pick_block_b(N, M, D, ED, GK, G,
                                jnp.dtype(x_tok.dtype).itemsize,
                                jnp.dtype(mxu_dtype).itemsize)
    pad = (-N) % block_b
    if pad:
        x_tok = jnp.concatenate(
            [x_tok, jnp.zeros((pad, M, D), x_tok.dtype)], axis=0)
    n_steps = (N + pad) // block_b
    # Merge the per-step images into one token slab on the host (free reshape) so
    # the kernel's projection is a single (block_b*M, D) matmul.
    x_flat = x_tok.reshape(n_steps, block_b * M, D)

    kernel = functools.partial(_nextvlad_kernel, group=G, approx=approx_recip)

    cp_kwargs = dict(
        dimension_semantics=("parallel",),
        # Let XLA fuse the NCHW -> token transpose into the kernel's input DMA
        # instead of a separate HBM round trip.
        allow_input_fusion=[True, False, False],
    )
    if vmem_limit_bytes is not None:
        cp_kwargs["vmem_limit_bytes"] = vmem_limit_bytes

    out = pl.pallas_call(
        kernel,
        out_shape=jax.ShapeDtypeStruct((N + pad, K, d), jnp.float32),
        grid_spec=pltpu.PrefetchScalarGridSpec(
            num_scalar_prefetch=0,
            grid=(n_steps,),
            in_specs=[
                pl.BlockSpec((None, block_b * M, D), lambda n: (n, 0, 0)),
                pl.BlockSpec(w_big.shape, lambda n: (0, 0)),    # resident weights
                pl.BlockSpec(cent.shape, lambda n: (0, 0)),     # resident centroids
            ],
            out_specs=pl.BlockSpec((block_b, K, d), lambda n: (n, 0, 0)),
            scratch_shapes=[
                pltpu.VMEM((block_b * M, ED), mxu_dtype),       # grouped features
                pltpu.VMEM((block_b * M, GK), mxu_dtype),       # assign*attention weights
            ],
        ),
        compiler_params=pltpu.CompilerParams(**cp_kwargs),
    )(x_flat, w_big, cent)

    return out[:N]                       # (N, K, d) lane-dense, no post-kernel transpose


def reference(x, params, *, expansion, group, num_clusters):
    """Pure-JAX mirror of the PyTorch NextVLAD.forward semantics."""
    eps = 1e-12
    hp = jax.lax.Precision.HIGHEST
    N, D, H, W = x.shape
    M = H * W
    E, G, K = expansion, group, num_clusters
    ED = E * D
    d = ED // G
    xn = x / jnp.maximum(jnp.sqrt(jnp.sum(x * x, axis=1, keepdims=True)), eps)
    x_tok = jnp.transpose(xn, (0, 2, 3, 1)).reshape(N, M, D)
    y = jnp.einsum('nmc,ec->nme', x_tok, params['w1'], precision=hp)       # (N, M, ED)
    att = jax.nn.sigmoid(
        jnp.einsum('nme,ge->nmg', y, params['w2'], precision=hp))          # (N, M, G)
    yg = y.reshape(N, M, G, d)
    logits = jnp.einsum('nmgj,kj->nmgk', yg, params['wc'], precision=hp)   # (N, M, G, K)
    sa = jax.nn.softmax(logits, axis=-1)
    w = sa * att[..., None]                                                # (N, M, G, K)
    agg = jnp.einsum('nmgk,nmgj->nkj', w, yg, precision=hp)                # (N, K, d)
    ssum = jnp.sum(w, axis=(1, 2))                                         # (N, K)
    return agg - params['centroids'][None] * ssum[..., None]


if __name__ == "__main__":
    # Small shapes consistent with the module: batch=2, dim=32 input channels,
    # 16x16 spatial, expansion=2, group=4, num_clusters=8.
    N, D, H, W = 2, 32, 16, 16
    E, G, K = 2, 4, 8
    ED, d = E * D, E * D // G

    key = jax.random.PRNGKey(0)
    ks = jax.random.split(key, 5)
    params = dict(
        w1=jax.random.normal(ks[0], (ED, D), jnp.float32) * 0.2,     # nn.Linear(dim, E*dim)
        w2=jax.random.normal(ks[1], (G, ED), jnp.float32) * 0.2,     # nn.Linear(E*dim, group)
        wc=jax.random.normal(ks[2], (K, d), jnp.float32) * 0.5,      # Conv2d(d, K, 1x1)
        centroids=jax.random.uniform(ks[3], (K, d), jnp.float32),    # torch.rand init
    )
    x = jax.random.normal(ks[4], (N, D, H, W), jnp.float32)

    ref = reference(x, params, expansion=E, group=G, num_clusters=K)

    # Tight check: f32 MXU operands + exact reciprocals.
    out_f32 = jax.block_until_ready(
        nextvlad_forward(x, params, expansion=E, group=G, num_clusters=K,
                         mxu_dtype=jnp.float32, approx_recip=False))
    np.testing.assert_allclose(np.asarray(out_f32), np.asarray(ref),
                               atol=5e-3, rtol=5e-3)

    # Default production path: bf16 MXU operands + approximate EUP reciprocals
    # (f32 accumulation and f32 vector math), checked at a correspondingly
    # looser tolerance.
    out_bf16 = jax.block_until_ready(
        nextvlad_forward(x, params, expansion=E, group=G, num_clusters=K))
    np.testing.assert_allclose(np.asarray(out_bf16), np.asarray(ref),
                               atol=1e-1, rtol=2e-2)

    print("KERNEL_OK")
</pallas_src>

<mosaic_0001>
module attributes {stable_mosaic.version = 11 : i64} {
  func.func @_nextvlad_kernel(%arg0: i32, %arg1: memref<1x512x32xf32, #tpu.memory_space<vmem>>, %arg2: memref<32x100xf32, #tpu.memory_space<vmem>>, %arg3: memref<8x16xf32, #tpu.memory_space<vmem>>, %arg4: memref<2x8x16xf32, #tpu.memory_space<vmem>>, %arg5: memref<512x64xf32, #tpu.memory_space<vmem>>, %arg6: memref<512x32xf32, #tpu.memory_space<vmem>>) attributes {dimension_semantics = [#tpu.dimension_semantics<parallel>], iteration_bounds = array<i64: 1>, scalar_prefetch = 0 : i64, scratch_operands = 2 : i64, tpu.core_type = #tpu.core_type<tc>, window_params = [{transform_indices = @transform_0, window_bounds = array<i64: 1, 512, 32>}, {pipeline_mode = #tpu.pipeline_mode<synchronous>, transform_indices = @transform_1, window_bounds = array<i64: 32, 100>}, {pipeline_mode = #tpu.pipeline_mode<synchronous>, transform_indices = @transform_2, window_bounds = array<i64: 8, 16>}, {transform_indices = @transform_3, window_bounds = array<i64: 2, 8, 16>}]} {
    %c0 = arith.constant 0 : index
    %c0_0 = arith.constant 0 : index
    %0 = vector.load %arg2[%c0, %c0_0] : memref<32x100xf32, #tpu.memory_space<vmem>>, vector<32x100xf32>
    %c0_1 = arith.constant 0 : index
    %c0_2 = arith.constant 0 : index
    %1 = vector.load %arg3[%c0_1, %c0_2] : memref<8x16xf32, #tpu.memory_space<vmem>>, vector<8x16xf32>
    %c0_3 = arith.constant 0 : index
    %c0_4 = arith.constant 0 : index
    %c0_5 = arith.constant 0 : index
    %2 = vector.load %arg1[%c0_3, %c0_4, %c0_5] : memref<1x512x32xf32, #tpu.memory_space<vmem>>, vector<1x512x32xf32>
    %3 = vector.shape_cast %2 : vector<1x512x32xf32> to vector<512x32xf32>
    %4 = arith.mulf %3, %3 : vector<512x32xf32>
    %cst = arith.constant dense<0.000000e+00> : vector<512xf32>
    %5 = vector.multi_reduction <add>, %4, %cst [1] : vector<512x32xf32> to vector<512xf32>
    %6 = vector.shape_cast %5 : vector<512xf32> to vector<512x1xf32>
    %cst_6 = arith.constant 1.000000e-24 : f32
    %7 = vector.broadcast %cst_6 : f32 to vector<512x1xf32>
    %8 = arith.maximumf %6, %7 : vector<512x1xf32>
    %9 = math.rsqrt %8 : vector<512x1xf32>
    %10 = vector.broadcast %9 : vector<512x1xf32> to vector<512x32xf32>
    %11 = arith.mulf %3, %10 : vector<512x32xf32>
    %cst_7 = arith.constant dense<0.000000e+00> : vector<512x100xf32>
    %12 = tpu.matmul %11, %0, %cst_7 {dimension_numbers = #tpu.dot_dimension_numbers<[1], [0], [0], [1], [0, 0, 1, 1], [], []>} : vector<512x32xf32>, vector<32x100xf32>, vector<512x100xf32> -> vector<512x100xf32>
    %13 = vector.extract_strided_slice %12 {offsets = [0, 0], sizes = [512, 64], strides = [1, 1]} : vector<512x100xf32> to vector<512x64xf32>
    %c0_8 = arith.constant 0 : index
    %c0_9 = arith.constant 0 : index
    %14 = vector.load %arg5[%c0_8, %c0_9] : memref<512x64xf32, #tpu.memory_space<vmem>>, vector<512x64xf32>
    tpu.vector_store %arg5[%c0_8, %c0_9], %13 {strides = array<i32>} : memref<512x64xf32, #tpu.memory_space<vmem>>, vector<512x64xf32>,
    %15 = vector.extract_strided_slice %12 {offsets = [0, 96], sizes = [512, 4], strides = [1, 1]} : vector<512x100xf32> to vector<512x4xf32>
    %cst_10 = arith.constant 0.000000e+00 : f32
    %16 = vector.broadcast %cst_10 : f32 to vector<512x4xf32>
    %17 = arith.subf %16, %15 : vector<512x4xf32>
    %18 = math.exp %17 : vector<512x4xf32>
    %cst_11 = arith.constant 1.000000e+00 : f32
    %19 = vector.broadcast %cst_11 : f32 to vector<512x4xf32>
    %20 = arith.addf %19, %18 : vector<512x4xf32>
    %21 = tpu.reciprocal %20 : vector<512x4xf32> -> vector<512x4xf32>
    %22 = vector.extract_strided_slice %12 {offsets = [0, 64], sizes = [512, 32], strides = [1, 1]} : vector<512x100xf32> to vector<512x32xf32>
    %cst_12 = arith.constant dense<0xFF800000> : vector<512xf32>
    %23 = vector.multi_reduction <maximumf>, %22, %cst_12 [1] : vector<512x32xf32> to vector<512xf32>
    %24 = vector.shape_cast %23 : vector<512xf32> to vector<512x1xf32>
    %25 = vector.broadcast %24 : vector<512x1xf32> to vector<512x32xf32>
    %26 = arith.subf %22, %25 : vector<512x32xf32>
    %27 = math.exp %26 : vector<512x32xf32>
    %28 = vector.extract_strided_slice %27 {offsets = [0, 0], sizes = [512, 8], strides = [1, 1]} : vector<512x32xf32> to vector<512x8xf32>
    %cst_13 = arith.constant dense<0.000000e+00> : vector<512xf32>
    %29 = vector.multi_reduction <add>, %28, %cst_13 [1] : vector<512x8xf32> to vector<512xf32>
    %30 = vector.shape_cast %29 : vector<512xf32> to vector<512x1xf32>
    %31 = tpu.reciprocal %30 : vector<512x1xf32> -> vector<512x1xf32>
    %32 = vector.broadcast %31 : vector<512x1xf32> to vector<512x8xf32>
    %33 = arith.mulf %28, %32 : vector<512x8xf32>
    %34 = vector.extract_strided_slice %21 {offsets = [0, 0], sizes = [512, 1], strides = [1, 1]} : vector<512x4xf32> to vector<512x1xf32>
    %35 = vector.broadcast %34 : vector<512x1xf32> to vector<512x8xf32>
    %36 = arith.mulf %33, %35 : vector<512x8xf32>
    %37 = vector.extract_strided_slice %27 {offsets = [0, 8], sizes = [512, 8], strides = [1, 1]} : vector<512x32xf32> to vector<512x8xf32>
    %cst_14 = arith.constant dense<0.000000e+00> : vector<512xf32>
    %38 = vector.multi_reduction <add>, %37, %cst_14 [1] : vector<512x8xf32> to vector<512xf32>
    %39 = vector.shape_cast %38 : vector<512xf32> to vector<512x1xf32>
    %40 = tpu.reciprocal %39 : vector<512x1xf32> -> vector<512x1xf32>
    %41 = vector.broadcast %40 : vector<512x1xf32> to vector<512x8xf32>
    %42 = arith.mulf %37, %41 : vector<512x8xf32>
    %43 = vector.extract_strided_slice %21 {offsets = [0, 1], sizes = [512, 1], strides = [1, 1]} : vector<512x4xf32> to vector<512x1xf32>
    %44 = vector.broadcast %43 : vector<512x1xf32> to vector<512x8xf32>
    %45 = arith.mulf %42, %44 : vector<512x8xf32>
    %46 = vector.extract_strided_slice %27 {offsets = [0, 16], sizes = [512, 8], strides = [1, 1]} : vector<512x32xf32> to vector<512x8xf32>
    %cst_15 = arith.constant dense<0.000000e+00> : vector<512xf32>
    %47 = vector.multi_reduction <add>, %46, %cst_15 [1] : vector<512x8xf32> to vector<512xf32>
    %48 = vector.shape_cast %47 : vector<512xf32> to vector<512x1xf32>
    %49 = tpu.reciprocal %48 : vector<512x1xf32> -> vector<512x1xf32>
    %50 = vector.broadcast %49 : vector<512x1xf32> to vector<512x8xf32>
    %51 = arith.mulf %46, %50 : vector<512x8xf32>
    %52 = vector.extract_strided_slice %21 {offsets = [0, 2], sizes = [512, 1], strides = [1, 1]} : vector<512x4xf32> to vector<512x1xf32>
    %53 = vector.broadcast %52 : vector<512x1xf32> to vector<512x8xf32>
    %54 = arith.mulf %51, %53 : vector<512x8xf32>
    %55 = vector.extract_strided_slice %27 {offsets = [0, 24], sizes = [512, 8], strides = [1, 1]} : vector<512x32xf32> to vector<512x8xf32>
    %cst_16 = arith.constant dense<0.000000e+00> : vector<512xf32>
    %56 = vector.multi_reduction <add>, %55, %cst_16 [1] : vector<512x8xf32> to vector<512xf32>
    %57 = vector.shape_cast %56 : vector<512xf32> to vector<512x1xf32>
    %58 = tpu.reciprocal %57 : vector<512x1xf32> -> vector<512x1xf32>
    %59 = vector.broadcast %58 : vector<512x1xf32> to vector<512x8xf32>
    %60 = arith.mulf %55, %59 : vector<512x8xf32>
    %61 = vector.extract_strided_slice %21 {offsets = [0, 3], sizes = [512, 1], strides = [1, 1]} : vector<512x4xf32> to vector<512x1xf32>
    %62 = vector.broadcast %61 : vector<512x1xf32> to vector<512x8xf32>
    %63 = arith.mulf %60, %62 : vector<512x8xf32>
    %64 = tpu.concatenate %36, %45, %54, %63 in 1 : vector<512x8xf32>, vector<512x8xf32>, vector<512x8xf32>, vector<512x8xf32> -> vector<512x32xf32>
    %c0_17 = arith.constant 0 : index
    %c0_18 = arith.constant 0 : index
    %65 = vector.load %arg6[%c0_17, %c0_18] : memref<512x32xf32, #tpu.memory_space<vmem>>, vector<512x32xf32>
    tpu.vector_store %arg6[%c0_17, %c0_18], %64 {strides = array<i32>} : memref<512x32xf32, #tpu.memory_space<vmem>>, vector<512x32xf32>,
    %cst_19 = arith.constant 1.000000e+00 : f32
    %66 = vector.broadcast %cst_19 : f32 to vector<256x16xf32>
    %c0_i32 = arith.constant 0 : i32
    %c1_i32 = arith.constant 1 : i32
    %67 = arith.muli %c0_i32, %c1_i32 : i32
    %c0_i32_20 = arith.constant 0 : i32
    %68 = arith.addi %c0_i32_20, %67 : i32
    %c256_i32 = arith.constant 256 : i32
    %69 = arith.muli %68, %c256_i32 : i32
    %70 = tpu.assume_multiple %69, 128 : i32
    %71 = arith.index_cast %70 : i32 to index
    %c0_21 = arith.constant 0 : index
    %72 = vector.load %arg6[%71, %c0_21] : memref<512x32xf32, #tpu.memory_space<vmem>>, vector<256x32xf32>
    %73 = arith.index_cast %70 : i32 to index
    %c0_22 = arith.constant 0 : index
    %74 = vector.load %arg5[%73, %c0_22] : memref<512x64xf32, #tpu.memory_space<vmem>>, vector<256x64xf32>
    %cst_23 = arith.constant 0.000000e+00 : f32
    %75 = vector.broadcast %cst_23 : f32 to vector<8x16xf32>
    %cst_24 = arith.constant 0.000000e+00 : f32
    %76 = vector.broadcast %cst_24 : f32 to vector<256x8xf32>
    %77 = vector.extract_strided_slice %72 {offsets = [0, 0], sizes = [256, 8], strides = [1, 1]} : vector<256x32xf32> to vector<256x8xf32>
    %78 = vector.extract_strided_slice %74 {offsets = [0, 0], sizes = [256, 16], strides = [1, 1]} : vector<256x64xf32> to vector<256x16xf32>
    %cst_25 = arith.constant dense<0.000000e+00> : vector<8x16xf32>
    %79 = tpu.matmul %77, %78, %cst_25 {dimension_numbers = #tpu.dot_dimension_numbers<[0], [0], [1], [1], [0, 1, 1, 1], [], []>} : vector<256x8xf32>, vector<256x16xf32>, vector<8x16xf32> -> vector<8x16xf32>
    %80 = arith.addf %75, %79 : vector<8x16xf32>
    %81 = arith.addf %76, %77 : vector<256x8xf32>
    %82 = vector.extract_strided_slice %72 {offsets = [0, 8], sizes = [256, 8], strides = [1, 1]} : vector<256x32xf32> to vector<256x8xf32>
    %83 = vector.extract_strided_slice %74 {offsets = [0, 16], sizes = [256, 16], strides = [1, 1]} : vector<256x64xf32> to vector<256x16xf32>
    %cst_26 = arith.constant dense<0.000000e+00> : vector<8x16xf32>
    %84 = tpu.matmul %82, %83, %cst_26 {dimension_numbers = #tpu.dot_dimension_numbers<[0], [0], [1], [1], [0, 1, 1, 1], [], []>} : vector<256x8xf32>, vector<256x16xf32>, vector<8x16xf32> -> vector<8x16xf32>
    %85 = arith.addf %80, %84 : vector<8x16xf32>
    %86 = arith.addf %81, %82 : vector<256x8xf32>
    %87 = vector.extract_strided_slice %72 {offsets = [0, 16], sizes = [256, 8], strides = [1, 1]} : vector<256x32xf32> to vector<256x8xf32>
    %88 = vector.extract_strided_slice %74 {offsets = [0, 32], sizes = [256, 16], strides = [1, 1]} : vector<256x64xf32> to vector<256x16xf32>
    %cst_27 = arith.constant dense<0.000000e+00> : vector<8x16xf32>
    %89 = tpu.matmul %87, %88, %cst_27 {dimension_numbers = #tpu.dot_dimension_numbers<[0], [0], [1], [1], [0, 1, 1, 1], [], []>} : vector<256x8xf32>, vector<256x16xf32>, vector<8x16xf32> -> vector<8x16xf32>
    %90 = arith.addf %85, %89 : vector<8x16xf32>
    %91 = arith.addf %86, %87 : vector<256x8xf32>
    %92 = vector.extract_strided_slice %72 {offsets = [0, 24], sizes = [256, 8], strides = [1, 1]} : vector<256x32xf32> to vector<256x8xf32>
    %93 = vector.extract_strided_slice %74 {offsets = [0, 48], sizes = [256, 16], strides = [1, 1]} : vector<256x64xf32> to vector<256x16xf32>
    %cst_28 = arith.constant dense<0.000000e+00> : vector<8x16xf32>
    %94 = tpu.matmul %92, %93, %cst_28 {dimension_numbers = #tpu.dot_dimension_numbers<[0], [0], [1], [1], [0, 1, 1, 1], [], []>} : vector<256x8xf32>, vector<256x16xf32>, vector<8x16xf32> -> vector<8x16xf32>
    %95 = arith.addf %90, %94 : vector<8x16xf32>
    %96 = arith.addf %91, %92 : vector<256x8xf32>
    %cst_29 = arith.constant dense<0.000000e+00> : vector<8x16xf32>
    %97 = tpu.matmul %96, %66, %cst_29 {dimension_numbers = #tpu.dot_dimension_numbers<[0], [0], [1], [1], [0, 1, 1, 1], [], []>} : vector<256x8xf32>, vector<256x16xf32>, vector<8x16xf32> -> vector<8x16xf32>
    %98 = arith.mulf %1, %97 : vector<8x16xf32>
    %99 = arith.subf %95, %98 : vector<8x16xf32>
    %100 = arith.index_cast %68 : i32 to index
    %c0_30 = arith.constant 0 : index
    %c0_31 = arith.constant 0 : index
    %101 = vector.load %arg4[%100, %c0_30, %c0_31] : memref<2x8x16xf32, #tpu.memory_space<vmem>>, vector<1x8x16xf32>
    %102 = vector.shape_cast %101 : vector<1x8x16xf32> to vector<8x16xf32>
    %103 = vector.shape_cast %99 : vector<8x16xf32> to vector<1x8x16xf32>
    tpu.vector_store %arg4[%100, %c0_30, %c0_31], %103 {strides = array<i32>} : memref<2x8x16xf32, #tpu.memory_space<vmem>>, vector<1x8x16xf32>,
    %c1_i32_32 = arith.constant 1 : i32
    %c1_i32_33 = arith.constant 1 : i32
    %104 = arith.muli %c1_i32_32, %c1_i32_33 : i32
    %c0_i32_34 = arith.constant 0 : i32
    %105 = arith.addi %c0_i32_34, %104 : i32
    %c256_i32_35 = arith.constant 256 : i32
    %106 = arith.muli %105, %c256_i32_35 : i32
    %107 = tpu.assume_multiple %106, 128 : i32
    %108 = arith.index_cast %107 : i32 to index
    %c0_36 = arith.constant 0 : index
    %109 = vector.load %arg6[%108, %c0_36] : memref<512x32xf32, #tpu.memory_space<vmem>>, vector<256x32xf32>
    %110 = arith.index_cast %107 : i32 to index
    %c0_37 = arith.constant 0 : index
    %111 = vector.load %arg5[%110, %c0_37] : memref<512x64xf32, #tpu.memory_space<vmem>>, vector<256x64xf32>
    %cst_38 = arith.constant 0.000000e+00 : f32
    %112 = vector.broadcast %cst_38 : f32 to vector<8x16xf32>
    %cst_39 = arith.constant 0.000000e+00 : f32
    %113 = vector.broadcast %cst_39 : f32 to vector<256x8xf32>
    %114 = vector.extract_strided_slice %109 {offsets = [0, 0], sizes = [256, 8], strides = [1, 1]} : vector<256x32xf32> to vector<256x8xf32>
    %115 = vector.extract_strided_slice %111 {offsets = [0, 0], sizes = [256, 16], strides = [1, 1]} : vector<256x64xf32> to vector<256x16xf32>
    %cst_40 = arith.constant dense<0.000000e+00> : vector<8x16xf32>
    %116 = tpu.matmul %114, %115, %cst_40 {dimension_numbers = #tpu.dot_dimension_numbers<[0], [0], [1], [1], [0, 1, 1, 1], [], []>} : vector<256x8xf32>, vector<256x16xf32>, vector<8x16xf32> -> vector<8x16xf32>
    %117 = arith.addf %112, %116 : vector<8x16xf32>
    %118 = arith.addf %113, %114 : vector<256x8xf32>
    %119 = vector.extract_strided_slice %109 {offsets = [0, 8], sizes = [256, 8], strides = [1, 1]} : vector<256x32xf32> to vector<256x8xf32>
    %120 = vector.extract_strided_slice %111 {offsets = [0, 16], sizes = [256, 16], strides = [1, 1]} : vector<256x64xf32> to vector<256x16xf32>
    %cst_41 = arith.constant dense<0.000000e+00> : vector<8x16xf32>
    %121 = tpu.matmul %119, %120, %cst_41 {dimension_numbers = #tpu.dot_dimension_numbers<[0], [0], [1], [1], [0, 1, 1, 1], [], []>} : vector<256x8xf32>, vector<256x16xf32>, vector<8x16xf32> -> vector<8x16xf32>
    %122 = arith.addf %117, %121 : vector<8x16xf32>
    %123 = arith.addf %118, %119 : vector<256x8xf32>
    %124 = vector.extract_strided_slice %109 {offsets = [0, 16], sizes = [256, 8], strides = [1, 1]} : vector<256x32xf32> to vector<256x8xf32>
    %125 = vector.extract_strided_slice %111 {offsets = [0, 32], sizes = [256, 16], strides = [1, 1]} : vector<256x64xf32> to vector<256x16xf32>
    %cst_42 = arith.constant dense<0.000000e+00> : vector<8x16xf32>
    %126 = tpu.matmul %124, %125, %cst_42 {dimension_numbers = #tpu.dot_dimension_numbers<[0], [0], [1], [1], [0, 1, 1, 1], [], []>} : vector<256x8xf32>, vector<256x16xf32>, vector<8x16xf32> -> vector<8x16xf32>
    %127 = arith.addf %122, %126 : vector<8x16xf32>
    %128 = arith.addf %123, %124 : vector<256x8xf32>
    %129 = vector.extract_strided_slice %109 {offsets = [0, 24], sizes = [256, 8], strides = [1, 1]} : vector<256x32xf32> to vector<256x8xf32>
    %130 = vector.extract_strided_slice %111 {offsets = [0, 48], sizes = [256, 16], strides = [1, 1]} : vector<256x64xf32> to vector<256x16xf32>
    %cst_43 = arith.constant dense<0.000000e+00> : vector<8x16xf32>
    %131 = tpu.matmul %129, %130, %cst_43 {dimension_numbers = #tpu.dot_dimension_numbers<[0], [0], [1], [1], [0, 1, 1, 1], [], []>} : vector<256x8xf32>, vector<256x16xf32>, vector<8x16xf32> -> vector<8x16xf32>
    %132 = arith.addf %127, %131 : vector<8x16xf32>
    %133 = arith.addf %128, %129 : vector<256x8xf32>
    %cst_44 = arith.constant dense<0.000000e+00> : vector<8x16xf32>
    %134 = tpu.matmul %133, %66, %cst_44 {dimension_numbers = #tpu.dot_dimension_numbers<[0], [0], [1], [1], [0, 1, 1, 1], [], []>} : vector<256x8xf32>, vector<256x16xf32>, vector<8x16xf32> -> vector<8x16xf32>
    %135 = arith.mulf %1, %134 : vector<8x16xf32>
    %136 = arith.subf %132, %135 : vector<8x16xf32>
    %137 = arith.index_cast %105 : i32 to index
    %c0_45 = arith.constant 0 : index
    %c0_46 = arith.constant 0 : index
    %138 = vector.load %arg4[%137, %c0_45, %c0_46] : memref<2x8x16xf32, #tpu.memory_space<vmem>>, vector<1x8x16xf32>
    %139 = vector.shape_cast %138 : vector<1x8x16xf32> to vector<8x16xf32>
    %140 = vector.shape_cast %136 : vector<8x16xf32> to vector<1x8x16xf32>
    tpu.vector_store %arg4[%137, %c0_45, %c0_46], %140 {strides = array<i32>} : memref<2x8x16xf32, #tpu.memory_space<vmem>>, vector<1x8x16xf32>,
    %c2_i32 = arith.constant 2 : i32
    return
  }
  func.func @transform_0(%arg0: i32) -> (i32, i32, i32) {
    %c0_i32 = arith.constant 0 : i32
    %c0_i32_0 = arith.constant 0 : i32
    %c0_i32_1 = arith.constant 0 : i32
    return %arg0, %c0_i32, %c0_i32_0 : i32, i32, i32
  }
  func.func @transform_1(%arg0: i32) -> (i32, i32) {
    %c0_i32 = arith.constant 0 : i32
    %c0_i32_0 = arith.constant 0 : i32
    %c0_i32_1 = arith.constant 0 : i32
    return %c0_i32, %c0_i32_0 : i32, i32
  }
  func.func @transform_2(%arg0: i32) -> (i32, i32) {
    %c0_i32 = arith.constant 0 : i32
    %c0_i32_0 = arith.constant 0 : i32
    %c0_i32_1 = arith.constant 0 : i32
    return %c0_i32, %c0_i32_0 : i32, i32
  }
  func.func @transform_3(%arg0: i32) -> (i32, i32, i32) {
    %c0_i32 = arith.constant 0 : i32
    %c0_i32_0 = arith.constant 0 : i32
    %c0_i32_1 = arith.constant 0 : i32
    return %arg0, %c0_i32, %c0_i32_0 : i32, i32, i32
  }
}

</mosaic_0001>

<llo_original>
// kernel: tpu_custom_call.1
$region0: #{tpu_custom_call.1}
  #allocation0 [shape = 'u32[]', space=smem, size = 0x4, offset = 0x4, fixed_abs, tag = 'smem constant byte address 0x4 - core index']
  #allocation1 [shape = 'u32[144,128]{1,0:T(1,128)}', space=vmem, size = 0x12000, scoped, tag = 'internal scratch']
  #allocation2 [shape = 'f32[512,64]{1,0:T(8,128)}', space=vmem, size = 0x40000, scoped, tag = 'scratch operand']
  #allocation3 [shape = 'f32[512,32]{1,0:T(8,128)}', space=vmem, size = 0x40000, scoped, tag = 'scratch operand']
  %s0 = inlined_call_operand.vmem [shape: f32[1,512,32], index: 0, kind: input, shape index: {}]
  %s1 = inlined_call_operand.vmem [shape: f32[32,100], index: 1, kind: input, shape index: {}]
  %s2 = inlined_call_operand.vmem [shape: f32[8,16], index: 2, kind: input, shape index: {}]
  %s3 = inlined_call_operand.hbm [shape: f32[2,8,16], index: 3, kind: output, shape index: {}]
  %s4 = sld [smem:[#allocation0]]
  $region22: #{tpu_custom_call.1} parent=0
    _
  %s6 = ssub.s32 1, %s4
  %s7 = scalar_select 0, %s6, %s4
  $region1: #{tpu_custom_call.1} parent=0
    #allocation4 [shape = 'u8[8192]{0}', space=vmem, size = 0x2000, scoped, tag = 'output window, operand 0, single buffered']
    #allocation5 [shape = 's32[1]{0}', space=sflag, size = 0x4, scoped, tag = 'scoped memory for tpu_custom_call.1']
    %8 = vsyncpa [#allocation5], 0
    // Predicated region
    $region2: #{tpu_custom_call.1} parent=1 // pred_check
      _
    $region3: #{tpu_custom_call.1} parent=1 // pred_check_branch
      %10 = sbr.rel (0) target = $region5
    $region4: #{tpu_custom_call.1} parent=1 // pred_region
      _
    $region5: #{tpu_custom_call.1} parent=1 // pred_fallthru
      _
    // Predicated region
    $region6: #{tpu_custom_call.1} parent=1 // pred_check
      _
    $region7: #{tpu_custom_call.1} parent=1 // pred_check_branch
      %12 = sbr.rel (0) target = $region9
    $region8: #{tpu_custom_call.1} parent=1 // pred_region
      _
    $region9: #{tpu_custom_call.1} parent=1 // pred_fallthru
      _
    // Predicated region
    $region10: #{tpu_custom_call.1} parent=1 // pred_check
      _
    $region11: #{tpu_custom_call.1} parent=1 // pred_check_branch
      %14 = sbr.rel (0) target = $region13
    $region12: #{tpu_custom_call.1} parent=1 // pred_region
      _
    $region13: #{tpu_custom_call.1} parent=1 // pred_fallthru
      _
    %v15 = vld [vmem:[%s1] sm:$0xff]
    %v16 = vld [vmem:[%s1 + $0x8] sm:$0xff]
    %v17 = vld [vmem:[%s1 + $0x10] sm:$0xff]
    %v18 = vld [vmem:[%s1 + $0x18] sm:$0xff]
    %v19 = vld [vmem:[%s2] sm:$0xff]
    %v20 = vld [vmem:[%s0] sm:$0xff]
    %v21 = vld [vmem:[%s0 + $0x8] sm:$0xff]
    %v22 = vld [vmem:[%s0 + $0x10] sm:$0xff]
    %v23 = vld [vmem:[%s0 + $0x18] sm:$0xff]
    %v24 = vld [vmem:[%s0 + $0x20] sm:$0xff]
    %v25 = vld [vmem:[%s0 + $0x28] sm:$0xff]
    %v26 = vld [vmem:[%s0 + $0x30] sm:$0xff]
    %v27 = vld [vmem:[%s0 + $0x38] sm:$0xff]
    %v28 = vld [vmem:[%s0 + $0x40] sm:$0xff]
    %v29 = vld [vmem:[%s0 + $0x48] sm:$0xff]
    %v30 = vld [vmem:[%s0 + $0x50] sm:$0xff]
    %v31 = vld [vmem:[%s0 + $0x58] sm:$0xff]
    %v32 = vld [vmem:[%s0 + $0x60] sm:$0xff]
    %v33 = vld [vmem:[%s0 + $0x68] sm:$0xff]
    %v34 = vld [vmem:[%s0 + $0x70] sm:$0xff]
    %v35 = vld [vmem:[%s0 + $0x78] sm:$0xff]
    %v36 = vld [vmem:[%s0 + $0x80] sm:$0xff]
    %v37 = vld [vmem:[%s0 + $0x88] sm:$0xff]
    %v38 = vld [vmem:[%s0 + $0x90] sm:$0xff]
    %v39 = vld [vmem:[%s0 + $0x98] sm:$0xff]
    %v40 = vld [vmem:[%s0 + $0xa0] sm:$0xff]
    %v41 = vld [vmem:[%s0 + $0xa8] sm:$0xff]
    %v42 = vld [vmem:[%s0 + $0xb0] sm:$0xff]
    %v43 = vld [vmem:[%s0 + $0xb8] sm:$0xff]
    %v44 = vld [vmem:[%s0 + $0xc0] sm:$0xff]
    %v45 = vld [vmem:[%s0 + $0xc8] sm:$0xff]
    %v46 = vld [vmem:[%s0 + $0xd0] sm:$0xff]
    %v47 = vld [vmem:[%s0 + $0xd8] sm:$0xff]
    %v48 = vld [vmem:[%s0 + $0xe0] sm:$0xff]
    %v49 = vld [vmem:[%s0 + $0xe8] sm:$0xff]
    %v50 = vld [vmem:[%s0 + $0xf0] sm:$0xff]
    %v51 = vld [vmem:[%s0 + $0xf8] sm:$0xff]
    %v52 = vld [vmem:[%s0 + $0x100] sm:$0xff]
    %v53 = vld [vmem:[%s0 + $0x108] sm:$0xff]
    %v54 = vld [vmem:[%s0 + $0x110] sm:$0xff]
    %v55 = vld [vmem:[%s0 + $0x118] sm:$0xff]
    %v56 = vld [vmem:[%s0 + $0x120] sm:$0xff]
    %v57 = vld [vmem:[%s0 + $0x128] sm:$0xff]
    %v58 = vld [vmem:[%s0 + $0x130] sm:$0xff]
    %v59 = vld [vmem:[%s0 + $0x138] sm:$0xff]
    %v60 = vld [vmem:[%s0 + $0x140] sm:$0xff]
    %v61 = vld [vmem:[%s0 + $0x148] sm:$0xff]
    %v62 = vld [vmem:[%s0 + $0x150] sm:$0xff]
    %v63 = vld [vmem:[%s0 + $0x158] sm:$0xff]
    %v64 = vld [vmem:[%s0 + $0x160] sm:$0xff]
    %v65 = vld [vmem:[%s0 + $0x168] sm:$0xff]
    %v66 = vld [vmem:[%s0 + $0x170] sm:$0xff]
    %v67 = vld [vmem:[%s0 + $0x178] sm:$0xff]
    %v68 = vld [vmem:[%s0 + $0x180] sm:$0xff]
    %v69 = vld [vmem:[%s0 + $0x188] sm:$0xff]
    %v70 = vld [vmem:[%s0 + $0x190] sm:$0xff]
    %v71 = vld [vmem:[%s0 + $0x198] sm:$0xff]
    %v72 = vld [vmem:[%s0 + $0x1a0] sm:$0xff]
    %v73 = vld [vmem:[%s0 + $0x1a8] sm:$0xff]
    %v74 = vld [vmem:[%s0 + $0x1b0] sm:$0xff]
    %v75 = vld [vmem:[%s0 + $0x1b8] sm:$0xff]
    %v76 = vld [vmem:[%s0 + $0x1c0] sm:$0xff]
    %v77 = vld [vmem:[%s0 + $0x1c8] sm:$0xff]
    %v78 = vld [vmem:[%s0 + $0x1d0] sm:$0xff]
    %v79 = vld [vmem:[%s0 + $0x1d8] sm:$0xff]
    %v80 = vld [vmem:[%s0 + $0x1e0] sm:$0xff]
    %v81 = vld [vmem:[%s0 + $0x1e8] sm:$0xff]
    %v82 = vld [vmem:[%s0 + $0x1f0] sm:$0xff]
    %v83 = vld [vmem:[%s0 + $0x1f8] sm:$0xff]
    %v84 = vmul.f32 %v20, %v20
    %v85 = vmul.f32 %v21, %v21
    %v86 = vmul.f32 %v22, %v22
    %v87 = vmul.f32 %v23, %v23
    %v88 = vmul.f32 %v24, %v24
    %v89 = vmul.f32 %v25, %v25
    %v90 = vmul.f32 %v26, %v26
    %v91 = vmul.f32 %v27, %v27
    %v92 = vmul.f32 %v28, %v28
    %v93 = vmul.f32 %v29, %v29
    %v94 = vmul.f32 %v30, %v30
    %v95 = vmul.f32 %v31, %v31
    %v96 = vmul.f32 %v32, %v32
    %v97 = vmul.f32 %v33, %v33
    %v98 = vmul.f32 %v34, %v34
    %v99 = vmul.f32 %v35, %v35
    %v100 = vmul.f32 %v36, %v36
    %v101 = vmul.f32 %v37, %v37
    %v102 = vmul.f32 %v38, %v38
    %v103 = vmul.f32 %v39, %v39
    %v104 = vmul.f32 %v40, %v40
    %v105 = vmul.f32 %v41, %v41
    %v106 = vmul.f32 %v42, %v42
    %v107 = vmul.f32 %v43, %v43
    %v108 = vmul.f32 %v44, %v44
    %v109 = vmul.f32 %v45, %v45
    %v110 = vmul.f32 %v46, %v46
    %v111 = vmul.f32 %v47, %v47
    %v112 = vmul.f32 %v48, %v48
    %v113 = vmul.f32 %v49, %v49
    %v114 = vmul.f32 %v50, %v50
    %v115 = vmul.f32 %v51, %v51
    %v116 = vmul.f32 %v52, %v52
    %v117 = vmul.f32 %v53, %v53
    %v118 = vmul.f32 %v54, %v54
    %v119 = vmul.f32 %v55, %v55
    %v120 = vmul.f32 %v56, %v56
    %v121 = vmul.f32 %v57, %v57
    %v122 = vmul.f32 %v58, %v58
    %v123 = vmul.f32 %v59, %v59
    %v124 = vmul.f32 %v60, %v60
    %v125 = vmul.f32 %v61, %v61
    %v126 = vmul.f32 %v62, %v62
    %v127 = vmul.f32 %v63, %v63
    %v128 = vmul.f32 %v64, %v64
    %v129 = vmul.f32 %v65, %v65
    %v130 = vmul.f32 %v66, %v66
    %v131 = vmul.f32 %v67, %v67
    %v132 = vmul.f32 %v68, %v68
    %v133 = vmul.f32 %v69, %v69
    %v134 = vmul.f32 %v70, %v70
    %v135 = vmul.f32 %v71, %v71
    %v136 = vmul.f32 %v72, %v72
    %v137 = vmul.f32 %v73, %v73
    %v138 = vmul.f32 %v74, %v74
    %v139 = vmul.f32 %v75, %v75
    %v140 = vmul.f32 %v76, %v76
    %v141 = vmul.f32 %v77, %v77
    %v142 = vmul.f32 %v78, %v78
    %v143 = vmul.f32 %v79, %v79
    %v144 = vmul.f32 %v80, %v80
    %v145 = vmul.f32 %v81, %v81
    %v146 = vmul.f32 %v82, %v82
    %v147 = vmul.f32 %v83, %v83
    %vm148 = vcmask 261120
    %v149 = vsel %vm148, %v84, 0.0
    %150 = vadd.xlane.f32.xlu0 %v149
    %v151 = vpop.xlane.xlu0 %150
    %v152 = vsel %vm148, %v85, 0.0
    %153 = vadd.xlane.f32.xlu0 %v152
    %v154 = vpop.xlane.xlu0 %153
    %v155 = vsel %vm148, %v86, 0.0
    %156 = vadd.xlane.f32.xlu0 %v155
    %v157 = vpop.xlane.xlu0 %156
    %v158 = vsel %vm148, %v87, 0.0
    %159 = vadd.xlane.f32.xlu0 %v158
    %v160 = vpop.xlane.xlu0 %159
    %v161 = vsel %vm148, %v88, 0.0
    %162 = vadd.xlane.f32.xlu0 %v161
    %v163 = vpop.xlane.xlu0 %162
    %v164 = vsel %vm148, %v89, 0.0
    %165 = vadd.xlane.f32.xlu0 %v164
    %v166 = vpop.xlane.xlu0 %165
    %v167 = vsel %vm148, %v90, 0.0
    %168 = vadd.xlane.f32.xlu0 %v167
    %v169 = vpop.xlane.xlu0 %168
    %v170 = vsel %vm148, %v91, 0.0
    %171 = vadd.xlane.f32.xlu0 %v170
    %v172 = vpop.xlane.xlu0 %171
    %v173 = vsel %vm148, %v92, 0.0
    %174 = vadd.xlane.f32.xlu0 %v173
    %v175 = vpop.xlane.xlu0 %174
    %v176 = vsel %vm148, %v93, 0.0
    %177 = vadd.xlane.f32.xlu0 %v176
    %v178 = vpop.xlane.xlu0 %177
    %v179 = vsel %vm148, %v94, 0.0
    %180 = vadd.xlane.f32.xlu0 %v179
    %v181 = vpop.xlane.xlu0 %180
    %v182 = vsel %vm148, %v95, 0.0
    %183 = vadd.xlane.f32.xlu0 %v182
    %v184 = vpop.xlane.xlu0 %183
    %v185 = vsel %vm148, %v96, 0.0
    %186 = vadd.xlane.f32.xlu0 %v185
    %v187 = vpop.xlane.xlu0 %186
    %v188 = vsel %vm148, %v97, 0.0
    %189 = vadd.xlane.f32.xlu0 %v188
    %v190 = vpop.xlane.xlu0 %189
    %v191 = vsel %vm148, %v98, 0.0
    %192 = vadd.xlane.f32.xlu0 %v191
    %v193 = vpop.xlane.xlu0 %192
    %v194 = vsel %vm148, %v99, 0.0
    %195 = vadd.xlane.f32.xlu0 %v194
    %v196 = vpop.xlane.xlu0 %195
    %v197 = vsel %vm148, %v100, 0.0
    %198 = vadd.xlane.f32.xlu0 %v197
    %v199 = vpop.xlane.xlu0 %198
    %v200 = vsel %vm148, %v101, 0.0
    %201 = vadd.xlane.f32.xlu0 %v200
    %v202 = vpop.xlane.xlu0 %201
    %v203 = vsel %vm148, %v102, 0.0
    %204 = vadd.xlane.f32.xlu0 %v203
    %v205 = vpop.xlane.xlu0 %204
    %v206 = vsel %vm148, %v103, 0.0
    %207 = vadd.xlane.f32.xlu0 %v206
    %v208 = vpop.xlane.xlu0 %207
    %v209 = vsel %vm148, %v104, 0.0
    %210 = vadd.xlane.f32.xlu0 %v209
    %v211 = vpop.xlane.xlu0 %210
    %v212 = vsel %vm148, %v105, 0.0
    %213 = vadd.xlane.f32.xlu0 %v212
    %v214 = vpop.xlane.xlu0 %213
    %v215 = vsel %vm148, %v106, 0.0
    %216 = vadd.xlane.f32.xlu0 %v215
    %v217 = vpop.xlane.xlu0 %216
    %v218 = vsel %vm148, %v107, 0.0
    %219 = vadd.xlane.f32.xlu0 %v218
    %v220 = vpop.xlane.xlu0 %219
    %v221 = vsel %vm148, %v108, 0.0
    %222 = vadd.xlane.f32.xlu0 %v221
    %v223 = vpop.xlane.xlu0 %222
    %v224 = vsel %vm148, %v109, 0.0
    %225 = vadd.xlane.f32.xlu0 %v224
    %v226 = vpop.xlane.xlu0 %225
    %v227 = vsel %vm148, %v110, 0.0
    %228 = vadd.xlane.f32.xlu0 %v227
    %v229 = vpop.xlane.xlu0 %228
    %v230 = vsel %vm148, %v111, 0.0
    %231 = vadd.xlane.f32.xlu0 %v230
    %v232 = vpop.xlane.xlu0 %231
    %v233 = vsel %vm148, %v112, 0.0
    %234 = vadd.xlane.f32.xlu0 %v233
    %v235 = vpop.xlane.xlu0 %234
    %v236 = vsel %vm148, %v113, 0.0
    %237 = vadd.xlane.f32.xlu0 %v236
    %v238 = vpop.xlane.xlu0 %237
    %v239 = vsel %vm148, %v114, 0.0
    %240 = vadd.xlane.f32.xlu0 %v239
    %v241 = vpop.xlane.xlu0 %240
    %v242 = vsel %vm148, %v115, 0.0
    %243 = vadd.xlane.f32.xlu0 %v242
    %v244 = vpop.xlane.xlu0 %243
    %v245 = vsel %vm148, %v116, 0.0
    %246 = vadd.xlane.f32.xlu0 %v245
    %v247 = vpop.xlane.xlu0 %246
    %v248 = vsel %vm148, %v117, 0.0
    %249 = vadd.xlane.f32.xlu0 %v248
    %v250 = vpop.xlane.xlu0 %249
    %v251 = vsel %vm148, %v118, 0.0
    %252 = vadd.xlane.f32.xlu0 %v251
    %v253 = vpop.xlane.xlu0 %252
    %v254 = vsel %vm148, %v119, 0.0
    %255 = vadd.xlane.f32.xlu0 %v254
    %v256 = vpop.xlane.xlu0 %255
    %v257 = vsel %vm148, %v120, 0.0
    %258 = vadd.xlane.f32.xlu0 %v257
    %v259 = vpop.xlane.xlu0 %258
    %v260 = vsel %vm148, %v121, 0.0
    %261 = vadd.xlane.f32.xlu0 %v260
    %v262 = vpop.xlane.xlu0 %261
    %v263 = vsel %vm148, %v122, 0.0
    %264 = vadd.xlane.f32.xlu0 %v263
    %v265 = vpop.xlane.xlu0 %264
    %v266 = vsel %vm148, %v123, 0.0
    %267 = vadd.xlane.f32.xlu0 %v266
    %v268 = vpop.xlane.xlu0 %267
    %v269 = vsel %vm148, %v124, 0.0
    %270 = vadd.xlane.f32.xlu0 %v269
    %v271 = vpop.xlane.xlu0 %270
    %v272 = vsel %vm148, %v125, 0.0
    %273 = vadd.xlane.f32.xlu0 %v272
    %v274 = vpop.xlane.xlu0 %273
    %v275 = vsel %vm148, %v126, 0.0
    %276 = vadd.xlane.f32.xlu0 %v275
    %v277 = vpop.xlane.xlu0 %276
    %v278 = vsel %vm148, %v127, 0.0
    %279 = vadd.xlane.f32.xlu0 %v278
    %v280 = vpop.xlane.xlu0 %279
    %v281 = vsel %vm148, %v128, 0.0
    %282 = vadd.xlane.f32.xlu0 %v281
    %v283 = vpop.xlane.xlu0 %282
    %v284 = vsel %vm148, %v129, 0.0
    %285 = vadd.xlane.f32.xlu0 %v284
    %v286 = vpop.xlane.xlu0 %285
    %v287 = vsel %vm148, %v130, 0.0
    %288 = vadd.xlane.f32.xlu0 %v287
    %v289 = vpop.xlane.xlu0 %288
    %v290 = vsel %vm148, %v131, 0.0
    %291 = vadd.xlane.f32.xlu0 %v290
    %v292 = vpop.xlane.xlu0 %291
    %v293 = vsel %vm148, %v132, 0.0
    %294 = vadd.xlane.f32.xlu0 %v293
    %v295 = vpop.xlane.xlu0 %294
    %v296 = vsel %vm148, %v133, 0.0
    %297 = vadd.xlane.f32.xlu0 %v296
    %v298 = vpop.xlane.xlu0 %297
    %v299 = vsel %vm148, %v134, 0.0
    %300 = vadd.xlane.f32.xlu0 %v299
    %v301 = vpop.xlane.xlu0 %300
    %v302 = vsel %vm148, %v135, 0.0
    %303 = vadd.xlane.f32.xlu0 %v302
    %v304 = vpop.xlane.xlu0 %303
    %v305 = vsel %vm148, %v136, 0.0
    %306 = vadd.xlane.f32.xlu0 %v305
    %v307 = vpop.xlane.xlu0 %306
    %v308 = vsel %vm148, %v137, 0.0
    %309 = vadd.xlane.f32.xlu0 %v308
    %v310 = vpop.xlane.xlu0 %309
    %v311 = vsel %vm148, %v138, 0.0
    %312 = vadd.xlane.f32.xlu0 %v311
    %v313 = vpop.xlane.xlu0 %312
    %v314 = vsel %vm148, %v139, 0.0
    %315 = vadd.xlane.f32.xlu0 %v314
    %v316 = vpop.xlane.xlu0 %315
    %v317 = vsel %vm148, %v140, 0.0
    %318 = vadd.xlane.f32.xlu0 %v317
    %v319 = vpop.xlane.xlu0 %318
    %v320 = vsel %vm148, %v141, 0.0
    %321 = vadd.xlane.f32.xlu0 %v320
    %v322 = vpop.xlane.xlu0 %321
    %v323 = vsel %vm148, %v142, 0.0
    %324 = vadd.xlane.f32.xlu0 %v323
    %v325 = vpop.xlane.xlu0 %324
    %v326 = vsel %vm148, %v143, 0.0
    %327 = vadd.xlane.f32.xlu0 %v326
    %v328 = vpop.xlane.xlu0 %327
    %v329 = vsel %vm148, %v144, 0.0
    %330 = vadd.xlane.f32.xlu0 %v329
    %v331 = vpop.xlane.xlu0 %330
    %v332 = vsel %vm148, %v145, 0.0
    %333 = vadd.xlane.f32.xlu0 %v332
    %v334 = vpop.xlane.xlu0 %333
    %v335 = vsel %vm148, %v146, 0.0
    %336 = vadd.xlane.f32.xlu0 %v335
    %v337 = vpop.xlane.xlu0 %336
    %v338 = vsel %vm148, %v147, 0.0
    %339 = vadd.xlane.f32.xlu0 %v338
    %v340 = vpop.xlane.xlu0 %339
    %v341 = vmax.f32 %v151, 1e-24
    %v342 = vmax.f32 %v154, 1e-24
    %v343 = vmax.f32 %v157, 1e-24
    %v344 = vmax.f32 %v160, 1e-24
    %v345 = vmax.f32 %v163, 1e-24
    %v346 = vmax.f32 %v166, 1e-24
    %v347 = vmax.f32 %v169, 1e-24
    %v348 = vmax.f32 %v172, 1e-24
    %v349 = vmax.f32 %v175, 1e-24
    %v350 = vmax.f32 %v178, 1e-24
    %v351 = vmax.f32 %v181, 1e-24
    %v352 = vmax.f32 %v184, 1e-24
    %v353 = vmax.f32 %v187, 1e-24
    %v354 = vmax.f32 %v190, 1e-24
    %v355 = vmax.f32 %v193, 1e-24
    %v356 = vmax.f32 %v196, 1e-24
    %v357 = vmax.f32 %v199, 1e-24
    %v358 = vmax.f32 %v202, 1e-24
    %v359 = vmax.f32 %v205, 1e-24
    %v360 = vmax.f32 %v208, 1e-24
    %v361 = vmax.f32 %v211, 1e-24
    %v362 = vmax.f32 %v214, 1e-24
    %v363 = vmax.f32 %v217, 1e-24
    %v364 = vmax.f32 %v220, 1e-24
    %v365 = vmax.f32 %v223, 1e-24
    %v366 = vmax.f32 %v226, 1e-24
    %v367 = vmax.f32 %v229, 1e-24
    %v368 = vmax.f32 %v232, 1e-24
    %v369 = vmax.f32 %v235, 1e-24
    %v370 = vmax.f32 %v238, 1e-24
    %v371 = vmax.f32 %v241, 1e-24
    %v372 = vmax.f32 %v244, 1e-24
    %v373 = vmax.f32 %v247, 1e-24
    %v374 = vmax.f32 %v250, 1e-24
    %v375 = vmax.f32 %v253, 1e-24
    %v376 = vmax.f32 %v256, 1e-24
    %v377 = vmax.f32 %v259, 1e-24
    %v378 = vmax.f32 %v262, 1e-24
    %v379 = vmax.f32 %v265, 1e-24
    %v380 = vmax.f32 %v268, 1e-24
    %v381 = vmax.f32 %v271, 1e-24
    %v382 = vmax.f32 %v274, 1e-24
    %v383 = vmax.f32 %v277, 1e-24
    %v384 = vmax.f32 %v280, 1e-24
    %v385 = vmax.f32 %v283, 1e-24
    %v386 = vmax.f32 %v286, 1e-24
    %v387 = vmax.f32 %v289, 1e-24
    %v388 = vmax.f32 %v292, 1e-24
    %v389 = vmax.f32 %v295, 1e-24
    %v390 = vmax.f32 %v298, 1e-24
    %v391 = vmax.f32 %v301, 1e-24
    %v392 = vmax.f32 %v304, 1e-24
    %v393 = vmax.f32 %v307, 1e-24
    %v394 = vmax.f32 %v310, 1e-24
    %v395 = vmax.f32 %v313, 1e-24
    %v396 = vmax.f32 %v316, 1e-24
    %v397 = vmax.f32 %v319, 1e-24
    %v398 = vmax.f32 %v322, 1e-24
    %v399 = vmax.f32 %v325, 1e-24
    %v400 = vmax.f32 %v328, 1e-24
    %v401 = vmax.f32 %v331, 1e-24
    %v402 = vmax.f32 %v334, 1e-24
    %v403 = vmax.f32 %v337, 1e-24
    %v404 = vmax.f32 %v340, 1e-24
    %v405 = vrsqrt.pop %v341
    %v406 = vrsqrt.pop %v342
    %v407 = vrsqrt.pop %v343
    %v408 = vrsqrt.pop %v344
    %v409 = vrsqrt.pop %v345
    %v410 = vrsqrt.pop %v346
    %v411 = vrsqrt.pop %v347
    %v412 = vrsqrt.pop %v348
    %v413 = vrsqrt.pop %v349
    %v414 = vrsqrt.pop %v350
    %v415 = vrsqrt.pop %v351
    %v416 = vrsqrt.pop %v352
    %v417 = vrsqrt.pop %v353
    %v418 = vrsqrt.pop %v354
    %v419 = vrsqrt.pop %v355
    %v420 = vrsqrt.pop %v356
    %v421 = vrsqrt.pop %v357
    %v422 = vrsqrt.pop %v358
    %v423 = vrsqrt.pop %v359
    %v424 = vrsqrt.pop %v360
    %v425 = vrsqrt.pop %v361
    %v426 = vrsqrt.pop %v362
    %v427 = vrsqrt.pop %v363
    %v428 = vrsqrt.pop %v364
    %v429 = vrsqrt.pop %v365
    %v430 = vrsqrt.pop %v366
    %v431 = vrsqrt.pop %v367
    %v432 = vrsqrt.pop %v368
    %v433 = vrsqrt.pop %v369
    %v434 = vrsqrt.pop %v370
    %v435 = vrsqrt.pop %v371
    %v436 = vrsqrt.pop %v372
    %v437 = vrsqrt.pop %v373
    %v438 = vrsqrt.pop %v374
    %v439 = vrsqrt.pop %v375
    %v440 = vrsqrt.pop %v376
    %v441 = vrsqrt.pop %v377
    %v442 = vrsqrt.pop %v378
    %v443 = vrsqrt.pop %v379
    %v444 = vrsqrt.pop %v380
    %v445 = vrsqrt.pop %v381
    %v446 = vrsqrt.pop %v382
    %v447 = vrsqrt.pop %v383
    %v448 = vrsqrt.pop %v384
    %v449 = vrsqrt.pop %v385
    %v450 = vrsqrt.pop %v386
    %v451 = vrsqrt.pop %v387
    %v452 = vrsqrt.pop %v388
    %v453 = vrsqrt.pop %v389
    %v454 = vrsqrt.pop %v390
    %v455 = vrsqrt.pop %v391
    %v456 = vrsqrt.pop %v392
    %v457 = vrsqrt.pop %v393
    %v458 = vrsqrt.pop %v394
    %v459 = vrsqrt.pop %v395
    %v460 = vrsqrt.pop %v396
    %v461 = vrsqrt.pop %v397
    %v462 = vrsqrt.pop %v398
    %v463 = vrsqrt.pop %v399
    %v464 = vrsqrt.pop %v400
    %v465 = vrsqrt.pop %v401
    %v466 = vrsqrt.pop %v402
    %v467 = vrsqrt.pop %v403
    %v468 = vrsqrt.pop %v404
    %v469 = vmul.f32 %v20, %v405
    %v470 = vmul.f32 %v21, %v406
    %v471 = vmul.f32 %v22, %v407
    %v472 = vmul.f32 %v23, %v408
    %v473 = vmul.f32 %v24, %v409
    %v474 = vmul.f32 %v25, %v410
    %v475 = vmul.f32 %v26, %v411
    %v476 = vmul.f32 %v27, %v412
    %v477 = vmul.f32 %v28, %v413
    %v478 = vmul.f32 %v29, %v414
    %v479 = vmul.f32 %v30, %v415
    %v480 = vmul.f32 %v31, %v416
    %v481 = vmul.f32 %v32, %v417
    %v482 = vmul.f32 %v33, %v418
    %v483 = vmul.f32 %v34, %v419
    %v484 = vmul.f32 %v35, %v420
    %v485 = vmul.f32 %v36, %v421
    %v486 = vmul.f32 %v37, %v422
    %v487 = vmul.f32 %v38, %v423
    %v488 = vmul.f32 %v39, %v424
    %v489 = vmul.f32 %v40, %v425
    %v490 = vmul.f32 %v41, %v426
    %v491 = vmul.f32 %v42, %v427
    %v492 = vmul.f32 %v43, %v428
    %v493 = vmul.f32 %v44, %v429
    %v494 = vmul.f32 %v45, %v430
    %v495 = vmul.f32 %v46, %v431
    %v496 = vmul.f32 %v47, %v432
    %v497 = vmul.f32 %v48, %v433
    %v498 = vmul.f32 %v49, %v434
    %v499 = vmul.f32 %v50, %v435
    %v500 = vmul.f32 %v51, %v436
    %v501 = vmul.f32 %v52, %v437
    %v502 = vmul.f32 %v53, %v438
    %v503 = vmul.f32 %v54, %v439
    %v504 = vmul.f32 %v55, %v440
    %v505 = vmul.f32 %v56, %v441
    %v506 = vmul.f32 %v57, %v442
    %v507 = vmul.f32 %v58, %v443
    %v508 = vmul.f32 %v59, %v444
    %v509 = vmul.f32 %v60, %v445
    %v510 = vmul.f32 %v61, %v446
    %v511 = vmul.f32 %v62, %v447
    %v512 = vmul.f32 %v63, %v448
    %v513 = vmul.f32 %v64, %v449
    %v514 = vmul.f32 %v65, %v450
    %v515 = vmul.f32 %v66, %v451
    %v516 = vmul.f32 %v67, %v452
    %v517 = vmul.f32 %v68, %v453
    %v518 = vmul.f32 %v69, %v454
    %v519 = vmul.f32 %v70, %v455
    %v520 = vmul.f32 %v71, %v456
    %v521 = vmul.f32 %v72, %v457
    %v522 = vmul.f32 %v73, %v458
    %v523 = vmul.f32 %v74, %v459
    %v524 = vmul.f32 %v75, %v460
    %v525 = vmul.f32 %v76, %v461
    %v526 = vmul.f32 %v77, %v462
    %v527 = vmul.f32 %v78, %v463
    %v528 = vmul.f32 %v79, %v464
    %v529 = vmul.f32 %v80, %v465
    %v530 = vmul.f32 %v81, %v466
    %v531 = vmul.f32 %v82, %v467
    %v532 = vmul.f32 %v83, %v468
    %v534 = vsel %vm148, %v469, 0
    %v537 = vsel %vm148, %v470, 0
    %v540 = vsel %vm148, %v471, 0
    %v543 = vsel %vm148, %v472, 0
    %v546 = vsel %vm148, %v473, 0
    %v549 = vsel %vm148, %v474, 0
    %v552 = vsel %vm148, %v475, 0
    %v555 = vsel %vm148, %v476, 0
    %v558 = vsel %vm148, %v477, 0
    %v561 = vsel %vm148, %v478, 0
    %v564 = vsel %vm148, %v479, 0
    %v567 = vsel %vm148, %v480, 0
    %v570 = vsel %vm148, %v481, 0
    %v573 = vsel %vm148, %v482, 0
    %v576 = vsel %vm148, %v483, 0
    %v579 = vsel %vm148, %v484, 0
    %v582 = vsel %vm148, %v485, 0
    %v585 = vsel %vm148, %v486, 0
    %v588 = vsel %vm148, %v487, 0
    %v591 = vsel %vm148, %v488, 0
    %v594 = vsel %vm148, %v489, 0
    %v597 = vsel %vm148, %v490, 0
    %v600 = vsel %vm148, %v491, 0
    %v603 = vsel %vm148, %v492, 0
    %v606 = vsel %vm148, %v493, 0
    %v609 = vsel %vm148, %v494, 0
    %v612 = vsel %vm148, %v495, 0
    %v615 = vsel %vm148, %v496, 0
    %v618 = vsel %vm148, %v497, 0
    %v621 = vsel %vm148, %v498, 0
    %v624 = vsel %vm148, %v499, 0
    %v627 = vsel %vm148, %v500, 0
    %v630 = vsel %vm148, %v501, 0
    %v633 = vsel %vm148, %v502, 0
    %v636 = vsel %vm148, %v503, 0
    %v639 = vsel %vm148, %v504, 0
    %v642 = vsel %vm148, %v505, 0
    %v645 = vsel %vm148, %v506, 0
    %v648 = vsel %vm148, %v507, 0
    %v651 = vsel %vm148, %v508, 0
    %v654 = vsel %vm148, %v509, 0
    %v657 = vsel %vm148, %v510, 0
    %v660 = vsel %vm148, %v511, 0
    %v663 = vsel %vm148, %v512, 0
    %v666 = vsel %vm148, %v513, 0
    %v669 = vsel %vm148, %v514, 0
    %v672 = vsel %vm148, %v515, 0
    %v675 = vsel %vm148, %v516, 0
    %v678 = vsel %vm148, %v517, 0
    %v681 = vsel %vm148, %v518, 0
    %v684 = vsel %vm148, %v519, 0
    %v687 = vsel %vm148, %v520, 0
    %v690 = vsel %vm148, %v521, 0
    %v693 = vsel %vm148, %v522, 0
    %v696 = vsel %vm148, %v523, 0
    %v699 = vsel %vm148, %v524, 0
    %v702 = vsel %vm148, %v525, 0
    %v705 = vsel %vm148, %v526, 0
    %v708 = vsel %vm148, %v527, 0
    %v711 = vsel %vm148, %v528, 0
    %v714 = vsel %vm148, %v529, 0
    %v717 = vsel %vm148, %v530, 0
    %v720 = vsel %vm148, %v531, 0
    %v723 = vsel %vm148, %v532, 0
    %725 = vmatprep.subr.mxu0 0.0
    %726 = vmatpush1.msra.mxu0 %v15
    %727 = vmatprep.subr.mxu0 0.0
    %728 = vmatpush1.msra.mxu0 %v16
    %729 = vmatprep.subr.mxu0 0.0
    %730 = vmatpush1.msra.mxu0 %v17
    %731 = vmatprep.subr.mxu0 0.0
    %732 = vmatpush1.msra.mxu0 %v18
    %733 = vmatprep.subr.mxu0 0.0
    %734 = vmatpush1.msra.mxu0 0.0
    %735 = vmatprep.subr.mxu0 0.0
    %736 = vmatpush1.msra.mxu0 0.0
    %737 = vmatprep.subr.mxu0 0.0
    %738 = vmatpush1.msra.mxu0 0.0
    %739 = vmatprep.subr.mxu0 0.0
    %740 = vmatpush1.msra.mxu0 0.0
    %741 = vmatprep.subr.mxu0 0.0
    %742 = vmatpush1.msra.mxu0 0.0
    %743 = vmatprep.subr.mxu0 0.0
    %744 = vmatpush1.msra.mxu0 0.0
    %745 = vmatprep.subr.mxu0 0.0
    %746 = vmatpush1.msra.mxu0 0.0
    %747 = vmatprep.subr.mxu0 0.0
    %748 = vmatpush1.msra.mxu0 0.0
    %749 = vmatprep.subr.mxu0 0.0
    %750 = vmatpush1.msra.mxu0 0.0
    %751 = vmatprep.subr.mxu0 0.0
    %752 = vmatpush1.msra.mxu0 0.0
    %753 = vmatprep.subr.mxu0 0.0
    %754 = vmatpush1.msra.mxu0 0.0
    %755 = vmatprep.subr.mxu0 0.0
    %756 = vmatpush1.msra.mxu0 0.0
    %757 = vmatprep.subr.mxu0 0.0
    %758 = vmatpush1.msra.mxu0 0.0
    %759 = vmatprep.subr.mxu0 0.0
    %760 = vmatpush1.msra.mxu0 0.0
    %761 = vmatprep.subr.mxu0 0.0
    %762 = vmatpush1.msra.mxu0 0.0
    %763 = vmatprep.subr.mxu0 0.0
    %764 = vmatpush1.msra.mxu0 0.0
    %765 = vmatprep.subr.mxu0 0.0
    %766 = vmatpush1.msra.mxu0 0.0
    %767 = vmatprep.subr.mxu0 0.0
    %768 = vmatpush1.msra.mxu0 0.0
    %769 = vmatprep.subr.mxu0 0.0
    %770 = vmatpush1.msra.mxu0 0.0
    %771 = vmatprep.subr.mxu0 0.0
    %772 = vmatpush1.msra.mxu0 0.0
    %773 = vmatprep.subr.mxu0 0.0
    %774 = vmatpush1.msra.mxu0 0.0
    %775 = vmatprep.subr.mxu0 0.0
    %776 = vmatpush1.msra.mxu0 0.0
    %777 = vmatprep.subr.mxu0 0.0
    %778 = vmatpush1.msra.mxu0 0.0
    %779 = vmatprep.subr.mxu0 0.0
    %780 = vmatpush1.msra.mxu0 0.0
    %781 = vmatprep.subr.mxu0 0.0
    %782 = vmatpush1.msra.mxu0 0.0
    %783 = vmatprep.subr.mxu0 0.0
    %784 = vmatpush1.msra.mxu0 0.0
    %785 = vmatprep.subr.mxu0 0.0
    %786 = vmatpush1.msra.mxu0 0.0
    %787 = vmatprep.subr.mxu0 0.0
    %788 = vmatpush1.msra.mxu0 0.0
    %789 = vmatprep.mubr.f32.mxu0 0.0
    %790 = vmatmul.mubr.f32.gmra.mrb[0].mxu0 %v534
    %v791 = vpop.f32.mrb[0].mxu0
    %v792 = vadd.f32 0.0, %v791
    %v793 = vpop.f32.mrb[0].mxu0
    %794 = vmatprep.mubr.f32.mxu0 0.0
    %795 = vmatmul.mubr.f32.gmra.mrb[0].mxu0 %v537
    %v796 = vpop.f32.mrb[0].mxu0
    %v797 = vadd.f32 0.0, %v796
    %v798 = vpop.f32.mrb[0].mxu0
    %799 = vmatprep.mubr.f32.mxu0 0.0
    %800 = vmatmul.mubr.f32.gmra.mrb[0].mxu0 %v540
    %v801 = vpop.f32.mrb[0].mxu0
    %v802 = vadd.f32 0.0, %v801
    %v803 = vpop.f32.mrb[0].mxu0
    %804 = vmatprep.mubr.f32.mxu0 0.0
    %805 = vmatmul.mubr.f32.gmra.mrb[0].mxu0 %v543
    %v806 = vpop.f32.mrb[0].mxu0
    %v807 = vadd.f32 0.0, %v806
    %v808 = vpop.f32.mrb[0].mxu0
    %809 = vmatprep.mubr.f32.mxu0 0.0
    %810 = vmatmul.mubr.f32.gmra.mrb[0].mxu0 %v546
    %v811 = vpop.f32.mrb[0].mxu0
    %v812 = vadd.f32 0.0, %v811
    %v813 = vpop.f32.mrb[0].mxu0
    %814 = vmatprep.mubr.f32.mxu0 0.0
    %815 = vmatmul.mubr.f32.gmra.mrb[0].mxu0 %v549
    %v816 = vpop.f32.mrb[0].mxu0
    %v817 = vadd.f32 0.0, %v816
    %v818 = vpop.f32.mrb[0].mxu0
    %819 = vmatprep.mubr.f32.mxu0 0.0
    %820 = vmatmul.mubr.f32.gmra.mrb[0].mxu0 %v552
    %v821 = vpop.f32.mrb[0].mxu0
    %v822 = vadd.f32 0.0, %v821
    %v823 = vpop.f32.mrb[0].mxu0
    %824 = vmatprep.mubr.f32.mxu0 0.0
    %825 = vmatmul.mubr.f32.gmra.mrb[0].mxu0 %v555
    %v826 = vpop.f32.mrb[0].mxu0
    %v827 = vadd.f32 0.0, %v826
    %v828 = vpop.f32.mrb[0].mxu0
    %829 = vmatprep.mubr.f32.mxu0 0.0
    %830 = vmatmul.mubr.f32.gmra.mrb[0].mxu0 %v558
    %v831 = vpop.f32.mrb[0].mxu0
    %v832 = vadd.f32 0.0, %v831
    %v833 = vpop.f32.mrb[0].mxu0
    %834 = vmatprep.mubr.f32.mxu0 0.0
    %835 = vmatmul.mubr.f32.gmra.mrb[0].mxu0 %v561
    %v836 = vpop.f32.mrb[0].mxu0
    %v837 = vadd.f32 0.0, %v836
    %v838 = vpop.f32.mrb[0].mxu0
    %839 = vmatprep.mubr.f32.mxu0 0.0
    %840 = vmatmul.mubr.f32.gmra.mrb[0].mxu0 %v564
    %v841 = vpop.f32.mrb[0].mxu0
    %v842 = vadd.f32 0.0, %v841
    %v843 = vpop.f32.mrb[0].mxu0
    %844 = vmatprep.mubr.f32.mxu0 0.0
    %845 = vmatmul.mubr.f32.gmra.mrb[0].mxu0 %v567
    %v846 = vpop.f32.mrb[0].mxu0
    %v847 = vadd.f32 0.0, %v846
    %v848 = vpop.f32.mrb[0].mxu0
    %849 = vmatprep.mubr.f32.mxu0 0.0
    %850 = vmatmul.mubr.f32.gmra.mrb[0].mxu0 %v570
    %v851 = vpop.f32.mrb[0].mxu0
    %v852 = vadd.f32 0.0, %v851
    %v853 = vpop.f32.mrb[0].mxu0
    %854 = vmatprep.mubr.f32.mxu0 0.0
    %855 = vmatmul.mubr.f32.gmra.mrb[0].mxu0 %v573
    %v856 = vpop.f32.mrb[0].mxu0
    %v857 = vadd.f32 0.0, %v856
    %v858 = vpop.f32.mrb[0].mxu0
    %859 = vmatprep.mubr.f32.mxu0 0.0
    %860 = vmatmul.mubr.f32.gmra.mrb[0].mxu0 %v576
    %v861 = vpop.f32.mrb[0].mxu0
    %v862 = vadd.f32 0.0, %v861
    %v863 = vpop.f32.mrb[0].mxu0
    %864 = vmatprep.mubr.f32.mxu0 0.0
    %865 = vmatmul.mubr.f32.gmra.mrb[0].mxu0 %v579
    %v866 = vpop.f32.mrb[0].mxu0
    %v867 = vadd.f32 0.0, %v866
    %v868 = vpop.f32.mrb[0].mxu0
    %869 = vmatprep.mubr.f32.mxu0 0.0
    %870 = vmatmul.mubr.f32.gmra.mrb[0].mxu0 %v582
    %v871 = vpop.f32.mrb[0].mxu0
    %v872 = vadd.f32 0.0, %v871
    %v873 = vpop.f32.mrb[0].mxu0
    %874 = vmatprep.mubr.f32.mxu0 0.0
    %875 = vmatmul.mubr.f32.gmra.mrb[0].mxu0 %v585
    %v876 = vpop.f32.mrb[0].mxu0
    %v877 = vadd.f32 0.0, %v876
    %v878 = vpop.f32.mrb[0].mxu0
    %879 = vmatprep.mubr.f32.mxu0 0.0
    %880 = vmatmul.mubr.f32.gmra.mrb[0].mxu0 %v588
    %v881 = vpop.f32.mrb[0].mxu0
    %v882 = vadd.f32 0.0, %v881
    %v883 = vpop.f32.mrb[0].mxu0
    %884 = vmatprep.mubr.f32.mxu0 0.0
    %885 = vmatmul.mubr.f32.gmra.mrb[0].mxu0 %v591
    %v886 = vpop.f32.mrb[0].mxu0
    %v887 = vadd.f32 0.0, %v886
    %v888 = vpop.f32.mrb[0].mxu0
    %889 = vmatprep.mubr.f32.mxu0 0.0
    %890 = vmatmul.mubr.f32.gmra.mrb[0].mxu0 %v594
    %v891 = vpop.f32.mrb[0].mxu0
    %v892 = vadd.f32 0.0, %v891
    %v893 = vpop.f32.mrb[0].mxu0
    %894 = vmatprep.mubr.f32.mxu0 0.0
    %895 = vmatmul.mubr.f32.gmra.mrb[0].mxu0 %v597
    %v896 = vpop.f32.mrb[0].mxu0
    %v897 = vadd.f32 0.0, %v896
    %v898 = vpop.f32.mrb[0].mxu0
    %899 = vmatprep.mubr.f32.mxu0 0.0
    %900 = vmatmul.mubr.f32.gmra.mrb[0].mxu0 %v600
    %v901 = vpop.f32.mrb[0].mxu0
    %v902 = vadd.f32 0.0, %v901
    %v903 = vpop.f32.mrb[0].mxu0
    %904 = vmatprep.mubr.f32.mxu0 0.0
    %905 = vmatmul.mubr.f32.gmra.mrb[0].mxu0 %v603
    %v906 = vpop.f32.mrb[0].mxu0
    %v907 = vadd.f32 0.0, %v906
    %v908 = vpop.f32.mrb[0].mxu0
    %909 = vmatprep.mubr.f32.mxu0 0.0
    %910 = vmatmul.mubr.f32.gmra.mrb[0].mxu0 %v606
    %v911 = vpop.f32.mrb[0].mxu0
    %v912 = vadd.f32 0.0, %v911
    %v913 = vpop.f32.mrb[0].mxu0
    %914 = vmatprep.mubr.f32.mxu0 0.0
    %915 = vmatmul.mubr.f32.gmra.mrb[0].mxu0 %v609
    %v916 = vpop.f32.mrb[0].mxu0
    %v917 = vadd.f32 0.0, %v916
    %v918 = vpop.f32.mrb[0].mxu0
    %919 = vmatprep.mubr.f32.mxu0 0.0
    %920 = vmatmul.mubr.f32.gmra.mrb[0].mxu0 %v612
    %v921 = vpop.f32.mrb[0].mxu0
    %v922 = vadd.f32 0.0, %v921
    %v923 = vpop.f32.mrb[0].mxu0
    %924 = vmatprep.mubr.f32.mxu0 0.0
    %925 = vmatmul.mubr.f32.gmra.mrb[0].mxu0 %v615
    %v926 = vpop.f32.mrb[0].mxu0
    %v927 = vadd.f32 0.0, %v926
    %v928 = vpop.f32.mrb[0].mxu0
    %929 = vmatprep.mubr.f32.mxu0 0.0
    %930 = vmatmul.mubr.f32.gmra.mrb[0].mxu0 %v618
    %v931 = vpop.f32.mrb[0].mxu0
    %v932 = vadd.f32 0.0, %v931
    %v933 = vpop.f32.mrb[0].mxu0
    %934 = vmatprep.mubr.f32.mxu0 0.0
    %935 = vmatmul.mubr.f32.gmra.mrb[0].mxu0 %v621
    %v936 = vpop.f32.mrb[0].mxu0
    %v937 = vadd.f32 0.0, %v936
    %v938 = vpop.f32.mrb[0].mxu0
    %939 = vmatprep.mubr.f32.mxu0 0.0
    %940 = vmatmul.mubr.f32.gmra.mrb[0].mxu0 %v624
    %v941 = vpop.f32.mrb[0].mxu0
    %v942 = vadd.f32 0.0, %v941
    %v943 = vpop.f32.mrb[0].mxu0
    %944 = vmatprep.mubr.f32.mxu0 0.0
    %945 = vmatmul.mubr.f32.gmra.mrb[0].mxu0 %v627
    %v946 = vpop.f32.mrb[0].mxu0
    %v947 = vadd.f32 0.0, %v946
    %v948 = vpop.f32.mrb[0].mxu0
    %949 = vmatprep.mubr.f32.mxu0 0.0
    %950 = vmatmul.mubr.f32.gmra.mrb[0].mxu0 %v630
    %v951 = vpop.f32.mrb[0].mxu0
    %v952 = vadd.f32 0.0, %v951
    %v953 = vpop.f32.mrb[0].mxu0
    %954 = vmatprep.mubr.f32.mxu0 0.0
    %955 = vmatmul.mubr.f32.gmra.mrb[0].mxu0 %v633
    %v956 = vpop.f32.mrb[0].mxu0
    %v957 = vadd.f32 0.0, %v956
    %v958 = vpop.f32.mrb[0].mxu0
    %959 = vmatprep.mubr.f32.mxu0 0.0
    %960 = vmatmul.mubr.f32.gmra.mrb[0].mxu0 %v636
    %v961 = vpop.f32.mrb[0].mxu0
    %v962 = vadd.f32 0.0, %v961
    %v963 = vpop.f32.mrb[0].mxu0
    %964 = vmatprep.mubr.f32.mxu0 0.0
    %965 = vmatmul.mubr.f32.gmra.mrb[0].mxu0 %v639
    %v966 = vpop.f32.mrb[0].mxu0
    %v967 = vadd.f32 0.0, %v966
    %v968 = vpop.f32.mrb[0].mxu0
    %969 = vmatprep.mubr.f32.mxu0 0.0
    %970 = vmatmul.mubr.f32.gmra.mrb[0].mxu0 %v642
    %v971 = vpop.f32.mrb[0].mxu0
    %v972 = vadd.f32 0.0, %v971
    %v973 = vpop.f32.mrb[0].mxu0
    %974 = vmatprep.mubr.f32.mxu0 0.0
    %975 = vmatmul.mubr.f32.gmra.mrb[0].mxu0 %v645
    %v976 = vpop.f32.mrb[0].mxu0
    %v977 = vadd.f32 0.0, %v976
    %v978 = vpop.f32.mrb[0].mxu0
    %979 = vmatprep.mubr.f32.mxu0 0.0
    %980 = vmatmul.mubr.f32.gmra.mrb[0].mxu0 %v648
    %v981 = vpop.f32.mrb[0].mxu0
    %v982 = vadd.f32 0.0, %v981
    %v983 = vpop.f32.mrb[0].mxu0
    %984 = vmatprep.mubr.f32.mxu0 0.0
    %985 = vmatmul.mubr.f32.gmra.mrb[0].mxu0 %v651
    %v986 = vpop.f32.mrb[0].mxu0
    %v987 = vadd.f32 0.0, %v986
    %v988 = vpop.f32.mrb[0].mxu0
    %989 = vmatprep.mubr.f32.mxu0 0.0
    %990 = vmatmul.mubr.f32.gmra.mrb[0].mxu0 %v654
    %v991 = vpop.f32.mrb[0].mxu0
    %v992 = vadd.f32 0.0, %v991
    %v993 = vpop.f32.mrb[0].mxu0
    %994 = vmatprep.mubr.f32.mxu0 0.0
    %995 = vmatmul.mubr.f32.gmra.mrb[0].mxu0 %v657
    %v996 = vpop.f32.mrb[0].mxu0
    %v997 = vadd.f32 0.0, %v996
    %v998 = vpop.f32.mrb[0].mxu0
    %999 = vmatprep.mubr.f32.mxu0 0.0
    %1000 = vmatmul.mubr.f32.gmra.mrb[0].mxu0 %v660
    %v1001 = vpop.f32.mrb[0].mxu0
    %v1002 = vadd.f32 0.0, %v1001
    %v1003 = vpop.f32.mrb[0].mxu0
    %1004 = vmatprep.mubr.f32.mxu0 0.0
    %1005 = vmatmul.mubr.f32.gmra.mrb[0].mxu0 %v663
    %v1006 = vpop.f32.mrb[0].mxu0
    %v1007 = vadd.f32 0.0, %v1006
    %v1008 = vpop.f32.mrb[0].mxu0
    %1009 = vmatprep.mubr.f32.mxu0 0.0
    %1010 = vmatmul.mubr.f32.gmra.mrb[0].mxu0 %v666
    %v1011 = vpop.f32.mrb[0].mxu0
    %v1012 = vadd.f32 0.0, %v1011
    %v1013 = vpop.f32.mrb[0].mxu0
    %1014 = vmatprep.mubr.f32.mxu0 0.0
    %1015 = vmatmul.mubr.f32.gmra.mrb[0].mxu0 %v669
    %v1016 = vpop.f32.mrb[0].mxu0
    %v1017 = vadd.f32 0.0, %v1016
    %v1018 = vpop.f32.mrb[0].mxu0
    %1019 = vmatprep.mubr.f32.mxu0 0.0
    %1020 = vmatmul.mubr.f32.gmra.mrb[0].mxu0 %v672
    %v1021 = vpop.f32.mrb[0].mxu0
    %v1022 = vadd.f32 0.0, %v1021
    %v1023 = vpop.f32.mrb[0].mxu0
    %1024 = vmatprep.mubr.f32.mxu0 0.0
    %1025 = vmatmul.mubr.f32.gmra.mrb[0].mxu0 %v675
    %v1026 = vpop.f32.mrb[0].mxu0
    %v1027 = vadd.f32 0.0, %v1026
    %v1028 = vpop.f32.mrb[0].mxu0
    %1029 = vmatprep.mubr.f32.mxu0 0.0
    %1030 = vmatmul.mubr.f32.gmra.mrb[0].mxu0 %v678
    %v1031 = vpop.f32.mrb[0].mxu0
    %v1032 = vadd.f32 0.0, %v1031
    %v1033 = vpop.f32.mrb[0].mxu0
    %1034 = vmatprep.mubr.f32.mxu0 0.0
    %1035 = vmatmul.mubr.f32.gmra.mrb[0].mxu0 %v681
    %v1036 = vpop.f32.mrb[0].mxu0
    %v1037 = vadd.f32 0.0, %v1036
    %v1038 = vpop.f32.mrb[0].mxu0
    %1039 = vmatprep.mubr.f32.mxu0 0.0
    %1040 = vmatmul.mubr.f32.gmra.mrb[0].mxu0 %v684
    %v1041 = vpop.f32.mrb[0].mxu0
    %v1042 = vadd.f32 0.0, %v1041
    %v1043 = vpop.f32.mrb[0].mxu0
    %1044 = vmatprep.mubr.f32.mxu0 0.0
    %1045 = vmatmul.mubr.f32.gmra.mrb[0].mxu0 %v687
    %v1046 = vpop.f32.mrb[0].mxu0
    %v1047 = vadd.f32 0.0, %v1046
    %v1048 = vpop.f32.mrb[0].mxu0
    %1049 = vmatprep.mubr.f32.mxu0 0.0
    %1050 = vmatmul.mubr.f32.gmra.mrb[0].mxu0 %v690
    %v1051 = vpop.f32.mrb[0].mxu0
    %v1052 = vadd.f32 0.0, %v1051
    %v1053 = vpop.f32.mrb[0].mxu0
    %1054 = vmatprep.mubr.f32.mxu0 0.0
    %1055 = vmatmul.mubr.f32.gmra.mrb[0].mxu0 %v693
    %v1056 = vpop.f32.mrb[0].mxu0
    %v1057 = vadd.f32 0.0, %v1056
    %v1058 = vpop.f32.mrb[0].mxu0
    %1059 = vmatprep.mubr.f32.mxu0 0.0
    %1060 = vmatmul.mubr.f32.gmra.mrb[0].mxu0 %v696
    %v1061 = vpop.f32.mrb[0].mxu0
    %v1062 = vadd.f32 0.0, %v1061
    %v1063 = vpop.f32.mrb[0].mxu0
    %1064 = vmatprep.mubr.f32.mxu0 0.0
    %1065 = vmatmul.mubr.f32.gmra.mrb[0].mxu0 %v699
    %v1066 = vpop.f32.mrb[0].mxu0
    %v1067 = vadd.f32 0.0, %v1066
    %v1068 = vpop.f32.mrb[0].mxu0
    %1069 = vmatprep.mubr.f32.mxu0 0.0
    %1070 = vmatmul.mubr.f32.gmra.mrb[0].mxu0 %v702
    %v1071 = vpop.f32.mrb[0].mxu0
    %v1072 = vadd.f32 0.0, %v1071
    %v1073 = vpop.f32.mrb[0].mxu0
    %1074 = vmatprep.mubr.f32.mxu0 0.0
    %1075 = vmatmul.mubr.f32.gmra.mrb[0].mxu0 %v705
    %v1076 = vpop.f32.mrb[0].mxu0
    %v1077 = vadd.f32 0.0, %v1076
    %v1078 = vpop.f32.mrb[0].mxu0
    %1079 = vmatprep.mubr.f32.mxu0 0.0
    %1080 = vmatmul.mubr.f32.gmra.mrb[0].mxu0 %v708
    %v1081 = vpop.f32.mrb[0].mxu0
    %v1082 = vadd.f32 0.0, %v1081
    %v1083 = vpop.f32.mrb[0].mxu0
    %1084 = vmatprep.mubr.f32.mxu0 0.0
    %1085 = vmatmul.mubr.f32.gmra.mrb[0].mxu0 %v711
    %v1086 = vpop.f32.mrb[0].mxu0
    %v1087 = vadd.f32 0.0, %v1086
    %v1088 = vpop.f32.mrb[0].mxu0
    %1089 = vmatprep.mubr.f32.mxu0 0.0
    %1090 = vmatmul.mubr.f32.gmra.mrb[0].mxu0 %v714
    %v1091 = vpop.f32.mrb[0].mxu0
    %v1092 = vadd.f32 0.0, %v1091
    %v1093 = vpop.f32.mrb[0].mxu0
    %1094 = vmatprep.mubr.f32.mxu0 0.0
    %1095 = vmatmul.mubr.f32.gmra.mrb[0].mxu0 %v717
    %v1096 = vpop.f32.mrb[0].mxu0
    %v1097 = vadd.f32 0.0, %v1096
    %v1098 = vpop.f32.mrb[0].mxu0
    %1099 = vmatprep.mubr.f32.mxu0 0.0
    %1100 = vmatmul.mubr.f32.gmra.mrb[0].mxu0 %v720
    %v1101 = vpop.f32.mrb[0].mxu0
    %v1102 = vadd.f32 0.0, %v1101
    %v1103 = vpop.f32.mrb[0].mxu0
    %1104 = vmatprep.mubr.f32.mxu0 0.0
    %1105 = vmatmul.mubr.f32.gmra.mrb[0].mxu0 %v723
    %v1106 = vpop.f32.mrb[0].mxu0
    %v1107 = vadd.f32 0.0, %v1106
    %v1108 = vpop.f32.mrb[0].mxu0
    %1109 = vdwg.mxu0
    %vm1110 = vcmask 523264
    %1111 = vst.msk [vmem:[#allocation2] sm:$0xff] %vm1110, %v792
    %1112 = vst.msk [vmem:[#allocation2 + $0x8] sm:$0xff] %vm1110, %v797
    %1113 = vst.msk [vmem:[#allocation2 + $0x10] sm:$0xff] %vm1110, %v802
    %1114 = vst.msk [vmem:[#allocation2 + $0x18] sm:$0xff] %vm1110, %v807
    %1115 = vst.msk [vmem:[#allocation2 + $0x20] sm:$0xff] %vm1110, %v812
    %1116 = vst.msk [vmem:[#allocation2 + $0x28] sm:$0xff] %vm1110, %v817
    %1117 = vst.msk [vmem:[#allocation2 + $0x30] sm:$0xff] %vm1110, %v822
    %1118 = vst.msk [vmem:[#allocation2 + $0x38] sm:$0xff] %vm1110, %v827
    %1119 = vst.msk [vmem:[#allocation2 + $0x40] sm:$0xff] %vm1110, %v832
    %1120 = vst.msk [vmem:[#allocation2 + $0x48] sm:$0xff] %vm1110, %v837
    %1121 = vst.msk [vmem:[#allocation2 + $0x50] sm:$0xff] %vm1110, %v842
    %1122 = vst.msk [vmem:[#allocation2 + $0x58] sm:$0xff] %vm1110, %v847
    %1123 = vst.msk [vmem:[#allocation2 + $0x60] sm:$0xff] %vm1110, %v852
    %1124 = vst.msk [vmem:[#allocation2 + $0x68] sm:$0xff] %vm1110, %v857
    %1125 = vst.msk [vmem:[#allocation2 + $0x70] sm:$0xff] %vm1110, %v862
    %1126 = vst.msk [vmem:[#allocation2 + $0x78] sm:$0xff] %vm1110, %v867
    %1127 = vst.msk [vmem:[#allocation2 + $0x80] sm:$0xff] %vm1110, %v872
    %1128 = vst.msk [vmem:[#allocation2 + $0x88] sm:$0xff] %vm1110, %v877
    %1129 = vst.msk [vmem:[#allocation2 + $0x90] sm:$0xff] %vm1110, %v882
    %1130 = vst.msk [vmem:[#allocation2 + $0x98] sm:$0xff] %vm1110, %v887
    %1131 = vst.msk [vmem:[#allocation2 + $0xa0] sm:$0xff] %vm1110, %v892
    %1132 = vst.msk [vmem:[#allocation2 + $0xa8] sm:$0xff] %vm1110, %v897
    %1133 = vst.msk [vmem:[#allocation2 + $0xb0] sm:$0xff] %vm1110, %v902
    %1134 = vst.msk [vmem:[#allocation2 + $0xb8] sm:$0xff] %vm1110, %v907
    %1135 = vst.msk [vmem:[#allocation2 + $0xc0] sm:$0xff] %vm1110, %v912
    %1136 = vst.msk [vmem:[#allocation2 + $0xc8] sm:$0xff] %vm1110, %v917
    %1137 = vst.msk [vmem:[#allocation2 + $0xd0] sm:$0xff] %vm1110, %v922
    %1138 = vst.msk [vmem:[#allocation2 + $0xd8] sm:$0xff] %vm1110, %v927
    %1139 = vst.msk [vmem:[#allocation2 + $0xe0] sm:$0xff] %vm1110, %v932
    %1140 = vst.msk [vmem:[#allocation2 + $0xe8] sm:$0xff] %vm1110, %v937
    %1141 = vst.msk [vmem:[#allocation2 + $0xf0] sm:$0xff] %vm1110, %v942
    %1142 = vst.msk [vmem:[#allocation2 + $0xf8] sm:$0xff] %vm1110, %v947
    %1143 = vst.msk [vmem:[#allocation2 + $0x100] sm:$0xff] %vm1110, %v952
    %1144 = vst.msk [vmem:[#allocation2 + $0x108] sm:$0xff] %vm1110, %v957
    %1145 = vst.msk [vmem:[#allocation2 + $0x110] sm:$0xff] %vm1110, %v962
    %1146 = vst.msk [vmem:[#allocation2 + $0x118] sm:$0xff] %vm1110, %v967
    %1147 = vst.msk [vmem:[#allocation2 + $0x120] sm:$0xff] %vm1110, %v972
    %1148 = vst.msk [vmem:[#allocation2 + $0x128] sm:$0xff] %vm1110, %v977
    %1149 = vst.msk [vmem:[#allocation2 + $0x130] sm:$0xff] %vm1110, %v982
    %1150 = vst.msk [vmem:[#allocation2 + $0x138] sm:$0xff] %vm1110, %v987
    %1151 = vst.msk [vmem:[#allocation2 + $0x140] sm:$0xff] %vm1110, %v992
    %1152 = vst.msk [vmem:[#allocation2 + $0x148] sm:$0xff] %vm1110, %v997
    %1153 = vst.msk [vmem:[#allocation2 + $0x150] sm:$0xff] %vm1110, %v1002
    %1154 = vst.msk [vmem:[#allocation2 + $0x158] sm:$0xff] %vm1110, %v1007
    %1155 = vst.msk [vmem:[#allocation2 + $0x160] sm:$0xff] %vm1110, %v1012
    %1156 = vst.msk [vmem:[#allocation2 + $0x168] sm:$0xff] %vm1110, %v1017
    %1157 = vst.msk [vmem:[#allocation2 + $0x170] sm:$0xff] %vm1110, %v1022
    %1158 = vst.msk [vmem:[#allocation2 + $0x178] sm:$0xff] %vm1110, %v1027
    %1159 = vst.msk [vmem:[#allocation2 + $0x180] sm:$0xff] %vm1110, %v1032
    %1160 = vst.msk [vmem:[#allocation2 + $0x188] sm:$0xff] %vm1110, %v1037
    %1161 = vst.msk [vmem:[#allocation2 + $0x190] sm:$0xff] %vm1110, %v1042
    %1162 = vst.msk [vmem:[#allocation2 + $0x198] sm:$0xff] %vm1110, %v1047
    %1163 = vst.msk [vmem:[#allocation2 + $0x1a0] sm:$0xff] %vm1110, %v1052
    %1164 = vst.msk [vmem:[#allocation2 + $0x1a8] sm:$0xff] %vm1110, %v1057
    %1165 = vst.msk [vmem:[#allocation2 + $0x1b0] sm:$0xff] %vm1110, %v1062
    %1166 = vst.msk [vmem:[#allocation2 + $0x1b8] sm:$0xff] %vm1110, %v1067
    %1167 = vst.msk [vmem:[#allocation2 + $0x1c0] sm:$0xff] %vm1110, %v1072
    %1168 = vst.msk [vmem:[#allocation2 + $0x1c8] sm:$0xff] %vm1110, %v1077
    %1169 = vst.msk [vmem:[#allocation2 + $0x1d0] sm:$0xff] %vm1110, %v1082
    %1170 = vst.msk [vmem:[#allocation2 + $0x1d8] sm:$0xff] %vm1110, %v1087
    %1171 = vst.msk [vmem:[#allocation2 + $0x1e0] sm:$0xff] %vm1110, %v1092
    %1172 = vst.msk [vmem:[#allocation2 + $0x1e8] sm:$0xff] %vm1110, %v1097
    %1173 = vst.msk [vmem:[#allocation2 + $0x1f0] sm:$0xff] %vm1110, %v1102
    %1174 = vst.msk [vmem:[#allocation2 + $0x1f8] sm:$0xff] %vm1110, %v1107
    %v1175 = vsub.f32 0.0, %v792
    %v1176 = vsub.f32 0.0, %v797
    %v1177 = vsub.f32 0.0, %v802
    %v1178 = vsub.f32 0.0, %v807
    %v1179 = vsub.f32 0.0, %v812
    %v1180 = vsub.f32 0.0, %v817
    %v1181 = vsub.f32 0.0, %v822
    %v1182 = vsub.f32 0.0, %v827
    %v1183 = vsub.f32 0.0, %v832
    %v1184 = vsub.f32 0.0, %v837
    %v1185 = vsub.f32 0.0, %v842
    %v1186 = vsub.f32 0.0, %v847
    %v1187 = vsub.f32 0.0, %v852
    %v1188 = vsub.f32 0.0, %v857
    %v1189 = vsub.f32 0.0, %v862
    %v1190 = vsub.f32 0.0, %v867
    %v1191 = vsub.f32 0.0, %v872
    %v1192 = vsub.f32 0.0, %v877
    %v1193 = vsub.f32 0.0, %v882
    %v1194 = vsub.f32 0.0, %v887
    %v1195 = vsub.f32 0.0, %v892
    %v1196 = vsub.f32 0.0, %v897
    %v1197 = vsub.f32 0.0, %v902
    %v1198 = vsub.f32 0.0, %v907
    %v1199 = vsub.f32 0.0, %v912
    %v1200 = vsub.f32 0.0, %v917
    %v1201 = vsub.f32 0.0, %v922
    %v1202 = vsub.f32 0.0, %v927
    %v1203 = vsub.f32 0.0, %v932
    %v1204 = vsub.f32 0.0, %v937
    %v1205 = vsub.f32 0.0, %v942
    %v1206 = vsub.f32 0.0, %v947
    %v1207 = vsub.f32 0.0, %v952
    %v1208 = vsub.f32 0.0, %v957
    %v1209 = vsub.f32 0.0, %v962
    %v1210 = vsub.f32 0.0, %v967
    %v1211 = vsub.f32 0.0, %v972
    %v1212 = vsub.f32 0.0, %v977
    %v1213 = vsub.f32 0.0, %v982
    %v1214 = vsub.f32 0.0, %v987
    %v1215 = vsub.f32 0.0, %v992
    %v1216 = vsub.f32 0.0, %v997
    %v1217 = vsub.f32 0.0, %v1002
    %v1218 = vsub.f32 0.0, %v1007
    %v1219 = vsub.f32 0.0, %v1012
    %v1220 = vsub.f32 0.0, %v1017
    %v1221 = vsub.f32 0.0, %v1022
    %v1222 = vsub.f32 0.0, %v1027
    %v1223 = vsub.f32 0.0, %v1032
    %v1224 = vsub.f32 0.0, %v1037
    %v1225 = vsub.f32 0.0, %v1042
    %v1226 = vsub.f32 0.0, %v1047
    %v1227 = vsub.f32 0.0, %v1052
    %v1228 = vsub.f32 0.0, %v1057
    %v1229 = vsub.f32 0.0, %v1062
    %v1230 = vsub.f32 0.0, %v1067
    %v1231 = vsub.f32 0.0, %v1072
    %v1232 = vsub.f32 0.0, %v1077
    %v1233 = vsub.f32 0.0, %v1082
    %v1234 = vsub.f32 0.0, %v1087
    %v1235 = vsub.f32 0.0, %v1092
    %v1236 = vsub.f32 0.0, %v1097
    %v1237 = vsub.f32 0.0, %v1102
    %v1238 = vsub.f32 0.0, %v1107
    %v1239 = vmul.f32 %v1175, 1.442695
    %v1240 = vpow.pop %v1239
    %v1241 = vmul.f32 %v1176, 1.442695
    %v1242 = vpow.pop %v1241
    %v1243 = vmul.f32 %v1177, 1.442695
    %v1244 = vpow.pop %v1243
    %v1245 = vmul.f32 %v1178, 1.442695
    %v1246 = vpow.pop %v1245
    %v1247 = vmul.f32 %v1179, 1.442695
    %v1248 = vpow.pop %v1247
    %v1249 = vmul.f32 %v1180, 1.442695
    %v1250 = vpow.pop %v1249
    %v1251 = vmul.f32 %v1181, 1.442695
    %v1252 = vpow.pop %v1251
    %v1253 = vmul.f32 %v1182, 1.442695
    %v1254 = vpow.pop %v1253
    %v1255 = vmul.f32 %v1183, 1.442695
    %v1256 = vpow.pop %v1255
    %v1257 = vmul.f32 %v1184, 1.442695
    %v1258 = vpow.pop %v1257
    %v1259 = vmul.f32 %v1185, 1.442695
    %v1260 = vpow.pop %v1259
    %v1261 = vmul.f32 %v1186, 1.442695
    %v1262 = vpow.pop %v1261
    %v1263 = vmul.f32 %v1187, 1.442695
    %v1264 = vpow.pop %v1263
    %v1265 = vmul.f32 %v1188, 1.442695
    %v1266 = vpow.pop %v1265
    %v1267 = vmul.f32 %v1189, 1.442695
    %v1268 = vpow.pop %v1267
    %v1269 = vmul.f32 %v1190, 1.442695
    %v1270 = vpow.pop %v1269
    %v1271 = vmul.f32 %v1191, 1.442695
    %v1272 = vpow.pop %v1271
    %v1273 = vmul.f32 %v1192, 1.442695
    %v1274 = vpow.pop %v1273
    %v1275 = vmul.f32 %v1193, 1.442695
    %v1276 = vpow.pop %v1275
    %v1277 = vmul.f32 %v1194, 1.442695
    %v1278 = vpow.pop %v1277
    %v1279 = vmul.f32 %v1195, 1.442695
    %v1280 = vpow.pop %v1279
    %v1281 = vmul.f32 %v1196, 1.442695
    %v1282 = vpow.pop %v1281
    %v1283 = vmul.f32 %v1197, 1.442695
    %v1284 = vpow.pop %v1283
    %v1285 = vmul.f32 %v1198, 1.442695
    %v1286 = vpow.pop %v1285
    %v1287 = vmul.f32 %v1199, 1.442695
    %v1288 = vpow.pop %v1287
    %v1289 = vmul.f32 %v1200, 1.442695
    %v1290 = vpow.pop %v1289
    %v1291 = vmul.f32 %v1201, 1.442695
    %v1292 = vpow.pop %v1291
    %v1293 = vmul.f32 %v1202, 1.442695
    %v1294 = vpow.pop %v1293
    %v1295 = vmul.f32 %v1203, 1.442695
    %v1296 = vpow.pop %v1295
    %v1297 = vmul.f32 %v1204, 1.442695
    %v1298 = vpow.pop %v1297
    %v1299 = vmul.f32 %v1205, 1.442695
    %v1300 = vpow.pop %v1299
    %v1301 = vmul.f32 %v1206, 1.442695
    %v1302 = vpow.pop %v1301
    %v1303 = vmul.f32 %v1207, 1.442695
    %v1304 = vpow.pop %v1303
    %v1305 = vmul.f32 %v1208, 1.442695
    %v1306 = vpow.pop %v1305
    %v1307 = vmul.f32 %v1209, 1.442695
    %v1308 = vpow.pop %v1307
    %v1309 = vmul.f32 %v1210, 1.442695
    %v1310 = vpow.pop %v1309
    %v1311 = vmul.f32 %v1211, 1.442695
    %v1312 = vpow.pop %v1311
    %v1313 = vmul.f32 %v1212, 1.442695
    %v1314 = vpow.pop %v1313
    %v1315 = vmul.f32 %v1213, 1.442695
    %v1316 = vpow.pop %v1315
    %v1317 = vmul.f32 %v1214, 1.442695
    %v1318 = vpow.pop %v1317
    %v1319 = vmul.f32 %v1215, 1.442695
    %v1320 = vpow.pop %v1319
    %v1321 = vmul.f32 %v1216, 1.442695
    %v1322 = vpow.pop %v1321
    %v1323 = vmul.f32 %v1217, 1.442695
    %v1324 = vpow.pop %v1323
    %v1325 = vmul.f32 %v1218, 1.442695
    %v1326 = vpow.pop %v1325
    %v1327 = vmul.f32 %v1219, 1.442695
    %v1328 = vpow.pop %v1327
    %v1329 = vmul.f32 %v1220, 1.442695
    %v1330 = vpow.pop %v1329
    %v1331 = vmul.f32 %v1221, 1.442695
    %v1332 = vpow.pop %v1331
    %v1333 = vmul.f32 %v1222, 1.442695
    %v1334 = vpow.pop %v1333
    %v1335 = vmul.f32 %v1223, 1.442695
    %v1336 = vpow.pop %v1335
    %v1337 = vmul.f32 %v1224, 1.442695
    %v1338 = vpow.pop %v1337
    %v1339 = vmul.f32 %v1225, 1.442695
    %v1340 = vpow.pop %v1339
    %v1341 = vmul.f32 %v1226, 1.442695
    %v1342 = vpow.pop %v1341
    %v1343 = vmul.f32 %v1227, 1.442695
    %v1344 = vpow.pop %v1343
    %v1345 = vmul.f32 %v1228, 1.442695
    %v1346 = vpow.pop %v1345
    %v1347 = vmul.f32 %v1229, 1.442695
    %v1348 = vpow.pop %v1347
    %v1349 = vmul.f32 %v1230, 1.442695
    %v1350 = vpow.pop %v1349
    %v1351 = vmul.f32 %v1231, 1.442695
    %v1352 = vpow.pop %v1351
    %v1353 = vmul.f32 %v1232, 1.442695
    %v1354 = vpow.pop %v1353
    %v1355 = vmul.f32 %v1233, 1.442695
    %v1356 = vpow.pop %v1355
    %v1357 = vmul.f32 %v1234, 1.442695
    %v1358 = vpow.pop %v1357
    %v1359 = vmul.f32 %v1235, 1.442695
    %v1360 = vpow.pop %v1359
    %v1361 = vmul.f32 %v1236, 1.442695
    %v1362 = vpow.pop %v1361
    %v1363 = vmul.f32 %v1237, 1.442695
    %v1364 = vpow.pop %v1363
    %v1365 = vmul.f32 %v1238, 1.442695
    %v1366 = vpow.pop %v1365
    %v1367 = vadd.f32 %v1240, 1.0
    %v1368 = vadd.f32 %v1242, 1.0
    %v1369 = vadd.f32 %v1244, 1.0
    %v1370 = vadd.f32 %v1246, 1.0
    %v1371 = vadd.f32 %v1248, 1.0
    %v1372 = vadd.f32 %v1250, 1.0
    %v1373 = vadd.f32 %v1252, 1.0
    %v1374 = vadd.f32 %v1254, 1.0
    %v1375 = vadd.f32 %v1256, 1.0
    %v1376 = vadd.f32 %v1258, 1.0
    %v1377 = vadd.f32 %v1260, 1.0
    %v1378 = vadd.f32 %v1262, 1.0
    %v1379 = vadd.f32 %v1264, 1.0
    %v1380 = vadd.f32 %v1266, 1.0
    %v1381 = vadd.f32 %v1268, 1.0
    %v1382 = vadd.f32 %v1270, 1.0
    %v1383 = vadd.f32 %v1272, 1.0
    %v1384 = vadd.f32 %v1274, 1.0
    %v1385 = vadd.f32 %v1276, 1.0
    %v1386 = vadd.f32 %v1278, 1.0
    %v1387 = vadd.f32 %v1280, 1.0
    %v1388 = vadd.f32 %v1282, 1.0
    %v1389 = vadd.f32 %v1284, 1.0
    %v1390 = vadd.f32 %v1286, 1.0
    %v1391 = vadd.f32 %v1288, 1.0
    %v1392 = vadd.f32 %v1290, 1.0
    %v1393 = vadd.f32 %v1292, 1.0
    %v1394 = vadd.f32 %v1294, 1.0
    %v1395 = vadd.f32 %v1296, 1.0
    %v1396 = vadd.f32 %v1298, 1.0
    %v1397 = vadd.f32 %v1300, 1.0
    %v1398 = vadd.f32 %v1302, 1.0
    %v1399 = vadd.f32 %v1304, 1.0
    %v1400 = vadd.f32 %v1306, 1.0
    %v1401 = vadd.f32 %v1308, 1.0
    %v1402 = vadd.f32 %v1310, 1.0
    %v1403 = vadd.f32 %v1312, 1.0
    %v1404 = vadd.f32 %v1314, 1.0
    %v1405 = vadd.f32 %v1316, 1.0
    %v1406 = vadd.f32 %v1318, 1.0
    %v1407 = vadd.f32 %v1320, 1.0
    %v1408 = vadd.f32 %v1322, 1.0
    %v1409 = vadd.f32 %v1324, 1.0
    %v1410 = vadd.f32 %v1326, 1.0
    %v1411 = vadd.f32 %v1328, 1.0
    %v1412 = vadd.f32 %v1330, 1.0
    %v1413 = vadd.f32 %v1332, 1.0
    %v1414 = vadd.f32 %v1334, 1.0
    %v1415 = vadd.f32 %v1336, 1.0
    %v1416 = vadd.f32 %v1338, 1.0
    %v1417 = vadd.f32 %v1340, 1.0
    %v1418 = vadd.f32 %v1342, 1.0
    %v1419 = vadd.f32 %v1344, 1.0
    %v1420 = vadd.f32 %v1346, 1.0
    %v1421 = vadd.f32 %v1348, 1.0
    %v1422 = vadd.f32 %v1350, 1.0
    %v1423 = vadd.f32 %v1352, 1.0
    %v1424 = vadd.f32 %v1354, 1.0
    %v1425 = vadd.f32 %v1356, 1.0
    %v1426 = vadd.f32 %v1358, 1.0
    %v1427 = vadd.f32 %v1360, 1.0
    %v1428 = vadd.f32 %v1362, 1.0
    %v1429 = vadd.f32 %v1364, 1.0
    %v1430 = vadd.f32 %v1366, 1.0
    %v1431 = vrcp.pop %v1367
    %v1432 = vrcp.pop %v1368
    %v1433 = vrcp.pop %v1369
    %v1434 = vrcp.pop %v1370
    %v1435 = vrcp.pop %v1371
    %v1436 = vrcp.pop %v1372
    %v1437 = vrcp.pop %v1373
    %v1438 = vrcp.pop %v1374
    %v1439 = vrcp.pop %v1375
    %v1440 = vrcp.pop %v1376
    %v1441 = vrcp.pop %v1377
    %v1442 = vrcp.pop %v1378
    %v1443 = vrcp.pop %v1379
    %v1444 = vrcp.pop %v1380
    %v1445 = vrcp.pop %v1381
    %v1446 = vrcp.pop %v1382
    %v1447 = vrcp.pop %v1383
    %v1448 = vrcp.pop %v1384
    %v1449 = vrcp.pop %v1385
    %v1450 = vrcp.pop %v1386
    %v1451 = vrcp.pop %v1387
    %v1452 = vrcp.pop %v1388
    %v1453 = vrcp.pop %v1389
    %v1454 = vrcp.pop %v1390
    %v1455 = vrcp.pop %v1391
    %v1456 = vrcp.pop %v1392
    %v1457 = vrcp.pop %v1393
    %v1458 = vrcp.pop %v1394
    %v1459 = vrcp.pop %v1395
    %v1460 = vrcp.pop %v1396
    %v1461 = vrcp.pop %v1397
    %v1462 = vrcp.pop %v1398
    %v1463 = vrcp.pop %v1399
    %v1464 = vrcp.pop %v1400
    %v1465 = vrcp.pop %v1401
    %v1466 = vrcp.pop %v1402
    %v1467 = vrcp.pop %v1403
    %v1468 = vrcp.pop %v1404
    %v1469 = vrcp.pop %v1405
    %v1470 = vrcp.pop %v1406
    %v1471 = vrcp.pop %v1407
    %v1472 = vrcp.pop %v1408
    %v1473 = vrcp.pop %v1409
    %v1474 = vrcp.pop %v1410
    %v1475 = vrcp.pop %v1411
    %v1476 = vrcp.pop %v1412
    %v1477 = vrcp.pop %v1413
    %v1478 = vrcp.pop %v1414
    %v1479 = vrcp.pop %v1415
    %v1480 = vrcp.pop %v1416
    %v1481 = vrcp.pop %v1417
    %v1482 = vrcp.pop %v1418
    %v1483 = vrcp.pop %v1419
    %v1484 = vrcp.pop %v1420
    %v1485 = vrcp.pop %v1421
    %v1486 = vrcp.pop %v1422
    %v1487 = vrcp.pop %v1423
    %v1488 = vrcp.pop %v1424
    %v1489 = vrcp.pop %v1425
    %v1490 = vrcp.pop %v1426
    %v1491 = vrcp.pop %v1427
    %v1492 = vrcp.pop %v1428
    %v1493 = vrcp.pop %v1429
    %v1494 = vrcp.pop %v1430
    %vm1495 = vcmask 785920
    %v1496 = vsel %vm1495, %v792, -inf
    %1497 = vmax.xlane.f32.xlu0 %v1496
    %v1498 = vpop.xlane.xlu0 %1497
    %v1499 = vsel %vm1495, %v797, -inf
    %1500 = vmax.xlane.f32.xlu0 %v1499
    %v1501 = vpop.xlane.xlu0 %1500
    %v1502 = vsel %vm1495, %v802, -inf
    %1503 = vmax.xlane.f32.xlu0 %v1502
    %v1504 = vpop.xlane.xlu0 %1503
    %v1505 = vsel %vm1495, %v807, -inf
    %1506 = vmax.xlane.f32.xlu0 %v1505
    %v1507 = vpop.xlane.xlu0 %1506
    %v1508 = vsel %vm1495, %v812, -inf
    %1509 = vmax.xlane.f32.xlu0 %v1508
    %v1510 = vpop.xlane.xlu0 %1509
    %v1511 = vsel %vm1495, %v817, -inf
    %1512 = vmax.xlane.f32.xlu0 %v1511
    %v1513 = vpop.xlane.xlu0 %1512
    %v1514 = vsel %vm1495, %v822, -inf
    %1515 = vmax.xlane.f32.xlu0 %v1514
    %v1516 = vpop.xlane.xlu0 %1515
    %v1517 = vsel %vm1495, %v827, -inf
    %1518 = vmax.xlane.f32.xlu0 %v1517
    %v1519 = vpop.xlane.xlu0 %1518
    %v1520 = vsel %vm1495, %v832, -inf
    %1521 = vmax.xlane.f32.xlu0 %v1520
    %v1522 = vpop.xlane.xlu0 %1521
    %v1523 = vsel %vm1495, %v837, -inf
    %1524 = vmax.xlane.f32.xlu0 %v1523
    %v1525 = vpop.xlane.xlu0 %1524
    %v1526 = vsel %vm1495, %v842, -inf
    %1527 = vmax.xlane.f32.xlu0 %v1526
    %v1528 = vpop.xlane.xlu0 %1527
    %v1529 = vsel %vm1495, %v847, -inf
    %1530 = vmax.xlane.f32.xlu0 %v1529
    %v1531 = vpop.xlane.xlu0 %1530
    %v1532 = vsel %vm1495, %v852, -inf
    %1533 = vmax.xlane.f32.xlu0 %v1532
    %v1534 = vpop.xlane.xlu0 %1533
    %v1535 = vsel %vm1495, %v857, -inf
    %1536 = vmax.xlane.f32.xlu0 %v1535
    %v1537 = vpop.xlane.xlu0 %1536
    %v1538 = vsel %vm1495, %v862, -inf
    %1539 = vmax.xlane.f32.xlu0 %v1538
    %v1540 = vpop.xlane.xlu0 %1539
    %v1541 = vsel %vm1495, %v867, -inf
    %1542 = vmax.xlane.f32.xlu0 %v1541
    %v1543 = vpop.xlane.xlu0 %1542
    %v1544 = vsel %vm1495, %v872, -inf
    %1545 = vmax.xlane.f32.xlu0 %v1544
    %v1546 = vpop.xlane.xlu0 %1545
    %v1547 = vsel %vm1495, %v877, -inf
    %1548 = vmax.xlane.f32.xlu0 %v1547
    %v1549 = vpop.xlane.xlu0 %1548
    %v1550 = vsel %vm1495, %v882, -inf
    %1551 = vmax.xlane.f32.xlu0 %v1550
    %v1552 = vpop.xlane.xlu0 %1551
    %v1553 = vsel %vm1495, %v887, -inf
    %1554 = vmax.xlane.f32.xlu0 %v1553
    %v1555 = vpop.xlane.xlu0 %1554
    %v1556 = vsel %vm1495, %v892, -inf
    %1557 = vmax.xlane.f32.xlu0 %v1556
    %v1558 = vpop.xlane.xlu0 %1557
    %v1559 = vsel %vm1495, %v897, -inf
    %1560 = vmax.xlane.f32.xlu0 %v1559
    %v1561 = vpop.xlane.xlu0 %1560
    %v1562 = vsel %vm1495, %v902, -inf
    %1563 = vmax.xlane.f32.xlu0 %v1562
    %v1564 = vpop.xlane.xlu0 %1563
    %v1565 = vsel %vm1495, %v907, -inf
    %1566 = vmax.xlane.f32.xlu0 %v1565
    %v1567 = vpop.xlane.xlu0 %1566
    %v1568 = vsel %vm1495, %v912, -inf
    %1569 = vmax.xlane.f32.xlu0 %v1568
    %v1570 = vpop.xlane.xlu0 %1569
    %v1571 = vsel %vm1495, %v917, -inf
    %1572 = vmax.xlane.f32.xlu0 %v1571
    %v1573 = vpop.xlane.xlu0 %1572
    %v1574 = vsel %vm1495, %v922, -inf
    %1575 = vmax.xlane.f32.xlu0 %v1574
    %v1576 = vpop.xlane.xlu0 %1575
    %v1577 = vsel %vm1495, %v927, -inf
    %1578 = vmax.xlane.f32.xlu0 %v1577
    %v1579 = vpop.xlane.xlu0 %1578
    %v1580 = vsel %vm1495, %v932, -inf
    %1581 = vmax.xlane.f32.xlu0 %v1580
    %v1582 = vpop.xlane.xlu0 %1581
    %v1583 = vsel %vm1495, %v937, -inf
    %1584 = vmax.xlane.f32.xlu0 %v1583
    %v1585 = vpop.xlane.xlu0 %1584
    %v1586 = vsel %vm1495, %v942, -inf
    %1587 = vmax.xlane.f32.xlu0 %v1586
    %v1588 = vpop.xlane.xlu0 %1587
    %v1589 = vsel %vm1495, %v947, -inf
    %1590 = vmax.xlane.f32.xlu0 %v1589
    %v1591 = vpop.xlane.xlu0 %1590
    %v1592 = vsel %vm1495, %v952, -inf
    %1593 = vmax.xlane.f32.xlu0 %v1592
    %v1594 = vpop.xlane.xlu0 %1593
    %v1595 = vsel %vm1495, %v957, -inf
    %1596 = vmax.xlane.f32.xlu0 %v1595
    %v1597 = vpop.xlane.xlu0 %1596
    %v1598 = vsel %vm1495, %v962, -inf
    %1599 = vmax.xlane.f32.xlu0 %v1598
    %v1600 = vpop.xlane.xlu0 %1599
    %v1601 = vsel %vm1495, %v967, -inf
    %1602 = vmax.xlane.f32.xlu0 %v1601
    %v1603 = vpop.xlane.xlu0 %1602
    %v1604 = vsel %vm1495, %v972, -inf
    %1605 = vmax.xlane.f32.xlu0 %v1604
    %v1606 = vpop.xlane.xlu0 %1605
    %v1607 = vsel %vm1495, %v977, -inf
    %1608 = vmax.xlane.f32.xlu0 %v1607
    %v1609 = vpop.xlane.xlu0 %1608
    %v1610 = vsel %vm1495, %v982, -inf
    %1611 = vmax.xlane.f32.xlu0 %v1610
    %v1612 = vpop.xlane.xlu0 %1611
    %v1613 = vsel %vm1495, %v987, -inf
    %1614 = vmax.xlane.f32.xlu0 %v1613
    %v1615 = vpop.xlane.xlu0 %1614
    %v1616 = vsel %vm1495, %v992, -inf
    %1617 = vmax.xlane.f32.xlu0 %v1616
    %v1618 = vpop.xlane.xlu0 %1617
    %v1619 = vsel %vm1495, %v997, -inf
    %1620 = vmax.xlane.f32.xlu0 %v1619
    %v1621 = vpop.xlane.xlu0 %1620
    %v1622 = vsel %vm1495, %v1002, -inf
    %1623 = vmax.xlane.f32.xlu0 %v1622
    %v1624 = vpop.xlane.xlu0 %1623
    %v1625 = vsel %vm1495, %v1007, -inf
    %1626 = vmax.xlane.f32.xlu0 %v1625
    %v1627 = vpop.xlane.xlu0 %1626
    %v1628 = vsel %vm1495, %v1012, -inf
    %1629 = vmax.xlane.f32.xlu0 %v1628
    %v1630 = vpop.xlane.xlu0 %1629
    %v1631 = vsel %vm1495, %v1017, -inf
    %1632 = vmax.xlane.f32.xlu0 %v1631
    %v1633 = vpop.xlane.xlu0 %1632
    %v1634 = vsel %vm1495, %v1022, -inf
    %1635 = vmax.xlane.f32.xlu0 %v1634
    %v1636 = vpop.xlane.xlu0 %1635
    %v1637 = vsel %vm1495, %v1027, -inf
    %1638 = vmax.xlane.f32.xlu0 %v1637
    %v1639 = vpop.xlane.xlu0 %1638
    %v1640 = vsel %vm1495, %v1032, -inf
    %1641 = vmax.xlane.f32.xlu0 %v1640
    %v1642 = vpop.xlane.xlu0 %1641
    %v1643 = vsel %vm1495, %v1037, -inf
    %1644 = vmax.xlane.f32.xlu0 %v1643
    %v1645 = vpop.xlane.xlu0 %1644
    %v1646 = vsel %vm1495, %v1042, -inf
    %1647 = vmax.xlane.f32.xlu0 %v1646
    %v1648 = vpop.xlane.xlu0 %1647
    %v1649 = vsel %vm1495, %v1047, -inf
    %1650 = vmax.xlane.f32.xlu0 %v1649
    %v1651 = vpop.xlane.xlu0 %1650
    %v1652 = vsel %vm1495, %v1052, -inf
    %1653 = vmax.xlane.f32.xlu0 %v1652
    %v1654 = vpop.xlane.xlu0 %1653
    %v1655 = vsel %vm1495, %v1057, -inf
    %1656 = vmax.xlane.f32.xlu0 %v1655
    %v1657 = vpop.xlane.xlu0 %1656
    %v1658 = vsel %vm1495, %v1062, -inf
    %1659 = vmax.xlane.f32.xlu0 %v1658
    %v1660 = vpop.xlane.xlu0 %1659
    %v1661 = vsel %vm1495, %v1067, -inf
    %1662 = vmax.xlane.f32.xlu0 %v1661
    %v1663 = vpop.xlane.xlu0 %1662
    %v1664 = vsel %vm1495, %v1072, -inf
    %1665 = vmax.xlane.f32.xlu0 %v1664
    %v1666 = vpop.xlane.xlu0 %1665
    %v1667 = vsel %vm1495, %v1077, -inf
    %1668 = vmax.xlane.f32.xlu0 %v1667
    %v1669 = vpop.xlane.xlu0 %1668
    %v1670 = vsel %vm1495, %v1082, -inf
    %1671 = vmax.xlane.f32.xlu0 %v1670
    %v1672 = vpop.xlane.xlu0 %1671
    %v1673 = vsel %vm1495, %v1087, -inf
    %1674 = vmax.xlane.f32.xlu0 %v1673
    %v1675 = vpop.xlane.xlu0 %1674
    %v1676 = vsel %vm1495, %v1092, -inf
    %1677 = vmax.xlane.f32.xlu0 %v1676
    %v1678 = vpop.xlane.xlu0 %1677
    %v1679 = vsel %vm1495, %v1097, -inf
    %1680 = vmax.xlane.f32.xlu0 %v1679
    %v1681 = vpop.xlane.xlu0 %1680
    %v1682 = vsel %vm1495, %v1102, -inf
    %1683 = vmax.xlane.f32.xlu0 %v1682
    %v1684 = vpop.xlane.xlu0 %1683
    %v1685 = vsel %vm1495, %v1107, -inf
    %1686 = vmax.xlane.f32.xlu0 %v1685
    %v1687 = vpop.xlane.xlu0 %1686
    %v1688 = vsub.f32 %v792, %v1498
    %v1689 = vsub.f32 %v797, %v1501
    %v1690 = vsub.f32 %v802, %v1504
    %v1691 = vsub.f32 %v807, %v1507
    %v1692 = vsub.f32 %v812, %v1510
    %v1693 = vsub.f32 %v817, %v1513
    %v1694 = vsub.f32 %v822, %v1516
    %v1695 = vsub.f32 %v827, %v1519
    %v1696 = vsub.f32 %v832, %v1522
    %v1697 = vsub.f32 %v837, %v1525
    %v1698 = vsub.f32 %v842, %v1528
    %v1699 = vsub.f32 %v847, %v1531
    %v1700 = vsub.f32 %v852, %v1534
    %v1701 = vsub.f32 %v857, %v1537
    %v1702 = vsub.f32 %v862, %v1540
    %v1703 = vsub.f32 %v867, %v1543
    %v1704 = vsub.f32 %v872, %v1546
    %v1705 = vsub.f32 %v877, %v1549
    %v1706 = vsub.f32 %v882, %v1552
    %v1707 = vsub.f32 %v887, %v1555
    %v1708 = vsub.f32 %v892, %v1558
    %v1709 = vsub.f32 %v897, %v1561
    %v1710 = vsub.f32 %v902, %v1564
    %v1711 = vsub.f32 %v907, %v1567
    %v1712 = vsub.f32 %v912, %v1570
    %v1713 = vsub.f32 %v917, %v1573
    %v1714 = vsub.f32 %v922, %v1576
    %v1715 = vsub.f32 %v927, %v1579
    %v1716 = vsub.f32 %v932, %v1582
    %v1717 = vsub.f32 %v937, %v1585
    %v1718 = vsub.f32 %v942, %v1588
    %v1719 = vsub.f32 %v947, %v1591
    %v1720 = vsub.f32 %v952, %v1594
    %v1721 = vsub.f32 %v957, %v1597
    %v1722 = vsub.f32 %v962, %v1600
    %v1723 = vsub.f32 %v967, %v1603
    %v1724 = vsub.f32 %v972, %v1606
    %v1725 = vsub.f32 %v977, %v1609
    %v1726 = vsub.f32 %v982, %v1612
    %v1727 = vsub.f32 %v987, %v1615
    %v1728 = vsub.f32 %v992, %v1618
    %v1729 = vsub.f32 %v997, %v1621
    %v1730 = vsub.f32 %v1002, %v1624
    %v1731 = vsub.f32 %v1007, %v1627
    %v1732 = vsub.f32 %v1012, %v1630
    %v1733 = vsub.f32 %v1017, %v1633
    %v1734 = vsub.f32 %v1022, %v1636
    %v1735 = vsub.f32 %v1027, %v1639
    %v1736 = vsub.f32 %v1032, %v1642
    %v1737 = vsub.f32 %v1037, %v1645
    %v1738 = vsub.f32 %v1042, %v1648
    %v1739 = vsub.f32 %v1047, %v1651
    %v1740 = vsub.f32 %v1052, %v1654
    %v1741 = vsub.f32 %v1057, %v1657
    %v1742 = vsub.f32 %v1062, %v1660
    %v1743 = vsub.f32 %v1067, %v1663
    %v1744 = vsub.f32 %v1072, %v1666
    %v1745 = vsub.f32 %v1077, %v1669
    %v1746 = vsub.f32 %v1082, %v1672
    %v1747 = vsub.f32 %v1087, %v1675
    %v1748 = vsub.f32 %v1092, %v1678
    %v1749 = vsub.f32 %v1097, %v1681
    %v1750 = vsub.f32 %v1102, %v1684
    %v1751 = vsub.f32 %v1107, %v1687
    %v1752 = vmul.f32 %v1688, 1.442695
    %v1753 = vpow.pop %v1752
    %v1754 = vmul.f32 %v1689, 1.442695
    %v1755 = vpow.pop %v1754
    %v1756 = vmul.f32 %v1690, 1.442695
    %v1757 = vpow.pop %v1756
    %v1758 = vmul.f32 %v1691, 1.442695
    %v1759 = vpow.pop %v1758
    %v1760 = vmul.f32 %v1692, 1.442695
    %v1761 = vpow.pop %v1760
    %v1762 = vmul.f32 %v1693, 1.442695
    %v1763 = vpow.pop %v1762
    %v1764 = vmul.f32 %v1694, 1.442695
    %v1765 = vpow.pop %v1764
    %v1766 = vmul.f32 %v1695, 1.442695
    %v1767 = vpow.pop %v1766
    %v1768 = vmul.f32 %v1696, 1.442695
    %v1769 = vpow.pop %v1768
    %v1770 = vmul.f32 %v1697, 1.442695
    %v1771 = vpow.pop %v1770
    %v1772 = vmul.f32 %v1698, 1.442695
    %v1773 = vpow.pop %v1772
    %v1774 = vmul.f32 %v1699, 1.442695
    %v1775 = vpow.pop %v1774
    %v1776 = vmul.f32 %v1700, 1.442695
    %v1777 = vpow.pop %v1776
    %v1778 = vmul.f32 %v1701, 1.442695
    %v1779 = vpow.pop %v1778
    %v1780 = vmul.f32 %v1702, 1.442695
    %v1781 = vpow.pop %v1780
    %v1782 = vmul.f32 %v1703, 1.442695
    %v1783 = vpow.pop %v1782
    %v1784 = vmul.f32 %v1704, 1.442695
    %v1785 = vpow.pop %v1784
    %v1786 = vmul.f32 %v1705, 1.442695
    %v1787 = vpow.pop %v1786
    %v1788 = vmul.f32 %v1706, 1.442695
    %v1789 = vpow.pop %v1788
    %v1790 = vmul.f32 %v1707, 1.442695
    %v1791 = vpow.pop %v1790
    %v1792 = vmul.f32 %v1708, 1.442695
    %v1793 = vpow.pop %v1792
    %v1794 = vmul.f32 %v1709, 1.442695
    %v1795 = vpow.pop %v1794
    %v1796 = vmul.f32 %v1710, 1.442695
    %v1797 = vpow.pop %v1796
    %v1798 = vmul.f32 %v1711, 1.442695
    %v1799 = vpow.pop %v1798
    %v1800 = vmul.f32 %v1712, 1.442695
    %v1801 = vpow.pop %v1800
    %v1802 = vmul.f32 %v1713, 1.442695
    %v1803 = vpow.pop %v1802
    %v1804 = vmul.f32 %v1714, 1.442695
    %v1805 = vpow.pop %v1804
    %v1806 = vmul.f32 %v1715, 1.442695
    %v1807 = vpow.pop %v1806
    %v1808 = vmul.f32 %v1716, 1.442695
    %v1809 = vpow.pop %v1808
    %v1810 = vmul.f32 %v1717, 1.442695
    %v1811 = vpow.pop %v1810
    %v1812 = vmul.f32 %v1718, 1.442695
    %v1813 = vpow.pop %v1812
    %v1814 = vmul.f32 %v1719, 1.442695
    %v1815 = vpow.pop %v1814
    %v1816 = vmul.f32 %v1720, 1.442695
    %v1817 = vpow.pop %v1816
    %v1818 = vmul.f32 %v1721, 1.442695
    %v1819 = vpow.pop %v1818
    %v1820 = vmul.f32 %v1722, 1.442695
    %v1821 = vpow.pop %v1820
    %v1822 = vmul.f32 %v1723, 1.442695
    %v1823 = vpow.pop %v1822
    %v1824 = vmul.f32 %v1724, 1.442695
    %v1825 = vpow.pop %v1824
    %v1826 = vmul.f32 %v1725, 1.442695
    %v1827 = vpow.pop %v1826
    %v1828 = vmul.f32 %v1726, 1.442695
    %v1829 = vpow.pop %v1828
    %v1830 = vmul.f32 %v1727, 1.442695
    %v1831 = vpow.pop %v1830
    %v1832 = vmul.f32 %v1728, 1.442695
    %v1833 = vpow.pop %v1832
    %v1834 = vmul.f32 %v1729, 1.442695
    %v1835 = vpow.pop %v1834
    %v1836 = vmul.f32 %v1730, 1.442695
    %v1837 = vpow.pop %v1836
    %v1838 = vmul.f32 %v1731, 1.442695
    %v1839 = vpow.pop %v1838
    %v1840 = vmul.f32 %v1732, 1.442695
    %v1841 = vpow.pop %v1840
    %v1842 = vmul.f32 %v1733, 1.442695
    %v1843 = vpow.pop %v1842
    %v1844 = vmul.f32 %v1734, 1.442695
    %v1845 = vpow.pop %v1844
    %v1846 = vmul.f32 %v1735, 1.442695
    %v1847 = vpow.pop %v1846
    %v1848 = vmul.f32 %v1736, 1.442695
    %v1849 = vpow.pop %v1848
    %v1850 = vmul.f32 %v1737, 1.442695
    %v1851 = vpow.pop %v1850
    %v1852 = vmul.f32 %v1738, 1.442695
    %v1853 = vpow.pop %v1852
    %v1854 = vmul.f32 %v1739, 1.442695
    %v1855 = vpow.pop %v1854
    %v1856 = vmul.f32 %v1740, 1.442695
    %v1857 = vpow.pop %v1856
    %v1858 = vmul.f32 %v1741, 1.442695
    %v1859 = vpow.pop %v1858
    %v1860 = vmul.f32 %v1742, 1.442695
    %v1861 = vpow.pop %v1860
    %v1862 = vmul.f32 %v1743, 1.442695
    %v1863 = vpow.pop %v1862
    %v1864 = vmul.f32 %v1744, 1.442695
    %v1865 = vpow.pop %v1864
    %v1866 = vmul.f32 %v1745, 1.442695
    %v1867 = vpow.pop %v1866
    %v1868 = vmul.f32 %v1746, 1.442695
    %v1869 = vpow.pop %v1868
    %v1870 = vmul.f32 %v1747, 1.442695
    %v1871 = vpow.pop %v1870
    %v1872 = vmul.f32 %v1748, 1.442695
    %v1873 = vpow.pop %v1872
    %v1874 = vmul.f32 %v1749, 1.442695
    %v1875 = vpow.pop %v1874
    %v1876 = vmul.f32 %v1750, 1.442695
    %v1877 = vpow.pop %v1876
    %v1878 = vmul.f32 %v1751, 1.442695
    %v1879 = vpow.pop %v1878
    %1944 = vrot.lane.b32.xlu0 %v1753, 64
    %v1945 = vpop.permute.xlu0 %1944
    %1946 = vrot.lane.b32.xlu0 %v1755, 64
    %v1947 = vpop.permute.xlu0 %1946
    %1948 = vrot.lane.b32.xlu0 %v1757, 64
    %v1949 = vpop.permute.xlu0 %1948
    %1950 = vrot.lane.b32.xlu0 %v1759, 64
    %v1951 = vpop.permute.xlu0 %1950
    %1952 = vrot.lane.b32.xlu0 %v1761, 64
    %v1953 = vpop.permute.xlu0 %1952
    %1954 = vrot.lane.b32.xlu0 %v1763, 64
    %v1955 = vpop.permute.xlu0 %1954
    %1956 = vrot.lane.b32.xlu0 %v1765, 64
    %v1957 = vpop.permute.xlu0 %1956
    %1958 = vrot.lane.b32.xlu0 %v1767, 64
    %v1959 = vpop.permute.xlu0 %1958
    %1960 = vrot.lane.b32.xlu0 %v1769, 64
    %v1961 = vpop.permute.xlu0 %1960
    %1962 = vrot.lane.b32.xlu0 %v1771, 64
    %v1963 = vpop.permute.xlu0 %1962
    %1964 = vrot.lane.b32.xlu0 %v1773, 64
    %v1965 = vpop.permute.xlu0 %1964
    %1966 = vrot.lane.b32.xlu0 %v1775, 64
    %v1967 = vpop.permute.xlu0 %1966
    %1968 = vrot.lane.b32.xlu0 %v1777, 64
    %v1969 = vpop.permute.xlu0 %1968
    %1970 = vrot.lane.b32.xlu0 %v1779, 64
    %v1971 = vpop.permute.xlu0 %1970
    %1972 = vrot.lane.b32.xlu0 %v1781, 64
    %v1973 = vpop.permute.xlu0 %1972
    %1974 = vrot.lane.b32.xlu0 %v1783, 64
    %v1975 = vpop.permute.xlu0 %1974
    %1976 = vrot.lane.b32.xlu0 %v1785, 64
    %v1977 = vpop.permute.xlu0 %1976
    %1978 = vrot.lane.b32.xlu0 %v1787, 64
    %v1979 = vpop.permute.xlu0 %1978
    %1980 = vrot.lane.b32.xlu0 %v1789, 64
    %v1981 = vpop.permute.xlu0 %1980
    %1982 = vrot.lane.b32.xlu0 %v1791, 64
    %v1983 = vpop.permute.xlu0 %1982
    %1984 = vrot.lane.b32.xlu0 %v1793, 64
    %v1985 = vpop.permute.xlu0 %1984
    %1986 = vrot.lane.b32.xlu0 %v1795, 64
    %v1987 = vpop.permute.xlu0 %1986
    %1988 = vrot.lane.b32.xlu0 %v1797, 64
    %v1989 = vpop.permute.xlu0 %1988
    %1990 = vrot.lane.b32.xlu0 %v1799, 64
    %v1991 = vpop.permute.xlu0 %1990
    %1992 = vrot.lane.b32.xlu0 %v1801, 64
    %v1993 = vpop.permute.xlu0 %1992
    %1994 = vrot.lane.b32.xlu0 %v1803, 64
    %v1995 = vpop.permute.xlu0 %1994
    %1996 = vrot.lane.b32.xlu0 %v1805, 64
    %v1997 = vpop.permute.xlu0 %1996
    %1998 = vrot.lane.b32.xlu0 %v1807, 64
    %v1999 = vpop.permute.xlu0 %1998
    %2000 = vrot.lane.b32.xlu0 %v1809, 64
    %v2001 = vpop.permute.xlu0 %2000
    %2002 = vrot.lane.b32.xlu0 %v1811, 64
    %v2003 = vpop.permute.xlu0 %2002
    %2004 = vrot.lane.b32.xlu0 %v1813, 64
    %v2005 = vpop.permute.xlu0 %2004
    %2006 = vrot.lane.b32.xlu0 %v1815, 64
    %v2007 = vpop.permute.xlu0 %2006
    %2008 = vrot.lane.b32.xlu0 %v1817, 64
    %v2009 = vpop.permute.xlu0 %2008
    %2010 = vrot.lane.b32.xlu0 %v1819, 64
    %v2011 = vpop.permute.xlu0 %2010
    %2012 = vrot.lane.b32.xlu0 %v1821, 64
    %v2013 = vpop.permute.xlu0 %2012
    %2014 = vrot.lane.b32.xlu0 %v1823, 64
    %v2015 = vpop.permute.xlu0 %2014
    %2016 = vrot.lane.b32.xlu0 %v1825, 64
    %v2017 = vpop.permute.xlu0 %2016
    %2018 = vrot.lane.b32.xlu0 %v1827, 64
    %v2019 = vpop.permute.xlu0 %2018
    %2020 = vrot.lane.b32.xlu0 %v1829, 64
    %v2021 = vpop.permute.xlu0 %2020
    %2022 = vrot.lane.b32.xlu0 %v1831, 64
    %v2023 = vpop.permute.xlu0 %2022
    %2024 = vrot.lane.b32.xlu0 %v1833, 64
    %v2025 = vpop.permute.xlu0 %2024
    %2026 = vrot.lane.b32.xlu0 %v1835, 64
    %v2027 = vpop.permute.xlu0 %2026
    %2028 = vrot.lane.b32.xlu0 %v1837, 64
    %v2029 = vpop.permute.xlu0 %2028
    %2030 = vrot.lane.b32.xlu0 %v1839, 64
    %v2031 = vpop.permute.xlu0 %2030
    %2032 = vrot.lane.b32.xlu0 %v1841, 64
    %v2033 = vpop.permute.xlu0 %2032
    %2034 = vrot.lane.b32.xlu0 %v1843, 64
    %v2035 = vpop.permute.xlu0 %2034
    %2036 = vrot.lane.b32.xlu0 %v1845, 64
    %v2037 = vpop.permute.xlu0 %2036
    %2038 = vrot.lane.b32.xlu0 %v1847, 64
    %v2039 = vpop.permute.xlu0 %2038
    %2040 = vrot.lane.b32.xlu0 %v1849, 64
    %v2041 = vpop.permute.xlu0 %2040
    %2042 = vrot.lane.b32.xlu0 %v1851, 64
    %v2043 = vpop.permute.xlu0 %2042
    %2044 = vrot.lane.b32.xlu0 %v1853, 64
    %v2045 = vpop.permute.xlu0 %2044
    %2046 = vrot.lane.b32.xlu0 %v1855, 64
    %v2047 = vpop.permute.xlu0 %2046
    %2048 = vrot.lane.b32.xlu0 %v1857, 64
    %v2049 = vpop.permute.xlu0 %2048
    %2050 = vrot.lane.b32.xlu0 %v1859, 64
    %v2051 = vpop.permute.xlu0 %2050
    %2052 = vrot.lane.b32.xlu0 %v1861, 64
    %v2053 = vpop.permute.xlu0 %2052
    %2054 = vrot.lane.b32.xlu0 %v1863, 64
    %v2055 = vpop.permute.xlu0 %2054
    %2056 = vrot.lane.b32.xlu0 %v1865, 64
    %v2057 = vpop.permute.xlu0 %2056
    %2058 = vrot.lane.b32.xlu0 %v1867, 64
    %v2059 = vpop.permute.xlu0 %2058
    %2060 = vrot.lane.b32.xlu0 %v1869, 64
    %v2061 = vpop.permute.xlu0 %2060
    %2062 = vrot.lane.b32.xlu0 %v1871, 64
    %v2063 = vpop.permute.xlu0 %2062
    %2064 = vrot.lane.b32.xlu0 %v1873, 64
    %v2065 = vpop.permute.xlu0 %2064
    %2066 = vrot.lane.b32.xlu0 %v1875, 64
    %v2067 = vpop.permute.xlu0 %2066
    %2068 = vrot.lane.b32.xlu0 %v1877, 64
    %v2069 = vpop.permute.xlu0 %2068
    %2070 = vrot.lane.b32.xlu0 %v1879, 64
    %v2071 = vpop.permute.xlu0 %2070
    %vm2136 = vcmask 64512
    %v2137 = vsel %vm2136, %v1945, 0.0
    %2138 = vadd.xlane.f32.xlu0 %v2137
    %v2139 = vpop.xlane.xlu0 %2138
    %v2140 = vsel %vm2136, %v1947, 0.0
    %2141 = vadd.xlane.f32.xlu0 %v2140
    %v2142 = vpop.xlane.xlu0 %2141
    %v2143 = vsel %vm2136, %v1949, 0.0
    %2144 = vadd.xlane.f32.xlu0 %v2143
    %v2145 = vpop.xlane.xlu0 %2144
    %v2146 = vsel %vm2136, %v1951, 0.0
    %2147 = vadd.xlane.f32.xlu0 %v2146
    %v2148 = vpop.xlane.xlu0 %2147
    %v2149 = vsel %vm2136, %v1953, 0.0
    %2150 = vadd.xlane.f32.xlu0 %v2149
    %v2151 = vpop.xlane.xlu0 %2150
    %v2152 = vsel %vm2136, %v1955, 0.0
    %2153 = vadd.xlane.f32.xlu0 %v2152
    %v2154 = vpop.xlane.xlu0 %2153
    %v2155 = vsel %vm2136, %v1957, 0.0
    %2156 = vadd.xlane.f32.xlu0 %v2155
    %v2157 = vpop.xlane.xlu0 %2156
    %v2158 = vsel %vm2136, %v1959, 0.0
    %2159 = vadd.xlane.f32.xlu0 %v2158
    %v2160 = vpop.xlane.xlu0 %2159
    %v2161 = vsel %vm2136, %v1961, 0.0
    %2162 = vadd.xlane.f32.xlu0 %v2161
    %v2163 = vpop.xlane.xlu0 %2162
    %v2164 = vsel %vm2136, %v1963, 0.0
    %2165 = vadd.xlane.f32.xlu0 %v2164
    %v2166 = vpop.xlane.xlu0 %2165
    %v2167 = vsel %vm2136, %v1965, 0.0
    %2168 = vadd.xlane.f32.xlu0 %v2167
    %v2169 = vpop.xlane.xlu0 %2168
    %v2170 = vsel %vm2136, %v1967, 0.0
    %2171 = vadd.xlane.f32.xlu0 %v2170
    %v2172 = vpop.xlane.xlu0 %2171
    %v2173 = vsel %vm2136, %v1969, 0.0
    %2174 = vadd.xlane.f32.xlu0 %v2173
    %v2175 = vpop.xlane.xlu0 %2174
    %v2176 = vsel %vm2136, %v1971, 0.0
    %2177 = vadd.xlane.f32.xlu0 %v2176
    %v2178 = vpop.xlane.xlu0 %2177
    %v2179 = vsel %vm2136, %v1973, 0.0
    %2180 = vadd.xlane.f32.xlu0 %v2179
    %v2181 = vpop.xlane.xlu0 %2180
    %v2182 = vsel %vm2136, %v1975, 0.0
    %2183 = vadd.xlane.f32.xlu0 %v2182
    %v2184 = vpop.xlane.xlu0 %2183
    %v2185 = vsel %vm2136, %v1977, 0.0
    %2186 = vadd.xlane.f32.xlu0 %v2185
    %v2187 = vpop.xlane.xlu0 %2186
    %v2188 = vsel %vm2136, %v1979, 0.0
    %2189 = vadd.xlane.f32.xlu0 %v2188
    %v2190 = vpop.xlane.xlu0 %2189
    %v2191 = vsel %vm2136, %v1981, 0.0
    %2192 = vadd.xlane.f32.xlu0 %v2191
    %v2193 = vpop.xlane.xlu0 %2192
    %v2194 = vsel %vm2136, %v1983, 0.0
    %2195 = vadd.xlane.f32.xlu0 %v2194
    %v2196 = vpop.xlane.xlu0 %2195
    %v2197 = vsel %vm2136, %v1985, 0.0
    %2198 = vadd.xlane.f32.xlu0 %v2197
    %v2199 = vpop.xlane.xlu0 %2198
    %v2200 = vsel %vm2136, %v1987, 0.0
    %2201 = vadd.xlane.f32.xlu0 %v2200
    %v2202 = vpop.xlane.xlu0 %2201
    %v2203 = vsel %vm2136, %v1989, 0.0
    %2204 = vadd.xlane.f32.xlu0 %v2203
    %v2205 = vpop.xlane.xlu0 %2204
    %v2206 = vsel %vm2136, %v1991, 0.0
    %2207 = vadd.xlane.f32.xlu0 %v2206
    %v2208 = vpop.xlane.xlu0 %2207
    %v2209 = vsel %vm2136, %v1993, 0.0
    %2210 = vadd.xlane.f32.xlu0 %v2209
    %v2211 = vpop.xlane.xlu0 %2210
    %v2212 = vsel %vm2136, %v1995, 0.0
    %2213 = vadd.xlane.f32.xlu0 %v2212
    %v2214 = vpop.xlane.xlu0 %2213
    %v2215 = vsel %vm2136, %v1997, 0.0
    %2216 = vadd.xlane.f32.xlu0 %v2215
    %v2217 = vpop.xlane.xlu0 %2216
    %v2218 = vsel %vm2136, %v1999, 0.0
    %2219 = vadd.xlane.f32.xlu0 %v2218
    %v2220 = vpop.xlane.xlu0 %2219
    %v2221 = vsel %vm2136, %v2001, 0.0
    %2222 = vadd.xlane.f32.xlu0 %v2221
    %v2223 = vpop.xlane.xlu0 %2222
    %v2224 = vsel %vm2136, %v2003, 0.0
    %2225 = vadd.xlane.f32.xlu0 %v2224
    %v2226 = vpop.xlane.xlu0 %2225
    %v2227 = vsel %vm2136, %v2005, 0.0
    %2228 = vadd.xlane.f32.xlu0 %v2227
    %v2229 = vpop.xlane.xlu0 %2228
    %v2230 = vsel %vm2136, %v2007, 0.0
    %2231 = vadd.xlane.f32.xlu0 %v2230
    %v2232 = vpop.xlane.xlu0 %2231
    %v2233 = vsel %vm2136, %v2009, 0.0
    %2234 = vadd.xlane.f32.xlu0 %v2233
    %v2235 = vpop.xlane.xlu0 %2234
    %v2236 = vsel %vm2136, %v2011, 0.0
    %2237 = vadd.xlane.f32.xlu0 %v2236
    %v2238 = vpop.xlane.xlu0 %2237
    %v2239 = vsel %vm2136, %v2013, 0.0
    %2240 = vadd.xlane.f32.xlu0 %v2239
    %v2241 = vpop.xlane.xlu0 %2240
    %v2242 = vsel %vm2136, %v2015, 0.0
    %2243 = vadd.xlane.f32.xlu0 %v2242
    %v2244 = vpop.xlane.xlu0 %2243
    %v2245 = vsel %vm2136, %v2017, 0.0
    %2246 = vadd.xlane.f32.xlu0 %v2245
    %v2247 = vpop.xlane.xlu0 %2246
    %v2248 = vsel %vm2136, %v2019, 0.0
    %2249 = vadd.xlane.f32.xlu0 %v2248
    %v2250 = vpop.xlane.xlu0 %2249
    %v2251 = vsel %vm2136, %v2021, 0.0
    %2252 = vadd.xlane.f32.xlu0 %v2251
    %v2253 = vpop.xlane.xlu0 %2252
    %v2254 = vsel %vm2136, %v2023, 0.0
    %2255 = vadd.xlane.f32.xlu0 %v2254
    %v2256 = vpop.xlane.xlu0 %2255
    %v2257 = vsel %vm2136, %v2025, 0.0
    %2258 = vadd.xlane.f32.xlu0 %v2257
    %v2259 = vpop.xlane.xlu0 %2258
    %v2260 = vsel %vm2136, %v2027, 0.0
    %2261 = vadd.xlane.f32.xlu0 %v2260
    %v2262 = vpop.xlane.xlu0 %2261
    %v2263 = vsel %vm2136, %v2029, 0.0
    %2264 = vadd.xlane.f32.xlu0 %v2263
    %v2265 = vpop.xlane.xlu0 %2264
    %v2266 = vsel %vm2136, %v2031, 0.0
    %2267 = vadd.xlane.f32.xlu0 %v2266
    %v2268 = vpop.xlane.xlu0 %2267
    %v2269 = vsel %vm2136, %v2033, 0.0
    %2270 = vadd.xlane.f32.xlu0 %v2269
    %v2271 = vpop.xlane.xlu0 %2270
    %v2272 = vsel %vm2136, %v2035, 0.0
    %2273 = vadd.xlane.f32.xlu0 %v2272
    %v2274 = vpop.xlane.xlu0 %2273
    %v2275 = vsel %vm2136, %v2037, 0.0
    %2276 = vadd.xlane.f32.xlu0 %v2275
    %v2277 = vpop.xlane.xlu0 %2276
    %v2278 = vsel %vm2136, %v2039, 0.0
    %2279 = vadd.xlane.f32.xlu0 %v2278
    %v2280 = vpop.xlane.xlu0 %2279
    %v2281 = vsel %vm2136, %v2041, 0.0
    %2282 = vadd.xlane.f32.xlu0 %v2281
    %v2283 = vpop.xlane.xlu0 %2282
    %v2284 = vsel %vm2136, %v2043, 0.0
    %2285 = vadd.xlane.f32.xlu0 %v2284
    %v2286 = vpop.xlane.xlu0 %2285
    %v2287 = vsel %vm2136, %v2045, 0.0
    %2288 = vadd.xlane.f32.xlu0 %v2287
    %v2289 = vpop.xlane.xlu0 %2288
    %v2290 = vsel %vm2136, %v2047, 0.0
    %2291 = vadd.xlane.f32.xlu0 %v2290
    %v2292 = vpop.xlane.xlu0 %2291
    %v2293 = vsel %vm2136, %v2049, 0.0
    %2294 = vadd.xlane.f32.xlu0 %v2293
    %v2295 = vpop.xlane.xlu0 %2294
    %v2296 = vsel %vm2136, %v2051, 0.0
    %2297 = vadd.xlane.f32.xlu0 %v2296
    %v2298 = vpop.xlane.xlu0 %2297
    %v2299 = vsel %vm2136, %v2053, 0.0
    %2300 = vadd.xlane.f32.xlu0 %v2299
    %v2301 = vpop.xlane.xlu0 %2300
    %v2302 = vsel %vm2136, %v2055, 0.0
    %2303 = vadd.xlane.f32.xlu0 %v2302
    %v2304 = vpop.xlane.xlu0 %2303
    %v2305 = vsel %vm2136, %v2057, 0.0
    %2306 = vadd.xlane.f32.xlu0 %v2305
    %v2307 = vpop.xlane.xlu0 %2306
    %v2308 = vsel %vm2136, %v2059, 0.0
    %2309 = vadd.xlane.f32.xlu0 %v2308
    %v2310 = vpop.xlane.xlu0 %2309
    %v2311 = vsel %vm2136, %v2061, 0.0
    %2312 = vadd.xlane.f32.xlu0 %v2311
    %v2313 = vpop.xlane.xlu0 %2312
    %v2314 = vsel %vm2136, %v2063, 0.0
    %2315 = vadd.xlane.f32.xlu0 %v2314
    %v2316 = vpop.xlane.xlu0 %2315
    %v2317 = vsel %vm2136, %v2065, 0.0
    %2318 = vadd.xlane.f32.xlu0 %v2317
    %v2319 = vpop.xlane.xlu0 %2318
    %v2320 = vsel %vm2136, %v2067, 0.0
    %2321 = vadd.xlane.f32.xlu0 %v2320
    %v2322 = vpop.xlane.xlu0 %2321
    %v2323 = vsel %vm2136, %v2069, 0.0
    %2324 = vadd.xlane.f32.xlu0 %v2323
    %v2325 = vpop.xlane.xlu0 %2324
    %v2326 = vsel %vm2136, %v2071, 0.0
    %2327 = vadd.xlane.f32.xlu0 %v2326
    %v2328 = vpop.xlane.xlu0 %2327
    %v2329 = vrcp.pop %v2139
    %v2330 = vrcp.pop %v2142
    %v2331 = vrcp.pop %v2145
    %v2332 = vrcp.pop %v2148
    %v2333 = vrcp.pop %v2151
    %v2334 = vrcp.pop %v2154
    %v2335 = vrcp.pop %v2157
    %v2336 = vrcp.pop %v2160
    %v2337 = vrcp.pop %v2163
    %v2338 = vrcp.pop %v2166
    %v2339 = vrcp.pop %v2169
    %v2340 = vrcp.pop %v2172
    %v2341 = vrcp.pop %v2175
    %v2342 = vrcp.pop %v2178
    %v2343 = vrcp.pop %v2181
    %v2344 = vrcp.pop %v2184
    %v2345 = vrcp.pop %v2187
    %v2346 = vrcp.pop %v2190
    %v2347 = vrcp.pop %v2193
    %v2348 = vrcp.pop %v2196
    %v2349 = vrcp.pop %v2199
    %v2350 = vrcp.pop %v2202
    %v2351 = vrcp.pop %v2205
    %v2352 = vrcp.pop %v2208
    %v2353 = vrcp.pop %v2211
    %v2354 = vrcp.pop %v2214
    %v2355 = vrcp.pop %v2217
    %v2356 = vrcp.pop %v2220
    %v2357 = vrcp.pop %v2223
    %v2358 = vrcp.pop %v2226
    %v2359 = vrcp.pop %v2229
    %v2360 = vrcp.pop %v2232
    %v2361 = vrcp.pop %v2235
    %v2362 = vrcp.pop %v2238
    %v2363 = vrcp.pop %v2241
    %v2364 = vrcp.pop %v2244
    %v2365 = vrcp.pop %v2247
    %v2366 = vrcp.pop %v2250
    %v2367 = vrcp.pop %v2253
    %v2368 = vrcp.pop %v2256
    %v2369 = vrcp.pop %v2259
    %v2370 = vrcp.pop %v2262
    %v2371 = vrcp.pop %v2265
    %v2372 = vrcp.pop %v2268
    %v2373 = vrcp.pop %v2271
    %v2374 = vrcp.pop %v2274
    %v2375 = vrcp.pop %v2277
    %v2376 = vrcp.pop %v2280
    %v2377 = vrcp.pop %v2283
    %v2378 = vrcp.pop %v2286
    %v2379 = vrcp.pop %v2289
    %v2380 = vrcp.pop %v2292
    %v2381 = vrcp.pop %v2295
    %v2382 = vrcp.pop %v2298
    %v2383 = vrcp.pop %v2301
    %v2384 = vrcp.pop %v2304
    %v2385 = vrcp.pop %v2307
    %v2386 = vrcp.pop %v2310
    %v2387 = vrcp.pop %v2313
    %v2388 = vrcp.pop %v2316
    %v2389 = vrcp.pop %v2319
    %v2390 = vrcp.pop %v2322
    %v2391 = vrcp.pop %v2325
    %v2392 = vrcp.pop %v2328
    %v2393 = vmul.f32 %v1753, %v2329
    %v2394 = vmul.f32 %v1755, %v2330
    %v2395 = vmul.f32 %v1757, %v2331
    %v2396 = vmul.f32 %v1759, %v2332
    %v2397 = vmul.f32 %v1761, %v2333
    %v2398 = vmul.f32 %v1763, %v2334
    %v2399 = vmul.f32 %v1765, %v2335
    %v2400 = vmul.f32 %v1767, %v2336
    %v2401 = vmul.f32 %v1769, %v2337
    %v2402 = vmul.f32 %v1771, %v2338
    %v2403 = vmul.f32 %v1773, %v2339
    %v2404 = vmul.f32 %v1775, %v2340
    %v2405 = vmul.f32 %v1777, %v2341
    %v2406 = vmul.f32 %v1779, %v2342
    %v2407 = vmul.f32 %v1781, %v2343
    %v2408 = vmul.f32 %v1783, %v2344
    %v2409 = vmul.f32 %v1785, %v2345
    %v2410 = vmul.f32 %v1787, %v2346
    %v2411 = vmul.f32 %v1789, %v2347
    %v2412 = vmul.f32 %v1791, %v2348
    %v2413 = vmul.f32 %v1793, %v2349
    %v2414 = vmul.f32 %v1795, %v2350
    %v2415 = vmul.f32 %v1797, %v2351
    %v2416 = vmul.f32 %v1799, %v2352
    %v2417 = vmul.f32 %v1801, %v2353
    %v2418 = vmul.f32 %v1803, %v2354
    %v2419 = vmul.f32 %v1805, %v2355
    %v2420 = vmul.f32 %v1807, %v2356
    %v2421 = vmul.f32 %v1809, %v2357
    %v2422 = vmul.f32 %v1811, %v2358
    %v2423 = vmul.f32 %v1813, %v2359
    %v2424 = vmul.f32 %v1815, %v2360
    %v2425 = vmul.f32 %v1817, %v2361
    %v2426 = vmul.f32 %v1819, %v2362
    %v2427 = vmul.f32 %v1821, %v2363
    %v2428 = vmul.f32 %v1823, %v2364
    %v2429 = vmul.f32 %v1825, %v2365
    %v2430 = vmul.f32 %v1827, %v2366
    %v2431 = vmul.f32 %v1829, %v2367
    %v2432 = vmul.f32 %v1831, %v2368
    %v2433 = vmul.f32 %v1833, %v2369
    %v2434 = vmul.f32 %v1835, %v2370
    %v2435 = vmul.f32 %v1837, %v2371
    %v2436 = vmul.f32 %v1839, %v2372
    %v2437 = vmul.f32 %v1841, %v2373
    %v2438 = vmul.f32 %v1843, %v2374
    %v2439 = vmul.f32 %v1845, %v2375
    %v2440 = vmul.f32 %v1847, %v2376
    %v2441 = vmul.f32 %v1849, %v2377
    %v2442 = vmul.f32 %v1851, %v2378
    %v2443 = vmul.f32 %v1853, %v2379
    %v2444 = vmul.f32 %v1855, %v2380
    %v2445 = vmul.f32 %v1857, %v2381
    %v2446 = vmul.f32 %v1859, %v2382
    %v2447 = vmul.f32 %v1861, %v2383
    %v2448 = vmul.f32 %v1863, %v2384
    %v2449 = vmul.f32 %v1865, %v2385
    %v2450 = vmul.f32 %v1867, %v2386
    %v2451 = vmul.f32 %v1869, %v2387
    %v2452 = vmul.f32 %v1871, %v2388
    %v2453 = vmul.f32 %v1873, %v2389
    %v2454 = vmul.f32 %v1875, %v2390
    %v2455 = vmul.f32 %v1877, %v2391
    %v2456 = vmul.f32 %v1879, %v2392
    %2458 = vset.pattern.permute.xlu0 96
    %2459 = vperm.xlu0 %2458, %v1431
    %v2460 = vpop.permute.xlu0 %2459
    %2463 = vset.pattern.permute.xlu0 96
    %2464 = vperm.xlu0 %2463, %v1432
    %v2465 = vpop.permute.xlu0 %2464
    %2468 = vset.pattern.permute.xlu0 96
    %2469 = vperm.xlu0 %2468, %v1433
    %v2470 = vpop.permute.xlu0 %2469
    %2473 = vset.pattern.permute.xlu0 96
    %2474 = vperm.xlu0 %2473, %v1434
    %v2475 = vpop.permute.xlu0 %2474
    %2478 = vset.pattern.permute.xlu0 96
    %2479 = vperm.xlu0 %2478, %v1435
    %v2480 = vpop.permute.xlu0 %2479
    %2483 = vset.pattern.permute.xlu0 96
    %2484 = vperm.xlu0 %2483, %v1436
    %v2485 = vpop.permute.xlu0 %2484
    %2488 = vset.pattern.permute.xlu0 96
    %2489 = vperm.xlu0 %2488, %v1437
    %v2490 = vpop.permute.xlu0 %2489
    %2493 = vset.pattern.permute.xlu0 96
    %2494 = vperm.xlu0 %2493, %v1438
    %v2495 = vpop.permute.xlu0 %2494
    %2498 = vset.pattern.permute.xlu0 96
    %2499 = vperm.xlu0 %2498, %v1439
    %v2500 = vpop.permute.xlu0 %2499
    %2503 = vset.pattern.permute.xlu0 96
    %2504 = vperm.xlu0 %2503, %v1440
    %v2505 = vpop.permute.xlu0 %2504
    %2508 = vset.pattern.permute.xlu0 96
    %2509 = vperm.xlu0 %2508, %v1441
    %v2510 = vpop.permute.xlu0 %2509
    %2513 = vset.pattern.permute.xlu0 96
    %2514 = vperm.xlu0 %2513, %v1442
    %v2515 = vpop.permute.xlu0 %2514
    %2518 = vset.pattern.permute.xlu0 96
    %2519 = vperm.xlu0 %2518, %v1443
    %v2520 = vpop.permute.xlu0 %2519
    %2523 = vset.pattern.permute.xlu0 96
    %2524 = vperm.xlu0 %2523, %v1444
    %v2525 = vpop.permute.xlu0 %2524
    %2528 = vset.pattern.permute.xlu0 96
    %2529 = vperm.xlu0 %2528, %v1445
    %v2530 = vpop.permute.xlu0 %2529
    %2533 = vset.pattern.permute.xlu0 96
    %2534 = vperm.xlu0 %2533, %v1446
    %v2535 = vpop.permute.xlu0 %2534
    %2538 = vset.pattern.permute.xlu0 96
    %2539 = vperm.xlu0 %2538, %v1447
    %v2540 = vpop.permute.xlu0 %2539
    %2543 = vset.pattern.permute.xlu0 96
    %2544 = vperm.xlu0 %2543, %v1448
    %v2545 = vpop.permute.xlu0 %2544
    %2548 = vset.pattern.permute.xlu0 96
    %2549 = vperm.xlu0 %2548, %v1449
    %v2550 = vpop.permute.xlu0 %2549
    %2553 = vset.pattern.permute.xlu0 96
    %2554 = vperm.xlu0 %2553, %v1450
    %v2555 = vpop.permute.xlu0 %2554
    %2558 = vset.pattern.permute.xlu0 96
    %2559 = vperm.xlu0 %2558, %v1451
    %v2560 = vpop.permute.xlu0 %2559
    %2563 = vset.pattern.permute.xlu0 96
    %2564 = vperm.xlu0 %2563, %v1452
    %v2565 = vpop.permute.xlu0 %2564
    %2568 = vset.pattern.permute.xlu0 96
    %2569 = vperm.xlu0 %2568, %v1453
    %v2570 = vpop.permute.xlu0 %2569
    %2573 = vset.pattern.permute.xlu0 96
    %2574 = vperm.xlu0 %2573, %v1454
    %v2575 = vpop.permute.xlu0 %2574
    %2578 = vset.pattern.permute.xlu0 96
    %2579 = vperm.xlu0 %2578, %v1455
    %v2580 = vpop.permute.xlu0 %2579
    %2583 = vset.pattern.permute.xlu0 96
    %2584 = vperm.xlu0 %2583, %v1456
    %v2585 = vpop.permute.xlu0 %2584
    %2588 = vset.pattern.permute.xlu0 96
    %2589 = vperm.xlu0 %2588, %v1457
    %v2590 = vpop.permute.xlu0 %2589
    %2593 = vset.pattern.permute.xlu0 96
    %2594 = vperm.xlu0 %2593, %v1458
    %v2595 = vpop.permute.xlu0 %2594
    %2598 = vset.pattern.permute.xlu0 96
    %2599 = vperm.xlu0 %2598, %v1459
    %v2600 = vpop.permute.xlu0 %2599
    %2603 = vset.pattern.permute.xlu0 96
    %2604 = vperm.xlu0 %2603, %v1460
    %v2605 = vpop.permute.xlu0 %2604
    %2608 = vset.pattern.permute.xlu0 96
    %2609 = vperm.xlu0 %2608, %v1461
    %v2610 = vpop.permute.xlu0 %2609
    %2613 = vset.pattern.permute.xlu0 96
    %2614 = vperm.xlu0 %2613, %v1462
    %v2615 = vpop.permute.xlu0 %2614
    %2618 = vset.pattern.permute.xlu0 96
    %2619 = vperm.xlu0 %2618, %v1463
    %v2620 = vpop.permute.xlu0 %2619
    %2623 = vset.pattern.permute.xlu0 96
    %2624 = vperm.xlu0 %2623, %v1464
    %v2625 = vpop.permute.xlu0 %2624
    %2628 = vset.pattern.permute.xlu0 96
    %2629 = vperm.xlu0 %2628, %v1465
    %v2630 = vpop.permute.xlu0 %2629
    %2633 = vset.pattern.permute.xlu0 96
    %2634 = vperm.xlu0 %2633, %v1466
    %v2635 = vpop.permute.xlu0 %2634
    %2638 = vset.pattern.permute.xlu0 96
    %2639 = vperm.xlu0 %2638, %v1467
    %v2640 = vpop.permute.xlu0 %2639
    %2643 = vset.pattern.permute.xlu0 96
    %2644 = vperm.xlu0 %2643, %v1468
    %v2645 = vpop.permute.xlu0 %2644
    %2648 = vset.pattern.permute.xlu0 96
    %2649 = vperm.xlu0 %2648, %v1469
    %v2650 = vpop.permute.xlu0 %2649
    %2653 = vset.pattern.permute.xlu0 96
    %2654 = vperm.xlu0 %2653, %v1470
    %v2655 = vpop.permute.xlu0 %2654
    %2658 = vset.pattern.permute.xlu0 96
    %2659 = vperm.xlu0 %2658, %v1471
    %v2660 = vpop.permute.xlu0 %2659
    %2663 = vset.pattern.permute.xlu0 96
    %2664 = vperm.xlu0 %2663, %v1472
    %v2665 = vpop.permute.xlu0 %2664
    %2668 = vset.pattern.permute.xlu0 96
    %2669 = vperm.xlu0 %2668, %v1473
    %v2670 = vpop.permute.xlu0 %2669
    %2673 = vset.pattern.permute.xlu0 96
    %2674 = vperm.xlu0 %2673, %v1474
    %v2675 = vpop.permute.xlu0 %2674
    %2678 = vset.pattern.permute.xlu0 96
    %2679 = vperm.xlu0 %2678, %v1475
    %v2680 = vpop.permute.xlu0 %2679
    %2683 = vset.pattern.permute.xlu0 96
    %2684 = vperm.xlu0 %2683, %v1476
    %v2685 = vpop.permute.xlu0 %2684
    %2688 = vset.pattern.permute.xlu0 96
    %2689 = vperm.xlu0 %2688, %v1477
    %v2690 = vpop.permute.xlu0 %2689
    %2693 = vset.pattern.permute.xlu0 96
    %2694 = vperm.xlu0 %2693, %v1478
    %v2695 = vpop.permute.xlu0 %2694
    %2698 = vset.pattern.permute.xlu0 96
    %2699 = vperm.xlu0 %2698, %v1479
    %v2700 = vpop.permute.xlu0 %2699
    %2703 = vset.pattern.permute.xlu0 96
    %2704 = vperm.xlu0 %2703, %v1480
    %v2705 = vpop.permute.xlu0 %2704
    %2708 = vset.pattern.permute.xlu0 96
    %2709 = vperm.xlu0 %2708, %v1481
    %v2710 = vpop.permute.xlu0 %2709
    %2713 = vset.pattern.permute.xlu0 96
    %2714 = vperm.xlu0 %2713, %v1482
    %v2715 = vpop.permute.xlu0 %2714
    %2718 = vset.pattern.permute.xlu0 96
    %2719 = vperm.xlu0 %2718, %v1483
    %v2720 = vpop.permute.xlu0 %2719
    %2723 = vset.pattern.permute.xlu0 96
    %2724 = vperm.xlu0 %2723, %v1484
    %v2725 = vpop.permute.xlu0 %2724
    %2728 = vset.pattern.permute.xlu0 96
    %2729 = vperm.xlu0 %2728, %v1485
    %v2730 = vpop.permute.xlu0 %2729
    %2733 = vset.pattern.permute.xlu0 96
    %2734 = vperm.xlu0 %2733, %v1486
    %v2735 = vpop.permute.xlu0 %2734
    %2738 = vset.pattern.permute.xlu0 96
    %2739 = vperm.xlu0 %2738, %v1487
    %v2740 = vpop.permute.xlu0 %2739
    %2743 = vset.pattern.permute.xlu0 96
    %2744 = vperm.xlu0 %2743, %v1488
    %v2745 = vpop.permute.xlu0 %2744
    %2748 = vset.pattern.permute.xlu0 96
    %2749 = vperm.xlu0 %2748, %v1489
    %v2750 = vpop.permute.xlu0 %2749
    %2753 = vset.pattern.permute.xlu0 96
    %2754 = vperm.xlu0 %2753, %v1490
    %v2755 = vpop.permute.xlu0 %2754
    %2758 = vset.pattern.permute.xlu0 96
    %2759 = vperm.xlu0 %2758, %v1491
    %v2760 = vpop.permute.xlu0 %2759
    %2763 = vset.pattern.permute.xlu0 96
    %2764 = vperm.xlu0 %2763, %v1492
    %v2765 = vpop.permute.xlu0 %2764
    %2768 = vset.pattern.permute.xlu0 96
    %2769 = vperm.xlu0 %2768, %v1493
    %v2770 = vpop.permute.xlu0 %2769
    %2773 = vset.pattern.permute.xlu0 96
    %2774 = vperm.xlu0 %2773, %v1494
    %v2775 = vpop.permute.xlu0 %2774
    %v2777 = vmul.f32 %v2393, %v2460
    %v2778 = vmul.f32 %v2394, %v2465
    %v2779 = vmul.f32 %v2395, %v2470
    %v2780 = vmul.f32 %v2396, %v2475
    %v2781 = vmul.f32 %v2397, %v2480
    %v2782 = vmul.f32 %v2398, %v2485
    %v2783 = vmul.f32 %v2399, %v2490
    %v2784 = vmul.f32 %v2400, %v2495
    %v2785 = vmul.f32 %v2401, %v2500
    %v2786 = vmul.f32 %v2402, %v2505
    %v2787 = vmul.f32 %v2403, %v2510
    %v2788 = vmul.f32 %v2404, %v2515
    %v2789 = vmul.f32 %v2405, %v2520
    %v2790 = vmul.f32 %v2406, %v2525
    %v2791 = vmul.f32 %v2407, %v2530
    %v2792 = vmul.f32 %v2408, %v2535
    %v2793 = vmul.f32 %v2409, %v2540
    %v2794 = vmul.f32 %v2410, %v2545
    %v2795 = vmul.f32 %v2411, %v2550
    %v2796 = vmul.f32 %v2412, %v2555
    %v2797 = vmul.f32 %v2413, %v2560
    %v2798 = vmul.f32 %v2414, %v2565
    %v2799 = vmul.f32 %v2415, %v2570
    %v2800 = vmul.f32 %v2416, %v2575
    %v2801 = vmul.f32 %v2417, %v2580
    %v2802 = vmul.f32 %v2418, %v2585
    %v2803 = vmul.f32 %v2419, %v2590
    %v2804 = vmul.f32 %v2420, %v2595
    %v2805 = vmul.f32 %v2421, %v2600
    %v2806 = vmul.f32 %v2422, %v2605
    %v2807 = vmul.f32 %v2423, %v2610
    %v2808 = vmul.f32 %v2424, %v2615
    %v2809 = vmul.f32 %v2425, %v2620
    %v2810 = vmul.f32 %v2426, %v2625
    %v2811 = vmul.f32 %v2427, %v2630
    %v2812 = vmul.f32 %v2428, %v2635
    %v2813 = vmul.f32 %v2429, %v2640
    %v2814 = vmul.f32 %v2430, %v2645
    %v2815 = vmul.f32 %v2431, %v2650
    %v2816 = vmul.f32 %v2432, %v2655
    %v2817 = vmul.f32 %v2433, %v2660
    %v2818 = vmul.f32 %v2434, %v2665
    %v2819 = vmul.f32 %v2435, %v2670
    %v2820 = vmul.f32 %v2436, %v2675
    %v2821 = vmul.f32 %v2437, %v2680
    %v2822 = vmul.f32 %v2438, %v2685
    %v2823 = vmul.f32 %v2439, %v2690
    %v2824 = vmul.f32 %v2440, %v2695
    %v2825 = vmul.f32 %v2441, %v2700
    %v2826 = vmul.f32 %v2442, %v2705
    %v2827 = vmul.f32 %v2443, %v2710
    %v2828 = vmul.f32 %v2444, %v2715
    %v2829 = vmul.f32 %v2445, %v2720
    %v2830 = vmul.f32 %v2446, %v2725
    %v2831 = vmul.f32 %v2447, %v2730
    %v2832 = vmul.f32 %v2448, %v2735
    %v2833 = vmul.f32 %v2449, %v2740
    %v2834 = vmul.f32 %v2450, %v2745
    %v2835 = vmul.f32 %v2451, %v2750
    %v2836 = vmul.f32 %v2452, %v2755
    %v2837 = vmul.f32 %v2453, %v2760
    %v2838 = vmul.f32 %v2454, %v2765
    %v2839 = vmul.f32 %v2455, %v2770
    %v2840 = vmul.f32 %v2456, %v2775
    %2841 = vrot.lane.b32.xlu0 %v1753, 56
    %v2842 = vpop.permute.xlu0 %2841
    %2843 = vrot.lane.b32.xlu0 %v1755, 56
    %v2844 = vpop.permute.xlu0 %2843
    %2845 = vrot.lane.b32.xlu0 %v1757, 56
    %v2846 = vpop.permute.xlu0 %2845
    %2847 = vrot.lane.b32.xlu0 %v1759, 56
    %v2848 = vpop.permute.xlu0 %2847
    %2849 = vrot.lane.b32.xlu0 %v1761, 56
    %v2850 = vpop.permute.xlu0 %2849
    %2851 = vrot.lane.b32.xlu0 %v1763, 56
    %v2852 = vpop.permute.xlu0 %2851
    %2853 = vrot.lane.b32.xlu0 %v1765, 56
    %v2854 = vpop.permute.xlu0 %2853
    %2855 = vrot.lane.b32.xlu0 %v1767, 56
    %v2856 = vpop.permute.xlu0 %2855
    %2857 = vrot.lane.b32.xlu0 %v1769, 56
    %v2858 = vpop.permute.xlu0 %2857
    %2859 = vrot.lane.b32.xlu0 %v1771, 56
    %v2860 = vpop.permute.xlu0 %2859
    %2861 = vrot.lane.b32.xlu0 %v1773, 56
    %v2862 = vpop.permute.xlu0 %2861
    %2863 = vrot.lane.b32.xlu0 %v1775, 56
    %v2864 = vpop.permute.xlu0 %2863
    %2865 = vrot.lane.b32.xlu0 %v1777, 56
    %v2866 = vpop.permute.xlu0 %2865
    %2867 = vrot.lane.b32.xlu0 %v1779, 56
    %v2868 = vpop.permute.xlu0 %2867
    %2869 = vrot.lane.b32.xlu0 %v1781, 56
    %v2870 = vpop.permute.xlu0 %2869
    %2871 = vrot.lane.b32.xlu0 %v1783, 56
    %v2872 = vpop.permute.xlu0 %2871
    %2873 = vrot.lane.b32.xlu0 %v1785, 56
    %v2874 = vpop.permute.xlu0 %2873
    %2875 = vrot.lane.b32.xlu0 %v1787, 56
    %v2876 = vpop.permute.xlu0 %2875
    %2877 = vrot.lane.b32.xlu0 %v1789, 56
    %v2878 = vpop.permute.xlu0 %2877
    %2879 = vrot.lane.b32.xlu0 %v1791, 56
    %v2880 = vpop.permute.xlu0 %2879
    %2881 = vrot.lane.b32.xlu0 %v1793, 56
    %v2882 = vpop.permute.xlu0 %2881
    %2883 = vrot.lane.b32.xlu0 %v1795, 56
    %v2884 = vpop.permute.xlu0 %2883
    %2885 = vrot.lane.b32.xlu0 %v1797, 56
    %v2886 = vpop.permute.xlu0 %2885
    %2887 = vrot.lane.b32.xlu0 %v1799, 56
    %v2888 = vpop.permute.xlu0 %2887
    %2889 = vrot.lane.b32.xlu0 %v1801, 56
    %v2890 = vpop.permute.xlu0 %2889
    %2891 = vrot.lane.b32.xlu0 %v1803, 56
    %v2892 = vpop.permute.xlu0 %2891
    %2893 = vrot.lane.b32.xlu0 %v1805, 56
    %v2894 = vpop.permute.xlu0 %2893
    %2895 = vrot.lane.b32.xlu0 %v1807, 56
    %v2896 = vpop.permute.xlu0 %2895
    %2897 = vrot.lane.b32.xlu0 %v1809, 56
    %v2898 = vpop.permute.xlu0 %2897
    %2899 = vrot.lane.b32.xlu0 %v1811, 56
    %v2900 = vpop.permute.xlu0 %2899
    %2901 = vrot.lane.b32.xlu0 %v1813, 56
    %v2902 = vpop.permute.xlu0 %2901
    %2903 = vrot.lane.b32.xlu0 %v1815, 56
    %v2904 = vpop.permute.xlu0 %2903
    %2905 = vrot.lane.b32.xlu0 %v1817, 56
    %v2906 = vpop.permute.xlu0 %2905
    %2907 = vrot.lane.b32.xlu0 %v1819, 56
    %v2908 = vpop.permute.xlu0 %2907
    %2909 = vrot.lane.b32.xlu0 %v1821, 56
    %v2910 = vpop.permute.xlu0 %2909
    %2911 = vrot.lane.b32.xlu0 %v1823, 56
    %v2912 = vpop.permute.xlu0 %2911
    %2913 = vrot.lane.b32.xlu0 %v1825, 56
    %v2914 = vpop.permute.xlu0 %2913
    %2915 = vrot.lane.b32.xlu0 %v1827, 56
    %v2916 = vpop.permute.xlu0 %2915
    %2917 = vrot.lane.b32.xlu0 %v1829, 56
    %v2918 = vpop.permute.xlu0 %2917
    %2919 = vrot.lane.b32.xlu0 %v1831, 56
    %v2920 = vpop.permute.xlu0 %2919
    %2921 = vrot.lane.b32.xlu0 %v1833, 56
    %v2922 = vpop.permute.xlu0 %2921
    %2923 = vrot.lane.b32.xlu0 %v1835, 56
    %v2924 = vpop.permute.xlu0 %2923
    %2925 = vrot.lane.b32.xlu0 %v1837, 56
    %v2926 = vpop.permute.xlu0 %2925
    %2927 = vrot.lane.b32.xlu0 %v1839, 56
    %v2928 = vpop.permute.xlu0 %2927
    %2929 = vrot.lane.b32.xlu0 %v1841, 56
    %v2930 = vpop.permute.xlu0 %2929
    %2931 = vrot.lane.b32.xlu0 %v1843, 56
    %v2932 = vpop.permute.xlu0 %2931
    %2933 = vrot.lane.b32.xlu0 %v1845, 56
    %v2934 = vpop.permute.xlu0 %2933
    %2935 = vrot.lane.b32.xlu0 %v1847, 56
    %v2936 = vpop.permute.xlu0 %2935
    %2937 = vrot.lane.b32.xlu0 %v1849, 56
    %v2938 = vpop.permute.xlu0 %2937
    %2939 = vrot.lane.b32.xlu0 %v1851, 56
    %v2940 = vpop.permute.xlu0 %2939
    %2941 = vrot.lane.b32.xlu0 %v1853, 56
    %v2942 = vpop.permute.xlu0 %2941
    %2943 = vrot.lane.b32.xlu0 %v1855, 56
    %v2944 = vpop.permute.xlu0 %2943
    %2945 = vrot.lane.b32.xlu0 %v1857, 56
    %v2946 = vpop.permute.xlu0 %2945
    %2947 = vrot.lane.b32.xlu0 %v1859, 56
    %v2948 = vpop.permute.xlu0 %2947
    %2949 = vrot.lane.b32.xlu0 %v1861, 56
    %v2950 = vpop.permute.xlu0 %2949
    %2951 = vrot.lane.b32.xlu0 %v1863, 56
    %v2952 = vpop.permute.xlu0 %2951
    %2953 = vrot.lane.b32.xlu0 %v1865, 56
    %v2954 = vpop.permute.xlu0 %2953
    %2955 = vrot.lane.b32.xlu0 %v1867, 56
    %v2956 = vpop.permute.xlu0 %2955
    %2957 = vrot.lane.b32.xlu0 %v1869, 56
    %v2958 = vpop.permute.xlu0 %2957
    %2959 = vrot.lane.b32.xlu0 %v1871, 56
    %v2960 = vpop.permute.xlu0 %2959
    %2961 = vrot.lane.b32.xlu0 %v1873, 56
    %v2962 = vpop.permute.xlu0 %2961
    %2963 = vrot.lane.b32.xlu0 %v1875, 56
    %v2964 = vpop.permute.xlu0 %2963
    %2965 = vrot.lane.b32.xlu0 %v1877, 56
    %v2966 = vpop.permute.xlu0 %2965
    %2967 = vrot.lane.b32.xlu0 %v1879, 56
    %v2968 = vpop.permute.xlu0 %2967
    %v3033 = vsel %vm2136, %v2842, 0.0
    %3034 = vadd.xlane.f32.xlu0 %v3033
    %v3035 = vpop.xlane.xlu0 %3034
    %v3036 = vsel %vm2136, %v2844, 0.0
    %3037 = vadd.xlane.f32.xlu0 %v3036
    %v3038 = vpop.xlane.xlu0 %3037
    %v3039 = vsel %vm2136, %v2846, 0.0
    %3040 = vadd.xlane.f32.xlu0 %v3039
    %v3041 = vpop.xlane.xlu0 %3040
    %v3042 = vsel %vm2136, %v2848, 0.0
    %3043 = vadd.xlane.f32.xlu0 %v3042
    %v3044 = vpop.xlane.xlu0 %3043
    %v3045 = vsel %vm2136, %v2850, 0.0
    %3046 = vadd.xlane.f32.xlu0 %v3045
    %v3047 = vpop.xlane.xlu0 %3046
    %v3048 = vsel %vm2136, %v2852, 0.0
    %3049 = vadd.xlane.f32.xlu0 %v3048
    %v3050 = vpop.xlane.xlu0 %3049
    %v3051 = vsel %vm2136, %v2854, 0.0
    %3052 = vadd.xlane.f32.xlu0 %v3051
    %v3053 = vpop.xlane.xlu0 %3052
    %v3054 = vsel %vm2136, %v2856, 0.0
    %3055 = vadd.xlane.f32.xlu0 %v3054
    %v3056 = vpop.xlane.xlu0 %3055
    %v3057 = vsel %vm2136, %v2858, 0.0
    %3058 = vadd.xlane.f32.xlu0 %v3057
    %v3059 = vpop.xlane.xlu0 %3058
    %v3060 = vsel %vm2136, %v2860, 0.0
    %3061 = vadd.xlane.f32.xlu0 %v3060
    %v3062 = vpop.xlane.xlu0 %3061
    %v3063 = vsel %vm2136, %v2862, 0.0
    %3064 = vadd.xlane.f32.xlu0 %v3063
    %v3065 = vpop.xlane.xlu0 %3064
    %v3066 = vsel %vm2136, %v2864, 0.0
    %3067 = vadd.xlane.f32.xlu0 %v3066
    %v3068 = vpop.xlane.xlu0 %3067
    %v3069 = vsel %vm2136, %v2866, 0.0
    %3070 = vadd.xlane.f32.xlu0 %v3069
    %v3071 = vpop.xlane.xlu0 %3070
    %v3072 = vsel %vm2136, %v2868, 0.0
    %3073 = vadd.xlane.f32.xlu0 %v3072
    %v3074 = vpop.xlane.xlu0 %3073
    %v3075 = vsel %vm2136, %v2870, 0.0
    %3076 = vadd.xlane.f32.xlu0 %v3075
    %v3077 = vpop.xlane.xlu0 %3076
    %v3078 = vsel %vm2136, %v2872, 0.0
    %3079 = vadd.xlane.f32.xlu0 %v3078
    %v3080 = vpop.xlane.xlu0 %3079
    %v3081 = vsel %vm2136, %v2874, 0.0
    %3082 = vadd.xlane.f32.xlu0 %v3081
    %v3083 = vpop.xlane.xlu0 %3082
    %v3084 = vsel %vm2136, %v2876, 0.0
    %3085 = vadd.xlane.f32.xlu0 %v3084
    %v3086 = vpop.xlane.xlu0 %3085
    %v3087 = vsel %vm2136, %v2878, 0.0
    %3088 = vadd.xlane.f32.xlu0 %v3087
    %v3089 = vpop.xlane.xlu0 %3088
    %v3090 = vsel %vm2136, %v2880, 0.0
    %3091 = vadd.xlane.f32.xlu0 %v3090
    %v3092 = vpop.xlane.xlu0 %3091
    %v3093 = vsel %vm2136, %v2882, 0.0
    %3094 = vadd.xlane.f32.xlu0 %v3093
    %v3095 = vpop.xlane.xlu0 %3094
    %v3096 = vsel %vm2136, %v2884, 0.0
    %3097 = vadd.xlane.f32.xlu0 %v3096
    %v3098 = vpop.xlane.xlu0 %3097
    %v3099 = vsel %vm2136, %v2886, 0.0
    %3100 = vadd.xlane.f32.xlu0 %v3099
    %v3101 = vpop.xlane.xlu0 %3100
    %v3102 = vsel %vm2136, %v2888, 0.0
    %3103 = vadd.xlane.f32.xlu0 %v3102
    %v3104 = vpop.xlane.xlu0 %3103
    %v3105 = vsel %vm2136, %v2890, 0.0
    %3106 = vadd.xlane.f32.xlu0 %v3105
    %v3107 = vpop.xlane.xlu0 %3106
    %v3108 = vsel %vm2136, %v2892, 0.0
    %3109 = vadd.xlane.f32.xlu0 %v3108
    %v3110 = vpop.xlane.xlu0 %3109
    %v3111 = vsel %vm2136, %v2894, 0.0
    %3112 = vadd.xlane.f32.xlu0 %v3111
    %v3113 = vpop.xlane.xlu0 %3112
    %v3114 = vsel %vm2136, %v2896, 0.0
    %3115 = vadd.xlane.f32.xlu0 %v3114
    %v3116 = vpop.xlane.xlu0 %3115
    %v3117 = vsel %vm2136, %v2898, 0.0
    %3118 = vadd.xlane.f32.xlu0 %v3117
    %v3119 = vpop.xlane.xlu0 %3118
    %v3120 = vsel %vm2136, %v2900, 0.0
    %3121 = vadd.xlane.f32.xlu0 %v3120
    %v3122 = vpop.xlane.xlu0 %3121
    %v3123 = vsel %vm2136, %v2902, 0.0
    %3124 = vadd.xlane.f32.xlu0 %v3123
    %v3125 = vpop.xlane.xlu0 %3124
    %v3126 = vsel %vm2136, %v2904, 0.0
    %3127 = vadd.xlane.f32.xlu0 %v3126
    %v3128 = vpop.xlane.xlu0 %3127
    %v3129 = vsel %vm2136, %v2906, 0.0
    %3130 = vadd.xlane.f32.xlu0 %v3129
    %v3131 = vpop.xlane.xlu0 %3130
    %v3132 = vsel %vm2136, %v2908, 0.0
    %3133 = vadd.xlane.f32.xlu0 %v3132
    %v3134 = vpop.xlane.xlu0 %3133
    %v3135 = vsel %vm2136, %v2910, 0.0
    %3136 = vadd.xlane.f32.xlu0 %v3135
    %v3137 = vpop.xlane.xlu0 %3136
    %v3138 = vsel %vm2136, %v2912, 0.0
    %3139 = vadd.xlane.f32.xlu0 %v3138
    %v3140 = vpop.xlane.xlu0 %3139
    %v3141 = vsel %vm2136, %v2914, 0.0
    %3142 = vadd.xlane.f32.xlu0 %v3141
    %v3143 = vpop.xlane.xlu0 %3142
    %v3144 = vsel %vm2136, %v2916, 0.0
    %3145 = vadd.xlane.f32.xlu0 %v3144
    %v3146 = vpop.xlane.xlu0 %3145
    %v3147 = vsel %vm2136, %v2918, 0.0
    %3148 = vadd.xlane.f32.xlu0 %v3147
    %v3149 = vpop.xlane.xlu0 %3148
    %v3150 = vsel %vm2136, %v2920, 0.0
    %3151 = vadd.xlane.f32.xlu0 %v3150
    %v3152 = vpop.xlane.xlu0 %3151
    %v3153 = vsel %vm2136, %v2922, 0.0
    %3154 = vadd.xlane.f32.xlu0 %v3153
    %v3155 = vpop.xlane.xlu0 %3154
    %v3156 = vsel %vm2136, %v2924, 0.0
    %3157 = vadd.xlane.f32.xlu0 %v3156
    %v3158 = vpop.xlane.xlu0 %3157
    %v3159 = vsel %vm2136, %v2926, 0.0
    %3160 = vadd.xlane.f32.xlu0 %v3159
    %v3161 = vpop.xlane.xlu0 %3160
    %v3162 = vsel %vm2136, %v2928, 0.0
    %3163 = vadd.xlane.f32.xlu0 %v3162
    %v3164 = vpop.xlane.xlu0 %3163
    %v3165 = vsel %vm2136, %v2930, 0.0
    %3166 = vadd.xlane.f32.xlu0 %v3165
    %v3167 = vpop.xlane.xlu0 %3166
    %v3168 = vsel %vm2136, %v2932, 0.0
    %3169 = vadd.xlane.f32.xlu0 %v3168
    %v3170 = vpop.xlane.xlu0 %3169
    %v3171 = vsel %vm2136, %v2934, 0.0
    %3172 = vadd.xlane.f32.xlu0 %v3171
    %v3173 = vpop.xlane.xlu0 %3172
    %v3174 = vsel %vm2136, %v2936, 0.0
    %3175 = vadd.xlane.f32.xlu0 %v3174
    %v3176 = vpop.xlane.xlu0 %3175
    %v3177 = vsel %vm2136, %v2938, 0.0
    %3178 = vadd.xlane.f32.xlu0 %v3177
    %v3179 = vpop.xlane.xlu0 %3178
    %v3180 = vsel %vm2136, %v2940, 0.0
    %3181 = vadd.xlane.f32.xlu0 %v3180
    %v3182 = vpop.xlane.xlu0 %3181
    %v3183 = vsel %vm2136, %v2942, 0.0
    %3184 = vadd.xlane.f32.xlu0 %v3183
    %v3185 = vpop.xlane.xlu0 %3184
    %v3186 = vsel %vm2136, %v2944, 0.0
    %3187 = vadd.xlane.f32.xlu0 %v3186
    %v3188 = vpop.xlane.xlu0 %3187
    %v3189 = vsel %vm2136, %v2946, 0.0
    %3190 = vadd.xlane.f32.xlu0 %v3189
    %v3191 = vpop.xlane.xlu0 %3190
    %v3192 = vsel %vm2136, %v2948, 0.0
    %3193 = vadd.xlane.f32.xlu0 %v3192
    %v3194 = vpop.xlane.xlu0 %3193
    %v3195 = vsel %vm2136, %v2950, 0.0
    %3196 = vadd.xlane.f32.xlu0 %v3195
    %v3197 = vpop.xlane.xlu0 %3196
    %v3198 = vsel %vm2136, %v2952, 0.0
    %3199 = vadd.xlane.f32.xlu0 %v3198
    %v3200 = vpop.xlane.xlu0 %3199
    %v3201 = vsel %vm2136, %v2954, 0.0
    %3202 = vadd.xlane.f32.xlu0 %v3201
    %v3203 = vpop.xlane.xlu0 %3202
    %v3204 = vsel %vm2136, %v2956, 0.0
    %3205 = vadd.xlane.f32.xlu0 %v3204
    %v3206 = vpop.xlane.xlu0 %3205
    %v3207 = vsel %vm2136, %v2958, 0.0
    %3208 = vadd.xlane.f32.xlu0 %v3207
    %v3209 = vpop.xlane.xlu0 %3208
    %v3210 = vsel %vm2136, %v2960, 0.0
    %3211 = vadd.xlane.f32.xlu0 %v3210
    %v3212 = vpop.xlane.xlu0 %3211
    %v3213 = vsel %vm2136, %v2962, 0.0
    %3214 = vadd.xlane.f32.xlu0 %v3213
    %v3215 = vpop.xlane.xlu0 %3214
    %v3216 = vsel %vm2136, %v2964, 0.0
    %3217 = vadd.xlane.f32.xlu0 %v3216
    %v3218 = vpop.xlane.xlu0 %3217
    %v3219 = vsel %vm2136, %v2966, 0.0
    %3220 = vadd.xlane.f32.xlu0 %v3219
    %v3221 = vpop.xlane.xlu0 %3220
    %v3222 = vsel %vm2136, %v2968, 0.0
    %3223 = vadd.xlane.f32.xlu0 %v3222
    %v3224 = vpop.xlane.xlu0 %3223
    %v3225 = vrcp.pop %v3035
    %v3226 = vrcp.pop %v3038
    %v3227 = vrcp.pop %v3041
    %v3228 = vrcp.pop %v3044
    %v3229 = vrcp.pop %v3047
    %v3230 = vrcp.pop %v3050
    %v3231 = vrcp.pop %v3053
    %v3232 = vrcp.pop %v3056
    %v3233 = vrcp.pop %v3059
    %v3234 = vrcp.pop %v3062
    %v3235 = vrcp.pop %v3065
    %v3236 = vrcp.pop %v3068
    %v3237 = vrcp.pop %v3071
    %v3238 = vrcp.pop %v3074
    %v3239 = vrcp.pop %v3077
    %v3240 = vrcp.pop %v3080
    %v3241 = vrcp.pop %v3083
    %v3242 = vrcp.pop %v3086
    %v3243 = vrcp.pop %v3089
    %v3244 = vrcp.pop %v3092
    %v3245 = vrcp.pop %v3095
    %v3246 = vrcp.pop %v3098
    %v3247 = vrcp.pop %v3101
    %v3248 = vrcp.pop %v3104
    %v3249 = vrcp.pop %v3107
    %v3250 = vrcp.pop %v3110
    %v3251 = vrcp.pop %v3113
    %v3252 = vrcp.pop %v3116
    %v3253 = vrcp.pop %v3119
    %v3254 = vrcp.pop %v3122
    %v3255 = vrcp.pop %v3125
    %v3256 = vrcp.pop %v3128
    %v3257 = vrcp.pop %v3131
    %v3258 = vrcp.pop %v3134
    %v3259 = vrcp.pop %v3137
    %v3260 = vrcp.pop %v3140
    %v3261 = vrcp.pop %v3143
    %v3262 = vrcp.pop %v3146
    %v3263 = vrcp.pop %v3149
    %v3264 = vrcp.pop %v3152
    %v3265 = vrcp.pop %v3155
    %v3266 = vrcp.pop %v3158
    %v3267 = vrcp.pop %v3161
    %v3268 = vrcp.pop %v3164
    %v3269 = vrcp.pop %v3167
    %v3270 = vrcp.pop %v3170
    %v3271 = vrcp.pop %v3173
    %v3272 = vrcp.pop %v3176
    %v3273 = vrcp.pop %v3179
    %v3274 = vrcp.pop %v3182
    %v3275 = vrcp.pop %v3185
    %v3276 = vrcp.pop %v3188
    %v3277 = vrcp.pop %v3191
    %v3278 = vrcp.pop %v3194
    %v3279 = vrcp.pop %v3197
    %v3280 = vrcp.pop %v3200
    %v3281 = vrcp.pop %v3203
    %v3282 = vrcp.pop %v3206
    %v3283 = vrcp.pop %v3209
    %v3284 = vrcp.pop %v3212
    %v3285 = vrcp.pop %v3215
    %v3286 = vrcp.pop %v3218
    %v3287 = vrcp.pop %v3221
    %v3288 = vrcp.pop %v3224
    %v3289 = vmul.f32 %v1753, %v3225
    %v3290 = vmul.f32 %v1755, %v3226
    %v3291 = vmul.f32 %v1757, %v3227
    %v3292 = vmul.f32 %v1759, %v3228
    %v3293 = vmul.f32 %v1761, %v3229
    %v3294 = vmul.f32 %v1763, %v3230
    %v3295 = vmul.f32 %v1765, %v3231
    %v3296 = vmul.f32 %v1767, %v3232
    %v3297 = vmul.f32 %v1769, %v3233
    %v3298 = vmul.f32 %v1771, %v3234
    %v3299 = vmul.f32 %v1773, %v3235
    %v3300 = vmul.f32 %v1775, %v3236
    %v3301 = vmul.f32 %v1777, %v3237
    %v3302 = vmul.f32 %v1779, %v3238
    %v3303 = vmul.f32 %v1781, %v3239
    %v3304 = vmul.f32 %v1783, %v3240
    %v3305 = vmul.f32 %v1785, %v3241
    %v3306 = vmul.f32 %v1787, %v3242
    %v3307 = vmul.f32 %v1789, %v3243
    %v3308 = vmul.f32 %v1791, %v3244
    %v3309 = vmul.f32 %v1793, %v3245
    %v3310 = vmul.f32 %v1795, %v3246
    %v3311 = vmul.f32 %v1797, %v3247
    %v3312 = vmul.f32 %v1799, %v3248
    %v3313 = vmul.f32 %v1801, %v3249
    %v3314 = vmul.f32 %v1803, %v3250
    %v3315 = vmul.f32 %v1805, %v3251
    %v3316 = vmul.f32 %v1807, %v3252
    %v3317 = vmul.f32 %v1809, %v3253
    %v3318 = vmul.f32 %v1811, %v3254
    %v3319 = vmul.f32 %v1813, %v3255
    %v3320 = vmul.f32 %v1815, %v3256
    %v3321 = vmul.f32 %v1817, %v3257
    %v3322 = vmul.f32 %v1819, %v3258
    %v3323 = vmul.f32 %v1821, %v3259
    %v3324 = vmul.f32 %v1823, %v3260
    %v3325 = vmul.f32 %v1825, %v3261
    %v3326 = vmul.f32 %v1827, %v3262
    %v3327 = vmul.f32 %v1829, %v3263
    %v3328 = vmul.f32 %v1831, %v3264
    %v3329 = vmul.f32 %v1833, %v3265
    %v3330 = vmul.f32 %v1835, %v3266
    %v3331 = vmul.f32 %v1837, %v3267
    %v3332 = vmul.f32 %v1839, %v3268
    %v3333 = vmul.f32 %v1841, %v3269
    %v3334 = vmul.f32 %v1843, %v3270
    %v3335 = vmul.f32 %v1845, %v3271
    %v3336 = vmul.f32 %v1847, %v3272
    %v3337 = vmul.f32 %v1849, %v3273
    %v3338 = vmul.f32 %v1851, %v3274
    %v3339 = vmul.f32 %v1853, %v3275
    %v3340 = vmul.f32 %v1855, %v3276
    %v3341 = vmul.f32 %v1857, %v3277
    %v3342 = vmul.f32 %v1859, %v3278
    %v3343 = vmul.f32 %v1861, %v3279
    %v3344 = vmul.f32 %v1863, %v3280
    %v3345 = vmul.f32 %v1865, %v3281
    %v3346 = vmul.f32 %v1867, %v3282
    %v3347 = vmul.f32 %v1869, %v3283
    %v3348 = vmul.f32 %v1871, %v3284
    %v3349 = vmul.f32 %v1873, %v3285
    %v3350 = vmul.f32 %v1875, %v3286
    %v3351 = vmul.f32 %v1877, %v3287
    %v3352 = vmul.f32 %v1879, %v3288
    %3353 = vset.pattern.permute.xlu0 97
    %3354 = vperm.xlu0 %3353, %v1431
    %v3355 = vpop.permute.xlu0 %3354
    %3357 = vset.pattern.permute.xlu0 97
    %3358 = vperm.xlu0 %3357, %v1432
    %v3359 = vpop.permute.xlu0 %3358
    %3361 = vset.pattern.permute.xlu0 97
    %3362 = vperm.xlu0 %3361, %v1433
    %v3363 = vpop.permute.xlu0 %3362
    %3365 = vset.pattern.permute.xlu0 97
    %3366 = vperm.xlu0 %3365, %v1434
    %v3367 = vpop.permute.xlu0 %3366
    %3369 = vset.pattern.permute.xlu0 97
    %3370 = vperm.xlu0 %3369, %v1435
    %v3371 = vpop.permute.xlu0 %3370
    %3373 = vset.pattern.permute.xlu0 97
    %3374 = vperm.xlu0 %3373, %v1436
    %v3375 = vpop.permute.xlu0 %3374
    %3377 = vset.pattern.permute.xlu0 97
    %3378 = vperm.xlu0 %3377, %v1437
    %v3379 = vpop.permute.xlu0 %3378
    %3381 = vset.pattern.permute.xlu0 97
    %3382 = vperm.xlu0 %3381, %v1438
    %v3383 = vpop.permute.xlu0 %3382
    %3385 = vset.pattern.permute.xlu0 97
    %3386 = vperm.xlu0 %3385, %v1439
    %v3387 = vpop.permute.xlu0 %3386
    %3389 = vset.pattern.permute.xlu0 97
    %3390 = vperm.xlu0 %3389, %v1440
    %v3391 = vpop.permute.xlu0 %3390
    %3393 = vset.pattern.permute.xlu0 97
    %3394 = vperm.xlu0 %3393, %v1441
    %v3395 = vpop.permute.xlu0 %3394
    %3397 = vset.pattern.permute.xlu0 97
    %3398 = vperm.xlu0 %3397, %v1442
    %v3399 = vpop.permute.xlu0 %3398
    %3401 = vset.pattern.permute.xlu0 97
    %3402 = vperm.xlu0 %3401, %v1443
    %v3403 = vpop.permute.xlu0 %3402
    %3405 = vset.pattern.permute.xlu0 97
    %3406 = vperm.xlu0 %3405, %v1444
    %v3407 = vpop.permute.xlu0 %3406
    %3409 = vset.pattern.permute.xlu0 97
    %3410 = vperm.xlu0 %3409, %v1445
    %v3411 = vpop.permute.xlu0 %3410
    %3413 = vset.pattern.permute.xlu0 97
    %3414 = vperm.xlu0 %3413, %v1446
    %v3415 = vpop.permute.xlu0 %3414
    %3417 = vset.pattern.permute.xlu0 97
    %3418 = vperm.xlu0 %3417, %v1447
    %v3419 = vpop.permute.xlu0 %3418
    %3421 = vset.pattern.permute.xlu0 97
    %3422 = vperm.xlu0 %3421, %v1448
    %v3423 = vpop.permute.xlu0 %3422
    %3425 = vset.pattern.permute.xlu0 97
    %3426 = vperm.xlu0 %3425, %v1449
    %v3427 = vpop.permute.xlu0 %3426
    %3429 = vset.pattern.permute.xlu0 97
    %3430 = vperm.xlu0 %3429, %v1450
    %v3431 = vpop.permute.xlu0 %3430
    %3433 = vset.pattern.permute.xlu0 97
    %3434 = vperm.xlu0 %3433, %v1451
    %v3435 = vpop.permute.xlu0 %3434
    %3437 = vset.pattern.permute.xlu0 97
    %3438 = vperm.xlu0 %3437, %v1452
    %v3439 = vpop.permute.xlu0 %3438
    %3441 = vset.pattern.permute.xlu0 97
    %3442 = vperm.xlu0 %3441, %v1453
    %v3443 = vpop.permute.xlu0 %3442
    %3445 = vset.pattern.permute.xlu0 97
    %3446 = vperm.xlu0 %3445, %v1454
    %v3447 = vpop.permute.xlu0 %3446
    %3449 = vset.pattern.permute.xlu0 97
    %3450 = vperm.xlu0 %3449, %v1455
    %v3451 = vpop.permute.xlu0 %3450
    %3453 = vset.pattern.permute.xlu0 97
    %3454 = vperm.xlu0 %3453, %v1456
    %v3455 = vpop.permute.xlu0 %3454
    %3457 = vset.pattern.permute.xlu0 97
    %3458 = vperm.xlu0 %3457, %v1457
    %v3459 = vpop.permute.xlu0 %3458
    %3461 = vset.pattern.permute.xlu0 97
    %3462 = vperm.xlu0 %3461, %v1458
    %v3463 = vpop.permute.xlu0 %3462
    %3465 = vset.pattern.permute.xlu0 97
    %3466 = vperm.xlu0 %3465, %v1459
    %v3467 = vpop.permute.xlu0 %3466
    %3469 = vset.pattern.permute.xlu0 97
    %3470 = vperm.xlu0 %3469, %v1460
    %v3471 = vpop.permute.xlu0 %3470
    %3473 = vset.pattern.permute.xlu0 97
    %3474 = vperm.xlu0 %3473, %v1461
    %v3475 = vpop.permute.xlu0 %3474
    %3477 = vset.pattern.permute.xlu0 97
    %3478 = vperm.xlu0 %3477, %v1462
    %v3479 = vpop.permute.xlu0 %3478
    %3481 = vset.pattern.permute.xlu0 97
    %3482 = vperm.xlu0 %3481, %v1463
    %v3483 = vpop.permute.xlu0 %3482
    %3485 = vset.pattern.permute.xlu0 97
    %3486 = vperm.xlu0 %3485, %v1464
    %v3487 = vpop.permute.xlu0 %3486
    %3489 = vset.pattern.permute.xlu0 97
    %3490 = vperm.xlu0 %3489, %v1465
    %v3491 = vpop.permute.xlu0 %3490
    %3493 = vset.pattern.permute.xlu0 97
    %3494 = vperm.xlu0 %3493, %v1466
    %v3495 = vpop.permute.xlu0 %3494
    %3497 = vset.pattern.permute.xlu0 97
    %3498 = vperm.xlu0 %3497, %v1467
    %v3499 = vpop.permute.xlu0 %3498
    %3501 = vset.pattern.permute.xlu0 97
    %3502 = vperm.xlu0 %3501, %v1468
    %v3503 = vpop.permute.xlu0 %3502
    %3505 = vset.pattern.permute.xlu0 97
    %3506 = vperm.xlu0 %3505, %v1469
    %v3507 = vpop.permute.xlu0 %3506
    %3509 = vset.pattern.permute.xlu0 97
    %3510 = vperm.xlu0 %3509, %v1470
    %v3511 = vpop.permute.xlu0 %3510
    %3513 = vset.pattern.permute.xlu0 97
    %3514 = vperm.xlu0 %3513, %v1471
    %v3515 = vpop.permute.xlu0 %3514
    %3517 = vset.pattern.permute.xlu0 97
    %3518 = vperm.xlu0 %3517, %v1472
    %v3519 = vpop.permute.xlu0 %3518
    %3521 = vset.pattern.permute.xlu0 97
    %3522 = vperm.xlu0 %3521, %v1473
    %v3523 = vpop.permute.xlu0 %3522
    %3525 = vset.pattern.permute.xlu0 97
    %3526 = vperm.xlu0 %3525, %v1474
    %v3527 = vpop.permute.xlu0 %3526
    %3529 = vset.pattern.permute.xlu0 97
    %3530 = vperm.xlu0 %3529, %v1475
    %v3531 = vpop.permute.xlu0 %3530
    %3533 = vset.pattern.permute.xlu0 97
    %3534 = vperm.xlu0 %3533, %v1476
    %v3535 = vpop.permute.xlu0 %3534
    %3537 = vset.pattern.permute.xlu0 97
    %3538 = vperm.xlu0 %3537, %v1477
    %v3539 = vpop.permute.xlu0 %3538
    %3541 = vset.pattern.permute.xlu0 97
    %3542 = vperm.xlu0 %3541, %v1478
    %v3543 = vpop.permute.xlu0 %3542
    %3545 = vset.pattern.permute.xlu0 97
    %3546 = vperm.xlu0 %3545, %v1479
    %v3547 = vpop.permute.xlu0 %3546
    %3549 = vset.pattern.permute.xlu0 97
    %3550 = vperm.xlu0 %3549, %v1480
    %v3551 = vpop.permute.xlu0 %3550
    %3553 = vset.pattern.permute.xlu0 97
    %3554 = vperm.xlu0 %3553, %v1481
    %v3555 = vpop.permute.xlu0 %3554
    %3557 = vset.pattern.permute.xlu0 97
    %3558 = vperm.xlu0 %3557, %v1482
    %v3559 = vpop.permute.xlu0 %3558
    %3561 = vset.pattern.permute.xlu0 97
    %3562 = vperm.xlu0 %3561, %v1483
    %v3563 = vpop.permute.xlu0 %3562
    %3565 = vset.pattern.permute.xlu0 97
    %3566 = vperm.xlu0 %3565, %v1484
    %v3567 = vpop.permute.xlu0 %3566
    %3569 = vset.pattern.permute.xlu0 97
    %3570 = vperm.xlu0 %3569, %v1485
    %v3571 = vpop.permute.xlu0 %3570
    %3573 = vset.pattern.permute.xlu0 97
    %3574 = vperm.xlu0 %3573, %v1486
    %v3575 = vpop.permute.xlu0 %3574
    %3577 = vset.pattern.permute.xlu0 97
    %3578 = vperm.xlu0 %3577, %v1487
    %v3579 = vpop.permute.xlu0 %3578
    %3581 = vset.pattern.permute.xlu0 97
    %3582 = vperm.xlu0 %3581, %v1488
    %v3583 = vpop.permute.xlu0 %3582
    %3585 = vset.pattern.permute.xlu0 97
    %3586 = vperm.xlu0 %3585, %v1489
    %v3587 = vpop.permute.xlu0 %3586
    %3589 = vset.pattern.permute.xlu0 97
    %3590 = vperm.xlu0 %3589, %v1490
    %v3591 = vpop.permute.xlu0 %3590
    %3593 = vset.pattern.permute.xlu0 97
    %3594 = vperm.xlu0 %3593, %v1491
    %v3595 = vpop.permute.xlu0 %3594
    %3597 = vset.pattern.permute.xlu0 97
    %3598 = vperm.xlu0 %3597, %v1492
    %v3599 = vpop.permute.xlu0 %3598
    %3601 = vset.pattern.permute.xlu0 97
    %3602 = vperm.xlu0 %3601, %v1493
    %v3603 = vpop.permute.xlu0 %3602
    %3605 = vset.pattern.permute.xlu0 97
    %3606 = vperm.xlu0 %3605, %v1494
    %v3607 = vpop.permute.xlu0 %3606
    %v3609 = vmul.f32 %v3289, %v3355
    %v3610 = vmul.f32 %v3290, %v3359
    %v3611 = vmul.f32 %v3291, %v3363
    %v3612 = vmul.f32 %v3292, %v3367
    %v3613 = vmul.f32 %v3293, %v3371
    %v3614 = vmul.f32 %v3294, %v3375
    %v3615 = vmul.f32 %v3295, %v3379
    %v3616 = vmul.f32 %v3296, %v3383
    %v3617 = vmul.f32 %v3297, %v3387
    %v3618 = vmul.f32 %v3298, %v3391
    %v3619 = vmul.f32 %v3299, %v3395
    %v3620 = vmul.f32 %v3300, %v3399
    %v3621 = vmul.f32 %v3301, %v3403
    %v3622 = vmul.f32 %v3302, %v3407
    %v3623 = vmul.f32 %v3303, %v3411
    %v3624 = vmul.f32 %v3304, %v3415
    %v3625 = vmul.f32 %v3305, %v3419
    %v3626 = vmul.f32 %v3306, %v3423
    %v3627 = vmul.f32 %v3307, %v3427
    %v3628 = vmul.f32 %v3308, %v3431
    %v3629 = vmul.f32 %v3309, %v3435
    %v3630 = vmul.f32 %v3310, %v3439
    %v3631 = vmul.f32 %v3311, %v3443
    %v3632 = vmul.f32 %v3312, %v3447
    %v3633 = vmul.f32 %v3313, %v3451
    %v3634 = vmul.f32 %v3314, %v3455
    %v3635 = vmul.f32 %v3315, %v3459
    %v3636 = vmul.f32 %v3316, %v3463
    %v3637 = vmul.f32 %v3317, %v3467
    %v3638 = vmul.f32 %v3318, %v3471
    %v3639 = vmul.f32 %v3319, %v3475
    %v3640 = vmul.f32 %v3320, %v3479
    %v3641 = vmul.f32 %v3321, %v3483
    %v3642 = vmul.f32 %v3322, %v3487
    %v3643 = vmul.f32 %v3323, %v3491
    %v3644 = vmul.f32 %v3324, %v3495
    %v3645 = vmul.f32 %v3325, %v3499
    %v3646 = vmul.f32 %v3326, %v3503
    %v3647 = vmul.f32 %v3327, %v3507
    %v3648 = vmul.f32 %v3328, %v3511
    %v3649 = vmul.f32 %v3329, %v3515
    %v3650 = vmul.f32 %v3330, %v3519
    %v3651 = vmul.f32 %v3331, %v3523
    %v3652 = vmul.f32 %v3332, %v3527
    %v3653 = vmul.f32 %v3333, %v3531
    %v3654 = vmul.f32 %v3334, %v3535
    %v3655 = vmul.f32 %v3335, %v3539
    %v3656 = vmul.f32 %v3336, %v3543
    %v3657 = vmul.f32 %v3337, %v3547
    %v3658 = vmul.f32 %v3338, %v3551
    %v3659 = vmul.f32 %v3339, %v3555
    %v3660 = vmul.f32 %v3340, %v3559
    %v3661 = vmul.f32 %v3341, %v3563
    %v3662 = vmul.f32 %v3342, %v3567
    %v3663 = vmul.f32 %v3343, %v3571
    %v3664 = vmul.f32 %v3344, %v3575
    %v3665 = vmul.f32 %v3345, %v3579
    %v3666 = vmul.f32 %v3346, %v3583
    %v3667 = vmul.f32 %v3347, %v3587
    %v3668 = vmul.f32 %v3348, %v3591
    %v3669 = vmul.f32 %v3349, %v3595
    %v3670 = vmul.f32 %v3350, %v3599
    %v3671 = vmul.f32 %v3351, %v3603
    %v3672 = vmul.f32 %v3352, %v3607
    %3673 = vrot.lane.b32.xlu0 %v1753, 48
    %v3674 = vpop.permute.xlu0 %3673
    %3675 = vrot.lane.b32.xlu0 %v1755, 48
    %v3676 = vpop.permute.xlu0 %3675
    %3677 = vrot.lane.b32.xlu0 %v1757, 48
    %v3678 = vpop.permute.xlu0 %3677
    %3679 = vrot.lane.b32.xlu0 %v1759, 48
    %v3680 = vpop.permute.xlu0 %3679
    %3681 = vrot.lane.b32.xlu0 %v1761, 48
    %v3682 = vpop.permute.xlu0 %3681
    %3683 = vrot.lane.b32.xlu0 %v1763, 48
    %v3684 = vpop.permute.xlu0 %3683
    %3685 = vrot.lane.b32.xlu0 %v1765, 48
    %v3686 = vpop.permute.xlu0 %3685
    %3687 = vrot.lane.b32.xlu0 %v1767, 48
    %v3688 = vpop.permute.xlu0 %3687
    %3689 = vrot.lane.b32.xlu0 %v1769, 48
    %v3690 = vpop.permute.xlu0 %3689
    %3691 = vrot.lane.b32.xlu0 %v1771, 48
    %v3692 = vpop.permute.xlu0 %3691
    %3693 = vrot.lane.b32.xlu0 %v1773, 48
    %v3694 = vpop.permute.xlu0 %3693
    %3695 = vrot.lane.b32.xlu0 %v1775, 48
    %v3696 = vpop.permute.xlu0 %3695
    %3697 = vrot.lane.b32.xlu0 %v1777, 48
    %v3698 = vpop.permute.xlu0 %3697
    %3699 = vrot.lane.b32.xlu0 %v1779, 48
    %v3700 = vpop.permute.xlu0 %3699
    %3701 = vrot.lane.b32.xlu0 %v1781, 48
    %v3702 = vpop.permute.xlu0 %3701
    %3703 = vrot.lane.b32.xlu0 %v1783, 48
    %v3704 = vpop.permute.xlu0 %3703
    %3705 = vrot.lane.b32.xlu0 %v1785, 48
    %v3706 = vpop.permute.xlu0 %3705
    %3707 = vrot.lane.b32.xlu0 %v1787, 48
    %v3708 = vpop.permute.xlu0 %3707
    %3709 = vrot.lane.b32.xlu0 %v1789, 48
    %v3710 = vpop.permute.xlu0 %3709
    %3711 = vrot.lane.b32.xlu0 %v1791, 48
    %v3712 = vpop.permute.xlu0 %3711
    %3713 = vrot.lane.b32.xlu0 %v1793, 48
    %v3714 = vpop.permute.xlu0 %3713
    %3715 = vrot.lane.b32.xlu0 %v1795, 48
    %v3716 = vpop.permute.xlu0 %3715
    %3717 = vrot.lane.b32.xlu0 %v1797, 48
    %v3718 = vpop.permute.xlu0 %3717
    %3719 = vrot.lane.b32.xlu0 %v1799, 48
    %v3720 = vpop.permute.xlu0 %3719
    %3721 = vrot.lane.b32.xlu0 %v1801, 48
    %v3722 = vpop.permute.xlu0 %3721
    %3723 = vrot.lane.b32.xlu0 %v1803, 48
    %v3724 = vpop.permute.xlu0 %3723
    %3725 = vrot.lane.b32.xlu0 %v1805, 48
    %v3726 = vpop.permute.xlu0 %3725
    %3727 = vrot.lane.b32.xlu0 %v1807, 48
    %v3728 = vpop.permute.xlu0 %3727
    %3729 = vrot.lane.b32.xlu0 %v1809, 48
    %v3730 = vpop.permute.xlu0 %3729
    %3731 = vrot.lane.b32.xlu0 %v1811, 48
    %v3732 = vpop.permute.xlu0 %3731
    %3733 = vrot.lane.b32.xlu0 %v1813, 48
    %v3734 = vpop.permute.xlu0 %3733
    %3735 = vrot.lane.b32.xlu0 %v1815, 48
    %v3736 = vpop.permute.xlu0 %3735
    %3737 = vrot.lane.b32.xlu0 %v1817, 48
    %v3738 = vpop.permute.xlu0 %3737
    %3739 = vrot.lane.b32.xlu0 %v1819, 48
    %v3740 = vpop.permute.xlu0 %3739
    %3741 = vrot.lane.b32.xlu0 %v1821, 48
    %v3742 = vpop.permute.xlu0 %3741
    %3743 = vrot.lane.b32.xlu0 %v1823, 48
    %v3744 = vpop.permute.xlu0 %3743
    %3745 = vrot.lane.b32.xlu0 %v1825, 48
    %v3746 = vpop.permute.xlu0 %3745
    %3747 = vrot.lane.b32.xlu0 %v1827, 48
    %v3748 = vpop.permute.xlu0 %3747
    %3749 = vrot.lane.b32.xlu0 %v1829, 48
    %v3750 = vpop.permute.xlu0 %3749
    %3751 = vrot.lane.b32.xlu0 %v1831, 48
    %v3752 = vpop.permute.xlu0 %3751
    %3753 = vrot.lane.b32.xlu0 %v1833, 48
    %v3754 = vpop.permute.xlu0 %3753
    %3755 = vrot.lane.b32.xlu0 %v1835, 48
    %v3756 = vpop.permute.xlu0 %3755
    %3757 = vrot.lane.b32.xlu0 %v1837, 48
    %v3758 = vpop.permute.xlu0 %3757
    %3759 = vrot.lane.b32.xlu0 %v1839, 48
    %v3760 = vpop.permute.xlu0 %3759
    %3761 = vrot.lane.b32.xlu0 %v1841, 48
    %v3762 = vpop.permute.xlu0 %3761
    %3763 = vrot.lane.b32.xlu0 %v1843, 48
    %v3764 = vpop.permute.xlu0 %3763
    %3765 = vrot.lane.b32.xlu0 %v1845, 48
    %v3766 = vpop.permute.xlu0 %3765
    %3767 = vrot.lane.b32.xlu0 %v1847, 48
    %v3768 = vpop.permute.xlu0 %3767
    %3769 = vrot.lane.b32.xlu0 %v1849, 48
    %v3770 = vpop.permute.xlu0 %3769
    %3771 = vrot.lane.b32.xlu0 %v1851, 48
    %v3772 = vpop.permute.xlu0 %3771
    %3773 = vrot.lane.b32.xlu0 %v1853, 48
    %v3774 = vpop.permute.xlu0 %3773
    %3775 = vrot.lane.b32.xlu0 %v1855, 48
    %v3776 = vpop.permute.xlu0 %3775
    %3777 = vrot.lane.b32.xlu0 %v1857, 48
    %v3778 = vpop.permute.xlu0 %3777
    %3779 = vrot.lane.b32.xlu0 %v1859, 48
    %v3780 = vpop.permute.xlu0 %3779
    %3781 = vrot.lane.b32.xlu0 %v1861, 48
    %v3782 = vpop.permute.xlu0 %3781
    %3783 = vrot.lane.b32.xlu0 %v1863, 48
    %v3784 = vpop.permute.xlu0 %3783
    %3785 = vrot.lane.b32.xlu0 %v1865, 48
    %v3786 = vpop.permute.xlu0 %3785
    %3787 = vrot.lane.b32.xlu0 %v1867, 48
    %v3788 = vpop.permute.xlu0 %3787
    %3789 = vrot.lane.b32.xlu0 %v1869, 48
    %v3790 = vpop.permute.xlu0 %3789
    %3791 = vrot.lane.b32.xlu0 %v1871, 48
    %v3792 = vpop.permute.xlu0 %3791
    %3793 = vrot.lane.b32.xlu0 %v1873, 48
    %v3794 = vpop.permute.xlu0 %3793
    %3795 = vrot.lane.b32.xlu0 %v1875, 48
    %v3796 = vpop.permute.xlu0 %3795
    %3797 = vrot.lane.b32.xlu0 %v1877, 48
    %v3798 = vpop.permute.xlu0 %3797
    %3799 = vrot.lane.b32.xlu0 %v1879, 48
    %v3800 = vpop.permute.xlu0 %3799
    %v3865 = vsel %vm2136, %v3674, 0.0
    %3866 = vadd.xlane.f32.xlu0 %v3865
    %v3867 = vpop.xlane.xlu0 %3866
    %v3868 = vsel %vm2136, %v3676, 0.0
    %3869 = vadd.xlane.f32.xlu0 %v3868
    %v3870 = vpop.xlane.xlu0 %3869
    %v3871 = vsel %vm2136, %v3678, 0.0
    %3872 = vadd.xlane.f32.xlu0 %v3871
    %v3873 = vpop.xlane.xlu0 %3872
    %v3874 = vsel %vm2136, %v3680, 0.0
    %3875 = vadd.xlane.f32.xlu0 %v3874
    %v3876 = vpop.xlane.xlu0 %3875
    %v3877 = vsel %vm2136, %v3682, 0.0
    %3878 = vadd.xlane.f32.xlu0 %v3877
    %v3879 = vpop.xlane.xlu0 %3878
    %v3880 = vsel %vm2136, %v3684, 0.0
    %3881 = vadd.xlane.f32.xlu0 %v3880
    %v3882 = vpop.xlane.xlu0 %3881
    %v3883 = vsel %vm2136, %v3686, 0.0
    %3884 = vadd.xlane.f32.xlu0 %v3883
    %v3885 = vpop.xlane.xlu0 %3884
    %v3886 = vsel %vm2136, %v3688, 0.0
    %3887 = vadd.xlane.f32.xlu0 %v3886
    %v3888 = vpop.xlane.xlu0 %3887
    %v3889 = vsel %vm2136, %v3690, 0.0
    %3890 = vadd.xlane.f32.xlu0 %v3889
    %v3891 = vpop.xlane.xlu0 %3890
    %v3892 = vsel %vm2136, %v3692, 0.0
    %3893 = vadd.xlane.f32.xlu0 %v3892
    %v3894 = vpop.xlane.xlu0 %3893
    %v3895 = vsel %vm2136, %v3694, 0.0
    %3896 = vadd.xlane.f32.xlu0 %v3895
    %v3897 = vpop.xlane.xlu0 %3896
    %v3898 = vsel %vm2136, %v3696, 0.0
    %3899 = vadd.xlane.f32.xlu0 %v3898
    %v3900 = vpop.xlane.xlu0 %3899
    %v3901 = vsel %vm2136, %v3698, 0.0
    %3902 = vadd.xlane.f32.xlu0 %v3901
    %v3903 = vpop.xlane.xlu0 %3902
    %v3904 = vsel %vm2136, %v3700, 0.0
    %3905 = vadd.xlane.f32.xlu0 %v3904
    %v3906 = vpop.xlane.xlu0 %3905
    %v3907 = vsel %vm2136, %v3702, 0.0
    %3908 = vadd.xlane.f32.xlu0 %v3907
    %v3909 = vpop.xlane.xlu0 %3908
    %v3910 = vsel %vm2136, %v3704, 0.0
    %3911 = vadd.xlane.f32.xlu0 %v3910
    %v3912 = vpop.xlane.xlu0 %3911
    %v3913 = vsel %vm2136, %v3706, 0.0
    %3914 = vadd.xlane.f32.xlu0 %v3913
    %v3915 = vpop.xlane.xlu0 %3914
    %v3916 = vsel %vm2136, %v3708, 0.0
    %3917 = vadd.xlane.f32.xlu0 %v3916
    %v3918 = vpop.xlane.xlu0 %3917
    %v3919 = vsel %vm2136, %v3710, 0.0
    %3920 = vadd.xlane.f32.xlu0 %v3919
    %v3921 = vpop.xlane.xlu0 %3920
    %v3922 = vsel %vm2136, %v3712, 0.0
    %3923 = vadd.xlane.f32.xlu0 %v3922
    %v3924 = vpop.xlane.xlu0 %3923
    %v3925 = vsel %vm2136, %v3714, 0.0
    %3926 = vadd.xlane.f32.xlu0 %v3925
    %v3927 = vpop.xlane.xlu0 %3926
    %v3928 = vsel %vm2136, %v3716, 0.0
    %3929 = vadd.xlane.f32.xlu0 %v3928
    %v3930 = vpop.xlane.xlu0 %3929
    %v3931 = vsel %vm2136, %v3718, 0.0
    %3932 = vadd.xlane.f32.xlu0 %v3931
    %v3933 = vpop.xlane.xlu0 %3932
    %v3934 = vsel %vm2136, %v3720, 0.0
    %3935 = vadd.xlane.f32.xlu0 %v3934
    %v3936 = vpop.xlane.xlu0 %3935
    %v3937 = vsel %vm2136, %v3722, 0.0
    %3938 = vadd.xlane.f32.xlu0 %v3937
    %v3939 = vpop.xlane.xlu0 %3938
    %v3940 = vsel %vm2136, %v3724, 0.0
    %3941 = vadd.xlane.f32.xlu0 %v3940
    %v3942 = vpop.xlane.xlu0 %3941
    %v3943 = vsel %vm2136, %v3726, 0.0
    %3944 = vadd.xlane.f32.xlu0 %v3943
    %v3945 = vpop.xlane.xlu0 %3944
    %v3946 = vsel %vm2136, %v3728, 0.0
    %3947 = vadd.xlane.f32.xlu0 %v3946
    %v3948 = vpop.xlane.xlu0 %3947
    %v3949 = vsel %vm2136, %v3730, 0.0
    %3950 = vadd.xlane.f32.xlu0 %v3949
    %v3951 = vpop.xlane.xlu0 %3950
    %v3952 = vsel %vm2136, %v3732, 0.0
    %3953 = vadd.xlane.f32.xlu0 %v3952
    %v3954 = vpop.xlane.xlu0 %3953
    %v3955 = vsel %vm2136, %v3734, 0.0
    %3956 = vadd.xlane.f32.xlu0 %v3955
    %v3957 = vpop.xlane.xlu0 %3956
    %v3958 = vsel %vm2136, %v3736, 0.0
    %3959 = vadd.xlane.f32.xlu0 %v3958
    %v3960 = vpop.xlane.xlu0 %3959
    %v3961 = vsel %vm2136, %v3738, 0.0
    %3962 = vadd.xlane.f32.xlu0 %v3961
    %v3963 = vpop.xlane.xlu0 %3962
    %v3964 = vsel %vm2136, %v3740, 0.0
    %3965 = vadd.xlane.f32.xlu0 %v3964
    %v3966 = vpop.xlane.xlu0 %3965
    %v3967 = vsel %vm2136, %v3742, 0.0
    %3968 = vadd.xlane.f32.xlu0 %v3967
    %v3969 = vpop.xlane.xlu0 %3968
    %v3970 = vsel %vm2136, %v3744, 0.0
    %3971 = vadd.xlane.f32.xlu0 %v3970
    %v3972 = vpop.xlane.xlu0 %3971
    %v3973 = vsel %vm2136, %v3746, 0.0
    %3974 = vadd.xlane.f32.xlu0 %v3973
    %v3975 = vpop.xlane.xlu0 %3974
    %v3976 = vsel %vm2136, %v3748, 0.0
    %3977 = vadd.xlane.f32.xlu0 %v3976
    %v3978 = vpop.xlane.xlu0 %3977
    %v3979 = vsel %vm2136, %v3750, 0.0
    %3980 = vadd.xlane.f32.xlu0 %v3979
    %v3981 = vpop.xlane.xlu0 %3980
    %v3982 = vsel %vm2136, %v3752, 0.0
    %3983 = vadd.xlane.f32.xlu0 %v3982
    %v3984 = vpop.xlane.xlu0 %3983
    %v3985 = vsel %vm2136, %v3754, 0.0
    %3986 = vadd.xlane.f32.xlu0 %v3985
    %v3987 = vpop.xlane.xlu0 %3986
    %v3988 = vsel %vm2136, %v3756, 0.0
    %3989 = vadd.xlane.f32.xlu0 %v3988
    %v3990 = vpop.xlane.xlu0 %3989
    %v3991 = vsel %vm2136, %v3758, 0.0
    %3992 = vadd.xlane.f32.xlu0 %v3991
    %v3993 = vpop.xlane.xlu0 %3992
    %v3994 = vsel %vm2136, %v3760, 0.0
    %3995 = vadd.xlane.f32.xlu0 %v3994
    %v3996 = vpop.xlane.xlu0 %3995
    %v3997 = vsel %vm2136, %v3762, 0.0
    %3998 = vadd.xlane.f32.xlu0 %v3997
    %v3999 = vpop.xlane.xlu0 %3998
    %v4000 = vsel %vm2136, %v3764, 0.0
    %4001 = vadd.xlane.f32.xlu0 %v4000
    %v4002 = vpop.xlane.xlu0 %4001
    %v4003 = vsel %vm2136, %v3766, 0.0
    %4004 = vadd.xlane.f32.xlu0 %v4003
    %v4005 = vpop.xlane.xlu0 %4004
    %v4006 = vsel %vm2136, %v3768, 0.0
    %4007 = vadd.xlane.f32.xlu0 %v4006
    %v4008 = vpop.xlane.xlu0 %4007
    %v4009 = vsel %vm2136, %v3770, 0.0
    %4010 = vadd.xlane.f32.xlu0 %v4009
    %v4011 = vpop.xlane.xlu0 %4010
    %v4012 = vsel %vm2136, %v3772, 0.0
    %4013 = vadd.xlane.f32.xlu0 %v4012
    %v4014 = vpop.xlane.xlu0 %4013
    %v4015 = vsel %vm2136, %v3774, 0.0
    %4016 = vadd.xlane.f32.xlu0 %v4015
    %v4017 = vpop.xlane.xlu0 %4016
    %v4018 = vsel %vm2136, %v3776, 0.0
    %4019 = vadd.xlane.f32.xlu0 %v4018
    %v4020 = vpop.xlane.xlu0 %4019
    %v4021 = vsel %vm2136, %v3778, 0.0
    %4022 = vadd.xlane.f32.xlu0 %v4021
    %v4023 = vpop.xlane.xlu0 %4022
    %v4024 = vsel %vm2136, %v3780, 0.0
    %4025 = vadd.xlane.f32.xlu0 %v4024
    %v4026 = vpop.xlane.xlu0 %4025
    %v4027 = vsel %vm2136, %v3782, 0.0
    %4028 = vadd.xlane.f32.xlu0 %v4027
    %v4029 = vpop.xlane.xlu0 %4028
    %v4030 = vsel %vm2136, %v3784, 0.0
    %4031 = vadd.xlane.f32.xlu0 %v4030
    %v4032 = vpop.xlane.xlu0 %4031
    %v4033 = vsel %vm2136, %v3786, 0.0
    %4034 = vadd.xlane.f32.xlu0 %v4033
    %v4035 = vpop.xlane.xlu0 %4034
    %v4036 = vsel %vm2136, %v3788, 0.0
    %4037 = vadd.xlane.f32.xlu0 %v4036
    %v4038 = vpop.xlane.xlu0 %4037
    %v4039 = vsel %vm2136, %v3790, 0.0
    %4040 = vadd.xlane.f32.xlu0 %v4039
    %v4041 = vpop.xlane.xlu0 %4040
    %v4042 = vsel %vm2136, %v3792, 0.0
    %4043 = vadd.xlane.f32.xlu0 %v4042
    %v4044 = vpop.xlane.xlu0 %4043
    %v4045 = vsel %vm2136, %v3794, 0.0
    %4046 = vadd.xlane.f32.xlu0 %v4045
    %v4047 = vpop.xlane.xlu0 %4046
    %v4048 = vsel %vm2136, %v3796, 0.0
    %4049 = vadd.xlane.f32.xlu0 %v4048
    %v4050 = vpop.xlane.xlu0 %4049
    %v4051 = vsel %vm2136, %v3798, 0.0
    %4052 = vadd.xlane.f32.xlu0 %v4051
    %v4053 = vpop.xlane.xlu0 %4052
    %v4054 = vsel %vm2136, %v3800, 0.0
    %4055 = vadd.xlane.f32.xlu0 %v4054
    %v4056 = vpop.xlane.xlu0 %4055
    %v4057 = vrcp.pop %v3867
    %v4058 = vrcp.pop %v3870
    %v4059 = vrcp.pop %v3873
    %v4060 = vrcp.pop %v3876
    %v4061 = vrcp.pop %v3879
    %v4062 = vrcp.pop %v3882
    %v4063 = vrcp.pop %v3885
    %v4064 = vrcp.pop %v3888
    %v4065 = vrcp.pop %v3891
    %v4066 = vrcp.pop %v3894
    %v4067 = vrcp.pop %v3897
    %v4068 = vrcp.pop %v3900
    %v4069 = vrcp.pop %v3903
    %v4070 = vrcp.pop %v3906
    %v4071 = vrcp.pop %v3909
    %v4072 = vrcp.pop %v3912
    %v4073 = vrcp.pop %v3915
    %v4074 = vrcp.pop %v3918
    %v4075 = vrcp.pop %v3921
    %v4076 = vrcp.pop %v3924
    %v4077 = vrcp.pop %v3927
    %v4078 = vrcp.pop %v3930
    %v4079 = vrcp.pop %v3933
    %v4080 = vrcp.pop %v3936
    %v4081 = vrcp.pop %v3939
    %v4082 = vrcp.pop %v3942
    %v4083 = vrcp.pop %v3945
    %v4084 = vrcp.pop %v3948
    %v4085 = vrcp.pop %v3951
    %v4086 = vrcp.pop %v3954
    %v4087 = vrcp.pop %v3957
    %v4088 = vrcp.pop %v3960
    %v4089 = vrcp.pop %v3963
    %v4090 = vrcp.pop %v3966
    %v4091 = vrcp.pop %v3969
    %v4092 = vrcp.pop %v3972
    %v4093 = vrcp.pop %v3975
    %v4094 = vrcp.pop %v3978
    %v4095 = vrcp.pop %v3981
    %v4096 = vrcp.pop %v3984
    %v4097 = vrcp.pop %v3987
    %v4098 = vrcp.pop %v3990
    %v4099 = vrcp.pop %v3993
    %v4100 = vrcp.pop %v3996
    %v4101 = vrcp.pop %v3999
    %v4102 = vrcp.pop %v4002
    %v4103 = vrcp.pop %v4005
    %v4104 = vrcp.pop %v4008
    %v4105 = vrcp.pop %v4011
    %v4106 = vrcp.pop %v4014
    %v4107 = vrcp.pop %v4017
    %v4108 = vrcp.pop %v4020
    %v4109 = vrcp.pop %v4023
    %v4110 = vrcp.pop %v4026
    %v4111 = vrcp.pop %v4029
    %v4112 = vrcp.pop %v4032
    %v4113 = vrcp.pop %v4035
    %v4114 = vrcp.pop %v4038
    %v4115 = vrcp.pop %v4041
    %v4116 = vrcp.pop %v4044
    %v4117 = vrcp.pop %v4047
    %v4118 = vrcp.pop %v4050
    %v4119 = vrcp.pop %v4053
    %v4120 = vrcp.pop %v4056
    %v4121 = vmul.f32 %v1753, %v4057
    %v4122 = vmul.f32 %v1755, %v4058
    %v4123 = vmul.f32 %v1757, %v4059
    %v4124 = vmul.f32 %v1759, %v4060
    %v4125 = vmul.f32 %v1761, %v4061
    %v4126 = vmul.f32 %v1763, %v4062
    %v4127 = vmul.f32 %v1765, %v4063
    %v4128 = vmul.f32 %v1767, %v4064
    %v4129 = vmul.f32 %v1769, %v4065
    %v4130 = vmul.f32 %v1771, %v4066
    %v4131 = vmul.f32 %v1773, %v4067
    %v4132 = vmul.f32 %v1775, %v4068
    %v4133 = vmul.f32 %v1777, %v4069
    %v4134 = vmul.f32 %v1779, %v4070
    %v4135 = vmul.f32 %v1781, %v4071
    %v4136 = vmul.f32 %v1783, %v4072
    %v4137 = vmul.f32 %v1785, %v4073
    %v4138 = vmul.f32 %v1787, %v4074
    %v4139 = vmul.f32 %v1789, %v4075
    %v4140 = vmul.f32 %v1791, %v4076
    %v4141 = vmul.f32 %v1793, %v4077
    %v4142 = vmul.f32 %v1795, %v4078
    %v4143 = vmul.f32 %v1797, %v4079
    %v4144 = vmul.f32 %v1799, %v4080
    %v4145 = vmul.f32 %v1801, %v4081
    %v4146 = vmul.f32 %v1803, %v4082
    %v4147 = vmul.f32 %v1805, %v4083
    %v4148 = vmul.f32 %v1807, %v4084
    %v4149 = vmul.f32 %v1809, %v4085
    %v4150 = vmul.f32 %v1811, %v4086
    %v4151 = vmul.f32 %v1813, %v4087
    %v4152 = vmul.f32 %v1815, %v4088
    %v4153 = vmul.f32 %v1817, %v4089
    %v4154 = vmul.f32 %v1819, %v4090
    %v4155 = vmul.f32 %v1821, %v4091
    %v4156 = vmul.f32 %v1823, %v4092
    %v4157 = vmul.f32 %v1825, %v4093
    %v4158 = vmul.f32 %v1827, %v4094
    %v4159 = vmul.f32 %v1829, %v4095
    %v4160 = vmul.f32 %v1831, %v4096
    %v4161 = vmul.f32 %v1833, %v4097
    %v4162 = vmul.f32 %v1835, %v4098
    %v4163 = vmul.f32 %v1837, %v4099
    %v4164 = vmul.f32 %v1839, %v4100
    %v4165 = vmul.f32 %v1841, %v4101
    %v4166 = vmul.f32 %v1843, %v4102
    %v4167 = vmul.f32 %v1845, %v4103
    %v4168 = vmul.f32 %v1847, %v4104
    %v4169 = vmul.f32 %v1849, %v4105
    %v4170 = vmul.f32 %v1851, %v4106
    %v4171 = vmul.f32 %v1853, %v4107
    %v4172 = vmul.f32 %v1855, %v4108
    %v4173 = vmul.f32 %v1857, %v4109
    %v4174 = vmul.f32 %v1859, %v4110
    %v4175 = vmul.f32 %v1861, %v4111
    %v4176 = vmul.f32 %v1863, %v4112
    %v4177 = vmul.f32 %v1865, %v4113
    %v4178 = vmul.f32 %v1867, %v4114
    %v4179 = vmul.f32 %v1869, %v4115
    %v4180 = vmul.f32 %v1871, %v4116
    %v4181 = vmul.f32 %v1873, %v4117
    %v4182 = vmul.f32 %v1875, %v4118
    %v4183 = vmul.f32 %v1877, %v4119
    %v4184 = vmul.f32 %v1879, %v4120
    %4185 = vset.pattern.permute.xlu0 98
    %4186 = vperm.xlu0 %4185, %v1431
    %v4187 = vpop.permute.xlu0 %4186
    %4189 = vset.pattern.permute.xlu0 98
    %4190 = vperm.xlu0 %4189, %v1432
    %v4191 = vpop.permute.xlu0 %4190
    %4193 = vset.pattern.permute.xlu0 98
    %4194 = vperm.xlu0 %4193, %v1433
    %v4195 = vpop.permute.xlu0 %4194
    %4197 = vset.pattern.permute.xlu0 98
    %4198 = vperm.xlu0 %4197, %v1434
    %v4199 = vpop.permute.xlu0 %4198
    %4201 = vset.pattern.permute.xlu0 98
    %4202 = vperm.xlu0 %4201, %v1435
    %v4203 = vpop.permute.xlu0 %4202
    %4205 = vset.pattern.permute.xlu0 98
    %4206 = vperm.xlu0 %4205, %v1436
    %v4207 = vpop.permute.xlu0 %4206
    %4209 = vset.pattern.permute.xlu0 98
    %4210 = vperm.xlu0 %4209, %v1437
    %v4211 = vpop.permute.xlu0 %4210
    %4213 = vset.pattern.permute.xlu0 98
    %4214 = vperm.xlu0 %4213, %v1438
    %v4215 = vpop.permute.xlu0 %4214
    %4217 = vset.pattern.permute.xlu0 98
    %4218 = vperm.xlu0 %4217, %v1439
    %v4219 = vpop.permute.xlu0 %4218
    %4221 = vset.pattern.permute.xlu0 98
    %4222 = vperm.xlu0 %4221, %v1440
    %v4223 = vpop.permute.xlu0 %4222
    %4225 = vset.pattern.permute.xlu0 98
    %4226 = vperm.xlu0 %4225, %v1441
    %v4227 = vpop.permute.xlu0 %4226
    %4229 = vset.pattern.permute.xlu0 98
    %4230 = vperm.xlu0 %4229, %v1442
    %v4231 = vpop.permute.xlu0 %4230
    %4233 = vset.pattern.permute.xlu0 98
    %4234 = vperm.xlu0 %4233, %v1443
    %v4235 = vpop.permute.xlu0 %4234
    %4237 = vset.pattern.permute.xlu0 98
    %4238 = vperm.xlu0 %4237, %v1444
    %v4239 = vpop.permute.xlu0 %4238
    %4241 = vset.pattern.permute.xlu0 98
    %4242 = vperm.xlu0 %4241, %v1445
    %v4243 = vpop.permute.xlu0 %4242
    %4245 = vset.pattern.permute.xlu0 98
    %4246 = vperm.xlu0 %4245, %v1446
    %v4247 = vpop.permute.xlu0 %4246
    %4249 = vset.pattern.permute.xlu0 98
    %4250 = vperm.xlu0 %4249, %v1447
    %v4251 = vpop.permute.xlu0 %4250
    %4253 = vset.pattern.permute.xlu0 98
    %4254 = vperm.xlu0 %4253, %v1448
    %v4255 = vpop.permute.xlu0 %4254
    %4257 = vset.pattern.permute.xlu0 98
    %4258 = vperm.xlu0 %4257, %v1449
    %v4259 = vpop.permute.xlu0 %4258
    %4261 = vset.pattern.permute.xlu0 98
    %4262 = vperm.xlu0 %4261, %v1450
    %v4263 = vpop.permute.xlu0 %4262
    %4265 = vset.pattern.permute.xlu0 98
    %4266 = vperm.xlu0 %4265, %v1451
    %v4267 = vpop.permute.xlu0 %4266
    %4269 = vset.pattern.permute.xlu0 98
    %4270 = vperm.xlu0 %4269, %v1452
    %v4271 = vpop.permute.xlu0 %4270
    %4273 = vset.pattern.permute.xlu0 98
    %4274 = vperm.xlu0 %4273, %v1453
    %v4275 = vpop.permute.xlu0 %4274
    %4277 = vset.pattern.permute.xlu0 98
    %4278 = vperm.xlu0 %4277, %v1454
    %v4279 = vpop.permute.xlu0 %4278
    %4281 = vset.pattern.permute.xlu0 98
    %4282 = vperm.xlu0 %4281, %v1455
    %v4283 = vpop.permute.xlu0 %4282
    %4285 = vset.pattern.permute.xlu0 98
    %4286 = vperm.xlu0 %4285, %v1456
    %v4287 = vpop.permute.xlu0 %4286
    %4289 = vset.pattern.permute.xlu0 98
    %4290 = vperm.xlu0 %4289, %v1457
    %v4291 = vpop.permute.xlu0 %4290
    %4293 = vset.pattern.permute.xlu0 98
    %4294 = vperm.xlu0 %4293, %v1458
    %v4295 = vpop.permute.xlu0 %4294
    %4297 = vset.pattern.permute.xlu0 98
    %4298 = vperm.xlu0 %4297, %v1459
    %v4299 = vpop.permute.xlu0 %4298
    %4301 = vset.pattern.permute.xlu0 98
    %4302 = vperm.xlu0 %4301, %v1460
    %v4303 = vpop.permute.xlu0 %4302
    %4305 = vset.pattern.permute.xlu0 98
    %4306 = vperm.xlu0 %4305, %v1461
    %v4307 = vpop.permute.xlu0 %4306
    %4309 = vset.pattern.permute.xlu0 98
    %4310 = vperm.xlu0 %4309, %v1462
    %v4311 = vpop.permute.xlu0 %4310
    %4313 = vset.pattern.permute.xlu0 98
    %4314 = vperm.xlu0 %4313, %v1463
    %v4315 = vpop.permute.xlu0 %4314
    %4317 = vset.pattern.permute.xlu0 98
    %4318 = vperm.xlu0 %4317, %v1464
    %v4319 = vpop.permute.xlu0 %4318
    %4321 = vset.pattern.permute.xlu0 98
    %4322 = vperm.xlu0 %4321, %v1465
    %v4323 = vpop.permute.xlu0 %4322
    %4325 = vset.pattern.permute.xlu0 98
    %4326 = vperm.xlu0 %4325, %v1466
    %v4327 = vpop.permute.xlu0 %4326
    %4329 = vset.pattern.permute.xlu0 98
    %4330 = vperm.xlu0 %4329, %v1467
    %v4331 = vpop.permute.xlu0 %4330
    %4333 = vset.pattern.permute.xlu0 98
    %4334 = vperm.xlu0 %4333, %v1468
    %v4335 = vpop.permute.xlu0 %4334
    %4337 = vset.pattern.permute.xlu0 98
    %4338 = vperm.xlu0 %4337, %v1469
    %v4339 = vpop.permute.xlu0 %4338
    %4341 = vset.pattern.permute.xlu0 98
    %4342 = vperm.xlu0 %4341, %v1470
    %v4343 = vpop.permute.xlu0 %4342
    %4345 = vset.pattern.permute.xlu0 98
    %4346 = vperm.xlu0 %4345, %v1471
    %v4347 = vpop.permute.xlu0 %4346
    %4349 = vset.pattern.permute.xlu0 98
    %4350 = vperm.xlu0 %4349, %v1472
    %v4351 = vpop.permute.xlu0 %4350
    %4353 = vset.pattern.permute.xlu0 98
    %4354 = vperm.xlu0 %4353, %v1473
    %v4355 = vpop.permute.xlu0 %4354
    %4357 = vset.pattern.permute.xlu0 98
    %4358 = vperm.xlu0 %4357, %v1474
    %v4359 = vpop.permute.xlu0 %4358
    %4361 = vset.pattern.permute.xlu0 98
    %4362 = vperm.xlu0 %4361, %v1475
    %v4363 = vpop.permute.xlu0 %4362
    %4365 = vset.pattern.permute.xlu0 98
    %4366 = vperm.xlu0 %4365, %v1476
    %v4367 = vpop.permute.xlu0 %4366
    %4369 = vset.pattern.permute.xlu0 98
    %4370 = vperm.xlu0 %4369, %v1477
    %v4371 = vpop.permute.xlu0 %4370
    %4373 = vset.pattern.permute.xlu0 98
    %4374 = vperm.xlu0 %4373, %v1478
    %v4375 = vpop.permute.xlu0 %4374
    %4377 = vset.pattern.permute.xlu0 98
    %4378 = vperm.xlu0 %4377, %v1479
    %v4379 = vpop.permute.xlu0 %4378
    %4381 = vset.pattern.permute.xlu0 98
    %4382 = vperm.xlu0 %4381, %v1480
    %v4383 = vpop.permute.xlu0 %4382
    %4385 = vset.pattern.permute.xlu0 98
    %4386 = vperm.xlu0 %4385, %v1481
    %v4387 = vpop.permute.xlu0 %4386
    %4389 = vset.pattern.permute.xlu0 98
    %4390 = vperm.xlu0 %4389, %v1482
    %v4391 = vpop.permute.xlu0 %4390
    %4393 = vset.pattern.permute.xlu0 98
    %4394 = vperm.xlu0 %4393, %v1483
    %v4395 = vpop.permute.xlu0 %4394
    %4397 = vset.pattern.permute.xlu0 98
    %4398 = vperm.xlu0 %4397, %v1484
    %v4399 = vpop.permute.xlu0 %4398
    %4401 = vset.pattern.permute.xlu0 98
    %4402 = vperm.xlu0 %4401, %v1485
    %v4403 = vpop.permute.xlu0 %4402
    %4405 = vset.pattern.permute.xlu0 98
    %4406 = vperm.xlu0 %4405, %v1486
    %v4407 = vpop.permute.xlu0 %4406
    %4409 = vset.pattern.permute.xlu0 98
    %4410 = vperm.xlu0 %4409, %v1487
    %v4411 = vpop.permute.xlu0 %4410
    %4413 = vset.pattern.permute.xlu0 98
    %4414 = vperm.xlu0 %4413, %v1488
    %v4415 = vpop.permute.xlu0 %4414
    %4417 = vset.pattern.permute.xlu0 98
    %4418 = vperm.xlu0 %4417, %v1489
    %v4419 = vpop.permute.xlu0 %4418
    %4421 = vset.pattern.permute.xlu0 98
    %4422 = vperm.xlu0 %4421, %v1490
    %v4423 = vpop.permute.xlu0 %4422
    %4425 = vset.pattern.permute.xlu0 98
    %4426 = vperm.xlu0 %4425, %v1491
    %v4427 = vpop.permute.xlu0 %4426
    %4429 = vset.pattern.permute.xlu0 98
    %4430 = vperm.xlu0 %4429, %v1492
    %v4431 = vpop.permute.xlu0 %4430
    %4433 = vset.pattern.permute.xlu0 98
    %4434 = vperm.xlu0 %4433, %v1493
    %v4435 = vpop.permute.xlu0 %4434
    %4437 = vset.pattern.permute.xlu0 98
    %4438 = vperm.xlu0 %4437, %v1494
    %v4439 = vpop.permute.xlu0 %4438
    %v4441 = vmul.f32 %v4121, %v4187
    %v4442 = vmul.f32 %v4122, %v4191
    %v4443 = vmul.f32 %v4123, %v4195
    %v4444 = vmul.f32 %v4124, %v4199
    %v4445 = vmul.f32 %v4125, %v4203
    %v4446 = vmul.f32 %v4126, %v4207
    %v4447 = vmul.f32 %v4127, %v4211
    %v4448 = vmul.f32 %v4128, %v4215
    %v4449 = vmul.f32 %v4129, %v4219
    %v4450 = vmul.f32 %v4130, %v4223
    %v4451 = vmul.f32 %v4131, %v4227
    %v4452 = vmul.f32 %v4132, %v4231
    %v4453 = vmul.f32 %v4133, %v4235
    %v4454 = vmul.f32 %v4134, %v4239
    %v4455 = vmul.f32 %v4135, %v4243
    %v4456 = vmul.f32 %v4136, %v4247
    %v4457 = vmul.f32 %v4137, %v4251
    %v4458 = vmul.f32 %v4138, %v4255
    %v4459 = vmul.f32 %v4139, %v4259
    %v4460 = vmul.f32 %v4140, %v4263
    %v4461 = vmul.f32 %v4141, %v4267
    %v4462 = vmul.f32 %v4142, %v4271
    %v4463 = vmul.f32 %v4143, %v4275
    %v4464 = vmul.f32 %v4144, %v4279
    %v4465 = vmul.f32 %v4145, %v4283
    %v4466 = vmul.f32 %v4146, %v4287
    %v4467 = vmul.f32 %v4147, %v4291
    %v4468 = vmul.f32 %v4148, %v4295
    %v4469 = vmul.f32 %v4149, %v4299
    %v4470 = vmul.f32 %v4150, %v4303
    %v4471 = vmul.f32 %v4151, %v4307
    %v4472 = vmul.f32 %v4152, %v4311
    %v4473 = vmul.f32 %v4153, %v4315
    %v4474 = vmul.f32 %v4154, %v4319
    %v4475 = vmul.f32 %v4155, %v4323
    %v4476 = vmul.f32 %v4156, %v4327
    %v4477 = vmul.f32 %v4157, %v4331
    %v4478 = vmul.f32 %v4158, %v4335
    %v4479 = vmul.f32 %v4159, %v4339
    %v4480 = vmul.f32 %v4160, %v4343
    %v4481 = vmul.f32 %v4161, %v4347
    %v4482 = vmul.f32 %v4162, %v4351
    %v4483 = vmul.f32 %v4163, %v4355
    %v4484 = vmul.f32 %v4164, %v4359
    %v4485 = vmul.f32 %v4165, %v4363
    %v4486 = vmul.f32 %v4166, %v4367
    %v4487 = vmul.f32 %v4167, %v4371
    %v4488 = vmul.f32 %v4168, %v4375
    %v4489 = vmul.f32 %v4169, %v4379
    %v4490 = vmul.f32 %v4170, %v4383
    %v4491 = vmul.f32 %v4171, %v4387
    %v4492 = vmul.f32 %v4172, %v4391
    %v4493 = vmul.f32 %v4173, %v4395
    %v4494 = vmul.f32 %v4174, %v4399
    %v4495 = vmul.f32 %v4175, %v4403
    %v4496 = vmul.f32 %v4176, %v4407
    %v4497 = vmul.f32 %v4177, %v4411
    %v4498 = vmul.f32 %v4178, %v4415
    %v4499 = vmul.f32 %v4179, %v4419
    %v4500 = vmul.f32 %v4180, %v4423
    %v4501 = vmul.f32 %v4181, %v4427
    %v4502 = vmul.f32 %v4182, %v4431
    %v4503 = vmul.f32 %v4183, %v4435
    %v4504 = vmul.f32 %v4184, %v4439
    %4505 = vrot.lane.b32.xlu0 %v1753, 40
    %v4506 = vpop.permute.xlu0 %4505
    %4507 = vrot.lane.b32.xlu0 %v1755, 40
    %v4508 = vpop.permute.xlu0 %4507
    %4509 = vrot.lane.b32.xlu0 %v1757, 40
    %v4510 = vpop.permute.xlu0 %4509
    %4511 = vrot.lane.b32.xlu0 %v1759, 40
    %v4512 = vpop.permute.xlu0 %4511
    %4513 = vrot.lane.b32.xlu0 %v1761, 40
    %v4514 = vpop.permute.xlu0 %4513
    %4515 = vrot.lane.b32.xlu0 %v1763, 40
    %v4516 = vpop.permute.xlu0 %4515
    %4517 = vrot.lane.b32.xlu0 %v1765, 40
    %v4518 = vpop.permute.xlu0 %4517
    %4519 = vrot.lane.b32.xlu0 %v1767, 40
    %v4520 = vpop.permute.xlu0 %4519
    %4521 = vrot.lane.b32.xlu0 %v1769, 40
    %v4522 = vpop.permute.xlu0 %4521
    %4523 = vrot.lane.b32.xlu0 %v1771, 40
    %v4524 = vpop.permute.xlu0 %4523
    %4525 = vrot.lane.b32.xlu0 %v1773, 40
    %v4526 = vpop.permute.xlu0 %4525
    %4527 = vrot.lane.b32.xlu0 %v1775, 40
    %v4528 = vpop.permute.xlu0 %4527
    %4529 = vrot.lane.b32.xlu0 %v1777, 40
    %v4530 = vpop.permute.xlu0 %4529
    %4531 = vrot.lane.b32.xlu0 %v1779, 40
    %v4532 = vpop.permute.xlu0 %4531
    %4533 = vrot.lane.b32.xlu0 %v1781, 40
    %v4534 = vpop.permute.xlu0 %4533
    %4535 = vrot.lane.b32.xlu0 %v1783, 40
    %v4536 = vpop.permute.xlu0 %4535
    %4537 = vrot.lane.b32.xlu0 %v1785, 40
    %v4538 = vpop.permute.xlu0 %4537
    %4539 = vrot.lane.b32.xlu0 %v1787, 40
    %v4540 = vpop.permute.xlu0 %4539
    %4541 = vrot.lane.b32.xlu0 %v1789, 40
    %v4542 = vpop.permute.xlu0 %4541
    %4543 = vrot.lane.b32.xlu0 %v1791, 40
    %v4544 = vpop.permute.xlu0 %4543
    %4545 = vrot.lane.b32.xlu0 %v1793, 40
    %v4546 = vpop.permute.xlu0 %4545
    %4547 = vrot.lane.b32.xlu0 %v1795, 40
    %v4548 = vpop.permute.xlu0 %4547
    %4549 = vrot.lane.b32.xlu0 %v1797, 40
    %v4550 = vpop.permute.xlu0 %4549
    %4551 = vrot.lane.b32.xlu0 %v1799, 40
    %v4552 = vpop.permute.xlu0 %4551
    %4553 = vrot.lane.b32.xlu0 %v1801, 40
    %v4554 = vpop.permute.xlu0 %4553
    %4555 = vrot.lane.b32.xlu0 %v1803, 40
    %v4556 = vpop.permute.xlu0 %4555
    %4557 = vrot.lane.b32.xlu0 %v1805, 40
    %v4558 = vpop.permute.xlu0 %4557
    %4559 = vrot.lane.b32.xlu0 %v1807, 40
    %v4560 = vpop.permute.xlu0 %4559
    %4561 = vrot.lane.b32.xlu0 %v1809, 40
    %v4562 = vpop.permute.xlu0 %4561
    %4563 = vrot.lane.b32.xlu0 %v1811, 40
    %v4564 = vpop.permute.xlu0 %4563
    %4565 = vrot.lane.b32.xlu0 %v1813, 40
    %v4566 = vpop.permute.xlu0 %4565
    %4567 = vrot.lane.b32.xlu0 %v1815, 40
    %v4568 = vpop.permute.xlu0 %4567
    %4569 = vrot.lane.b32.xlu0 %v1817, 40
    %v4570 = vpop.permute.xlu0 %4569
    %4571 = vrot.lane.b32.xlu0 %v1819, 40
    %v4572 = vpop.permute.xlu0 %4571
    %4573 = vrot.lane.b32.xlu0 %v1821, 40
    %v4574 = vpop.permute.xlu0 %4573
    %4575 = vrot.lane.b32.xlu0 %v1823, 40
    %v4576 = vpop.permute.xlu0 %4575
    %4577 = vrot.lane.b32.xlu0 %v1825, 40
    %v4578 = vpop.permute.xlu0 %4577
    %4579 = vrot.lane.b32.xlu0 %v1827, 40
    %v4580 = vpop.permute.xlu0 %4579
    %4581 = vrot.lane.b32.xlu0 %v1829, 40
    %v4582 = vpop.permute.xlu0 %4581
    %4583 = vrot.lane.b32.xlu0 %v1831, 40
    %v4584 = vpop.permute.xlu0 %4583
    %4585 = vrot.lane.b32.xlu0 %v1833, 40
    %v4586 = vpop.permute.xlu0 %4585
    %4587 = vrot.lane.b32.xlu0 %v1835, 40
    %v4588 = vpop.permute.xlu0 %4587
    %4589 = vrot.lane.b32.xlu0 %v1837, 40
    %v4590 = vpop.permute.xlu0 %4589
    %4591 = vrot.lane.b32.xlu0 %v1839, 40
    %v4592 = vpop.permute.xlu0 %4591
    %4593 = vrot.lane.b32.xlu0 %v1841, 40
    %v4594 = vpop.permute.xlu0 %4593
    %4595 = vrot.lane.b32.xlu0 %v1843, 40
    %v4596 = vpop.permute.xlu0 %4595
    %4597 = vrot.lane.b32.xlu0 %v1845, 40
    %v4598 = vpop.permute.xlu0 %4597
    %4599 = vrot.lane.b32.xlu0 %v1847, 40
    %v4600 = vpop.permute.xlu0 %4599
    %4601 = vrot.lane.b32.xlu0 %v1849, 40
    %v4602 = vpop.permute.xlu0 %4601
    %4603 = vrot.lane.b32.xlu0 %v1851, 40
    %v4604 = vpop.permute.xlu0 %4603
    %4605 = vrot.lane.b32.xlu0 %v1853, 40
    %v4606 = vpop.permute.xlu0 %4605
    %4607 = vrot.lane.b32.xlu0 %v1855, 40
    %v4608 = vpop.permute.xlu0 %4607
    %4609 = vrot.lane.b32.xlu0 %v1857, 40
    %v4610 = vpop.permute.xlu0 %4609
    %4611 = vrot.lane.b32.xlu0 %v1859, 40
    %v4612 = vpop.permute.xlu0 %4611
    %4613 = vrot.lane.b32.xlu0 %v1861, 40
    %v4614 = vpop.permute.xlu0 %4613
    %4615 = vrot.lane.b32.xlu0 %v1863, 40
    %v4616 = vpop.permute.xlu0 %4615
    %4617 = vrot.lane.b32.xlu0 %v1865, 40
    %v4618 = vpop.permute.xlu0 %4617
    %4619 = vrot.lane.b32.xlu0 %v1867, 40
    %v4620 = vpop.permute.xlu0 %4619
    %4621 = vrot.lane.b32.xlu0 %v1869, 40
    %v4622 = vpop.permute.xlu0 %4621
    %4623 = vrot.lane.b32.xlu0 %v1871, 40
    %v4624 = vpop.permute.xlu0 %4623
    %4625 = vrot.lane.b32.xlu0 %v1873, 40
    %v4626 = vpop.permute.xlu0 %4625
    %4627 = vrot.lane.b32.xlu0 %v1875, 40
    %v4628 = vpop.permute.xlu0 %4627
    %4629 = vrot.lane.b32.xlu0 %v1877, 40
    %v4630 = vpop.permute.xlu0 %4629
    %4631 = vrot.lane.b32.xlu0 %v1879, 40
    %v4632 = vpop.permute.xlu0 %4631
    %v4697 = vsel %vm2136, %v4506, 0.0
    %4698 = vadd.xlane.f32.xlu0 %v4697
    %v4699 = vpop.xlane.xlu0 %4698
    %v4700 = vsel %vm2136, %v4508, 0.0
    %4701 = vadd.xlane.f32.xlu0 %v4700
    %v4702 = vpop.xlane.xlu0 %4701
    %v4703 = vsel %vm2136, %v4510, 0.0
    %4704 = vadd.xlane.f32.xlu0 %v4703
    %v4705 = vpop.xlane.xlu0 %4704
    %v4706 = vsel %vm2136, %v4512, 0.0
    %4707 = vadd.xlane.f32.xlu0 %v4706
    %v4708 = vpop.xlane.xlu0 %4707
    %v4709 = vsel %vm2136, %v4514, 0.0
    %4710 = vadd.xlane.f32.xlu0 %v4709
    %v4711 = vpop.xlane.xlu0 %4710
    %v4712 = vsel %vm2136, %v4516, 0.0
    %4713 = vadd.xlane.f32.xlu0 %v4712
    %v4714 = vpop.xlane.xlu0 %4713
    %v4715 = vsel %vm2136, %v4518, 0.0
    %4716 = vadd.xlane.f32.xlu0 %v4715
    %v4717 = vpop.xlane.xlu0 %4716
    %v4718 = vsel %vm2136, %v4520, 0.0
    %4719 = vadd.xlane.f32.xlu0 %v4718
    %v4720 = vpop.xlane.xlu0 %4719
    %v4721 = vsel %vm2136, %v4522, 0.0
    %4722 = vadd.xlane.f32.xlu0 %v4721
    %v4723 = vpop.xlane.xlu0 %4722
    %v4724 = vsel %vm2136, %v4524, 0.0
    %4725 = vadd.xlane.f32.xlu0 %v4724
    %v4726 = vpop.xlane.xlu0 %4725
    %v4727 = vsel %vm2136, %v4526, 0.0
    %4728 = vadd.xlane.f32.xlu0 %v4727
    %v4729 = vpop.xlane.xlu0 %4728
    %v4730 = vsel %vm2136, %v4528, 0.0
    %4731 = vadd.xlane.f32.xlu0 %v4730
    %v4732 = vpop.xlane.xlu0 %4731
    %v4733 = vsel %vm2136, %v4530, 0.0
    %4734 = vadd.xlane.f32.xlu0 %v4733
    %v4735 = vpop.xlane.xlu0 %4734
    %v4736 = vsel %vm2136, %v4532, 0.0
    %4737 = vadd.xlane.f32.xlu0 %v4736
    %v4738 = vpop.xlane.xlu0 %4737
    %v4739 = vsel %vm2136, %v4534, 0.0
    %4740 = vadd.xlane.f32.xlu0 %v4739
    %v4741 = vpop.xlane.xlu0 %4740
    %v4742 = vsel %vm2136, %v4536, 0.0
    %4743 = vadd.xlane.f32.xlu0 %v4742
    %v4744 = vpop.xlane.xlu0 %4743
    %v4745 = vsel %vm2136, %v4538, 0.0
    %4746 = vadd.xlane.f32.xlu0 %v4745
    %v4747 = vpop.xlane.xlu0 %4746
    %v4748 = vsel %vm2136, %v4540, 0.0
    %4749 = vadd.xlane.f32.xlu0 %v4748
    %v4750 = vpop.xlane.xlu0 %4749
    %v4751 = vsel %vm2136, %v4542, 0.0
    %4752 = vadd.xlane.f32.xlu0 %v4751
    %v4753 = vpop.xlane.xlu0 %4752
    %v4754 = vsel %vm2136, %v4544, 0.0
    %4755 = vadd.xlane.f32.xlu0 %v4754
    %v4756 = vpop.xlane.xlu0 %4755
    %v4757 = vsel %vm2136, %v4546, 0.0
    %4758 = vadd.xlane.f32.xlu0 %v4757
    %v4759 = vpop.xlane.xlu0 %4758
    %v4760 = vsel %vm2136, %v4548, 0.0
    %4761 = vadd.xlane.f32.xlu0 %v4760
    %v4762 = vpop.xlane.xlu0 %4761
    %v4763 = vsel %vm2136, %v4550, 0.0
    %4764 = vadd.xlane.f32.xlu0 %v4763
    %v4765 = vpop.xlane.xlu0 %4764
    %v4766 = vsel %vm2136, %v4552, 0.0
    %4767 = vadd.xlane.f32.xlu0 %v4766
    %v4768 = vpop.xlane.xlu0 %4767
    %v4769 = vsel %vm2136, %v4554, 0.0
    %4770 = vadd.xlane.f32.xlu0 %v4769
    %v4771 = vpop.xlane.xlu0 %4770
    %v4772 = vsel %vm2136, %v4556, 0.0
    %4773 = vadd.xlane.f32.xlu0 %v4772
    %v4774 = vpop.xlane.xlu0 %4773
    %v4775 = vsel %vm2136, %v4558, 0.0
    %4776 = vadd.xlane.f32.xlu0 %v4775
    %v4777 = vpop.xlane.xlu0 %4776
    %v4778 = vsel %vm2136, %v4560, 0.0
    %4779 = vadd.xlane.f32.xlu0 %v4778
    %v4780 = vpop.xlane.xlu0 %4779
    %v4781 = vsel %vm2136, %v4562, 0.0
    %4782 = vadd.xlane.f32.xlu0 %v4781
    %v4783 = vpop.xlane.xlu0 %4782
    %v4784 = vsel %vm2136, %v4564, 0.0
    %4785 = vadd.xlane.f32.xlu0 %v4784
    %v4786 = vpop.xlane.xlu0 %4785
    %v4787 = vsel %vm2136, %v4566, 0.0
    %4788 = vadd.xlane.f32.xlu0 %v4787
    %v4789 = vpop.xlane.xlu0 %4788
    %v4790 = vsel %vm2136, %v4568, 0.0
    %4791 = vadd.xlane.f32.xlu0 %v4790
    %v4792 = vpop.xlane.xlu0 %4791
    %v4793 = vsel %vm2136, %v4570, 0.0
    %4794 = vadd.xlane.f32.xlu0 %v4793
    %v4795 = vpop.xlane.xlu0 %4794
    %v4796 = vsel %vm2136, %v4572, 0.0
    %4797 = vadd.xlane.f32.xlu0 %v4796
    %v4798 = vpop.xlane.xlu0 %4797
    %v4799 = vsel %vm2136, %v4574, 0.0
    %4800 = vadd.xlane.f32.xlu0 %v4799
    %v4801 = vpop.xlane.xlu0 %4800
    %v4802 = vsel %vm2136, %v4576, 0.0
    %4803 = vadd.xlane.f32.xlu0 %v4802
    %v4804 = vpop.xlane.xlu0 %4803
    %v4805 = vsel %vm2136, %v4578, 0.0
    %4806 = vadd.xlane.f32.xlu0 %v4805
    %v4807 = vpop.xlane.xlu0 %4806
    %v4808 = vsel %vm2136, %v4580, 0.0
    %4809 = vadd.xlane.f32.xlu0 %v4808
    %v4810 = vpop.xlane.xlu0 %4809
    %v4811 = vsel %vm2136, %v4582, 0.0
    %4812 = vadd.xlane.f32.xlu0 %v4811
    %v4813 = vpop.xlane.xlu0 %4812
    %v4814 = vsel %vm2136, %v4584, 0.0
    %4815 = vadd.xlane.f32.xlu0 %v4814
    %v4816 = vpop.xlane.xlu0 %4815
    %v4817 = vsel %vm2136, %v4586, 0.0
    %4818 = vadd.xlane.f32.xlu0 %v4817
    %v4819 = vpop.xlane.xlu0 %4818
    %v4820 = vsel %vm2136, %v4588, 0.0
    %4821 = vadd.xlane.f32.xlu0 %v4820
    %v4822 = vpop.xlane.xlu0 %4821
    %v4823 = vsel %vm2136, %v4590, 0.0
    %4824 = vadd.xlane.f32.xlu0 %v4823
    %v4825 = vpop.xlane.xlu0 %4824
    %v4826 = vsel %vm2136, %v4592, 0.0
    %4827 = vadd.xlane.f32.xlu0 %v4826
    %v4828 = vpop.xlane.xlu0 %4827
    %v4829 = vsel %vm2136, %v4594, 0.0
    %4830 = vadd.xlane.f32.xlu0 %v4829
    %v4831 = vpop.xlane.xlu0 %4830
    %v4832 = vsel %vm2136, %v4596, 0.0
    %4833 = vadd.xlane.f32.xlu0 %v4832
    %v4834 = vpop.xlane.xlu0 %4833
    %v4835 = vsel %vm2136, %v4598, 0.0
    %4836 = vadd.xlane.f32.xlu0 %v4835
    %v4837 = vpop.xlane.xlu0 %4836
    %v4838 = vsel %vm2136, %v4600, 0.0
    %4839 = vadd.xlane.f32.xlu0 %v4838
    %v4840 = vpop.xlane.xlu0 %4839
    %v4841 = vsel %vm2136, %v4602, 0.0
    %4842 = vadd.xlane.f32.xlu0 %v4841
    %v4843 = vpop.xlane.xlu0 %4842
    %v4844 = vsel %vm2136, %v4604, 0.0
    %4845 = vadd.xlane.f32.xlu0 %v4844
    %v4846 = vpop.xlane.xlu0 %4845
    %v4847 = vsel %vm2136, %v4606, 0.0
    %4848 = vadd.xlane.f32.xlu0 %v4847
    %v4849 = vpop.xlane.xlu0 %4848
    %v4850 = vsel %vm2136, %v4608, 0.0
    %4851 = vadd.xlane.f32.xlu0 %v4850
    %v4852 = vpop.xlane.xlu0 %4851
    %v4853 = vsel %vm2136, %v4610, 0.0
    %4854 = vadd.xlane.f32.xlu0 %v4853
    %v4855 = vpop.xlane.xlu0 %4854
    %v4856 = vsel %vm2136, %v4612, 0.0
    %4857 = vadd.xlane.f32.xlu0 %v4856
    %v4858 = vpop.xlane.xlu0 %4857
    %v4859 = vsel %vm2136, %v4614, 0.0
    %4860 = vadd.xlane.f32.xlu0 %v4859
    %v4861 = vpop.xlane.xlu0 %4860
    %v4862 = vsel %vm2136, %v4616, 0.0
    %4863 = vadd.xlane.f32.xlu0 %v4862
    %v4864 = vpop.xlane.xlu0 %4863
    %v4865 = vsel %vm2136, %v4618, 0.0
    %4866 = vadd.xlane.f32.xlu0 %v4865
    %v4867 = vpop.xlane.xlu0 %4866
    %v4868 = vsel %vm2136, %v4620, 0.0
    %4869 = vadd.xlane.f32.xlu0 %v4868
    %v4870 = vpop.xlane.xlu0 %4869
    %v4871 = vsel %vm2136, %v4622, 0.0
    %4872 = vadd.xlane.f32.xlu0 %v4871
    %v4873 = vpop.xlane.xlu0 %4872
    %v4874 = vsel %vm2136, %v4624, 0.0
    %4875 = vadd.xlane.f32.xlu0 %v4874
    %v4876 = vpop.xlane.xlu0 %4875
    %v4877 = vsel %vm2136, %v4626, 0.0
    %4878 = vadd.xlane.f32.xlu0 %v4877
    %v4879 = vpop.xlane.xlu0 %4878
    %v4880 = vsel %vm2136, %v4628, 0.0
    %4881 = vadd.xlane.f32.xlu0 %v4880
    %v4882 = vpop.xlane.xlu0 %4881
    %v4883 = vsel %vm2136, %v4630, 0.0
    %4884 = vadd.xlane.f32.xlu0 %v4883
    %v4885 = vpop.xlane.xlu0 %4884
    %v4886 = vsel %vm2136, %v4632, 0.0
    %4887 = vadd.xlane.f32.xlu0 %v4886
    %v4888 = vpop.xlane.xlu0 %4887
    %v4889 = vrcp.pop %v4699
    %v4890 = vrcp.pop %v4702
    %v4891 = vrcp.pop %v4705
    %v4892 = vrcp.pop %v4708
    %v4893 = vrcp.pop %v4711
    %v4894 = vrcp.pop %v4714
    %v4895 = vrcp.pop %v4717
    %v4896 = vrcp.pop %v4720
    %v4897 = vrcp.pop %v4723
    %v4898 = vrcp.pop %v4726
    %v4899 = vrcp.pop %v4729
    %v4900 = vrcp.pop %v4732
    %v4901 = vrcp.pop %v4735
    %v4902 = vrcp.pop %v4738
    %v4903 = vrcp.pop %v4741
    %v4904 = vrcp.pop %v4744
    %v4905 = vrcp.pop %v4747
    %v4906 = vrcp.pop %v4750
    %v4907 = vrcp.pop %v4753
    %v4908 = vrcp.pop %v4756
    %v4909 = vrcp.pop %v4759
    %v4910 = vrcp.pop %v4762
    %v4911 = vrcp.pop %v4765
    %v4912 = vrcp.pop %v4768
    %v4913 = vrcp.pop %v4771
    %v4914 = vrcp.pop %v4774
    %v4915 = vrcp.pop %v4777
    %v4916 = vrcp.pop %v4780
    %v4917 = vrcp.pop %v4783
    %v4918 = vrcp.pop %v4786
    %v4919 = vrcp.pop %v4789
    %v4920 = vrcp.pop %v4792
    %v4921 = vrcp.pop %v4795
    %v4922 = vrcp.pop %v4798
    %v4923 = vrcp.pop %v4801
    %v4924 = vrcp.pop %v4804
    %v4925 = vrcp.pop %v4807
    %v4926 = vrcp.pop %v4810
    %v4927 = vrcp.pop %v4813
    %v4928 = vrcp.pop %v4816
    %v4929 = vrcp.pop %v4819
    %v4930 = vrcp.pop %v4822
    %v4931 = vrcp.pop %v4825
    %v4932 = vrcp.pop %v4828
    %v4933 = vrcp.pop %v4831
    %v4934 = vrcp.pop %v4834
    %v4935 = vrcp.pop %v4837
    %v4936 = vrcp.pop %v4840
    %v4937 = vrcp.pop %v4843
    %v4938 = vrcp.pop %v4846
    %v4939 = vrcp.pop %v4849
    %v4940 = vrcp.pop %v4852
    %v4941 = vrcp.pop %v4855
    %v4942 = vrcp.pop %v4858
    %v4943 = vrcp.pop %v4861
    %v4944 = vrcp.pop %v4864
    %v4945 = vrcp.pop %v4867
    %v4946 = vrcp.pop %v4870
    %v4947 = vrcp.pop %v4873
    %v4948 = vrcp.pop %v4876
    %v4949 = vrcp.pop %v4879
    %v4950 = vrcp.pop %v4882
    %v4951 = vrcp.pop %v4885
    %v4952 = vrcp.pop %v4888
    %v4953 = vmul.f32 %v1753, %v4889
    %v4954 = vmul.f32 %v1755, %v4890
    %v4955 = vmul.f32 %v1757, %v4891
    %v4956 = vmul.f32 %v1759, %v4892
    %v4957 = vmul.f32 %v1761, %v4893
    %v4958 = vmul.f32 %v1763, %v4894
    %v4959 = vmul.f32 %v1765, %v4895
    %v4960 = vmul.f32 %v1767, %v4896
    %v4961 = vmul.f32 %v1769, %v4897
    %v4962 = vmul.f32 %v1771, %v4898
    %v4963 = vmul.f32 %v1773, %v4899
    %v4964 = vmul.f32 %v1775, %v4900
    %v4965 = vmul.f32 %v1777, %v4901
    %v4966 = vmul.f32 %v1779, %v4902
    %v4967 = vmul.f32 %v1781, %v4903
    %v4968 = vmul.f32 %v1783, %v4904
    %v4969 = vmul.f32 %v1785, %v4905
    %v4970 = vmul.f32 %v1787, %v4906
    %v4971 = vmul.f32 %v1789, %v4907
    %v4972 = vmul.f32 %v1791, %v4908
    %v4973 = vmul.f32 %v1793, %v4909
    %v4974 = vmul.f32 %v1795, %v4910
    %v4975 = vmul.f32 %v1797, %v4911
    %v4976 = vmul.f32 %v1799, %v4912
    %v4977 = vmul.f32 %v1801, %v4913
    %v4978 = vmul.f32 %v1803, %v4914
    %v4979 = vmul.f32 %v1805, %v4915
    %v4980 = vmul.f32 %v1807, %v4916
    %v4981 = vmul.f32 %v1809, %v4917
    %v4982 = vmul.f32 %v1811, %v4918
    %v4983 = vmul.f32 %v1813, %v4919
    %v4984 = vmul.f32 %v1815, %v4920
    %v4985 = vmul.f32 %v1817, %v4921
    %v4986 = vmul.f32 %v1819, %v4922
    %v4987 = vmul.f32 %v1821, %v4923
    %v4988 = vmul.f32 %v1823, %v4924
    %v4989 = vmul.f32 %v1825, %v4925
    %v4990 = vmul.f32 %v1827, %v4926
    %v4991 = vmul.f32 %v1829, %v4927
    %v4992 = vmul.f32 %v1831, %v4928
    %v4993 = vmul.f32 %v1833, %v4929
    %v4994 = vmul.f32 %v1835, %v4930
    %v4995 = vmul.f32 %v1837, %v4931
    %v4996 = vmul.f32 %v1839, %v4932
    %v4997 = vmul.f32 %v1841, %v4933
    %v4998 = vmul.f32 %v1843, %v4934
    %v4999 = vmul.f32 %v1845, %v4935
    %v5000 = vmul.f32 %v1847, %v4936
    %v5001 = vmul.f32 %v1849, %v4937
    %v5002 = vmul.f32 %v1851, %v4938
    %v5003 = vmul.f32 %v1853, %v4939
    %v5004 = vmul.f32 %v1855, %v4940
    %v5005 = vmul.f32 %v1857, %v4941
    %v5006 = vmul.f32 %v1859, %v4942
    %v5007 = vmul.f32 %v1861, %v4943
    %v5008 = vmul.f32 %v1863, %v4944
    %v5009 = vmul.f32 %v1865, %v4945
    %v5010 = vmul.f32 %v1867, %v4946
    %v5011 = vmul.f32 %v1869, %v4947
    %v5012 = vmul.f32 %v1871, %v4948
    %v5013 = vmul.f32 %v1873, %v4949
    %v5014 = vmul.f32 %v1875, %v4950
    %v5015 = vmul.f32 %v1877, %v4951
    %v5016 = vmul.f32 %v1879, %v4952
    %5017 = vset.pattern.permute.xlu0 99
    %5018 = vperm.xlu0 %5017, %v1431
    %v5019 = vpop.permute.xlu0 %5018
    %5021 = vset.pattern.permute.xlu0 99
    %5022 = vperm.xlu0 %5021, %v1432
    %v5023 = vpop.permute.xlu0 %5022
    %5025 = vset.pattern.permute.xlu0 99
    %5026 = vperm.xlu0 %5025, %v1433
    %v5027 = vpop.permute.xlu0 %5026
    %5029 = vset.pattern.permute.xlu0 99
    %5030 = vperm.xlu0 %5029, %v1434
    %v5031 = vpop.permute.xlu0 %5030
    %5033 = vset.pattern.permute.xlu0 99
    %5034 = vperm.xlu0 %5033, %v1435
    %v5035 = vpop.permute.xlu0 %5034
    %5037 = vset.pattern.permute.xlu0 99
    %5038 = vperm.xlu0 %5037, %v1436
    %v5039 = vpop.permute.xlu0 %5038
    %5041 = vset.pattern.permute.xlu0 99
    %5042 = vperm.xlu0 %5041, %v1437
    %v5043 = vpop.permute.xlu0 %5042
    %5045 = vset.pattern.permute.xlu0 99
    %5046 = vperm.xlu0 %5045, %v1438
    %v5047 = vpop.permute.xlu0 %5046
    %5049 = vset.pattern.permute.xlu0 99
    %5050 = vperm.xlu0 %5049, %v1439
    %v5051 = vpop.permute.xlu0 %5050
    %5053 = vset.pattern.permute.xlu0 99
    %5054 = vperm.xlu0 %5053, %v1440
    %v5055 = vpop.permute.xlu0 %5054
    %5057 = vset.pattern.permute.xlu0 99
    %5058 = vperm.xlu0 %5057, %v1441
    %v5059 = vpop.permute.xlu0 %5058
    %5061 = vset.pattern.permute.xlu0 99
    %5062 = vperm.xlu0 %5061, %v1442
    %v5063 = vpop.permute.xlu0 %5062
    %5065 = vset.pattern.permute.xlu0 99
    %5066 = vperm.xlu0 %5065, %v1443
    %v5067 = vpop.permute.xlu0 %5066
    %5069 = vset.pattern.permute.xlu0 99
    %5070 = vperm.xlu0 %5069, %v1444
    %v5071 = vpop.permute.xlu0 %5070
    %5073 = vset.pattern.permute.xlu0 99
    %5074 = vperm.xlu0 %5073, %v1445
    %v5075 = vpop.permute.xlu0 %5074
    %5077 = vset.pattern.permute.xlu0 99
    %5078 = vperm.xlu0 %5077, %v1446
    %v5079 = vpop.permute.xlu0 %5078
    %5081 = vset.pattern.permute.xlu0 99
    %5082 = vperm.xlu0 %5081, %v1447
    %v5083 = vpop.permute.xlu0 %5082
    %5085 = vset.pattern.permute.xlu0 99
    %5086 = vperm.xlu0 %5085, %v1448
    %v5087 = vpop.permute.xlu0 %5086
    %5089 = vset.pattern.permute.xlu0 99
    %5090 = vperm.xlu0 %5089, %v1449
    %v5091 = vpop.permute.xlu0 %5090
    %5093 = vset.pattern.permute.xlu0 99
    %5094 = vperm.xlu0 %5093, %v1450
    %v5095 = vpop.permute.xlu0 %5094
    %5097 = vset.pattern.permute.xlu0 99
    %5098 = vperm.xlu0 %5097, %v1451
    %v5099 = vpop.permute.xlu0 %5098
    %5101 = vset.pattern.permute.xlu0 99
    %5102 = vperm.xlu0 %5101, %v1452
    %v5103 = vpop.permute.xlu0 %5102
    %5105 = vset.pattern.permute.xlu0 99
    %5106 = vperm.xlu0 %5105, %v1453
    %v5107 = vpop.permute.xlu0 %5106
    %5109 = vset.pattern.permute.xlu0 99
    %5110 = vperm.xlu0 %5109, %v1454
    %v5111 = vpop.permute.xlu0 %5110
    %5113 = vset.pattern.permute.xlu0 99
    %5114 = vperm.xlu0 %5113, %v1455
    %v5115 = vpop.permute.xlu0 %5114
    %5117 = vset.pattern.permute.xlu0 99
    %5118 = vperm.xlu0 %5117, %v1456
    %v5119 = vpop.permute.xlu0 %5118
    %5121 = vset.pattern.permute.xlu0 99
    %5122 = vperm.xlu0 %5121, %v1457
    %v5123 = vpop.permute.xlu0 %5122
    %5125 = vset.pattern.permute.xlu0 99
    %5126 = vperm.xlu0 %5125, %v1458
    %v5127 = vpop.permute.xlu0 %5126
    %5129 = vset.pattern.permute.xlu0 99
    %5130 = vperm.xlu0 %5129, %v1459
    %v5131 = vpop.permute.xlu0 %5130
    %5133 = vset.pattern.permute.xlu0 99
    %5134 = vperm.xlu0 %5133, %v1460
    %v5135 = vpop.permute.xlu0 %5134
    %5137 = vset.pattern.permute.xlu0 99
    %5138 = vperm.xlu0 %5137, %v1461
    %v5139 = vpop.permute.xlu0 %5138
    %5141 = vset.pattern.permute.xlu0 99
    %5142 = vperm.xlu0 %5141, %v1462
    %v5143 = vpop.permute.xlu0 %5142
    %5145 = vset.pattern.permute.xlu0 99
    %5146 = vperm.xlu0 %5145, %v1463
    %v5147 = vpop.permute.xlu0 %5146
    %5149 = vset.pattern.permute.xlu0 99
    %5150 = vperm.xlu0 %5149, %v1464
    %v5151 = vpop.permute.xlu0 %5150
    %5153 = vset.pattern.permute.xlu0 99
    %5154 = vperm.xlu0 %5153, %v1465
    %v5155 = vpop.permute.xlu0 %5154
    %5157 = vset.pattern.permute.xlu0 99
    %5158 = vperm.xlu0 %5157, %v1466
    %v5159 = vpop.permute.xlu0 %5158
    %5161 = vset.pattern.permute.xlu0 99
    %5162 = vperm.xlu0 %5161, %v1467
    %v5163 = vpop.permute.xlu0 %5162
    %5165 = vset.pattern.permute.xlu0 99
    %5166 = vperm.xlu0 %5165, %v1468
    %v5167 = vpop.permute.xlu0 %5166
    %5169 = vset.pattern.permute.xlu0 99
    %5170 = vperm.xlu0 %5169, %v1469
    %v5171 = vpop.permute.xlu0 %5170
    %5173 = vset.pattern.permute.xlu0 99
    %5174 = vperm.xlu0 %5173, %v1470
    %v5175 = vpop.permute.xlu0 %5174
    %5177 = vset.pattern.permute.xlu0 99
    %5178 = vperm.xlu0 %5177, %v1471
    %v5179 = vpop.permute.xlu0 %5178
    %5181 = vset.pattern.permute.xlu0 99
    %5182 = vperm.xlu0 %5181, %v1472
    %v5183 = vpop.permute.xlu0 %5182
    %5185 = vset.pattern.permute.xlu0 99
    %5186 = vperm.xlu0 %5185, %v1473
    %v5187 = vpop.permute.xlu0 %5186
    %5189 = vset.pattern.permute.xlu0 99
    %5190 = vperm.xlu0 %5189, %v1474
    %v5191 = vpop.permute.xlu0 %5190
    %5193 = vset.pattern.permute.xlu0 99
    %5194 = vperm.xlu0 %5193, %v1475
    %v5195 = vpop.permute.xlu0 %5194
    %5197 = vset.pattern.permute.xlu0 99
    %5198 = vperm.xlu0 %5197, %v1476
    %v5199 = vpop.permute.xlu0 %5198
    %5201 = vset.pattern.permute.xlu0 99
    %5202 = vperm.xlu0 %5201, %v1477
    %v5203 = vpop.permute.xlu0 %5202
    %5205 = vset.pattern.permute.xlu0 99
    %5206 = vperm.xlu0 %5205, %v1478
    %v5207 = vpop.permute.xlu0 %5206
    %5209 = vset.pattern.permute.xlu0 99
    %5210 = vperm.xlu0 %5209, %v1479
    %v5211 = vpop.permute.xlu0 %5210
    %5213 = vset.pattern.permute.xlu0 99
    %5214 = vperm.xlu0 %5213, %v1480
    %v5215 = vpop.permute.xlu0 %5214
    %5217 = vset.pattern.permute.xlu0 99
    %5218 = vperm.xlu0 %5217, %v1481
    %v5219 = vpop.permute.xlu0 %5218
    %5221 = vset.pattern.permute.xlu0 99
    %5222 = vperm.xlu0 %5221, %v1482
    %v5223 = vpop.permute.xlu0 %5222
    %5225 = vset.pattern.permute.xlu0 99
    %5226 = vperm.xlu0 %5225, %v1483
    %v5227 = vpop.permute.xlu0 %5226
    %5229 = vset.pattern.permute.xlu0 99
    %5230 = vperm.xlu0 %5229, %v1484
    %v5231 = vpop.permute.xlu0 %5230
    %5233 = vset.pattern.permute.xlu0 99
    %5234 = vperm.xlu0 %5233, %v1485
    %v5235 = vpop.permute.xlu0 %5234
    %5237 = vset.pattern.permute.xlu0 99
    %5238 = vperm.xlu0 %5237, %v1486
    %v5239 = vpop.permute.xlu0 %5238
    %5241 = vset.pattern.permute.xlu0 99
    %5242 = vperm.xlu0 %5241, %v1487
    %v5243 = vpop.permute.xlu0 %5242
    %5245 = vset.pattern.permute.xlu0 99
    %5246 = vperm.xlu0 %5245, %v1488
    %v5247 = vpop.permute.xlu0 %5246
    %5249 = vset.pattern.permute.xlu0 99
    %5250 = vperm.xlu0 %5249, %v1489
    %v5251 = vpop.permute.xlu0 %5250
    %5253 = vset.pattern.permute.xlu0 99
    %5254 = vperm.xlu0 %5253, %v1490
    %v5255 = vpop.permute.xlu0 %5254
    %5257 = vset.pattern.permute.xlu0 99
    %5258 = vperm.xlu0 %5257, %v1491
    %v5259 = vpop.permute.xlu0 %5258
    %5261 = vset.pattern.permute.xlu0 99
    %5262 = vperm.xlu0 %5261, %v1492
    %v5263 = vpop.permute.xlu0 %5262
    %5265 = vset.pattern.permute.xlu0 99
    %5266 = vperm.xlu0 %5265, %v1493
    %v5267 = vpop.permute.xlu0 %5266
    %5269 = vset.pattern.permute.xlu0 99
    %5270 = vperm.xlu0 %5269, %v1494
    %v5271 = vpop.permute.xlu0 %5270
    %v5273 = vmul.f32 %v4953, %v5019
    %v5274 = vmul.f32 %v4954, %v5023
    %v5275 = vmul.f32 %v4955, %v5027
    %v5276 = vmul.f32 %v4956, %v5031
    %v5277 = vmul.f32 %v4957, %v5035
    %v5278 = vmul.f32 %v4958, %v5039
    %v5279 = vmul.f32 %v4959, %v5043
    %v5280 = vmul.f32 %v4960, %v5047
    %v5281 = vmul.f32 %v4961, %v5051
    %v5282 = vmul.f32 %v4962, %v5055
    %v5283 = vmul.f32 %v4963, %v5059
    %v5284 = vmul.f32 %v4964, %v5063
    %v5285 = vmul.f32 %v4965, %v5067
    %v5286 = vmul.f32 %v4966, %v5071
    %v5287 = vmul.f32 %v4967, %v5075
    %v5288 = vmul.f32 %v4968, %v5079
    %v5289 = vmul.f32 %v4969, %v5083
    %v5290 = vmul.f32 %v4970, %v5087
    %v5291 = vmul.f32 %v4971, %v5091
    %v5292 = vmul.f32 %v4972, %v5095
    %v5293 = vmul.f32 %v4973, %v5099
    %v5294 = vmul.f32 %v4974, %v5103
    %v5295 = vmul.f32 %v4975, %v5107
    %v5296 = vmul.f32 %v4976, %v5111
    %v5297 = vmul.f32 %v4977, %v5115
    %v5298 = vmul.f32 %v4978, %v5119
    %v5299 = vmul.f32 %v4979, %v5123
    %v5300 = vmul.f32 %v4980, %v5127
    %v5301 = vmul.f32 %v4981, %v5131
    %v5302 = vmul.f32 %v4982, %v5135
    %v5303 = vmul.f32 %v4983, %v5139
    %v5304 = vmul.f32 %v4984, %v5143
    %v5305 = vmul.f32 %v4985, %v5147
    %v5306 = vmul.f32 %v4986, %v5151
    %v5307 = vmul.f32 %v4987, %v5155
    %v5308 = vmul.f32 %v4988, %v5159
    %v5309 = vmul.f32 %v4989, %v5163
    %v5310 = vmul.f32 %v4990, %v5167
    %v5311 = vmul.f32 %v4991, %v5171
    %v5312 = vmul.f32 %v4992, %v5175
    %v5313 = vmul.f32 %v4993, %v5179
    %v5314 = vmul.f32 %v4994, %v5183
    %v5315 = vmul.f32 %v4995, %v5187
    %v5316 = vmul.f32 %v4996, %v5191
    %v5317 = vmul.f32 %v4997, %v5195
    %v5318 = vmul.f32 %v4998, %v5199
    %v5319 = vmul.f32 %v4999, %v5203
    %v5320 = vmul.f32 %v5000, %v5207
    %v5321 = vmul.f32 %v5001, %v5211
    %v5322 = vmul.f32 %v5002, %v5215
    %v5323 = vmul.f32 %v5003, %v5219
    %v5324 = vmul.f32 %v5004, %v5223
    %v5325 = vmul.f32 %v5005, %v5227
    %v5326 = vmul.f32 %v5006, %v5231
    %v5327 = vmul.f32 %v5007, %v5235
    %v5328 = vmul.f32 %v5008, %v5239
    %v5329 = vmul.f32 %v5009, %v5243
    %v5330 = vmul.f32 %v5010, %v5247
    %v5331 = vmul.f32 %v5011, %v5251
    %v5332 = vmul.f32 %v5012, %v5255
    %v5333 = vmul.f32 %v5013, %v5259
    %v5334 = vmul.f32 %v5014, %v5263
    %v5335 = vmul.f32 %v5015, %v5267
    %v5336 = vmul.f32 %v5016, %v5271
    %5401 = vrot.lane.b32.xlu0 %v2777, 64
    %v5402 = vpop.permute.xlu0 %5401
    %5403 = vrot.lane.b32.xlu0 %v2778, 64
    %v5404 = vpop.permute.xlu0 %5403
    %5405 = vrot.lane.b32.xlu0 %v2779, 64
    %v5406 = vpop.permute.xlu0 %5405
    %5407 = vrot.lane.b32.xlu0 %v2780, 64
    %v5408 = vpop.permute.xlu0 %5407
    %5409 = vrot.lane.b32.xlu0 %v2781, 64
    %v5410 = vpop.permute.xlu0 %5409
    %5411 = vrot.lane.b32.xlu0 %v2782, 64
    %v5412 = vpop.permute.xlu0 %5411
    %5413 = vrot.lane.b32.xlu0 %v2783, 64
    %v5414 = vpop.permute.xlu0 %5413
    %5415 = vrot.lane.b32.xlu0 %v2784, 64
    %v5416 = vpop.permute.xlu0 %5415
    %5417 = vrot.lane.b32.xlu0 %v2785, 64
    %v5418 = vpop.permute.xlu0 %5417
    %5419 = vrot.lane.b32.xlu0 %v2786, 64
    %v5420 = vpop.permute.xlu0 %5419
    %5421 = vrot.lane.b32.xlu0 %v2787, 64
    %v5422 = vpop.permute.xlu0 %5421
    %5423 = vrot.lane.b32.xlu0 %v2788, 64
    %v5424 = vpop.permute.xlu0 %5423
    %5425 = vrot.lane.b32.xlu0 %v2789, 64
    %v5426 = vpop.permute.xlu0 %5425
    %5427 = vrot.lane.b32.xlu0 %v2790, 64
    %v5428 = vpop.permute.xlu0 %5427
    %5429 = vrot.lane.b32.xlu0 %v2791, 64
    %v5430 = vpop.permute.xlu0 %5429
    %5431 = vrot.lane.b32.xlu0 %v2792, 64
    %v5432 = vpop.permute.xlu0 %5431
    %5433 = vrot.lane.b32.xlu0 %v2793, 64
    %v5434 = vpop.permute.xlu0 %5433
    %5435 = vrot.lane.b32.xlu0 %v2794, 64
    %v5436 = vpop.permute.xlu0 %5435
    %5437 = vrot.lane.b32.xlu0 %v2795, 64
    %v5438 = vpop.permute.xlu0 %5437
    %5439 = vrot.lane.b32.xlu0 %v2796, 64
    %v5440 = vpop.permute.xlu0 %5439
    %5441 = vrot.lane.b32.xlu0 %v2797, 64
    %v5442 = vpop.permute.xlu0 %5441
    %5443 = vrot.lane.b32.xlu0 %v2798, 64
    %v5444 = vpop.permute.xlu0 %5443
    %5445 = vrot.lane.b32.xlu0 %v2799, 64
    %v5446 = vpop.permute.xlu0 %5445
    %5447 = vrot.lane.b32.xlu0 %v2800, 64
    %v5448 = vpop.permute.xlu0 %5447
    %5449 = vrot.lane.b32.xlu0 %v2801, 64
    %v5450 = vpop.permute.xlu0 %5449
    %5451 = vrot.lane.b32.xlu0 %v2802, 64
    %v5452 = vpop.permute.xlu0 %5451
    %5453 = vrot.lane.b32.xlu0 %v2803, 64
    %v5454 = vpop.permute.xlu0 %5453
    %5455 = vrot.lane.b32.xlu0 %v2804, 64
    %v5456 = vpop.permute.xlu0 %5455
    %5457 = vrot.lane.b32.xlu0 %v2805, 64
    %v5458 = vpop.permute.xlu0 %5457
    %5459 = vrot.lane.b32.xlu0 %v2806, 64
    %v5460 = vpop.permute.xlu0 %5459
    %5461 = vrot.lane.b32.xlu0 %v2807, 64
    %v5462 = vpop.permute.xlu0 %5461
    %5463 = vrot.lane.b32.xlu0 %v2808, 64
    %v5464 = vpop.permute.xlu0 %5463
    %5465 = vrot.lane.b32.xlu0 %v2809, 64
    %v5466 = vpop.permute.xlu0 %5465
    %5467 = vrot.lane.b32.xlu0 %v2810, 64
    %v5468 = vpop.permute.xlu0 %5467
    %5469 = vrot.lane.b32.xlu0 %v2811, 64
    %v5470 = vpop.permute.xlu0 %5469
    %5471 = vrot.lane.b32.xlu0 %v2812, 64
    %v5472 = vpop.permute.xlu0 %5471
    %5473 = vrot.lane.b32.xlu0 %v2813, 64
    %v5474 = vpop.permute.xlu0 %5473
    %5475 = vrot.lane.b32.xlu0 %v2814, 64
    %v5476 = vpop.permute.xlu0 %5475
    %5477 = vrot.lane.b32.xlu0 %v2815, 64
    %v5478 = vpop.permute.xlu0 %5477
    %5479 = vrot.lane.b32.xlu0 %v2816, 64
    %v5480 = vpop.permute.xlu0 %5479
    %5481 = vrot.lane.b32.xlu0 %v2817, 64
    %v5482 = vpop.permute.xlu0 %5481
    %5483 = vrot.lane.b32.xlu0 %v2818, 64
    %v5484 = vpop.permute.xlu0 %5483
    %5485 = vrot.lane.b32.xlu0 %v2819, 64
    %v5486 = vpop.permute.xlu0 %5485
    %5487 = vrot.lane.b32.xlu0 %v2820, 64
    %v5488 = vpop.permute.xlu0 %5487
    %5489 = vrot.lane.b32.xlu0 %v2821, 64
    %v5490 = vpop.permute.xlu0 %5489
    %5491 = vrot.lane.b32.xlu0 %v2822, 64
    %v5492 = vpop.permute.xlu0 %5491
    %5493 = vrot.lane.b32.xlu0 %v2823, 64
    %v5494 = vpop.permute.xlu0 %5493
    %5495 = vrot.lane.b32.xlu0 %v2824, 64
    %v5496 = vpop.permute.xlu0 %5495
    %5497 = vrot.lane.b32.xlu0 %v2825, 64
    %v5498 = vpop.permute.xlu0 %5497
    %5499 = vrot.lane.b32.xlu0 %v2826, 64
    %v5500 = vpop.permute.xlu0 %5499
    %5501 = vrot.lane.b32.xlu0 %v2827, 64
    %v5502 = vpop.permute.xlu0 %5501
    %5503 = vrot.lane.b32.xlu0 %v2828, 64
    %v5504 = vpop.permute.xlu0 %5503
    %5505 = vrot.lane.b32.xlu0 %v2829, 64
    %v5506 = vpop.permute.xlu0 %5505
    %5507 = vrot.lane.b32.xlu0 %v2830, 64
    %v5508 = vpop.permute.xlu0 %5507
    %5509 = vrot.lane.b32.xlu0 %v2831, 64
    %v5510 = vpop.permute.xlu0 %5509
    %5511 = vrot.lane.b32.xlu0 %v2832, 64
    %v5512 = vpop.permute.xlu0 %5511
    %5513 = vrot.lane.b32.xlu0 %v2833, 64
    %v5514 = vpop.permute.xlu0 %5513
    %5515 = vrot.lane.b32.xlu0 %v2834, 64
    %v5516 = vpop.permute.xlu0 %5515
    %5517 = vrot.lane.b32.xlu0 %v2835, 64
    %v5518 = vpop.permute.xlu0 %5517
    %5519 = vrot.lane.b32.xlu0 %v2836, 64
    %v5520 = vpop.permute.xlu0 %5519
    %5521 = vrot.lane.b32.xlu0 %v2837, 64
    %v5522 = vpop.permute.xlu0 %5521
    %5523 = vrot.lane.b32.xlu0 %v2838, 64
    %v5524 = vpop.permute.xlu0 %5523
    %5525 = vrot.lane.b32.xlu0 %v2839, 64
    %v5526 = vpop.permute.xlu0 %5525
    %5527 = vrot.lane.b32.xlu0 %v2840, 64
    %v5528 = vpop.permute.xlu0 %5527
    %5657 = vrot.lane.b32.xlu0 %v3609, 64
    %v5658 = vpop.permute.xlu0 %5657
    %5659 = vrot.lane.b32.xlu0 %v3610, 64
    %v5660 = vpop.permute.xlu0 %5659
    %5661 = vrot.lane.b32.xlu0 %v3611, 64
    %v5662 = vpop.permute.xlu0 %5661
    %5663 = vrot.lane.b32.xlu0 %v3612, 64
    %v5664 = vpop.permute.xlu0 %5663
    %5665 = vrot.lane.b32.xlu0 %v3613, 64
    %v5666 = vpop.permute.xlu0 %5665
    %5667 = vrot.lane.b32.xlu0 %v3614, 64
    %v5668 = vpop.permute.xlu0 %5667
    %5669 = vrot.lane.b32.xlu0 %v3615, 64
    %v5670 = vpop.permute.xlu0 %5669
    %5671 = vrot.lane.b32.xlu0 %v3616, 64
    %v5672 = vpop.permute.xlu0 %5671
    %5673 = vrot.lane.b32.xlu0 %v3617, 64
    %v5674 = vpop.permute.xlu0 %5673
    %5675 = vrot.lane.b32.xlu0 %v3618, 64
    %v5676 = vpop.permute.xlu0 %5675
    %5677 = vrot.lane.b32.xlu0 %v3619, 64
    %v5678 = vpop.permute.xlu0 %5677
    %5679 = vrot.lane.b32.xlu0 %v3620, 64
    %v5680 = vpop.permute.xlu0 %5679
    %5681 = vrot.lane.b32.xlu0 %v3621, 64
    %v5682 = vpop.permute.xlu0 %5681
    %5683 = vrot.lane.b32.xlu0 %v3622, 64
    %v5684 = vpop.permute.xlu0 %5683
    %5685 = vrot.lane.b32.xlu0 %v3623, 64
    %v5686 = vpop.permute.xlu0 %5685
    %5687 = vrot.lane.b32.xlu0 %v3624, 64
    %v5688 = vpop.permute.xlu0 %5687
    %5689 = vrot.lane.b32.xlu0 %v3625, 64
    %v5690 = vpop.permute.xlu0 %5689
    %5691 = vrot.lane.b32.xlu0 %v3626, 64
    %v5692 = vpop.permute.xlu0 %5691
    %5693 = vrot.lane.b32.xlu0 %v3627, 64
    %v5694 = vpop.permute.xlu0 %5693
    %5695 = vrot.lane.b32.xlu0 %v3628, 64
    %v5696 = vpop.permute.xlu0 %5695
    %5697 = vrot.lane.b32.xlu0 %v3629, 64
    %v5698 = vpop.permute.xlu0 %5697
    %5699 = vrot.lane.b32.xlu0 %v3630, 64
    %v5700 = vpop.permute.xlu0 %5699
    %5701 = vrot.lane.b32.xlu0 %v3631, 64
    %v5702 = vpop.permute.xlu0 %5701
    %5703 = vrot.lane.b32.xlu0 %v3632, 64
    %v5704 = vpop.permute.xlu0 %5703
    %5705 = vrot.lane.b32.xlu0 %v3633, 64
    %v5706 = vpop.permute.xlu0 %5705
    %5707 = vrot.lane.b32.xlu0 %v3634, 64
    %v5708 = vpop.permute.xlu0 %5707
    %5709 = vrot.lane.b32.xlu0 %v3635, 64
    %v5710 = vpop.permute.xlu0 %5709
    %5711 = vrot.lane.b32.xlu0 %v3636, 64
    %v5712 = vpop.permute.xlu0 %5711
    %5713 = vrot.lane.b32.xlu0 %v3637, 64
    %v5714 = vpop.permute.xlu0 %5713
    %5715 = vrot.lane.b32.xlu0 %v3638, 64
    %v5716 = vpop.permute.xlu0 %5715
    %5717 = vrot.lane.b32.xlu0 %v3639, 64
    %v5718 = vpop.permute.xlu0 %5717
    %5719 = vrot.lane.b32.xlu0 %v3640, 64
    %v5720 = vpop.permute.xlu0 %5719
    %5721 = vrot.lane.b32.xlu0 %v3641, 64
    %v5722 = vpop.permute.xlu0 %5721
    %5723 = vrot.lane.b32.xlu0 %v3642, 64
    %v5724 = vpop.permute.xlu0 %5723
    %5725 = vrot.lane.b32.xlu0 %v3643, 64
    %v5726 = vpop.permute.xlu0 %5725
    %5727 = vrot.lane.b32.xlu0 %v3644, 64
    %v5728 = vpop.permute.xlu0 %5727
    %5729 = vrot.lane.b32.xlu0 %v3645, 64
    %v5730 = vpop.permute.xlu0 %5729
    %5731 = vrot.lane.b32.xlu0 %v3646, 64
    %v5732 = vpop.permute.xlu0 %5731
    %5733 = vrot.lane.b32.xlu0 %v3647, 64
    %v5734 = vpop.permute.xlu0 %5733
    %5735 = vrot.lane.b32.xlu0 %v3648, 64
    %v5736 = vpop.permute.xlu0 %5735
    %5737 = vrot.lane.b32.xlu0 %v3649, 64
    %v5738 = vpop.permute.xlu0 %5737
    %5739 = vrot.lane.b32.xlu0 %v3650, 64
    %v5740 = vpop.permute.xlu0 %5739
    %5741 = vrot.lane.b32.xlu0 %v3651, 64
    %v5742 = vpop.permute.xlu0 %5741
    %5743 = vrot.lane.b32.xlu0 %v3652, 64
    %v5744 = vpop.permute.xlu0 %5743
    %5745 = vrot.lane.b32.xlu0 %v3653, 64
    %v5746 = vpop.permute.xlu0 %5745
    %5747 = vrot.lane.b32.xlu0 %v3654, 64
    %v5748 = vpop.permute.xlu0 %5747
    %5749 = vrot.lane.b32.xlu0 %v3655, 64
    %v5750 = vpop.permute.xlu0 %5749
    %5751 = vrot.lane.b32.xlu0 %v3656, 64
    %v5752 = vpop.permute.xlu0 %5751
    %5753 = vrot.lane.b32.xlu0 %v3657, 64
    %v5754 = vpop.permute.xlu0 %5753
    %5755 = vrot.lane.b32.xlu0 %v3658, 64
    %v5756 = vpop.permute.xlu0 %5755
    %5757 = vrot.lane.b32.xlu0 %v3659, 64
    %v5758 = vpop.permute.xlu0 %5757
    %5759 = vrot.lane.b32.xlu0 %v3660, 64
    %v5760 = vpop.permute.xlu0 %5759
    %5761 = vrot.lane.b32.xlu0 %v3661, 64
    %v5762 = vpop.permute.xlu0 %5761
    %5763 = vrot.lane.b32.xlu0 %v3662, 64
    %v5764 = vpop.permute.xlu0 %5763
    %5765 = vrot.lane.b32.xlu0 %v3663, 64
    %v5766 = vpop.permute.xlu0 %5765
    %5767 = vrot.lane.b32.xlu0 %v3664, 64
    %v5768 = vpop.permute.xlu0 %5767
    %5769 = vrot.lane.b32.xlu0 %v3665, 64
    %v5770 = vpop.permute.xlu0 %5769
    %5771 = vrot.lane.b32.xlu0 %v3666, 64
    %v5772 = vpop.permute.xlu0 %5771
    %5773 = vrot.lane.b32.xlu0 %v3667, 64
    %v5774 = vpop.permute.xlu0 %5773
    %5775 = vrot.lane.b32.xlu0 %v3668, 64
    %v5776 = vpop.permute.xlu0 %5775
    %5777 = vrot.lane.b32.xlu0 %v3669, 64
    %v5778 = vpop.permute.xlu0 %5777
    %5779 = vrot.lane.b32.xlu0 %v3670, 64
    %v5780 = vpop.permute.xlu0 %5779
    %5781 = vrot.lane.b32.xlu0 %v3671, 64
    %v5782 = vpop.permute.xlu0 %5781
    %5783 = vrot.lane.b32.xlu0 %v3672, 64
    %v5784 = vpop.permute.xlu0 %5783
    %5913 = vrot.lane.b32.xlu0 %v4441, 64
    %v5914 = vpop.permute.xlu0 %5913
    %5915 = vrot.lane.b32.xlu0 %v4442, 64
    %v5916 = vpop.permute.xlu0 %5915
    %5917 = vrot.lane.b32.xlu0 %v4443, 64
    %v5918 = vpop.permute.xlu0 %5917
    %5919 = vrot.lane.b32.xlu0 %v4444, 64
    %v5920 = vpop.permute.xlu0 %5919
    %5921 = vrot.lane.b32.xlu0 %v4445, 64
    %v5922 = vpop.permute.xlu0 %5921
    %5923 = vrot.lane.b32.xlu0 %v4446, 64
    %v5924 = vpop.permute.xlu0 %5923
    %5925 = vrot.lane.b32.xlu0 %v4447, 64
    %v5926 = vpop.permute.xlu0 %5925
    %5927 = vrot.lane.b32.xlu0 %v4448, 64
    %v5928 = vpop.permute.xlu0 %5927
    %5929 = vrot.lane.b32.xlu0 %v4449, 64
    %v5930 = vpop.permute.xlu0 %5929
    %5931 = vrot.lane.b32.xlu0 %v4450, 64
    %v5932 = vpop.permute.xlu0 %5931
    %5933 = vrot.lane.b32.xlu0 %v4451, 64
    %v5934 = vpop.permute.xlu0 %5933
    %5935 = vrot.lane.b32.xlu0 %v4452, 64
    %v5936 = vpop.permute.xlu0 %5935
    %5937 = vrot.lane.b32.xlu0 %v4453, 64
    %v5938 = vpop.permute.xlu0 %5937
    %5939 = vrot.lane.b32.xlu0 %v4454, 64
    %v5940 = vpop.permute.xlu0 %5939
    %5941 = vrot.lane.b32.xlu0 %v4455, 64
    %v5942 = vpop.permute.xlu0 %5941
    %5943 = vrot.lane.b32.xlu0 %v4456, 64
    %v5944 = vpop.permute.xlu0 %5943
    %5945 = vrot.lane.b32.xlu0 %v4457, 64
    %v5946 = vpop.permute.xlu0 %5945
    %5947 = vrot.lane.b32.xlu0 %v4458, 64
    %v5948 = vpop.permute.xlu0 %5947
    %5949 = vrot.lane.b32.xlu0 %v4459, 64
    %v5950 = vpop.permute.xlu0 %5949
    %5951 = vrot.lane.b32.xlu0 %v4460, 64
    %v5952 = vpop.permute.xlu0 %5951
    %5953 = vrot.lane.b32.xlu0 %v4461, 64
    %v5954 = vpop.permute.xlu0 %5953
    %5955 = vrot.lane.b32.xlu0 %v4462, 64
    %v5956 = vpop.permute.xlu0 %5955
    %5957 = vrot.lane.b32.xlu0 %v4463, 64
    %v5958 = vpop.permute.xlu0 %5957
    %5959 = vrot.lane.b32.xlu0 %v4464, 64
    %v5960 = vpop.permute.xlu0 %5959
    %5961 = vrot.lane.b32.xlu0 %v4465, 64
    %v5962 = vpop.permute.xlu0 %5961
    %5963 = vrot.lane.b32.xlu0 %v4466, 64
    %v5964 = vpop.permute.xlu0 %5963
    %5965 = vrot.lane.b32.xlu0 %v4467, 64
    %v5966 = vpop.permute.xlu0 %5965
    %5967 = vrot.lane.b32.xlu0 %v4468, 64
    %v5968 = vpop.permute.xlu0 %5967
    %5969 = vrot.lane.b32.xlu0 %v4469, 64
    %v5970 = vpop.permute.xlu0 %5969
    %5971 = vrot.lane.b32.xlu0 %v4470, 64
    %v5972 = vpop.permute.xlu0 %5971
    %5973 = vrot.lane.b32.xlu0 %v4471, 64
    %v5974 = vpop.permute.xlu0 %5973
    %5975 = vrot.lane.b32.xlu0 %v4472, 64
    %v5976 = vpop.permute.xlu0 %5975
    %5977 = vrot.lane.b32.xlu0 %v4473, 64
    %v5978 = vpop.permute.xlu0 %5977
    %5979 = vrot.lane.b32.xlu0 %v4474, 64
    %v5980 = vpop.permute.xlu0 %5979
    %5981 = vrot.lane.b32.xlu0 %v4475, 64
    %v5982 = vpop.permute.xlu0 %5981
    %5983 = vrot.lane.b32.xlu0 %v4476, 64
    %v5984 = vpop.permute.xlu0 %5983
    %5985 = vrot.lane.b32.xlu0 %v4477, 64
    %v5986 = vpop.permute.xlu0 %5985
    %5987 = vrot.lane.b32.xlu0 %v4478, 64
    %v5988 = vpop.permute.xlu0 %5987
    %5989 = vrot.lane.b32.xlu0 %v4479, 64
    %v5990 = vpop.permute.xlu0 %5989
    %5991 = vrot.lane.b32.xlu0 %v4480, 64
    %v5992 = vpop.permute.xlu0 %5991
    %5993 = vrot.lane.b32.xlu0 %v4481, 64
    %v5994 = vpop.permute.xlu0 %5993
    %5995 = vrot.lane.b32.xlu0 %v4482, 64
    %v5996 = vpop.permute.xlu0 %5995
    %5997 = vrot.lane.b32.xlu0 %v4483, 64
    %v5998 = vpop.permute.xlu0 %5997
    %5999 = vrot.lane.b32.xlu0 %v4484, 64
    %v6000 = vpop.permute.xlu0 %5999
    %6001 = vrot.lane.b32.xlu0 %v4485, 64
    %v6002 = vpop.permute.xlu0 %6001
    %6003 = vrot.lane.b32.xlu0 %v4486, 64
    %v6004 = vpop.permute.xlu0 %6003
    %6005 = vrot.lane.b32.xlu0 %v4487, 64
    %v6006 = vpop.permute.xlu0 %6005
    %6007 = vrot.lane.b32.xlu0 %v4488, 64
    %v6008 = vpop.permute.xlu0 %6007
    %6009 = vrot.lane.b32.xlu0 %v4489, 64
    %v6010 = vpop.permute.xlu0 %6009
    %6011 = vrot.lane.b32.xlu0 %v4490, 64
    %v6012 = vpop.permute.xlu0 %6011
    %6013 = vrot.lane.b32.xlu0 %v4491, 64
    %v6014 = vpop.permute.xlu0 %6013
    %6015 = vrot.lane.b32.xlu0 %v4492, 64
    %v6016 = vpop.permute.xlu0 %6015
    %6017 = vrot.lane.b32.xlu0 %v4493, 64
    %v6018 = vpop.permute.xlu0 %6017
    %6019 = vrot.lane.b32.xlu0 %v4494, 64
    %v6020 = vpop.permute.xlu0 %6019
    %6021 = vrot.lane.b32.xlu0 %v4495, 64
    %v6022 = vpop.permute.xlu0 %6021
    %6023 = vrot.lane.b32.xlu0 %v4496, 64
    %v6024 = vpop.permute.xlu0 %6023
    %6025 = vrot.lane.b32.xlu0 %v4497, 64
    %v6026 = vpop.permute.xlu0 %6025
    %6027 = vrot.lane.b32.xlu0 %v4498, 64
    %v6028 = vpop.permute.xlu0 %6027
    %6029 = vrot.lane.b32.xlu0 %v4499, 64
    %v6030 = vpop.permute.xlu0 %6029
    %6031 = vrot.lane.b32.xlu0 %v4500, 64
    %v6032 = vpop.permute.xlu0 %6031
    %6033 = vrot.lane.b32.xlu0 %v4501, 64
    %v6034 = vpop.permute.xlu0 %6033
    %6035 = vrot.lane.b32.xlu0 %v4502, 64
    %v6036 = vpop.permute.xlu0 %6035
    %6037 = vrot.lane.b32.xlu0 %v4503, 64
    %v6038 = vpop.permute.xlu0 %6037
    %6039 = vrot.lane.b32.xlu0 %v4504, 64
    %v6040 = vpop.permute.xlu0 %6039
    %6169 = vrot.lane.b32.xlu0 %v5273, 64
    %v6170 = vpop.permute.xlu0 %6169
    %6171 = vrot.lane.b32.xlu0 %v5274, 64
    %v6172 = vpop.permute.xlu0 %6171
    %6173 = vrot.lane.b32.xlu0 %v5275, 64
    %v6174 = vpop.permute.xlu0 %6173
    %6175 = vrot.lane.b32.xlu0 %v5276, 64
    %v6176 = vpop.permute.xlu0 %6175
    %6177 = vrot.lane.b32.xlu0 %v5277, 64
    %v6178 = vpop.permute.xlu0 %6177
    %6179 = vrot.lane.b32.xlu0 %v5278, 64
    %v6180 = vpop.permute.xlu0 %6179
    %6181 = vrot.lane.b32.xlu0 %v5279, 64
    %v6182 = vpop.permute.xlu0 %6181
    %6183 = vrot.lane.b32.xlu0 %v5280, 64
    %v6184 = vpop.permute.xlu0 %6183
    %6185 = vrot.lane.b32.xlu0 %v5281, 64
    %v6186 = vpop.permute.xlu0 %6185
    %6187 = vrot.lane.b32.xlu0 %v5282, 64
    %v6188 = vpop.permute.xlu0 %6187
    %6189 = vrot.lane.b32.xlu0 %v5283, 64
    %v6190 = vpop.permute.xlu0 %6189
    %6191 = vrot.lane.b32.xlu0 %v5284, 64
    %v6192 = vpop.permute.xlu0 %6191
    %6193 = vrot.lane.b32.xlu0 %v5285, 64
    %v6194 = vpop.permute.xlu0 %6193
    %6195 = vrot.lane.b32.xlu0 %v5286, 64
    %v6196 = vpop.permute.xlu0 %6195
    %6197 = vrot.lane.b32.xlu0 %v5287, 64
    %v6198 = vpop.permute.xlu0 %6197
    %6199 = vrot.lane.b32.xlu0 %v5288, 64
    %v6200 = vpop.permute.xlu0 %6199
    %6201 = vrot.lane.b32.xlu0 %v5289, 64
    %v6202 = vpop.permute.xlu0 %6201
    %6203 = vrot.lane.b32.xlu0 %v5290, 64
    %v6204 = vpop.permute.xlu0 %6203
    %6205 = vrot.lane.b32.xlu0 %v5291, 64
    %v6206 = vpop.permute.xlu0 %6205
    %6207 = vrot.lane.b32.xlu0 %v5292, 64
    %v6208 = vpop.permute.xlu0 %6207
    %6209 = vrot.lane.b32.xlu0 %v5293, 64
    %v6210 = vpop.permute.xlu0 %6209
    %6211 = vrot.lane.b32.xlu0 %v5294, 64
    %v6212 = vpop.permute.xlu0 %6211
    %6213 = vrot.lane.b32.xlu0 %v5295, 64
    %v6214 = vpop.permute.xlu0 %6213
    %6215 = vrot.lane.b32.xlu0 %v5296, 64
    %v6216 = vpop.permute.xlu0 %6215
    %6217 = vrot.lane.b32.xlu0 %v5297, 64
    %v6218 = vpop.permute.xlu0 %6217
    %6219 = vrot.lane.b32.xlu0 %v5298, 64
    %v6220 = vpop.permute.xlu0 %6219
    %6221 = vrot.lane.b32.xlu0 %v5299, 64
    %v6222 = vpop.permute.xlu0 %6221
    %6223 = vrot.lane.b32.xlu0 %v5300, 64
    %v6224 = vpop.permute.xlu0 %6223
    %6225 = vrot.lane.b32.xlu0 %v5301, 64
    %v6226 = vpop.permute.xlu0 %6225
    %6227 = vrot.lane.b32.xlu0 %v5302, 64
    %v6228 = vpop.permute.xlu0 %6227
    %6229 = vrot.lane.b32.xlu0 %v5303, 64
    %v6230 = vpop.permute.xlu0 %6229
    %6231 = vrot.lane.b32.xlu0 %v5304, 64
    %v6232 = vpop.permute.xlu0 %6231
    %6233 = vrot.lane.b32.xlu0 %v5305, 64
    %v6234 = vpop.permute.xlu0 %6233
    %6235 = vrot.lane.b32.xlu0 %v5306, 64
    %v6236 = vpop.permute.xlu0 %6235
    %6237 = vrot.lane.b32.xlu0 %v5307, 64
    %v6238 = vpop.permute.xlu0 %6237
    %6239 = vrot.lane.b32.xlu0 %v5308, 64
    %v6240 = vpop.permute.xlu0 %6239
    %6241 = vrot.lane.b32.xlu0 %v5309, 64
    %v6242 = vpop.permute.xlu0 %6241
    %6243 = vrot.lane.b32.xlu0 %v5310, 64
    %v6244 = vpop.permute.xlu0 %6243
    %6245 = vrot.lane.b32.xlu0 %v5311, 64
    %v6246 = vpop.permute.xlu0 %6245
    %6247 = vrot.lane.b32.xlu0 %v5312, 64
    %v6248 = vpop.permute.xlu0 %6247
    %6249 = vrot.lane.b32.xlu0 %v5313, 64
    %v6250 = vpop.permute.xlu0 %6249
    %6251 = vrot.lane.b32.xlu0 %v5314, 64
    %v6252 = vpop.permute.xlu0 %6251
    %6253 = vrot.lane.b32.xlu0 %v5315, 64
    %v6254 = vpop.permute.xlu0 %6253
    %6255 = vrot.lane.b32.xlu0 %v5316, 64
    %v6256 = vpop.permute.xlu0 %6255
    %6257 = vrot.lane.b32.xlu0 %v5317, 64
    %v6258 = vpop.permute.xlu0 %6257
    %6259 = vrot.lane.b32.xlu0 %v5318, 64
    %v6260 = vpop.permute.xlu0 %6259
    %6261 = vrot.lane.b32.xlu0 %v5319, 64
    %v6262 = vpop.permute.xlu0 %6261
    %6263 = vrot.lane.b32.xlu0 %v5320, 64
    %v6264 = vpop.permute.xlu0 %6263
    %6265 = vrot.lane.b32.xlu0 %v5321, 64
    %v6266 = vpop.permute.xlu0 %6265
    %6267 = vrot.lane.b32.xlu0 %v5322, 64
    %v6268 = vpop.permute.xlu0 %6267
    %6269 = vrot.lane.b32.xlu0 %v5323, 64
    %v6270 = vpop.permute.xlu0 %6269
    %6271 = vrot.lane.b32.xlu0 %v5324, 64
    %v6272 = vpop.permute.xlu0 %6271
    %6273 = vrot.lane.b32.xlu0 %v5325, 64
    %v6274 = vpop.permute.xlu0 %6273
    %6275 = vrot.lane.b32.xlu0 %v5326, 64
    %v6276 = vpop.permute.xlu0 %6275
    %6277 = vrot.lane.b32.xlu0 %v5327, 64
    %v6278 = vpop.permute.xlu0 %6277
    %6279 = vrot.lane.b32.xlu0 %v5328, 64
    %v6280 = vpop.permute.xlu0 %6279
    %6281 = vrot.lane.b32.xlu0 %v5329, 64
    %v6282 = vpop.permute.xlu0 %6281
    %6283 = vrot.lane.b32.xlu0 %v5330, 64
    %v6284 = vpop.permute.xlu0 %6283
    %6285 = vrot.lane.b32.xlu0 %v5331, 64
    %v6286 = vpop.permute.xlu0 %6285
    %6287 = vrot.lane.b32.xlu0 %v5332, 64
    %v6288 = vpop.permute.xlu0 %6287
    %6289 = vrot.lane.b32.xlu0 %v5333, 64
    %v6290 = vpop.permute.xlu0 %6289
    %6291 = vrot.lane.b32.xlu0 %v5334, 64
    %v6292 = vpop.permute.xlu0 %6291
    %6293 = vrot.lane.b32.xlu0 %v5335, 64
    %v6294 = vpop.permute.xlu0 %6293
    %6295 = vrot.lane.b32.xlu0 %v5336, 64
    %v6296 = vpop.permute.xlu0 %6295
    %v6361 = vsel %vm2136, %v5402, %v5658
    %v6362 = vsel %vm2136, %v5404, %v5660
    %v6363 = vsel %vm2136, %v5406, %v5662
    %v6364 = vsel %vm2136, %v5408, %v5664
    %v6365 = vsel %vm2136, %v5410, %v5666
    %v6366 = vsel %vm2136, %v5412, %v5668
    %v6367 = vsel %vm2136, %v5414, %v5670
    %v6368 = vsel %vm2136, %v5416, %v5672
    %v6369 = vsel %vm2136, %v5418, %v5674
    %v6370 = vsel %vm2136, %v5420, %v5676
    %v6371 = vsel %vm2136, %v5422, %v5678
    %v6372 = vsel %vm2136, %v5424, %v5680
    %v6373 = vsel %vm2136, %v5426, %v5682
    %v6374 = vsel %vm2136, %v5428, %v5684
    %v6375 = vsel %vm2136, %v5430, %v5686
    %v6376 = vsel %vm2136, %v5432, %v5688
    %v6377 = vsel %vm2136, %v5434, %v5690
    %v6378 = vsel %vm2136, %v5436, %v5692
    %v6379 = vsel %vm2136, %v5438, %v5694
    %v6380 = vsel %vm2136, %v5440, %v5696
    %v6381 = vsel %vm2136, %v5442, %v5698
    %v6382 = vsel %vm2136, %v5444, %v5700
    %v6383 = vsel %vm2136, %v5446, %v5702
    %v6384 = vsel %vm2136, %v5448, %v5704
    %v6385 = vsel %vm2136, %v5450, %v5706
    %v6386 = vsel %vm2136, %v5452, %v5708
    %v6387 = vsel %vm2136, %v5454, %v5710
    %v6388 = vsel %vm2136, %v5456, %v5712
    %v6389 = vsel %vm2136, %v5458, %v5714
    %v6390 = vsel %vm2136, %v5460, %v5716
    %v6391 = vsel %vm2136, %v5462, %v5718
    %v6392 = vsel %vm2136, %v5464, %v5720
    %v6393 = vsel %vm2136, %v5466, %v5722
    %v6394 = vsel %vm2136, %v5468, %v5724
    %v6395 = vsel %vm2136, %v5470, %v5726
    %v6396 = vsel %vm2136, %v5472, %v5728
    %v6397 = vsel %vm2136, %v5474, %v5730
    %v6398 = vsel %vm2136, %v5476, %v5732
    %v6399 = vsel %vm2136, %v5478, %v5734
    %v6400 = vsel %vm2136, %v5480, %v5736
    %v6401 = vsel %vm2136, %v5482, %v5738
    %v6402 = vsel %vm2136, %v5484, %v5740
    %v6403 = vsel %vm2136, %v5486, %v5742
    %v6404 = vsel %vm2136, %v5488, %v5744
    %v6405 = vsel %vm2136, %v5490, %v5746
    %v6406 = vsel %vm2136, %v5492, %v5748
    %v6407 = vsel %vm2136, %v5494, %v5750
    %v6408 = vsel %vm2136, %v5496, %v5752
    %v6409 = vsel %vm2136, %v5498, %v5754
    %v6410 = vsel %vm2136, %v5500, %v5756
    %v6411 = vsel %vm2136, %v5502, %v5758
    %v6412 = vsel %vm2136, %v5504, %v5760
    %v6413 = vsel %vm2136, %v5506, %v5762
    %v6414 = vsel %vm2136, %v5508, %v5764
    %v6415 = vsel %vm2136, %v5510, %v5766
    %v6416 = vsel %vm2136, %v5512, %v5768
    %v6417 = vsel %vm2136, %v5514, %v5770
    %v6418 = vsel %vm2136, %v5516, %v5772
    %v6419 = vsel %vm2136, %v5518, %v5774
    %v6420 = vsel %vm2136, %v5520, %v5776
    %v6421 = vsel %vm2136, %v5522, %v5778
    %v6422 = vsel %vm2136, %v5524, %v5780
    %v6423 = vsel %vm2136, %v5526, %v5782
    %v6424 = vsel %vm2136, %v5528, %v5784
    %vm6425 = vcmask 130048
    %v6426 = vsel %vm6425, %v6361, %v5914
    %v6427 = vsel %vm6425, %v6362, %v5916
    %v6428 = vsel %vm6425, %v6363, %v5918
    %v6429 = vsel %vm6425, %v6364, %v5920
    %v6430 = vsel %vm6425, %v6365, %v5922
    %v6431 = vsel %vm6425, %v6366, %v5924
    %v6432 = vsel %vm6425, %v6367, %v5926
    %v6433 = vsel %vm6425, %v6368, %v5928
    %v6434 = vsel %vm6425, %v6369, %v5930
    %v6435 = vsel %vm6425, %v6370, %v5932
    %v6436 = vsel %vm6425, %v6371, %v5934
    %v6437 = vsel %vm6425, %v6372, %v5936
    %v6438 = vsel %vm6425, %v6373, %v5938
    %v6439 = vsel %vm6425, %v6374, %v5940
    %v6440 = vsel %vm6425, %v6375, %v5942
    %v6441 = vsel %vm6425, %v6376, %v5944
    %v6442 = vsel %vm6425, %v6377, %v5946
    %v6443 = vsel %vm6425, %v6378, %v5948
    %v6444 = vsel %vm6425, %v6379, %v5950
    %v6445 = vsel %vm6425, %v6380, %v5952
    %v6446 = vsel %vm6425, %v6381, %v5954
    %v6447 = vsel %vm6425, %v6382, %v5956
    %v6448 = vsel %vm6425, %v6383, %v5958
    %v6449 = vsel %vm6425, %v6384, %v5960
    %v6450 = vsel %vm6425, %v6385, %v5962
    %v6451 = vsel %vm6425, %v6386, %v5964
    %v6452 = vsel %vm6425, %v6387, %v5966
    %v6453 = vsel %vm6425, %v6388, %v5968
    %v6454 = vsel %vm6425, %v6389, %v5970
    %v6455 = vsel %vm6425, %v6390, %v5972
    %v6456 = vsel %vm6425, %v6391, %v5974
    %v6457 = vsel %vm6425, %v6392, %v5976
    %v6458 = vsel %vm6425, %v6393, %v5978
    %v6459 = vsel %vm6425, %v6394, %v5980
    %v6460 = vsel %vm6425, %v6395, %v5982
    %v6461 = vsel %vm6425, %v6396, %v5984
    %v6462 = vsel %vm6425, %v6397, %v5986
    %v6463 = vsel %vm6425, %v6398, %v5988
    %v6464 = vsel %vm6425, %v6399, %v5990
    %v6465 = vsel %vm6425, %v6400, %v5992
    %v6466 = vsel %vm6425, %v6401, %v5994
    %v6467 = vsel %vm6425, %v6402, %v5996
    %v6468 = vsel %vm6425, %v6403, %v5998
    %v6469 = vsel %vm6425, %v6404, %v6000
    %v6470 = vsel %vm6425, %v6405, %v6002
    %v6471 = vsel %vm6425, %v6406, %v6004
    %v6472 = vsel %vm6425, %v6407, %v6006
    %v6473 = vsel %vm6425, %v6408, %v6008
    %v6474 = vsel %vm6425, %v6409, %v6010
    %v6475 = vsel %vm6425, %v6410, %v6012
    %v6476 = vsel %vm6425, %v6411, %v6014
    %v6477 = vsel %vm6425, %v6412, %v6016
    %v6478 = vsel %vm6425, %v6413, %v6018
    %v6479 = vsel %vm6425, %v6414, %v6020
    %v6480 = vsel %vm6425, %v6415, %v6022
    %v6481 = vsel %vm6425, %v6416, %v6024
    %v6482 = vsel %vm6425, %v6417, %v6026
    %v6483 = vsel %vm6425, %v6418, %v6028
    %v6484 = vsel %vm6425, %v6419, %v6030
    %v6485 = vsel %vm6425, %v6420, %v6032
    %v6486 = vsel %vm6425, %v6421, %v6034
    %v6487 = vsel %vm6425, %v6422, %v6036
    %v6488 = vsel %vm6425, %v6423, %v6038
    %v6489 = vsel %vm6425, %v6424, %v6040
    %vm6490 = vcmask 195584
    %v6491 = vsel %vm6490, %v6426, %v6170
    %v6492 = vsel %vm6490, %v6427, %v6172
    %v6493 = vsel %vm6490, %v6428, %v6174
    %v6494 = vsel %vm6490, %v6429, %v6176
    %v6495 = vsel %vm6490, %v6430, %v6178
    %v6496 = vsel %vm6490, %v6431, %v6180
    %v6497 = vsel %vm6490, %v6432, %v6182
    %v6498 = vsel %vm6490, %v6433, %v6184
    %v6499 = vsel %vm6490, %v6434, %v6186
    %v6500 = vsel %vm6490, %v6435, %v6188
    %v6501 = vsel %vm6490, %v6436, %v6190
    %v6502 = vsel %vm6490, %v6437, %v6192
    %v6503 = vsel %vm6490, %v6438, %v6194
    %v6504 = vsel %vm6490, %v6439, %v6196
    %v6505 = vsel %vm6490, %v6440, %v6198
    %v6506 = vsel %vm6490, %v6441, %v6200
    %v6507 = vsel %vm6490, %v6442, %v6202
    %v6508 = vsel %vm6490, %v6443, %v6204
    %v6509 = vsel %vm6490, %v6444, %v6206
    %v6510 = vsel %vm6490, %v6445, %v6208
    %v6511 = vsel %vm6490, %v6446, %v6210
    %v6512 = vsel %vm6490, %v6447, %v6212
    %v6513 = vsel %vm6490, %v6448, %v6214
    %v6514 = vsel %vm6490, %v6449, %v6216
    %v6515 = vsel %vm6490, %v6450, %v6218
    %v6516 = vsel %vm6490, %v6451, %v6220
    %v6517 = vsel %vm6490, %v6452, %v6222
    %v6518 = vsel %vm6490, %v6453, %v6224
    %v6519 = vsel %vm6490, %v6454, %v6226
    %v6520 = vsel %vm6490, %v6455, %v6228
    %v6521 = vsel %vm6490, %v6456, %v6230
    %v6522 = vsel %vm6490, %v6457, %v6232
    %v6523 = vsel %vm6490, %v6458, %v6234
    %v6524 = vsel %vm6490, %v6459, %v6236
    %v6525 = vsel %vm6490, %v6460, %v6238
    %v6526 = vsel %vm6490, %v6461, %v6240
    %v6527 = vsel %vm6490, %v6462, %v6242
    %v6528 = vsel %vm6490, %v6463, %v6244
    %v6529 = vsel %vm6490, %v6464, %v6246
    %v6530 = vsel %vm6490, %v6465, %v6248
    %v6531 = vsel %vm6490, %v6466, %v6250
    %v6532 = vsel %vm6490, %v6467, %v6252
    %v6533 = vsel %vm6490, %v6468, %v6254
    %v6534 = vsel %vm6490, %v6469, %v6256
    %v6535 = vsel %vm6490, %v6470, %v6258
    %v6536 = vsel %vm6490, %v6471, %v6260
    %v6537 = vsel %vm6490, %v6472, %v6262
    %v6538 = vsel %vm6490, %v6473, %v6264
    %v6539 = vsel %vm6490, %v6474, %v6266
    %v6540 = vsel %vm6490, %v6475, %v6268
    %v6541 = vsel %vm6490, %v6476, %v6270
    %v6542 = vsel %vm6490, %v6477, %v6272
    %v6543 = vsel %vm6490, %v6478, %v6274
    %v6544 = vsel %vm6490, %v6479, %v6276
    %v6545 = vsel %vm6490, %v6480, %v6278
    %v6546 = vsel %vm6490, %v6481, %v6280
    %v6547 = vsel %vm6490, %v6482, %v6282
    %v6548 = vsel %vm6490, %v6483, %v6284
    %v6549 = vsel %vm6490, %v6484, %v6286
    %v6550 = vsel %vm6490, %v6485, %v6288
    %v6551 = vsel %vm6490, %v6486, %v6290
    %v6552 = vsel %vm6490, %v6487, %v6292
    %v6553 = vsel %vm6490, %v6488, %v6294
    %v6554 = vsel %vm6490, %v6489, %v6296
    %6555 = vst.msk [vmem:[#allocation3] sm:$0xff] %vm148, %v6491
    %6556 = vst.msk [vmem:[#allocation3 + $0x8] sm:$0xff] %vm148, %v6492
    %6557 = vst.msk [vmem:[#allocation3 + $0x10] sm:$0xff] %vm148, %v6493
    %6558 = vst.msk [vmem:[#allocation3 + $0x18] sm:$0xff] %vm148, %v6494
    %6559 = vst.msk [vmem:[#allocation3 + $0x20] sm:$0xff] %vm148, %v6495
    %6560 = vst.msk [vmem:[#allocation3 + $0x28] sm:$0xff] %vm148, %v6496
    %6561 = vst.msk [vmem:[#allocation3 + $0x30] sm:$0xff] %vm148, %v6497
    %6562 = vst.msk [vmem:[#allocation3 + $0x38] sm:$0xff] %vm148, %v6498
    %6563 = vst.msk [vmem:[#allocation3 + $0x40] sm:$0xff] %vm148, %v6499
    %6564 = vst.msk [vmem:[#allocation3 + $0x48] sm:$0xff] %vm148, %v6500
    %6565 = vst.msk [vmem:[#allocation3 + $0x50] sm:$0xff] %vm148, %v6501
    %6566 = vst.msk [vmem:[#allocation3 + $0x58] sm:$0xff] %vm148, %v6502
    %6567 = vst.msk [vmem:[#allocation3 + $0x60] sm:$0xff] %vm148, %v6503
    %6568 = vst.msk [vmem:[#allocation3 + $0x68] sm:$0xff] %vm148, %v6504
    %6569 = vst.msk [vmem:[#allocation3 + $0x70] sm:$0xff] %vm148, %v6505
    %6570 = vst.msk [vmem:[#allocation3 + $0x78] sm:$0xff] %vm148, %v6506
    %6571 = vst.msk [vmem:[#allocation3 + $0x80] sm:$0xff] %vm148, %v6507
    %6572 = vst.msk [vmem:[#allocation3 + $0x88] sm:$0xff] %vm148, %v6508
    %6573 = vst.msk [vmem:[#allocation3 + $0x90] sm:$0xff] %vm148, %v6509
    %6574 = vst.msk [vmem:[#allocation3 + $0x98] sm:$0xff] %vm148, %v6510
    %6575 = vst.msk [vmem:[#allocation3 + $0xa0] sm:$0xff] %vm148, %v6511
    %6576 = vst.msk [vmem:[#allocation3 + $0xa8] sm:$0xff] %vm148, %v6512
    %6577 = vst.msk [vmem:[#allocation3 + $0xb0] sm:$0xff] %vm148, %v6513
    %6578 = vst.msk [vmem:[#allocation3 + $0xb8] sm:$0xff] %vm148, %v6514
    %6579 = vst.msk [vmem:[#allocation3 + $0xc0] sm:$0xff] %vm148, %v6515
    %6580 = vst.msk [vmem:[#allocation3 + $0xc8] sm:$0xff] %vm148, %v6516
    %6581 = vst.msk [vmem:[#allocation3 + $0xd0] sm:$0xff] %vm148, %v6517
    %6582 = vst.msk [vmem:[#allocation3 + $0xd8] sm:$0xff] %vm148, %v6518
    %6583 = vst.msk [vmem:[#allocation3 + $0xe0] sm:$0xff] %vm148, %v6519
    %6584 = vst.msk [vmem:[#allocation3 + $0xe8] sm:$0xff] %vm148, %v6520
    %6585 = vst.msk [vmem:[#allocation3 + $0xf0] sm:$0xff] %vm148, %v6521
    %6586 = vst.msk [vmem:[#allocation3 + $0xf8] sm:$0xff] %vm148, %v6522
    %6587 = vst.msk [vmem:[#allocation3 + $0x100] sm:$0xff] %vm148, %v6523
    %6588 = vst.msk [vmem:[#allocation3 + $0x108] sm:$0xff] %vm148, %v6524
    %6589 = vst.msk [vmem:[#allocation3 + $0x110] sm:$0xff] %vm148, %v6525
    %6590 = vst.msk [vmem:[#allocation3 + $0x118] sm:$0xff] %vm148, %v6526
    %6591 = vst.msk [vmem:[#allocation3 + $0x120] sm:$0xff] %vm148, %v6527
    %6592 = vst.msk [vmem:[#allocation3 + $0x128] sm:$0xff] %vm148, %v6528
    %6593 = vst.msk [vmem:[#allocation3 + $0x130] sm:$0xff] %vm148, %v6529
    %6594 = vst.msk [vmem:[#allocation3 + $0x138] sm:$0xff] %vm148, %v6530
    %6595 = vst.msk [vmem:[#allocation3 + $0x140] sm:$0xff] %vm148, %v6531
    %6596 = vst.msk [vmem:[#allocation3 + $0x148] sm:$0xff] %vm148, %v6532
    %6597 = vst.msk [vmem:[#allocation3 + $0x150] sm:$0xff] %vm148, %v6533
    %6598 = vst.msk [vmem:[#allocation3 + $0x158] sm:$0xff] %vm148, %v6534
    %6599 = vst.msk [vmem:[#allocation3 + $0x160] sm:$0xff] %vm148, %v6535
    %6600 = vst.msk [vmem:[#allocation3 + $0x168] sm:$0xff] %vm148, %v6536
    %6601 = vst.msk [vmem:[#allocation3 + $0x170] sm:$0xff] %vm148, %v6537
    %6602 = vst.msk [vmem:[#allocation3 + $0x178] sm:$0xff] %vm148, %v6538
    %6603 = vst.msk [vmem:[#allocation3 + $0x180] sm:$0xff] %vm148, %v6539
    %6604 = vst.msk [vmem:[#allocation3 + $0x188] sm:$0xff] %vm148, %v6540
    %6605 = vst.msk [vmem:[#allocation3 + $0x190] sm:$0xff] %vm148, %v6541
    %6606 = vst.msk [vmem:[#allocation3 + $0x198] sm:$0xff] %vm148, %v6542
    %6607 = vst.msk [vmem:[#allocation3 + $0x1a0] sm:$0xff] %vm148, %v6543
    %6608 = vst.msk [vmem:[#allocation3 + $0x1a8] sm:$0xff] %vm148, %v6544
    %6609 = vst.msk [vmem:[#allocation3 + $0x1b0] sm:$0xff] %vm148, %v6545
    %6610 = vst.msk [vmem:[#allocation3 + $0x1b8] sm:$0xff] %vm148, %v6546
    %6611 = vst.msk [vmem:[#allocation3 + $0x1c0] sm:$0xff] %vm148, %v6547
    %6612 = vst.msk [vmem:[#allocation3 + $0x1c8] sm:$0xff] %vm148, %v6548
    %6613 = vst.msk [vmem:[#allocation3 + $0x1d0] sm:$0xff] %vm148, %v6549
    %6614 = vst.msk [vmem:[#allocation3 + $0x1d8] sm:$0xff] %vm148, %v6550
    %6615 = vst.msk [vmem:[#allocation3 + $0x1e0] sm:$0xff] %vm148, %v6551
    %6616 = vst.msk [vmem:[#allocation3 + $0x1e8] sm:$0xff] %vm148, %v6552
    %6617 = vst.msk [vmem:[#allocation3 + $0x1f0] sm:$0xff] %vm148, %v6553
    %6618 = vst.msk [vmem:[#allocation3 + $0x1f8] sm:$0xff] %vm148, %v6554
    %v6619 = vld [vmem:[#allocation3] sm:$0xff]
    %v6620 = vld [vmem:[#allocation3 + $0x8] sm:$0xff]
    %v6621 = vld [vmem:[#allocation3 + $0x10] sm:$0xff]
    %v6622 = vld [vmem:[#allocation3 + $0x18] sm:$0xff]
    %v6623 = vld [vmem:[#allocation3 + $0x20] sm:$0xff]
    %v6624 = vld [vmem:[#allocation3 + $0x28] sm:$0xff]
    %v6625 = vld [vmem:[#allocation3 + $0x30] sm:$0xff]
    %v6626 = vld [vmem:[#allocation3 + $0x38] sm:$0xff]
    %v6627 = vld [vmem:[#allocation3 + $0x40] sm:$0xff]
    %v6628 = vld [vmem:[#allocation3 + $0x48] sm:$0xff]
    %v6629 = vld [vmem:[#allocation3 + $0x50] sm:$0xff]
    %v6630 = vld [vmem:[#allocation3 + $0x58] sm:$0xff]
    %v6631 = vld [vmem:[#allocation3 + $0x60] sm:$0xff]
    %v6632 = vld [vmem:[#allocation3 + $0x68] sm:$0xff]
    %v6633 = vld [vmem:[#allocation3 + $0x70] sm:$0xff]
    %v6634 = vld [vmem:[#allocation3 + $0x78] sm:$0xff]
    %v6635 = vld [vmem:[#allocation3 + $0x80] sm:$0xff]
    %v6636 = vld [vmem:[#allocation3 + $0x88] sm:$0xff]
    %v6637 = vld [vmem:[#allocation3 + $0x90] sm:$0xff]
    %v6638 = vld [vmem:[#allocation3 + $0x98] sm:$0xff]
    %v6639 = vld [vmem:[#allocation3 + $0xa0] sm:$0xff]
    %v6640 = vld [vmem:[#allocation3 + $0xa8] sm:$0xff]
    %v6641 = vld [vmem:[#allocation3 + $0xb0] sm:$0xff]
    %v6642 = vld [vmem:[#allocation3 + $0xb8] sm:$0xff]
    %v6643 = vld [vmem:[#allocation3 + $0xc0] sm:$0xff]
    %v6644 = vld [vmem:[#allocation3 + $0xc8] sm:$0xff]
    %v6645 = vld [vmem:[#allocation3 + $0xd0] sm:$0xff]
    %v6646 = vld [vmem:[#allocation3 + $0xd8] sm:$0xff]
    %v6647 = vld [vmem:[#allocation3 + $0xe0] sm:$0xff]
    %v6648 = vld [vmem:[#allocation3 + $0xe8] sm:$0xff]
    %v6649 = vld [vmem:[#allocation3 + $0xf0] sm:$0xff]
    %v6650 = vld [vmem:[#allocation3 + $0xf8] sm:$0xff]
    %v6651 = vld [vmem:[#allocation2] sm:$0xff]
    %v6652 = vld [vmem:[#allocation2 + $0x8] sm:$0xff]
    %v6653 = vld [vmem:[#allocation2 + $0x10] sm:$0xff]
    %v6654 = vld [vmem:[#allocation2 + $0x18] sm:$0xff]
    %v6655 = vld [vmem:[#allocation2 + $0x20] sm:$0xff]
    %v6656 = vld [vmem:[#allocation2 + $0x28] sm:$0xff]
    %v6657 = vld [vmem:[#allocation2 + $0x30] sm:$0xff]
    %v6658 = vld [vmem:[#allocation2 + $0x38] sm:$0xff]
    %v6659 = vld [vmem:[#allocation2 + $0x40] sm:$0xff]
    %v6660 = vld [vmem:[#allocation2 + $0x48] sm:$0xff]
    %v6661 = vld [vmem:[#allocation2 + $0x50] sm:$0xff]
    %v6662 = vld [vmem:[#allocation2 + $0x58] sm:$0xff]
    %v6663 = vld [vmem:[#allocation2 + $0x60] sm:$0xff]
    %v6664 = vld [vmem:[#allocation2 + $0x68] sm:$0xff]
    %v6665 = vld [vmem:[#allocation2 + $0x70] sm:$0xff]
    %v6666 = vld [vmem:[#allocation2 + $0x78] sm:$0xff]
    %v6667 = vld [vmem:[#allocation2 + $0x80] sm:$0xff]
    %v6668 = vld [vmem:[#allocation2 + $0x88] sm:$0xff]
    %v6669 = vld [vmem:[#allocation2 + $0x90] sm:$0xff]
    %v6670 = vld [vmem:[#allocation2 + $0x98] sm:$0xff]
    %v6671 = vld [vmem:[#allocation2 + $0xa0] sm:$0xff]
    %v6672 = vld [vmem:[#allocation2 + $0xa8] sm:$0xff]
    %v6673 = vld [vmem:[#allocation2 + $0xb0] sm:$0xff]
    %v6674 = vld [vmem:[#allocation2 + $0xb8] sm:$0xff]
    %v6675 = vld [vmem:[#allocation2 + $0xc0] sm:$0xff]
    %v6676 = vld [vmem:[#allocation2 + $0xc8] sm:$0xff]
    %v6677 = vld [vmem:[#allocation2 + $0xd0] sm:$0xff]
    %v6678 = vld [vmem:[#allocation2 + $0xd8] sm:$0xff]
    %v6679 = vld [vmem:[#allocation2 + $0xe0] sm:$0xff]
    %v6680 = vld [vmem:[#allocation2 + $0xe8] sm:$0xff]
    %v6681 = vld [vmem:[#allocation2 + $0xf0] sm:$0xff]
    %v6682 = vld [vmem:[#allocation2 + $0xf8] sm:$0xff]
    %v6683 = vadd.f32 %v6619, 0.0
    %v6684 = vadd.f32 %v6620, 0.0
    %v6685 = vadd.f32 %v6621, 0.0
    %v6686 = vadd.f32 %v6622, 0.0
    %v6687 = vadd.f32 %v6623, 0.0
    %v6688 = vadd.f32 %v6624, 0.0
    %v6689 = vadd.f32 %v6625, 0.0
    %v6690 = vadd.f32 %v6626, 0.0
    %v6691 = vadd.f32 %v6627, 0.0
    %v6692 = vadd.f32 %v6628, 0.0
    %v6693 = vadd.f32 %v6629, 0.0
    %v6694 = vadd.f32 %v6630, 0.0
    %v6695 = vadd.f32 %v6631, 0.0
    %v6696 = vadd.f32 %v6632, 0.0
    %v6697 = vadd.f32 %v6633, 0.0
    %v6698 = vadd.f32 %v6634, 0.0
    %v6699 = vadd.f32 %v6635, 0.0
    %v6700 = vadd.f32 %v6636, 0.0
    %v6701 = vadd.f32 %v6637, 0.0
    %v6702 = vadd.f32 %v6638, 0.0
    %v6703 = vadd.f32 %v6639, 0.0
    %v6704 = vadd.f32 %v6640, 0.0
    %v6705 = vadd.f32 %v6641, 0.0
    %v6706 = vadd.f32 %v6642, 0.0
    %v6707 = vadd.f32 %v6643, 0.0
    %v6708 = vadd.f32 %v6644, 0.0
    %v6709 = vadd.f32 %v6645, 0.0
    %v6710 = vadd.f32 %v6646, 0.0
    %v6711 = vadd.f32 %v6647, 0.0
    %v6712 = vadd.f32 %v6648, 0.0
    %v6713 = vadd.f32 %v6649, 0.0
    %v6714 = vadd.f32 %v6650, 0.0
    %6747 = vrot.lane.b32.xlu0 %v6619, 120
    %v6748 = vpop.permute.xlu0 %6747
    %6749 = vrot.lane.b32.xlu0 %v6620, 120
    %v6750 = vpop.permute.xlu0 %6749
    %6751 = vrot.lane.b32.xlu0 %v6621, 120
    %v6752 = vpop.permute.xlu0 %6751
    %6753 = vrot.lane.b32.xlu0 %v6622, 120
    %v6754 = vpop.permute.xlu0 %6753
    %6755 = vrot.lane.b32.xlu0 %v6623, 120
    %v6756 = vpop.permute.xlu0 %6755
    %6757 = vrot.lane.b32.xlu0 %v6624, 120
    %v6758 = vpop.permute.xlu0 %6757
    %6759 = vrot.lane.b32.xlu0 %v6625, 120
    %v6760 = vpop.permute.xlu0 %6759
    %6761 = vrot.lane.b32.xlu0 %v6626, 120
    %v6762 = vpop.permute.xlu0 %6761
    %6763 = vrot.lane.b32.xlu0 %v6627, 120
    %v6764 = vpop.permute.xlu0 %6763
    %6765 = vrot.lane.b32.xlu0 %v6628, 120
    %v6766 = vpop.permute.xlu0 %6765
    %6767 = vrot.lane.b32.xlu0 %v6629, 120
    %v6768 = vpop.permute.xlu0 %6767
    %6769 = vrot.lane.b32.xlu0 %v6630, 120
    %v6770 = vpop.permute.xlu0 %6769
    %6771 = vrot.lane.b32.xlu0 %v6631, 120
    %v6772 = vpop.permute.xlu0 %6771
    %6773 = vrot.lane.b32.xlu0 %v6632, 120
    %v6774 = vpop.permute.xlu0 %6773
    %6775 = vrot.lane.b32.xlu0 %v6633, 120
    %v6776 = vpop.permute.xlu0 %6775
    %6777 = vrot.lane.b32.xlu0 %v6634, 120
    %v6778 = vpop.permute.xlu0 %6777
    %6779 = vrot.lane.b32.xlu0 %v6635, 120
    %v6780 = vpop.permute.xlu0 %6779
    %6781 = vrot.lane.b32.xlu0 %v6636, 120
    %v6782 = vpop.permute.xlu0 %6781
    %6783 = vrot.lane.b32.xlu0 %v6637, 120
    %v6784 = vpop.permute.xlu0 %6783
    %6785 = vrot.lane.b32.xlu0 %v6638, 120
    %v6786 = vpop.permute.xlu0 %6785
    %6787 = vrot.lane.b32.xlu0 %v6639, 120
    %v6788 = vpop.permute.xlu0 %6787
    %6789 = vrot.lane.b32.xlu0 %v6640, 120
    %v6790 = vpop.permute.xlu0 %6789
    %6791 = vrot.lane.b32.xlu0 %v6641, 120
    %v6792 = vpop.permute.xlu0 %6791
    %6793 = vrot.lane.b32.xlu0 %v6642, 120
    %v6794 = vpop.permute.xlu0 %6793
    %6795 = vrot.lane.b32.xlu0 %v6643, 120
    %v6796 = vpop.permute.xlu0 %6795
    %6797 = vrot.lane.b32.xlu0 %v6644, 120
    %v6798 = vpop.permute.xlu0 %6797
    %6799 = vrot.lane.b32.xlu0 %v6645, 120
    %v6800 = vpop.permute.xlu0 %6799
    %6801 = vrot.lane.b32.xlu0 %v6646, 120
    %v6802 = vpop.permute.xlu0 %6801
    %6803 = vrot.lane.b32.xlu0 %v6647, 120
    %v6804 = vpop.permute.xlu0 %6803
    %6805 = vrot.lane.b32.xlu0 %v6648, 120
    %v6806 = vpop.permute.xlu0 %6805
    %6807 = vrot.lane.b32.xlu0 %v6649, 120
    %v6808 = vpop.permute.xlu0 %6807
    %6809 = vrot.lane.b32.xlu0 %v6650, 120
    %v6810 = vpop.permute.xlu0 %6809
    %6843 = vxpose.xlu0.b32.start [1/16] %v6748, 128
    %6844 = vxpose.xlu0.b32.cont [2/16] %v6750, 128
    %6845 = vxpose.xlu0.b32.cont [3/16] %v6752, 128
    %6846 = vxpose.xlu0.b32.cont [4/16] %v6754, 128
    %6847 = vxpose.xlu0.b32.cont [5/16] %v6756, 128
    %6848 = vxpose.xlu0.b32.cont [6/16] %v6758, 128
    %6849 = vxpose.xlu0.b32.cont [7/16] %v6760, 128
    %6850 = vxpose.xlu0.b32.cont [8/16] %v6762, 128
    %6851 = vxpose.xlu0.b32.cont [9/16] %v6764, 128
    %6852 = vxpose.xlu0.b32.cont [10/16] %v6766, 128
    %6853 = vxpose.xlu0.b32.cont [11/16] %v6768, 128
    %6854 = vxpose.xlu0.b32.cont [12/16] %v6770, 128
    %6855 = vxpose.xlu0.b32.cont [13/16] %v6772, 128
    %6856 = vxpose.xlu0.b32.cont [14/16] %v6774, 128
    %6857 = vxpose.xlu0.b32.cont [15/16] %v6776, 128
    %6858 = vxpose.xlu0.b32.end [16/16] %v6778, 128
    %v6859 = vpop.trf.xlu0
    %v6860 = vpop.trf.xlu0
    %v6861 = vpop.trf.xlu0
    %v6862 = vpop.trf.xlu0
    %v6863 = vpop.trf.xlu0
    %v6864 = vpop.trf.xlu0
    %v6865 = vpop.trf.xlu0
    %v6866 = vpop.trf.xlu0
    %v6867 = vpop.trf.xlu0
    %v6868 = vpop.trf.xlu0
    %v6869 = vpop.trf.xlu0
    %v6870 = vpop.trf.xlu0
    %v6871 = vpop.trf.xlu0
    %v6872 = vpop.trf.xlu0
    %v6873 = vpop.trf.xlu0
    %v6874 = vpop.trf.xlu0
    %6875 = vxpose.xlu0.b32.start [1/16] %v6780, 128
    %6876 = vxpose.xlu0.b32.cont [2/16] %v6782, 128
    %6877 = vxpose.xlu0.b32.cont [3/16] %v6784, 128
    %6878 = vxpose.xlu0.b32.cont [4/16] %v6786, 128
    %6879 = vxpose.xlu0.b32.cont [5/16] %v6788, 128
    %6880 = vxpose.xlu0.b32.cont [6/16] %v6790, 128
    %6881 = vxpose.xlu0.b32.cont [7/16] %v6792, 128
    %6882 = vxpose.xlu0.b32.cont [8/16] %v6794, 128
    %6883 = vxpose.xlu0.b32.cont [9/16] %v6796, 128
    %6884 = vxpose.xlu0.b32.cont [10/16] %v6798, 128
    %6885 = vxpose.xlu0.b32.cont [11/16] %v6800, 128
    %6886 = vxpose.xlu0.b32.cont [12/16] %v6802, 128
    %6887 = vxpose.xlu0.b32.cont [13/16] %v6804, 128
    %6888 = vxpose.xlu0.b32.cont [14/16] %v6806, 128
    %6889 = vxpose.xlu0.b32.cont [15/16] %v6808, 128
    %6890 = vxpose.xlu0.b32.end [16/16] %v6810, 128
    %v6891 = vpop.trf.xlu0
    %v6892 = vpop.trf.xlu0
    %v6893 = vpop.trf.xlu0
    %v6894 = vpop.trf.xlu0
    %v6895 = vpop.trf.xlu0
    %v6896 = vpop.trf.xlu0
    %v6897 = vpop.trf.xlu0
    %v6898 = vpop.trf.xlu0
    %v6899 = vpop.trf.xlu0
    %v6900 = vpop.trf.xlu0
    %v6901 = vpop.trf.xlu0
    %v6902 = vpop.trf.xlu0
    %v6903 = vpop.trf.xlu0
    %v6904 = vpop.trf.xlu0
    %v6905 = vpop.trf.xlu0
    %v6906 = vpop.trf.xlu0
    %6939 = vrot.lane.b32.xlu0 %v6651, 112
    %v6940 = vpop.permute.xlu0 %6939
    %6941 = vrot.lane.b32.xlu0 %v6652, 112
    %v6942 = vpop.permute.xlu0 %6941
    %6943 = vrot.lane.b32.xlu0 %v6653, 112
    %v6944 = vpop.permute.xlu0 %6943
    %6945 = vrot.lane.b32.xlu0 %v6654, 112
    %v6946 = vpop.permute.xlu0 %6945
    %6947 = vrot.lane.b32.xlu0 %v6655, 112
    %v6948 = vpop.permute.xlu0 %6947
    %6949 = vrot.lane.b32.xlu0 %v6656, 112
    %v6950 = vpop.permute.xlu0 %6949
    %6951 = vrot.lane.b32.xlu0 %v6657, 112
    %v6952 = vpop.permute.xlu0 %6951
    %6953 = vrot.lane.b32.xlu0 %v6658, 112
    %v6954 = vpop.permute.xlu0 %6953
    %6955 = vrot.lane.b32.xlu0 %v6659, 112
    %v6956 = vpop.permute.xlu0 %6955
    %6957 = vrot.lane.b32.xlu0 %v6660, 112
    %v6958 = vpop.permute.xlu0 %6957
    %6959 = vrot.lane.b32.xlu0 %v6661, 112
    %v6960 = vpop.permute.xlu0 %6959
    %6961 = vrot.lane.b32.xlu0 %v6662, 112
    %v6962 = vpop.permute.xlu0 %6961
    %6963 = vrot.lane.b32.xlu0 %v6663, 112
    %v6964 = vpop.permute.xlu0 %6963
    %6965 = vrot.lane.b32.xlu0 %v6664, 112
    %v6966 = vpop.permute.xlu0 %6965
    %6967 = vrot.lane.b32.xlu0 %v6665, 112
    %v6968 = vpop.permute.xlu0 %6967
    %6969 = vrot.lane.b32.xlu0 %v6666, 112
    %v6970 = vpop.permute.xlu0 %6969
    %6971 = vrot.lane.b32.xlu0 %v6667, 112
    %v6972 = vpop.permute.xlu0 %6971
    %6973 = vrot.lane.b32.xlu0 %v6668, 112
    %v6974 = vpop.permute.xlu0 %6973
    %6975 = vrot.lane.b32.xlu0 %v6669, 112
    %v6976 = vpop.permute.xlu0 %6975
    %6977 = vrot.lane.b32.xlu0 %v6670, 112
    %v6978 = vpop.permute.xlu0 %6977
    %6979 = vrot.lane.b32.xlu0 %v6671, 112
    %v6980 = vpop.permute.xlu0 %6979
    %6981 = vrot.lane.b32.xlu0 %v6672, 112
    %v6982 = vpop.permute.xlu0 %6981
    %6983 = vrot.lane.b32.xlu0 %v6673, 112
    %v6984 = vpop.permute.xlu0 %6983
    %6985 = vrot.lane.b32.xlu0 %v6674, 112
    %v6986 = vpop.permute.xlu0 %6985
    %6987 = vrot.lane.b32.xlu0 %v6675, 112
    %v6988 = vpop.permute.xlu0 %6987
    %6989 = vrot.lane.b32.xlu0 %v6676, 112
    %v6990 = vpop.permute.xlu0 %6989
    %6991 = vrot.lane.b32.xlu0 %v6677, 112
    %v6992 = vpop.permute.xlu0 %6991
    %6993 = vrot.lane.b32.xlu0 %v6678, 112
    %v6994 = vpop.permute.xlu0 %6993
    %6995 = vrot.lane.b32.xlu0 %v6679, 112
    %v6996 = vpop.permute.xlu0 %6995
    %6997 = vrot.lane.b32.xlu0 %v6680, 112
    %v6998 = vpop.permute.xlu0 %6997
    %6999 = vrot.lane.b32.xlu0 %v6681, 112
    %v7000 = vpop.permute.xlu0 %6999
    %7001 = vrot.lane.b32.xlu0 %v6682, 112
    %v7002 = vpop.permute.xlu0 %7001
    %7035 = vmatprep.subr.mxu0 0.0
    %7036 = vmatpush1.msra.mxu0 %v6940
    %7037 = vmatprep.subr.mxu0 0.0
    %7038 = vmatpush1.msra.mxu0 %v6942
    %7039 = vmatprep.subr.mxu0 0.0
    %7040 = vmatpush1.msra.mxu0 %v6944
    %7041 = vmatprep.subr.mxu0 0.0
    %7042 = vmatpush1.msra.mxu0 %v6946
    %7043 = vmatprep.subr.mxu0 0.0
    %7044 = vmatpush1.msra.mxu0 %v6948
    %7045 = vmatprep.subr.mxu0 0.0
    %7046 = vmatpush1.msra.mxu0 %v6950
    %7047 = vmatprep.subr.mxu0 0.0
    %7048 = vmatpush1.msra.mxu0 %v6952
    %7049 = vmatprep.subr.mxu0 0.0
    %7050 = vmatpush1.msra.mxu0 %v6954
    %7051 = vmatprep.subr.mxu0 0.0
    %7052 = vmatpush1.msra.mxu0 %v6956
    %7053 = vmatprep.subr.mxu0 0.0
    %7054 = vmatpush1.msra.mxu0 %v6958
    %7055 = vmatprep.subr.mxu0 0.0
    %7056 = vmatpush1.msra.mxu0 %v6960
    %7057 = vmatprep.subr.mxu0 0.0
    %7058 = vmatpush1.msra.mxu0 %v6962
    %7059 = vmatprep.subr.mxu0 0.0
    %7060 = vmatpush1.msra.mxu0 %v6964
    %7061 = vmatprep.subr.mxu0 0.0
    %7062 = vmatpush1.msra.mxu0 %v6966
    %7063 = vmatprep.subr.mxu0 0.0
    %7064 = vmatpush1.msra.mxu0 %v6968
    %7065 = vmatprep.subr.mxu0 0.0
    %7066 = vmatpush1.msra.mxu0 %v6970
    %7067 = vmatprep.subr.mxu0 0.0
    %7068 = vmatpush1.msra.mxu0 %v6972
    %7069 = vmatprep.subr.mxu0 0.0
    %7070 = vmatpush1.msra.mxu0 %v6974
    %7071 = vmatprep.subr.mxu0 0.0
    %7072 = vmatpush1.msra.mxu0 %v6976
    %7073 = vmatprep.subr.mxu0 0.0
    %7074 = vmatpush1.msra.mxu0 %v6978
    %7075 = vmatprep.subr.mxu0 0.0
    %7076 = vmatpush1.msra.mxu0 %v6980
    %7077 = vmatprep.subr.mxu0 0.0
    %7078 = vmatpush1.msra.mxu0 %v6982
    %7079 = vmatprep.subr.mxu0 0.0
    %7080 = vmatpush1.msra.mxu0 %v6984
    %7081 = vmatprep.subr.mxu0 0.0
    %7082 = vmatpush1.msra.mxu0 %v6986
    %7083 = vmatprep.subr.mxu0 0.0
    %7084 = vmatpush1.msra.mxu0 %v6988
    %7085 = vmatprep.subr.mxu0 0.0
    %7086 = vmatpush1.msra.mxu0 %v6990
    %7087 = vmatprep.subr.mxu0 0.0
    %7088 = vmatpush1.msra.mxu0 %v6992
    %7089 = vmatprep.subr.mxu0 0.0
    %7090 = vmatpush1.msra.mxu0 %v6994
    %7091 = vmatprep.subr.mxu0 0.0
    %7092 = vmatpush1.msra.mxu0 %v6996
    %7093 = vmatprep.subr.mxu0 0.0
    %7094 = vmatpush1.msra.mxu0 %v6998
    %7095 = vmatprep.subr.mxu0 0.0
    %7096 = vmatpush1.msra.mxu0 %v7000
    %7097 = vmatprep.subr.mxu0 0.0
    %7098 = vmatpush1.msra.mxu0 %v7002
    %7099 = vmatprep.mubr.f32.mxu0 %v6891
    %7100 = vmatmul.mubr.f32.gmra.mrb[0].mxu0 %v6859
    %v7101 = vpop.f32.mrb[0].mxu0
    %v7102 = vadd.f32 0.0, %v7101
    %v7103 = vpop.f32.mrb[0].mxu0
    %7104 = vdwg.mxu0
    %7105 = vxpose.xlu0.b32.start [1/16] %v6619, 128
    %7106 = vxpose.xlu0.b32.cont [2/16] %v6620, 128
    %7107 = vxpose.xlu0.b32.cont [3/16] %v6621, 128
    %7108 = vxpose.xlu0.b32.cont [4/16] %v6622, 128
    %7109 = vxpose.xlu0.b32.cont [5/16] %v6623, 128
    %7110 = vxpose.xlu0.b32.cont [6/16] %v6624, 128
    %7111 = vxpose.xlu0.b32.cont [7/16] %v6625, 128
    %7112 = vxpose.xlu0.b32.cont [8/16] %v6626, 128
    %7113 = vxpose.xlu0.b32.cont [9/16] %v6627, 128
    %7114 = vxpose.xlu0.b32.cont [10/16] %v6628, 128
    %7115 = vxpose.xlu0.b32.cont [11/16] %v6629, 128
    %7116 = vxpose.xlu0.b32.cont [12/16] %v6630, 128
    %7117 = vxpose.xlu0.b32.cont [13/16] %v6631, 128
    %7118 = vxpose.xlu0.b32.cont [14/16] %v6632, 128
    %7119 = vxpose.xlu0.b32.cont [15/16] %v6633, 128
    %7120 = vxpose.xlu0.b32.end [16/16] %v6634, 128
    %v7121 = vpop.trf.xlu0
    %v7122 = vpop.trf.xlu0
    %v7123 = vpop.trf.xlu0
    %v7124 = vpop.trf.xlu0
    %v7125 = vpop.trf.xlu0
    %v7126 = vpop.trf.xlu0
    %v7127 = vpop.trf.xlu0
    %v7128 = vpop.trf.xlu0
    %v7129 = vpop.trf.xlu0
    %v7130 = vpop.trf.xlu0
    %v7131 = vpop.trf.xlu0
    %v7132 = vpop.trf.xlu0
    %v7133 = vpop.trf.xlu0
    %v7134 = vpop.trf.xlu0
    %v7135 = vpop.trf.xlu0
    %v7136 = vpop.trf.xlu0
    %7137 = vxpose.xlu0.b32.start [1/16] %v6635, 128
    %7138 = vxpose.xlu0.b32.cont [2/16] %v6636, 128
    %7139 = vxpose.xlu0.b32.cont [3/16] %v6637, 128
    %7140 = vxpose.xlu0.b32.cont [4/16] %v6638, 128
    %7141 = vxpose.xlu0.b32.cont [5/16] %v6639, 128
    %7142 = vxpose.xlu0.b32.cont [6/16] %v6640, 128
    %7143 = vxpose.xlu0.b32.cont [7/16] %v6641, 128
    %7144 = vxpose.xlu0.b32.cont [8/16] %v6642, 128
    %7145 = vxpose.xlu0.b32.cont [9/16] %v6643, 128
    %7146 = vxpose.xlu0.b32.cont [10/16] %v6644, 128
    %7147 = vxpose.xlu0.b32.cont [11/16] %v6645, 128
    %7148 = vxpose.xlu0.b32.cont [12/16] %v6646, 128
    %7149 = vxpose.xlu0.b32.cont [13/16] %v6647, 128
    %7150 = vxpose.xlu0.b32.cont [14/16] %v6648, 128
    %7151 = vxpose.xlu0.b32.cont [15/16] %v6649, 128
    %7152 = vxpose.xlu0.b32.end [16/16] %v6650, 128
    %v7153 = vpop.trf.xlu0
    %v7154 = vpop.trf.xlu0
    %v7155 = vpop.trf.xlu0
    %v7156 = vpop.trf.xlu0
    %v7157 = vpop.trf.xlu0
    %v7158 = vpop.trf.xlu0
    %v7159 = vpop.trf.xlu0
    %v7160 = vpop.trf.xlu0
    %v7161 = vpop.trf.xlu0
    %v7162 = vpop.trf.xlu0
    %v7163 = vpop.trf.xlu0
    %v7164 = vpop.trf.xlu0
    %v7165 = vpop.trf.xlu0
    %v7166 = vpop.trf.xlu0
    %v7167 = vpop.trf.xlu0
    %v7168 = vpop.trf.xlu0
    %7169 = vmatprep.subr.mxu0 0.0
    %7170 = vmatpush1.msra.mxu0 %v6651
    %7171 = vmatprep.subr.mxu0 0.0
    %7172 = vmatpush1.msra.mxu0 %v6652
    %7173 = vmatprep.subr.mxu0 0.0
    %7174 = vmatpush1.msra.mxu0 %v6653
    %7175 = vmatprep.subr.mxu0 0.0
    %7176 = vmatpush1.msra.mxu0 %v6654
    %7177 = vmatprep.subr.mxu0 0.0
    %7178 = vmatpush1.msra.mxu0 %v6655
    %7179 = vmatprep.subr.mxu0 0.0
    %7180 = vmatpush1.msra.mxu0 %v6656
    %7181 = vmatprep.subr.mxu0 0.0
    %7182 = vmatpush1.msra.mxu0 %v6657
    %7183 = vmatprep.subr.mxu0 0.0
    %7184 = vmatpush1.msra.mxu0 %v6658
    %7185 = vmatprep.subr.mxu0 0.0
    %7186 = vmatpush1.msra.mxu0 %v6659
    %7187 = vmatprep.subr.mxu0 0.0
    %7188 = vmatpush1.msra.mxu0 %v6660
    %7189 = vmatprep.subr.mxu0 0.0
    %7190 = vmatpush1.msra.mxu0 %v6661
    %7191 = vmatprep.subr.mxu0 0.0
    %7192 = vmatpush1.msra.mxu0 %v6662
    %7193 = vmatprep.subr.mxu0 0.0
    %7194 = vmatpush1.msra.mxu0 %v6663
    %7195 = vmatprep.subr.mxu0 0.0
    %7196 = vmatpush1.msra.mxu0 %v6664
    %7197 = vmatprep.subr.mxu0 0.0
    %7198 = vmatpush1.msra.mxu0 %v6665
    %7199 = vmatprep.subr.mxu0 0.0
    %7200 = vmatpush1.msra.mxu0 %v6666
    %7201 = vmatprep.subr.mxu0 0.0
    %7202 = vmatpush1.msra.mxu0 %v6667
    %7203 = vmatprep.subr.mxu0 0.0
    %7204 = vmatpush1.msra.mxu0 %v6668
    %7205 = vmatprep.subr.mxu0 0.0
    %7206 = vmatpush1.msra.mxu0 %v6669
    %7207 = vmatprep.subr.mxu0 0.0
    %7208 = vmatpush1.msra.mxu0 %v6670
    %7209 = vmatprep.subr.mxu0 0.0
    %7210 = vmatpush1.msra.mxu0 %v6671
    %7211 = vmatprep.subr.mxu0 0.0
    %7212 = vmatpush1.msra.mxu0 %v6672
    %7213 = vmatprep.subr.mxu0 0.0
    %7214 = vmatpush1.msra.mxu0 %v6673
    %7215 = vmatprep.subr.mxu0 0.0
    %7216 = vmatpush1.msra.mxu0 %v6674
    %7217 = vmatprep.subr.mxu0 0.0
    %7218 = vmatpush1.msra.mxu0 %v6675
    %7219 = vmatprep.subr.mxu0 0.0
    %7220 = vmatpush1.msra.mxu0 %v6676
    %7221 = vmatprep.subr.mxu0 0.0
    %7222 = vmatpush1.msra.mxu0 %v6677
    %7223 = vmatprep.subr.mxu0 0.0
    %7224 = vmatpush1.msra.mxu0 %v6678
    %7225 = vmatprep.subr.mxu0 0.0
    %7226 = vmatpush1.msra.mxu0 %v6679
    %7227 = vmatprep.subr.mxu0 0.0
    %7228 = vmatpush1.msra.mxu0 %v6680
    %7229 = vmatprep.subr.mxu0 0.0
    %7230 = vmatpush1.msra.mxu0 %v6681
    %7231 = vmatprep.subr.mxu0 0.0
    %7232 = vmatpush1.msra.mxu0 %v6682
    %7233 = vmatprep.mubr.f32.mxu0 %v7153
    %7234 = vmatmul.mubr.f32.gmra.mrb[0].mxu0 %v7121
    %v7235 = vpop.f32.mrb[0].mxu0
    %v7236 = vadd.f32 %v7102, %v7235
    %v7237 = vpop.f32.mrb[0].mxu0
    %7238 = vdwg.mxu0
    %v7239 = vadd.f32 %v6683, %v6748
    %v7240 = vadd.f32 %v6684, %v6750
    %v7241 = vadd.f32 %v6685, %v6752
    %v7242 = vadd.f32 %v6686, %v6754
    %v7243 = vadd.f32 %v6687, %v6756
    %v7244 = vadd.f32 %v6688, %v6758
    %v7245 = vadd.f32 %v6689, %v6760
    %v7246 = vadd.f32 %v6690, %v6762
    %v7247 = vadd.f32 %v6691, %v6764
    %v7248 = vadd.f32 %v6692, %v6766
    %v7249 = vadd.f32 %v6693, %v6768
    %v7250 = vadd.f32 %v6694, %v6770
    %v7251 = vadd.f32 %v6695, %v6772
    %v7252 = vadd.f32 %v6696, %v6774
    %v7253 = vadd.f32 %v6697, %v6776
    %v7254 = vadd.f32 %v6698, %v6778
    %v7255 = vadd.f32 %v6699, %v6780
    %v7256 = vadd.f32 %v6700, %v6782
    %v7257 = vadd.f32 %v6701, %v6784
    %v7258 = vadd.f32 %v6702, %v6786
    %v7259 = vadd.f32 %v6703, %v6788
    %v7260 = vadd.f32 %v6704, %v6790
    %v7261 = vadd.f32 %v6705, %v6792
    %v7262 = vadd.f32 %v6706, %v6794
    %v7263 = vadd.f32 %v6707, %v6796
    %v7264 = vadd.f32 %v6708, %v6798
    %v7265 = vadd.f32 %v6709, %v6800
    %v7266 = vadd.f32 %v6710, %v6802
    %v7267 = vadd.f32 %v6711, %v6804
    %v7268 = vadd.f32 %v6712, %v6806
    %v7269 = vadd.f32 %v6713, %v6808
    %v7270 = vadd.f32 %v6714, %v6810
    %7271 = vrot.lane.b32.xlu0 %v6619, 112
    %v7272 = vpop.permute.xlu0 %7271
    %7273 = vrot.lane.b32.xlu0 %v6620, 112
    %v7274 = vpop.permute.xlu0 %7273
    %7275 = vrot.lane.b32.xlu0 %v6621, 112
    %v7276 = vpop.permute.xlu0 %7275
    %7277 = vrot.lane.b32.xlu0 %v6622, 112
    %v7278 = vpop.permute.xlu0 %7277
    %7279 = vrot.lane.b32.xlu0 %v6623, 112
    %v7280 = vpop.permute.xlu0 %7279
    %7281 = vrot.lane.b32.xlu0 %v6624, 112
    %v7282 = vpop.permute.xlu0 %7281
    %7283 = vrot.lane.b32.xlu0 %v6625, 112
    %v7284 = vpop.permute.xlu0 %7283
    %7285 = vrot.lane.b32.xlu0 %v6626, 112
    %v7286 = vpop.permute.xlu0 %7285
    %7287 = vrot.lane.b32.xlu0 %v6627, 112
    %v7288 = vpop.permute.xlu0 %7287
    %7289 = vrot.lane.b32.xlu0 %v6628, 112
    %v7290 = vpop.permute.xlu0 %7289
    %7291 = vrot.lane.b32.xlu0 %v6629, 112
    %v7292 = vpop.permute.xlu0 %7291
    %7293 = vrot.lane.b32.xlu0 %v6630, 112
    %v7294 = vpop.permute.xlu0 %7293
    %7295 = vrot.lane.b32.xlu0 %v6631, 112
    %v7296 = vpop.permute.xlu0 %7295
    %7297 = vrot.lane.b32.xlu0 %v6632, 112
    %v7298 = vpop.permute.xlu0 %7297
    %7299 = vrot.lane.b32.xlu0 %v6633, 112
    %v7300 = vpop.permute.xlu0 %7299
    %7301 = vrot.lane.b32.xlu0 %v6634, 112
    %v7302 = vpop.permute.xlu0 %7301
    %7303 = vrot.lane.b32.xlu0 %v6635, 112
    %v7304 = vpop.permute.xlu0 %7303
    %7305 = vrot.lane.b32.xlu0 %v6636, 112
    %v7306 = vpop.permute.xlu0 %7305
    %7307 = vrot.lane.b32.xlu0 %v6637, 112
    %v7308 = vpop.permute.xlu0 %7307
    %7309 = vrot.lane.b32.xlu0 %v6638, 112
    %v7310 = vpop.permute.xlu0 %7309
    %7311 = vrot.lane.b32.xlu0 %v6639, 112
    %v7312 = vpop.permute.xlu0 %7311
    %7313 = vrot.lane.b32.xlu0 %v6640, 112
    %v7314 = vpop.permute.xlu0 %7313
    %7315 = vrot.lane.b32.xlu0 %v6641, 112
    %v7316 = vpop.permute.xlu0 %7315
    %7317 = vrot.lane.b32.xlu0 %v6642, 112
    %v7318 = vpop.permute.xlu0 %7317
    %7319 = vrot.lane.b32.xlu0 %v6643, 112
    %v7320 = vpop.permute.xlu0 %7319
    %7321 = vrot.lane.b32.xlu0 %v6644, 112
    %v7322 = vpop.permute.xlu0 %7321
    %7323 = vrot.lane.b32.xlu0 %v6645, 112
    %v7324 = vpop.permute.xlu0 %7323
    %7325 = vrot.lane.b32.xlu0 %v6646, 112
    %v7326 = vpop.permute.xlu0 %7325
    %7327 = vrot.lane.b32.xlu0 %v6647, 112
    %v7328 = vpop.permute.xlu0 %7327
    %7329 = vrot.lane.b32.xlu0 %v6648, 112
    %v7330 = vpop.permute.xlu0 %7329
    %7331 = vrot.lane.b32.xlu0 %v6649, 112
    %v7332 = vpop.permute.xlu0 %7331
    %7333 = vrot.lane.b32.xlu0 %v6650, 112
    %v7334 = vpop.permute.xlu0 %7333
    %7367 = vxpose.xlu0.b32.start [1/16] %v7272, 128
    %7368 = vxpose.xlu0.b32.cont [2/16] %v7274, 128
    %7369 = vxpose.xlu0.b32.cont [3/16] %v7276, 128
    %7370 = vxpose.xlu0.b32.cont [4/16] %v7278, 128
    %7371 = vxpose.xlu0.b32.cont [5/16] %v7280, 128
    %7372 = vxpose.xlu0.b32.cont [6/16] %v7282, 128
    %7373 = vxpose.xlu0.b32.cont [7/16] %v7284, 128
    %7374 = vxpose.xlu0.b32.cont [8/16] %v7286, 128
    %7375 = vxpose.xlu0.b32.cont [9/16] %v7288, 128
    %7376 = vxpose.xlu0.b32.cont [10/16] %v7290, 128
    %7377 = vxpose.xlu0.b32.cont [11/16] %v7292, 128
    %7378 = vxpose.xlu0.b32.cont [12/16] %v7294, 128
    %7379 = vxpose.xlu0.b32.cont [13/16] %v7296, 128
    %7380 = vxpose.xlu0.b32.cont [14/16] %v7298, 128
    %7381 = vxpose.xlu0.b32.cont [15/16] %v7300, 128
    %7382 = vxpose.xlu0.b32.end [16/16] %v7302, 128
    %v7383 = vpop.trf.xlu0
    %v7384 = vpop.trf.xlu0
    %v7385 = vpop.trf.xlu0
    %v7386 = vpop.trf.xlu0
    %v7387 = vpop.trf.xlu0
    %v7388 = vpop.trf.xlu0
    %v7389 = vpop.trf.xlu0
    %v7390 = vpop.trf.xlu0
    %v7391 = vpop.trf.xlu0
    %v7392 = vpop.trf.xlu0
    %v7393 = vpop.trf.xlu0
    %v7394 = vpop.trf.xlu0
    %v7395 = vpop.trf.xlu0
    %v7396 = vpop.trf.xlu0
    %v7397 = vpop.trf.xlu0
    %v7398 = vpop.trf.xlu0
    %7399 = vxpose.xlu0.b32.start [1/16] %v7304, 128
    %7400 = vxpose.xlu0.b32.cont [2/16] %v7306, 128
    %7401 = vxpose.xlu0.b32.cont [3/16] %v7308, 128
    %7402 = vxpose.xlu0.b32.cont [4/16] %v7310, 128
    %7403 = vxpose.xlu0.b32.cont [5/16] %v7312, 128
    %7404 = vxpose.xlu0.b32.cont [6/16] %v7314, 128
    %7405 = vxpose.xlu0.b32.cont [7/16] %v7316, 128
    %7406 = vxpose.xlu0.b32.cont [8/16] %v7318, 128
    %7407 = vxpose.xlu0.b32.cont [9/16] %v7320, 128
    %7408 = vxpose.xlu0.b32.cont [10/16] %v7322, 128
    %7409 = vxpose.xlu0.b32.cont [11/16] %v7324, 128
    %7410 = vxpose.xlu0.b32.cont [12/16] %v7326, 128
    %7411 = vxpose.xlu0.b32.cont [13/16] %v7328, 128
    %7412 = vxpose.xlu0.b32.cont [14/16] %v7330, 128
    %7413 = vxpose.xlu0.b32.cont [15/16] %v7332, 128
    %7414 = vxpose.xlu0.b32.end [16/16] %v7334, 128
    %v7415 = vpop.trf.xlu0
    %v7416 = vpop.trf.xlu0
    %v7417 = vpop.trf.xlu0
    %v7418 = vpop.trf.xlu0
    %v7419 = vpop.trf.xlu0
    %v7420 = vpop.trf.xlu0
    %v7421 = vpop.trf.xlu0
    %v7422 = vpop.trf.xlu0
    %v7423 = vpop.trf.xlu0
    %v7424 = vpop.trf.xlu0
    %v7425 = vpop.trf.xlu0
    %v7426 = vpop.trf.xlu0
    %v7427 = vpop.trf.xlu0
    %v7428 = vpop.trf.xlu0
    %v7429 = vpop.trf.xlu0
    %v7430 = vpop.trf.xlu0
    %7431 = vrot.lane.b32.xlu0 %v6651, 96
    %v7432 = vpop.permute.xlu0 %7431
    %7433 = vrot.lane.b32.xlu0 %v6652, 96
    %v7434 = vpop.permute.xlu0 %7433
    %7435 = vrot.lane.b32.xlu0 %v6653, 96
    %v7436 = vpop.permute.xlu0 %7435
    %7437 = vrot.lane.b32.xlu0 %v6654, 96
    %v7438 = vpop.permute.xlu0 %7437
    %7439 = vrot.lane.b32.xlu0 %v6655, 96
    %v7440 = vpop.permute.xlu0 %7439
    %7441 = vrot.lane.b32.xlu0 %v6656, 96
    %v7442 = vpop.permute.xlu0 %7441
    %7443 = vrot.lane.b32.xlu0 %v6657, 96
    %v7444 = vpop.permute.xlu0 %7443
    %7445 = vrot.lane.b32.xlu0 %v6658, 96
    %v7446 = vpop.permute.xlu0 %7445
    %7447 = vrot.lane.b32.xlu0 %v6659, 96
    %v7448 = vpop.permute.xlu0 %7447
    %7449 = vrot.lane.b32.xlu0 %v6660, 96
    %v7450 = vpop.permute.xlu0 %7449
    %7451 = vrot.lane.b32.xlu0 %v6661, 96
    %v7452 = vpop.permute.xlu0 %7451
    %7453 = vrot.lane.b32.xlu0 %v6662, 96
    %v7454 = vpop.permute.xlu0 %7453
    %7455 = vrot.lane.b32.xlu0 %v6663, 96
    %v7456 = vpop.permute.xlu0 %7455
    %7457 = vrot.lane.b32.xlu0 %v6664, 96
    %v7458 = vpop.permute.xlu0 %7457
    %7459 = vrot.lane.b32.xlu0 %v6665, 96
    %v7460 = vpop.permute.xlu0 %7459
    %7461 = vrot.lane.b32.xlu0 %v6666, 96
    %v7462 = vpop.permute.xlu0 %7461
    %7463 = vrot.lane.b32.xlu0 %v6667, 96
    %v7464 = vpop.permute.xlu0 %7463
    %7465 = vrot.lane.b32.xlu0 %v6668, 96
    %v7466 = vpop.permute.xlu0 %7465
    %7467 = vrot.lane.b32.xlu0 %v6669, 96
    %v7468 = vpop.permute.xlu0 %7467
    %7469 = vrot.lane.b32.xlu0 %v6670, 96
    %v7470 = vpop.permute.xlu0 %7469
    %7471 = vrot.lane.b32.xlu0 %v6671, 96
    %v7472 = vpop.permute.xlu0 %7471
    %7473 = vrot.lane.b32.xlu0 %v6672, 96
    %v7474 = vpop.permute.xlu0 %7473
    %7475 = vrot.lane.b32.xlu0 %v6673, 96
    %v7476 = vpop.permute.xlu0 %7475
    %7477 = vrot.lane.b32.xlu0 %v6674, 96
    %v7478 = vpop.permute.xlu0 %7477
    %7479 = vrot.lane.b32.xlu0 %v6675, 96
    %v7480 = vpop.permute.xlu0 %7479
    %7481 = vrot.lane.b32.xlu0 %v6676, 96
    %v7482 = vpop.permute.xlu0 %7481
    %7483 = vrot.lane.b32.xlu0 %v6677, 96
    %v7484 = vpop.permute.xlu0 %7483
    %7485 = vrot.lane.b32.xlu0 %v6678, 96
    %v7486 = vpop.permute.xlu0 %7485
    %7487 = vrot.lane.b32.xlu0 %v6679, 96
    %v7488 = vpop.permute.xlu0 %7487
    %7489 = vrot.lane.b32.xlu0 %v6680, 96
    %v7490 = vpop.permute.xlu0 %7489
    %7491 = vrot.lane.b32.xlu0 %v6681, 96
    %v7492 = vpop.permute.xlu0 %7491
    %7493 = vrot.lane.b32.xlu0 %v6682, 96
    %v7494 = vpop.permute.xlu0 %7493
    %7527 = vmatprep.subr.mxu0 0.0
    %7528 = vmatpush1.msra.mxu0 %v7432
    %7529 = vmatprep.subr.mxu0 0.0
    %7530 = vmatpush1.msra.mxu0 %v7434
    %7531 = vmatprep.subr.mxu0 0.0
    %7532 = vmatpush1.msra.mxu0 %v7436
    %7533 = vmatprep.subr.mxu0 0.0
    %7534 = vmatpush1.msra.mxu0 %v7438
    %7535 = vmatprep.subr.mxu0 0.0
    %7536 = vmatpush1.msra.mxu0 %v7440
    %7537 = vmatprep.subr.mxu0 0.0
    %7538 = vmatpush1.msra.mxu0 %v7442
    %7539 = vmatprep.subr.mxu0 0.0
    %7540 = vmatpush1.msra.mxu0 %v7444
    %7541 = vmatprep.subr.mxu0 0.0
    %7542 = vmatpush1.msra.mxu0 %v7446
    %7543 = vmatprep.subr.mxu0 0.0
    %7544 = vmatpush1.msra.mxu0 %v7448
    %7545 = vmatprep.subr.mxu0 0.0
    %7546 = vmatpush1.msra.mxu0 %v7450
    %7547 = vmatprep.subr.mxu0 0.0
    %7548 = vmatpush1.msra.mxu0 %v7452
    %7549 = vmatprep.subr.mxu0 0.0
    %7550 = vmatpush1.msra.mxu0 %v7454
    %7551 = vmatprep.subr.mxu0 0.0
    %7552 = vmatpush1.msra.mxu0 %v7456
    %7553 = vmatprep.subr.mxu0 0.0
    %7554 = vmatpush1.msra.mxu0 %v7458
    %7555 = vmatprep.subr.mxu0 0.0
    %7556 = vmatpush1.msra.mxu0 %v7460
    %7557 = vmatprep.subr.mxu0 0.0
    %7558 = vmatpush1.msra.mxu0 %v7462
    %7559 = vmatprep.subr.mxu0 0.0
    %7560 = vmatpush1.msra.mxu0 %v7464
    %7561 = vmatprep.subr.mxu0 0.0
    %7562 = vmatpush1.msra.mxu0 %v7466
    %7563 = vmatprep.subr.mxu0 0.0
    %7564 = vmatpush1.msra.mxu0 %v7468
    %7565 = vmatprep.subr.mxu0 0.0
    %7566 = vmatpush1.msra.mxu0 %v7470
    %7567 = vmatprep.subr.mxu0 0.0
    %7568 = vmatpush1.msra.mxu0 %v7472
    %7569 = vmatprep.subr.mxu0 0.0
    %7570 = vmatpush1.msra.mxu0 %v7474
    %7571 = vmatprep.subr.mxu0 0.0
    %7572 = vmatpush1.msra.mxu0 %v7476
    %7573 = vmatprep.subr.mxu0 0.0
    %7574 = vmatpush1.msra.mxu0 %v7478
    %7575 = vmatprep.subr.mxu0 0.0
    %7576 = vmatpush1.msra.mxu0 %v7480
    %7577 = vmatprep.subr.mxu0 0.0
    %7578 = vmatpush1.msra.mxu0 %v7482
    %7579 = vmatprep.subr.mxu0 0.0
    %7580 = vmatpush1.msra.mxu0 %v7484
    %7581 = vmatprep.subr.mxu0 0.0
    %7582 = vmatpush1.msra.mxu0 %v7486
    %7583 = vmatprep.subr.mxu0 0.0
    %7584 = vmatpush1.msra.mxu0 %v7488
    %7585 = vmatprep.subr.mxu0 0.0
    %7586 = vmatpush1.msra.mxu0 %v7490
    %7587 = vmatprep.subr.mxu0 0.0
    %7588 = vmatpush1.msra.mxu0 %v7492
    %7589 = vmatprep.subr.mxu0 0.0
    %7590 = vmatpush1.msra.mxu0 %v7494
    %7591 = vmatprep.mubr.f32.mxu0 %v7415
    %7592 = vmatmul.mubr.f32.gmra.mrb[0].mxu0 %v7383
    %v7593 = vpop.f32.mrb[0].mxu0
    %v7594 = vadd.f32 0.0, %v7593
    %v7595 = vpop.f32.mrb[0].mxu0
    %7596 = vdwg.mxu0
    %v7597 = vadd.f32 %v7236, %v7594
    %v7598 = vadd.f32 %v7239, %v7272
    %v7599 = vadd.f32 %v7240, %v7274
    %v7600 = vadd.f32 %v7241, %v7276
    %v7601 = vadd.f32 %v7242, %v7278
    %v7602 = vadd.f32 %v7243, %v7280
    %v7603 = vadd.f32 %v7244, %v7282
    %v7604 = vadd.f32 %v7245, %v7284
    %v7605 = vadd.f32 %v7246, %v7286
    %v7606 = vadd.f32 %v7247, %v7288
    %v7607 = vadd.f32 %v7248, %v7290
    %v7608 = vadd.f32 %v7249, %v7292
    %v7609 = vadd.f32 %v7250, %v7294
    %v7610 = vadd.f32 %v7251, %v7296
    %v7611 = vadd.f32 %v7252, %v7298
    %v7612 = vadd.f32 %v7253, %v7300
    %v7613 = vadd.f32 %v7254, %v7302
    %v7614 = vadd.f32 %v7255, %v7304
    %v7615 = vadd.f32 %v7256, %v7306
    %v7616 = vadd.f32 %v7257, %v7308
    %v7617 = vadd.f32 %v7258, %v7310
    %v7618 = vadd.f32 %v7259, %v7312
    %v7619 = vadd.f32 %v7260, %v7314
    %v7620 = vadd.f32 %v7261, %v7316
    %v7621 = vadd.f32 %v7262, %v7318
    %v7622 = vadd.f32 %v7263, %v7320
    %v7623 = vadd.f32 %v7264, %v7322
    %v7624 = vadd.f32 %v7265, %v7324
    %v7625 = vadd.f32 %v7266, %v7326
    %v7626 = vadd.f32 %v7267, %v7328
    %v7627 = vadd.f32 %v7268, %v7330
    %v7628 = vadd.f32 %v7269, %v7332
    %v7629 = vadd.f32 %v7270, %v7334
    %7630 = vrot.lane.b32.xlu0 %v6619, 104
    %v7631 = vpop.permute.xlu0 %7630
    %7632 = vrot.lane.b32.xlu0 %v6620, 104
    %v7633 = vpop.permute.xlu0 %7632
    %7634 = vrot.lane.b32.xlu0 %v6621, 104
    %v7635 = vpop.permute.xlu0 %7634
    %7636 = vrot.lane.b32.xlu0 %v6622, 104
    %v7637 = vpop.permute.xlu0 %7636
    %7638 = vrot.lane.b32.xlu0 %v6623, 104
    %v7639 = vpop.permute.xlu0 %7638
    %7640 = vrot.lane.b32.xlu0 %v6624, 104
    %v7641 = vpop.permute.xlu0 %7640
    %7642 = vrot.lane.b32.xlu0 %v6625, 104
    %v7643 = vpop.permute.xlu0 %7642
    %7644 = vrot.lane.b32.xlu0 %v6626, 104
    %v7645 = vpop.permute.xlu0 %7644
    %7646 = vrot.lane.b32.xlu0 %v6627, 104
    %v7647 = vpop.permute.xlu0 %7646
    %7648 = vrot.lane.b32.xlu0 %v6628, 104
    %v7649 = vpop.permute.xlu0 %7648
    %7650 = vrot.lane.b32.xlu0 %v6629, 104
    %v7651 = vpop.permute.xlu0 %7650
    %7652 = vrot.lane.b32.xlu0 %v6630, 104
    %v7653 = vpop.permute.xlu0 %7652
    %7654 = vrot.lane.b32.xlu0 %v6631, 104
    %v7655 = vpop.permute.xlu0 %7654
    %7656 = vrot.lane.b32.xlu0 %v6632, 104
    %v7657 = vpop.permute.xlu0 %7656
    %7658 = vrot.lane.b32.xlu0 %v6633, 104
    %v7659 = vpop.permute.xlu0 %7658
    %7660 = vrot.lane.b32.xlu0 %v6634, 104
    %v7661 = vpop.permute.xlu0 %7660
    %7662 = vrot.lane.b32.xlu0 %v6635, 104
    %v7663 = vpop.permute.xlu0 %7662
    %7664 = vrot.lane.b32.xlu0 %v6636, 104
    %v7665 = vpop.permute.xlu0 %7664
    %7666 = vrot.lane.b32.xlu0 %v6637, 104
    %v7667 = vpop.permute.xlu0 %7666
    %7668 = vrot.lane.b32.xlu0 %v6638, 104
    %v7669 = vpop.permute.xlu0 %7668
    %7670 = vrot.lane.b32.xlu0 %v6639, 104
    %v7671 = vpop.permute.xlu0 %7670
    %7672 = vrot.lane.b32.xlu0 %v6640, 104
    %v7673 = vpop.permute.xlu0 %7672
    %7674 = vrot.lane.b32.xlu0 %v6641, 104
    %v7675 = vpop.permute.xlu0 %7674
    %7676 = vrot.lane.b32.xlu0 %v6642, 104
    %v7677 = vpop.permute.xlu0 %7676
    %7678 = vrot.lane.b32.xlu0 %v6643, 104
    %v7679 = vpop.permute.xlu0 %7678
    %7680 = vrot.lane.b32.xlu0 %v6644, 104
    %v7681 = vpop.permute.xlu0 %7680
    %7682 = vrot.lane.b32.xlu0 %v6645, 104
    %v7683 = vpop.permute.xlu0 %7682
    %7684 = vrot.lane.b32.xlu0 %v6646, 104
    %v7685 = vpop.permute.xlu0 %7684
    %7686 = vrot.lane.b32.xlu0 %v6647, 104
    %v7687 = vpop.permute.xlu0 %7686
    %7688 = vrot.lane.b32.xlu0 %v6648, 104
    %v7689 = vpop.permute.xlu0 %7688
    %7690 = vrot.lane.b32.xlu0 %v6649, 104
    %v7691 = vpop.permute.xlu0 %7690
    %7692 = vrot.lane.b32.xlu0 %v6650, 104
    %v7693 = vpop.permute.xlu0 %7692
    %7726 = vxpose.xlu0.b32.start [1/16] %v7631, 128
    %7727 = vxpose.xlu0.b32.cont [2/16] %v7633, 128
    %7728 = vxpose.xlu0.b32.cont [3/16] %v7635, 128
    %7729 = vxpose.xlu0.b32.cont [4/16] %v7637, 128
    %7730 = vxpose.xlu0.b32.cont [5/16] %v7639, 128
    %7731 = vxpose.xlu0.b32.cont [6/16] %v7641, 128
    %7732 = vxpose.xlu0.b32.cont [7/16] %v7643, 128
    %7733 = vxpose.xlu0.b32.cont [8/16] %v7645, 128
    %7734 = vxpose.xlu0.b32.cont [9/16] %v7647, 128
    %7735 = vxpose.xlu0.b32.cont [10/16] %v7649, 128
    %7736 = vxpose.xlu0.b32.cont [11/16] %v7651, 128
    %7737 = vxpose.xlu0.b32.cont [12/16] %v7653, 128
    %7738 = vxpose.xlu0.b32.cont [13/16] %v7655, 128
    %7739 = vxpose.xlu0.b32.cont [14/16] %v7657, 128
    %7740 = vxpose.xlu0.b32.cont [15/16] %v7659, 128
    %7741 = vxpose.xlu0.b32.end [16/16] %v7661, 128
    %v7742 = vpop.trf.xlu0
    %v7743 = vpop.trf.xlu0
    %v7744 = vpop.trf.xlu0
    %v7745 = vpop.trf.xlu0
    %v7746 = vpop.trf.xlu0
    %v7747 = vpop.trf.xlu0
    %v7748 = vpop.trf.xlu0
    %v7749 = vpop.trf.xlu0
    %v7750 = vpop.trf.xlu0
    %v7751 = vpop.trf.xlu0
    %v7752 = vpop.trf.xlu0
    %v7753 = vpop.trf.xlu0
    %v7754 = vpop.trf.xlu0
    %v7755 = vpop.trf.xlu0
    %v7756 = vpop.trf.xlu0
    %v7757 = vpop.trf.xlu0
    %7758 = vxpose.xlu0.b32.start [1/16] %v7663, 128
    %7759 = vxpose.xlu0.b32.cont [2/16] %v7665, 128
    %7760 = vxpose.xlu0.b32.cont [3/16] %v7667, 128
    %7761 = vxpose.xlu0.b32.cont [4/16] %v7669, 128
    %7762 = vxpose.xlu0.b32.cont [5/16] %v7671, 128
    %7763 = vxpose.xlu0.b32.cont [6/16] %v7673, 128
    %7764 = vxpose.xlu0.b32.cont [7/16] %v7675, 128
    %7765 = vxpose.xlu0.b32.cont [8/16] %v7677, 128
    %7766 = vxpose.xlu0.b32.cont [9/16] %v7679, 128
    %7767 = vxpose.xlu0.b32.cont [10/16] %v7681, 128
    %7768 = vxpose.xlu0.b32.cont [11/16] %v7683, 128
    %7769 = vxpose.xlu0.b32.cont [12/16] %v7685, 128
    %7770 = vxpose.xlu0.b32.cont [13/16] %v7687, 128
    %7771 = vxpose.xlu0.b32.cont [14/16] %v7689, 128
    %7772 = vxpose.xlu0.b32.cont [15/16] %v7691, 128
    %7773 = vxpose.xlu0.b32.end [16/16] %v7693, 128
    %v7774 = vpop.trf.xlu0
    %v7775 = vpop.trf.xlu0
    %v7776 = vpop.trf.xlu0
    %v7777 = vpop.trf.xlu0
    %v7778 = vpop.trf.xlu0
    %v7779 = vpop.trf.xlu0
    %v7780 = vpop.trf.xlu0
    %v7781 = vpop.trf.xlu0
    %v7782 = vpop.trf.xlu0
    %v7783 = vpop.trf.xlu0
    %v7784 = vpop.trf.xlu0
    %v7785 = vpop.trf.xlu0
    %v7786 = vpop.trf.xlu0
    %v7787 = vpop.trf.xlu0
    %v7788 = vpop.trf.xlu0
    %v7789 = vpop.trf.xlu0
    %7790 = vrot.lane.b32.xlu0 %v6651, 80
    %v7791 = vpop.permute.xlu0 %7790
    %7792 = vrot.lane.b32.xlu0 %v6652, 80
    %v7793 = vpop.permute.xlu0 %7792
    %7794 = vrot.lane.b32.xlu0 %v6653, 80
    %v7795 = vpop.permute.xlu0 %7794
    %7796 = vrot.lane.b32.xlu0 %v6654, 80
    %v7797 = vpop.permute.xlu0 %7796
    %7798 = vrot.lane.b32.xlu0 %v6655, 80
    %v7799 = vpop.permute.xlu0 %7798
    %7800 = vrot.lane.b32.xlu0 %v6656, 80
    %v7801 = vpop.permute.xlu0 %7800
    %7802 = vrot.lane.b32.xlu0 %v6657, 80
    %v7803 = vpop.permute.xlu0 %7802
    %7804 = vrot.lane.b32.xlu0 %v6658, 80
    %v7805 = vpop.permute.xlu0 %7804
    %7806 = vrot.lane.b32.xlu0 %v6659, 80
    %v7807 = vpop.permute.xlu0 %7806
    %7808 = vrot.lane.b32.xlu0 %v6660, 80
    %v7809 = vpop.permute.xlu0 %7808
    %7810 = vrot.lane.b32.xlu0 %v6661, 80
    %v7811 = vpop.permute.xlu0 %7810
    %7812 = vrot.lane.b32.xlu0 %v6662, 80
    %v7813 = vpop.permute.xlu0 %7812
    %7814 = vrot.lane.b32.xlu0 %v6663, 80
    %v7815 = vpop.permute.xlu0 %7814
    %7816 = vrot.lane.b32.xlu0 %v6664, 80
    %v7817 = vpop.permute.xlu0 %7816
    %7818 = vrot.lane.b32.xlu0 %v6665, 80
    %v7819 = vpop.permute.xlu0 %7818
    %7820 = vrot.lane.b32.xlu0 %v6666, 80
    %v7821 = vpop.permute.xlu0 %7820
    %7822 = vrot.lane.b32.xlu0 %v6667, 80
    %v7823 = vpop.permute.xlu0 %7822
    %7824 = vrot.lane.b32.xlu0 %v6668, 80
    %v7825 = vpop.permute.xlu0 %7824
    %7826 = vrot.lane.b32.xlu0 %v6669, 80
    %v7827 = vpop.permute.xlu0 %7826
    %7828 = vrot.lane.b32.xlu0 %v6670, 80
    %v7829 = vpop.permute.xlu0 %7828
    %7830 = vrot.lane.b32.xlu0 %v6671, 80
    %v7831 = vpop.permute.xlu0 %7830
    %7832 = vrot.lane.b32.xlu0 %v6672, 80
    %v7833 = vpop.permute.xlu0 %7832
    %7834 = vrot.lane.b32.xlu0 %v6673, 80
    %v7835 = vpop.permute.xlu0 %7834
    %7836 = vrot.lane.b32.xlu0 %v6674, 80
    %v7837 = vpop.permute.xlu0 %7836
    %7838 = vrot.lane.b32.xlu0 %v6675, 80
    %v7839 = vpop.permute.xlu0 %7838
    %7840 = vrot.lane.b32.xlu0 %v6676, 80
    %v7841 = vpop.permute.xlu0 %7840
    %7842 = vrot.lane.b32.xlu0 %v6677, 80
    %v7843 = vpop.permute.xlu0 %7842
    %7844 = vrot.lane.b32.xlu0 %v6678, 80
    %v7845 = vpop.permute.xlu0 %7844
    %7846 = vrot.lane.b32.xlu0 %v6679, 80
    %v7847 = vpop.permute.xlu0 %7846
    %7848 = vrot.lane.b32.xlu0 %v6680, 80
    %v7849 = vpop.permute.xlu0 %7848
    %7850 = vrot.lane.b32.xlu0 %v6681, 80
    %v7851 = vpop.permute.xlu0 %7850
    %7852 = vrot.lane.b32.xlu0 %v6682, 80
    %v7853 = vpop.permute.xlu0 %7852
    %7886 = vmatprep.subr.mxu0 0.0
    %7887 = vmatpush1.msra.mxu0 %v7791
    %7888 = vmatprep.subr.mxu0 0.0
    %7889 = vmatpush1.msra.mxu0 %v7793
    %7890 = vmatprep.subr.mxu0 0.0
    %7891 = vmatpush1.msra.mxu0 %v7795
    %7892 = vmatprep.subr.mxu0 0.0
    %7893 = vmatpush1.msra.mxu0 %v7797
    %7894 = vmatprep.subr.mxu0 0.0
    %7895 = vmatpush1.msra.mxu0 %v7799
    %7896 = vmatprep.subr.mxu0 0.0
    %7897 = vmatpush1.msra.mxu0 %v7801
    %7898 = vmatprep.subr.mxu0 0.0
    %7899 = vmatpush1.msra.mxu0 %v7803
    %7900 = vmatprep.subr.mxu0 0.0
    %7901 = vmatpush1.msra.mxu0 %v7805
    %7902 = vmatprep.subr.mxu0 0.0
    %7903 = vmatpush1.msra.mxu0 %v7807
    %7904 = vmatprep.subr.mxu0 0.0
    %7905 = vmatpush1.msra.mxu0 %v7809
    %7906 = vmatprep.subr.mxu0 0.0
    %7907 = vmatpush1.msra.mxu0 %v7811
    %7908 = vmatprep.subr.mxu0 0.0
    %7909 = vmatpush1.msra.mxu0 %v7813
    %7910 = vmatprep.subr.mxu0 0.0
    %7911 = vmatpush1.msra.mxu0 %v7815
    %7912 = vmatprep.subr.mxu0 0.0
    %7913 = vmatpush1.msra.mxu0 %v7817
    %7914 = vmatprep.subr.mxu0 0.0
    %7915 = vmatpush1.msra.mxu0 %v7819
    %7916 = vmatprep.subr.mxu0 0.0
    %7917 = vmatpush1.msra.mxu0 %v7821
    %7918 = vmatprep.subr.mxu0 0.0
    %7919 = vmatpush1.msra.mxu0 %v7823
    %7920 = vmatprep.subr.mxu0 0.0
    %7921 = vmatpush1.msra.mxu0 %v7825
    %7922 = vmatprep.subr.mxu0 0.0
    %7923 = vmatpush1.msra.mxu0 %v7827
    %7924 = vmatprep.subr.mxu0 0.0
    %7925 = vmatpush1.msra.mxu0 %v7829
    %7926 = vmatprep.subr.mxu0 0.0
    %7927 = vmatpush1.msra.mxu0 %v7831
    %7928 = vmatprep.subr.mxu0 0.0
    %7929 = vmatpush1.msra.mxu0 %v7833
    %7930 = vmatprep.subr.mxu0 0.0
    %7931 = vmatpush1.msra.mxu0 %v7835
    %7932 = vmatprep.subr.mxu0 0.0
    %7933 = vmatpush1.msra.mxu0 %v7837
    %7934 = vmatprep.subr.mxu0 0.0
    %7935 = vmatpush1.msra.mxu0 %v7839
    %7936 = vmatprep.subr.mxu0 0.0
    %7937 = vmatpush1.msra.mxu0 %v7841
    %7938 = vmatprep.subr.mxu0 0.0
    %7939 = vmatpush1.msra.mxu0 %v7843
    %7940 = vmatprep.subr.mxu0 0.0
    %7941 = vmatpush1.msra.mxu0 %v7845
    %7942 = vmatprep.subr.mxu0 0.0
    %7943 = vmatpush1.msra.mxu0 %v7847
    %7944 = vmatprep.subr.mxu0 0.0
    %7945 = vmatpush1.msra.mxu0 %v7849
    %7946 = vmatprep.subr.mxu0 0.0
    %7947 = vmatpush1.msra.mxu0 %v7851
    %7948 = vmatprep.subr.mxu0 0.0
    %7949 = vmatpush1.msra.mxu0 %v7853
    %7950 = vmatprep.mubr.f32.mxu0 %v7774
    %7951 = vmatmul.mubr.f32.gmra.mrb[0].mxu0 %v7742
    %v7952 = vpop.f32.mrb[0].mxu0
    %v7953 = vadd.f32 0.0, %v7952
    %v7954 = vpop.f32.mrb[0].mxu0
    %7955 = vdwg.mxu0
    %v7956 = vadd.f32 %v7597, %v7953
    %v7957 = vadd.f32 %v7598, %v7631
    %v7958 = vadd.f32 %v7599, %v7633
    %v7959 = vadd.f32 %v7600, %v7635
    %v7960 = vadd.f32 %v7601, %v7637
    %v7961 = vadd.f32 %v7602, %v7639
    %v7962 = vadd.f32 %v7603, %v7641
    %v7963 = vadd.f32 %v7604, %v7643
    %v7964 = vadd.f32 %v7605, %v7645
    %v7965 = vadd.f32 %v7606, %v7647
    %v7966 = vadd.f32 %v7607, %v7649
    %v7967 = vadd.f32 %v7608, %v7651
    %v7968 = vadd.f32 %v7609, %v7653
    %v7969 = vadd.f32 %v7610, %v7655
    %v7970 = vadd.f32 %v7611, %v7657
    %v7971 = vadd.f32 %v7612, %v7659
    %v7972 = vadd.f32 %v7613, %v7661
    %v7973 = vadd.f32 %v7614, %v7663
    %v7974 = vadd.f32 %v7615, %v7665
    %v7975 = vadd.f32 %v7616, %v7667
    %v7976 = vadd.f32 %v7617, %v7669
    %v7977 = vadd.f32 %v7618, %v7671
    %v7978 = vadd.f32 %v7619, %v7673
    %v7979 = vadd.f32 %v7620, %v7675
    %v7980 = vadd.f32 %v7621, %v7677
    %v7981 = vadd.f32 %v7622, %v7679
    %v7982 = vadd.f32 %v7623, %v7681
    %v7983 = vadd.f32 %v7624, %v7683
    %v7984 = vadd.f32 %v7625, %v7685
    %v7985 = vadd.f32 %v7626, %v7687
    %v7986 = vadd.f32 %v7627, %v7689
    %v7987 = vadd.f32 %v7628, %v7691
    %v7988 = vadd.f32 %v7629, %v7693
    %7989 = vxpose.xlu0.b32.start [1/16] %v7957, 128
    %7990 = vxpose.xlu0.b32.cont [2/16] %v7958, 128
    %7991 = vxpose.xlu0.b32.cont [3/16] %v7959, 128
    %7992 = vxpose.xlu0.b32.cont [4/16] %v7960, 128
    %7993 = vxpose.xlu0.b32.cont [5/16] %v7961, 128
    %7994 = vxpose.xlu0.b32.cont [6/16] %v7962, 128
    %7995 = vxpose.xlu0.b32.cont [7/16] %v7963, 128
    %7996 = vxpose.xlu0.b32.cont [8/16] %v7964, 128
    %7997 = vxpose.xlu0.b32.cont [9/16] %v7965, 128
    %7998 = vxpose.xlu0.b32.cont [10/16] %v7966, 128
    %7999 = vxpose.xlu0.b32.cont [11/16] %v7967, 128
    %8000 = vxpose.xlu0.b32.cont [12/16] %v7968, 128
    %8001 = vxpose.xlu0.b32.cont [13/16] %v7969, 128
    %8002 = vxpose.xlu0.b32.cont [14/16] %v7970, 128
    %8003 = vxpose.xlu0.b32.cont [15/16] %v7971, 128
    %8004 = vxpose.xlu0.b32.end [16/16] %v7972, 128
    %v8005 = vpop.trf.xlu0
    %v8006 = vpop.trf.xlu0
    %v8007 = vpop.trf.xlu0
    %v8008 = vpop.trf.xlu0
    %v8009 = vpop.trf.xlu0
    %v8010 = vpop.trf.xlu0
    %v8011 = vpop.trf.xlu0
    %v8012 = vpop.trf.xlu0
    %v8013 = vpop.trf.xlu0
    %v8014 = vpop.trf.xlu0
    %v8015 = vpop.trf.xlu0
    %v8016 = vpop.trf.xlu0
    %v8017 = vpop.trf.xlu0
    %v8018 = vpop.trf.xlu0
    %v8019 = vpop.trf.xlu0
    %v8020 = vpop.trf.xlu0
    %8021 = vxpose.xlu0.b32.start [1/16] %v7973, 128
    %8022 = vxpose.xlu0.b32.cont [2/16] %v7974, 128
    %8023 = vxpose.xlu0.b32.cont [3/16] %v7975, 128
    %8024 = vxpose.xlu0.b32.cont [4/16] %v7976, 128
    %8025 = vxpose.xlu0.b32.cont [5/16] %v7977, 128
    %8026 = vxpose.xlu0.b32.cont [6/16] %v7978, 128
    %8027 = vxpose.xlu0.b32.cont [7/16] %v7979, 128
    %8028 = vxpose.xlu0.b32.cont [8/16] %v7980, 128
    %8029 = vxpose.xlu0.b32.cont [9/16] %v7981, 128
    %8030 = vxpose.xlu0.b32.cont [10/16] %v7982, 128
    %8031 = vxpose.xlu0.b32.cont [11/16] %v7983, 128
    %8032 = vxpose.xlu0.b32.cont [12/16] %v7984, 128
    %8033 = vxpose.xlu0.b32.cont [13/16] %v7985, 128
    %8034 = vxpose.xlu0.b32.cont [14/16] %v7986, 128
    %8035 = vxpose.xlu0.b32.cont [15/16] %v7987, 128
    %8036 = vxpose.xlu0.b32.end [16/16] %v7988, 128
    %v8037 = vpop.trf.xlu0
    %v8038 = vpop.trf.xlu0
    %v8039 = vpop.trf.xlu0
    %v8040 = vpop.trf.xlu0
    %v8041 = vpop.trf.xlu0
    %v8042 = vpop.trf.xlu0
    %v8043 = vpop.trf.xlu0
    %v8044 = vpop.trf.xlu0
    %v8045 = vpop.trf.xlu0
    %v8046 = vpop.trf.xlu0
    %v8047 = vpop.trf.xlu0
    %v8048 = vpop.trf.xlu0
    %v8049 = vpop.trf.xlu0
    %v8050 = vpop.trf.xlu0
    %v8051 = vpop.trf.xlu0
    %v8052 = vpop.trf.xlu0
    %8053 = vmatprep.subr.mxu0 0.0
    %8054 = vmatpush1.msra.mxu0 1.0
    %8055 = vmatprep.subr.mxu0 0.0
    %8056 = vmatpush1.msra.mxu0 1.0
    %8057 = vmatprep.subr.mxu0 0.0
    %8058 = vmatpush1.msra.mxu0 1.0
    %8059 = vmatprep.subr.mxu0 0.0
    %8060 = vmatpush1.msra.mxu0 1.0
    %8061 = vmatprep.subr.mxu0 0.0
    %8062 = vmatpush1.msra.mxu0 1.0
    %8063 = vmatprep.subr.mxu0 0.0
    %8064 = vmatpush1.msra.mxu0 1.0
    %8065 = vmatprep.subr.mxu0 0.0
    %8066 = vmatpush1.msra.mxu0 1.0
    %8067 = vmatprep.subr.mxu0 0.0
    %8068 = vmatpush1.msra.mxu0 1.0
    %8069 = vmatprep.subr.mxu0 0.0
    %8070 = vmatpush1.msra.mxu0 1.0
    %8071 = vmatprep.subr.mxu0 0.0
    %8072 = vmatpush1.msra.mxu0 1.0
    %8073 = vmatprep.subr.mxu0 0.0
    %8074 = vmatpush1.msra.mxu0 1.0
    %8075 = vmatprep.subr.mxu0 0.0
    %8076 = vmatpush1.msra.mxu0 1.0
    %8077 = vmatprep.subr.mxu0 0.0
    %8078 = vmatpush1.msra.mxu0 1.0
    %8079 = vmatprep.subr.mxu0 0.0
    %8080 = vmatpush1.msra.mxu0 1.0
    %8081 = vmatprep.subr.mxu0 0.0
    %8082 = vmatpush1.msra.mxu0 1.0
    %8083 = vmatprep.subr.mxu0 0.0
    %8084 = vmatpush1.msra.mxu0 1.0
    %8085 = vmatprep.subr.mxu0 0.0
    %8086 = vmatpush1.msra.mxu0 1.0
    %8087 = vmatprep.subr.mxu0 0.0
    %8088 = vmatpush1.msra.mxu0 1.0
    %8089 = vmatprep.subr.mxu0 0.0
    %8090 = vmatpush1.msra.mxu0 1.0
    %8091 = vmatprep.subr.mxu0 0.0
    %8092 = vmatpush1.msra.mxu0 1.0
    %8093 = vmatprep.subr.mxu0 0.0
    %8094 = vmatpush1.msra.mxu0 1.0
    %8095 = vmatprep.subr.mxu0 0.0
    %8096 = vmatpush1.msra.mxu0 1.0
    %8097 = vmatprep.subr.mxu0 0.0
    %8098 = vmatpush1.msra.mxu0 1.0
    %8099 = vmatprep.subr.mxu0 0.0
    %8100 = vmatpush1.msra.mxu0 1.0
    %8101 = vmatprep.subr.mxu0 0.0
    %8102 = vmatpush1.msra.mxu0 1.0
    %8103 = vmatprep.subr.mxu0 0.0
    %8104 = vmatpush1.msra.mxu0 1.0
    %8105 = vmatprep.subr.mxu0 0.0
    %8106 = vmatpush1.msra.mxu0 1.0
    %8107 = vmatprep.subr.mxu0 0.0
    %8108 = vmatpush1.msra.mxu0 1.0
    %8109 = vmatprep.subr.mxu0 0.0
    %8110 = vmatpush1.msra.mxu0 1.0
    %8111 = vmatprep.subr.mxu0 0.0
    %8112 = vmatpush1.msra.mxu0 1.0
    %8113 = vmatprep.subr.mxu0 0.0
    %8114 = vmatpush1.msra.mxu0 1.0
    %8115 = vmatprep.subr.mxu0 0.0
    %8116 = vmatpush1.msra.mxu0 1.0
    %8117 = vmatprep.mubr.f32.mxu0 %v8037
    %8118 = vmatmul.mubr.f32.gmra.mrb[0].mxu0 %v8005
    %v8119 = vpop.f32.mrb[0].mxu0
    %v8120 = vadd.f32 0.0, %v8119
    %v8121 = vpop.f32.mrb[0].mxu0
    %8122 = vdwg.mxu0
    %v8123 = vmul.f32 %v19, %v8120
    %v8124 = vsub.f32 %v7956, %v8123
    %8125 = vst.msk [vmem:[#allocation4] sm:$0xff] %vm6425, %v8124
    %s8126 = scalar_lea.vmem [#allocation3], 256
    %v8127 = vld [vmem:[%s8126] sm:$0xff]
    %v8128 = vld [vmem:[%s8126 + $0x8] sm:$0xff]
    %v8129 = vld [vmem:[%s8126 + $0x10] sm:$0xff]
    %v8130 = vld [vmem:[%s8126 + $0x18] sm:$0xff]
    %v8131 = vld [vmem:[%s8126 + $0x20] sm:$0xff]
    %v8132 = vld [vmem:[%s8126 + $0x28] sm:$0xff]
    %v8133 = vld [vmem:[%s8126 + $0x30] sm:$0xff]
    %v8134 = vld [vmem:[%s8126 + $0x38] sm:$0xff]
    %v8135 = vld [vmem:[%s8126 + $0x40] sm:$0xff]
    %v8136 = vld [vmem:[%s8126 + $0x48] sm:$0xff]
    %v8137 = vld [vmem:[%s8126 + $0x50] sm:$0xff]
    %v8138 = vld [vmem:[%s8126 + $0x58] sm:$0xff]
    %v8139 = vld [vmem:[%s8126 + $0x60] sm:$0xff]
    %v8140 = vld [vmem:[%s8126 + $0x68] sm:$0xff]
    %v8141 = vld [vmem:[%s8126 + $0x70] sm:$0xff]
    %v8142 = vld [vmem:[%s8126 + $0x78] sm:$0xff]
    %v8143 = vld [vmem:[%s8126 + $0x80] sm:$0xff]
    %v8144 = vld [vmem:[%s8126 + $0x88] sm:$0xff]
    %v8145 = vld [vmem:[%s8126 + $0x90] sm:$0xff]
    %v8146 = vld [vmem:[%s8126 + $0x98] sm:$0xff]
    %v8147 = vld [vmem:[%s8126 + $0xa0] sm:$0xff]
    %v8148 = vld [vmem:[%s8126 + $0xa8] sm:$0xff]
    %v8149 = vld [vmem:[%s8126 + $0xb0] sm:$0xff]
    %v8150 = vld [vmem:[%s8126 + $0xb8] sm:$0xff]
    %v8151 = vld [vmem:[%s8126 + $0xc0] sm:$0xff]
    %v8152 = vld [vmem:[%s8126 + $0xc8] sm:$0xff]
    %v8153 = vld [vmem:[%s8126 + $0xd0] sm:$0xff]
    %v8154 = vld [vmem:[%s8126 + $0xd8] sm:$0xff]
    %v8155 = vld [vmem:[%s8126 + $0xe0] sm:$0xff]
    %v8156 = vld [vmem:[%s8126 + $0xe8] sm:$0xff]
    %v8157 = vld [vmem:[%s8126 + $0xf0] sm:$0xff]
    %v8158 = vld [vmem:[%s8126 + $0xf8] sm:$0xff]
    %s8159 = scalar_lea.vmem [#allocation2], 256
    %v8160 = vld [vmem:[%s8159] sm:$0xff]
    %v8161 = vld [vmem:[%s8159 + $0x8] sm:$0xff]
    %v8162 = vld [vmem:[%s8159 + $0x10] sm:$0xff]
    %v8163 = vld [vmem:[%s8159 + $0x18] sm:$0xff]
    %v8164 = vld [vmem:[%s8159 + $0x20] sm:$0xff]
    %v8165 = vld [vmem:[%s8159 + $0x28] sm:$0xff]
    %v8166 = vld [vmem:[%s8159 + $0x30] sm:$0xff]
    %v8167 = vld [vmem:[%s8159 + $0x38] sm:$0xff]
    %v8168 = vld [vmem:[%s8159 + $0x40] sm:$0xff]
    %v8169 = vld [vmem:[%s8159 + $0x48] sm:$0xff]
    %v8170 = vld [vmem:[%s8159 + $0x50] sm:$0xff]
    %v8171 = vld [vmem:[%s8159 + $0x58] sm:$0xff]
    %v8172 = vld [vmem:[%s8159 + $0x60] sm:$0xff]
    %v8173 = vld [vmem:[%s8159 + $0x68] sm:$0xff]
    %v8174 = vld [vmem:[%s8159 + $0x70] sm:$0xff]
    %v8175 = vld [vmem:[%s8159 + $0x78] sm:$0xff]
    %v8176 = vld [vmem:[%s8159 + $0x80] sm:$0xff]
    %v8177 = vld [vmem:[%s8159 + $0x88] sm:$0xff]
    %v8178 = vld [vmem:[%s8159 + $0x90] sm:$0xff]
    %v8179 = vld [vmem:[%s8159 + $0x98] sm:$0xff]
    %v8180 = vld [vmem:[%s8159 + $0xa0] sm:$0xff]
    %v8181 = vld [vmem:[%s8159 + $0xa8] sm:$0xff]
    %v8182 = vld [vmem:[%s8159 + $0xb0] sm:$0xff]
    %v8183 = vld [vmem:[%s8159 + $0xb8] sm:$0xff]
    %v8184 = vld [vmem:[%s8159 + $0xc0] sm:$0xff]
    %v8185 = vld [vmem:[%s8159 + $0xc8] sm:$0xff]
    %v8186 = vld [vmem:[%s8159 + $0xd0] sm:$0xff]
    %v8187 = vld [vmem:[%s8159 + $0xd8] sm:$0xff]
    %v8188 = vld [vmem:[%s8159 + $0xe0] sm:$0xff]
    %v8189 = vld [vmem:[%s8159 + $0xe8] sm:$0xff]
    %v8190 = vld [vmem:[%s8159 + $0xf0] sm:$0xff]
    %v8191 = vld [vmem:[%s8159 + $0xf8] sm:$0xff]
    %v8192 = vadd.f32 %v8127, 0.0
    %v8193 = vadd.f32 %v8128, 0.0
    %v8194 = vadd.f32 %v8129, 0.0
    %v8195 = vadd.f32 %v8130, 0.0
    %v8196 = vadd.f32 %v8131, 0.0
    %v8197 = vadd.f32 %v8132, 0.0
    %v8198 = vadd.f32 %v8133, 0.0
    %v8199 = vadd.f32 %v8134, 0.0
    %v8200 = vadd.f32 %v8135, 0.0
    %v8201 = vadd.f32 %v8136, 0.0
    %v8202 = vadd.f32 %v8137, 0.0
    %v8203 = vadd.f32 %v8138, 0.0
    %v8204 = vadd.f32 %v8139, 0.0
    %v8205 = vadd.f32 %v8140, 0.0
    %v8206 = vadd.f32 %v8141, 0.0
    %v8207 = vadd.f32 %v8142, 0.0
    %v8208 = vadd.f32 %v8143, 0.0
    %v8209 = vadd.f32 %v8144, 0.0
    %v8210 = vadd.f32 %v8145, 0.0
    %v8211 = vadd.f32 %v8146, 0.0
    %v8212 = vadd.f32 %v8147, 0.0
    %v8213 = vadd.f32 %v8148, 0.0
    %v8214 = vadd.f32 %v8149, 0.0
    %v8215 = vadd.f32 %v8150, 0.0
    %v8216 = vadd.f32 %v8151, 0.0
    %v8217 = vadd.f32 %v8152, 0.0
    %v8218 = vadd.f32 %v8153, 0.0
    %v8219 = vadd.f32 %v8154, 0.0
    %v8220 = vadd.f32 %v8155, 0.0
    %v8221 = vadd.f32 %v8156, 0.0
    %v8222 = vadd.f32 %v8157, 0.0
    %v8223 = vadd.f32 %v8158, 0.0
    %8256 = vrot.lane.b32.xlu0 %v8127, 120
    %v8257 = vpop.permute.xlu0 %8256
    %8258 = vrot.lane.b32.xlu0 %v8128, 120
    %v8259 = vpop.permute.xlu0 %8258
    %8260 = vrot.lane.b32.xlu0 %v8129, 120
    %v8261 = vpop.permute.xlu0 %8260
    %8262 = vrot.lane.b32.xlu0 %v8130, 120
    %v8263 = vpop.permute.xlu0 %8262
    %8264 = vrot.lane.b32.xlu0 %v8131, 120
    %v8265 = vpop.permute.xlu0 %8264
    %8266 = vrot.lane.b32.xlu0 %v8132, 120
    %v8267 = vpop.permute.xlu0 %8266
    %8268 = vrot.lane.b32.xlu0 %v8133, 120
    %v8269 = vpop.permute.xlu0 %8268
    %8270 = vrot.lane.b32.xlu0 %v8134, 120
    %v8271 = vpop.permute.xlu0 %8270
    %8272 = vrot.lane.b32.xlu0 %v8135, 120
    %v8273 = vpop.permute.xlu0 %8272
    %8274 = vrot.lane.b32.xlu0 %v8136, 120
    %v8275 = vpop.permute.xlu0 %8274
    %8276 = vrot.lane.b32.xlu0 %v8137, 120
    %v8277 = vpop.permute.xlu0 %8276
    %8278 = vrot.lane.b32.xlu0 %v8138, 120
    %v8279 = vpop.permute.xlu0 %8278
    %8280 = vrot.lane.b32.xlu0 %v8139, 120
    %v8281 = vpop.permute.xlu0 %8280
    %8282 = vrot.lane.b32.xlu0 %v8140, 120
    %v8283 = vpop.permute.xlu0 %8282
    %8284 = vrot.lane.b32.xlu0 %v8141, 120
    %v8285 = vpop.permute.xlu0 %8284
    %8286 = vrot.lane.b32.xlu0 %v8142, 120
    %v8287 = vpop.permute.xlu0 %8286
    %8288 = vrot.lane.b32.xlu0 %v8143, 120
    %v8289 = vpop.permute.xlu0 %8288
    %8290 = vrot.lane.b32.xlu0 %v8144, 120
    %v8291 = vpop.permute.xlu0 %8290
    %8292 = vrot.lane.b32.xlu0 %v8145, 120
    %v8293 = vpop.permute.xlu0 %8292
    %8294 = vrot.lane.b32.xlu0 %v8146, 120
    %v8295 = vpop.permute.xlu0 %8294
    %8296 = vrot.lane.b32.xlu0 %v8147, 120
    %v8297 = vpop.permute.xlu0 %8296
    %8298 = vrot.lane.b32.xlu0 %v8148, 120
    %v8299 = vpop.permute.xlu0 %8298
    %8300 = vrot.lane.b32.xlu0 %v8149, 120
    %v8301 = vpop.permute.xlu0 %8300
    %8302 = vrot.lane.b32.xlu0 %v8150, 120
    %v8303 = vpop.permute.xlu0 %8302
    %8304 = vrot.lane.b32.xlu0 %v8151, 120
    %v8305 = vpop.permute.xlu0 %8304
    %8306 = vrot.lane.b32.xlu0 %v8152, 120
    %v8307 = vpop.permute.xlu0 %8306
    %8308 = vrot.lane.b32.xlu0 %v8153, 120
    %v8309 = vpop.permute.xlu0 %8308
    %8310 = vrot.lane.b32.xlu0 %v8154, 120
    %v8311 = vpop.permute.xlu0 %8310
    %8312 = vrot.lane.b32.xlu0 %v8155, 120
    %v8313 = vpop.permute.xlu0 %8312
    %8314 = vrot.lane.b32.xlu0 %v8156, 120
    %v8315 = vpop.permute.xlu0 %8314
    %8316 = vrot.lane.b32.xlu0 %v8157, 120
    %v8317 = vpop.permute.xlu0 %8316
    %8318 = vrot.lane.b32.xlu0 %v8158, 120
    %v8319 = vpop.permute.xlu0 %8318
    %8352 = vxpose.xlu0.b32.start [1/16] %v8257, 128
    %8353 = vxpose.xlu0.b32.cont [2/16] %v8259, 128
    %8354 = vxpose.xlu0.b32.cont [3/16] %v8261, 128
    %8355 = vxpose.xlu0.b32.cont [4/16] %v8263, 128
    %8356 = vxpose.xlu0.b32.cont [5/16] %v8265, 128
    %8357 = vxpose.xlu0.b32.cont [6/16] %v8267, 128
    %8358 = vxpose.xlu0.b32.cont [7/16] %v8269, 128
    %8359 = vxpose.xlu0.b32.cont [8/16] %v8271, 128
    %8360 = vxpose.xlu0.b32.cont [9/16] %v8273, 128
    %8361 = vxpose.xlu0.b32.cont [10/16] %v8275, 128
    %8362 = vxpose.xlu0.b32.cont [11/16] %v8277, 128
    %8363 = vxpose.xlu0.b32.cont [12/16] %v8279, 128
    %8364 = vxpose.xlu0.b32.cont [13/16] %v8281, 128
    %8365 = vxpose.xlu0.b32.cont [14/16] %v8283, 128
    %8366 = vxpose.xlu0.b32.cont [15/16] %v8285, 128
    %8367 = vxpose.xlu0.b32.end [16/16] %v8287, 128
    %v8368 = vpop.trf.xlu0
    %v8369 = vpop.trf.xlu0
    %v8370 = vpop.trf.xlu0
    %v8371 = vpop.trf.xlu0
    %v8372 = vpop.trf.xlu0
    %v8373 = vpop.trf.xlu0
    %v8374 = vpop.trf.xlu0
    %v8375 = vpop.trf.xlu0
    %v8376 = vpop.trf.xlu0
    %v8377 = vpop.trf.xlu0
    %v8378 = vpop.trf.xlu0
    %v8379 = vpop.trf.xlu0
    %v8380 = vpop.trf.xlu0
    %v8381 = vpop.trf.xlu0
    %v8382 = vpop.trf.xlu0
    %v8383 = vpop.trf.xlu0
    %8384 = vxpose.xlu0.b32.start [1/16] %v8289, 128
    %8385 = vxpose.xlu0.b32.cont [2/16] %v8291, 128
    %8386 = vxpose.xlu0.b32.cont [3/16] %v8293, 128
    %8387 = vxpose.xlu0.b32.cont [4/16] %v8295, 128
    %8388 = vxpose.xlu0.b32.cont [5/16] %v8297, 128
    %8389 = vxpose.xlu0.b32.cont [6/16] %v8299, 128
    %8390 = vxpose.xlu0.b32.cont [7/16] %v8301, 128
    %8391 = vxpose.xlu0.b32.cont [8/16] %v8303, 128
    %8392 = vxpose.xlu0.b32.cont [9/16] %v8305, 128
    %8393 = vxpose.xlu0.b32.cont [10/16] %v8307, 128
    %8394 = vxpose.xlu0.b32.cont [11/16] %v8309, 128
    %8395 = vxpose.xlu0.b32.cont [12/16] %v8311, 128
    %8396 = vxpose.xlu0.b32.cont [13/16] %v8313, 128
    %8397 = vxpose.xlu0.b32.cont [14/16] %v8315, 128
    %8398 = vxpose.xlu0.b32.cont [15/16] %v8317, 128
    %8399 = vxpose.xlu0.b32.end [16/16] %v8319, 128
    %v8400 = vpop.trf.xlu0
    %v8401 = vpop.trf.xlu0
    %v8402 = vpop.trf.xlu0
    %v8403 = vpop.trf.xlu0
    %v8404 = vpop.trf.xlu0
    %v8405 = vpop.trf.xlu0
    %v8406 = vpop.trf.xlu0
    %v8407 = vpop.trf.xlu0
    %v8408 = vpop.trf.xlu0
    %v8409 = vpop.trf.xlu0
    %v8410 = vpop.trf.xlu0
    %v8411 = vpop.trf.xlu0
    %v8412 = vpop.trf.xlu0
    %v8413 = vpop.trf.xlu0
    %v8414 = vpop.trf.xlu0
    %v8415 = vpop.trf.xlu0
    %8448 = vrot.lane.b32.xlu0 %v8160, 112
    %v8449 = vpop.permute.xlu0 %8448
    %8450 = vrot.lane.b32.xlu0 %v8161, 112
    %v8451 = vpop.permute.xlu0 %8450
    %8452 = vrot.lane.b32.xlu0 %v8162, 112
    %v8453 = vpop.permute.xlu0 %8452
    %8454 = vrot.lane.b32.xlu0 %v8163, 112
    %v8455 = vpop.permute.xlu0 %8454
    %8456 = vrot.lane.b32.xlu0 %v8164, 112
    %v8457 = vpop.permute.xlu0 %8456
    %8458 = vrot.lane.b32.xlu0 %v8165, 112
    %v8459 = vpop.permute.xlu0 %8458
    %8460 = vrot.lane.b32.xlu0 %v8166, 112
    %v8461 = vpop.permute.xlu0 %8460
    %8462 = vrot.lane.b32.xlu0 %v8167, 112
    %v8463 = vpop.permute.xlu0 %8462
    %8464 = vrot.lane.b32.xlu0 %v8168, 112
    %v8465 = vpop.permute.xlu0 %8464
    %8466 = vrot.lane.b32.xlu0 %v8169, 112
    %v8467 = vpop.permute.xlu0 %8466
    %8468 = vrot.lane.b32.xlu0 %v8170, 112
    %v8469 = vpop.permute.xlu0 %8468
    %8470 = vrot.lane.b32.xlu0 %v8171, 112
    %v8471 = vpop.permute.xlu0 %8470
    %8472 = vrot.lane.b32.xlu0 %v8172, 112
    %v8473 = vpop.permute.xlu0 %8472
    %8474 = vrot.lane.b32.xlu0 %v8173, 112
    %v8475 = vpop.permute.xlu0 %8474
    %8476 = vrot.lane.b32.xlu0 %v8174, 112
    %v8477 = vpop.permute.xlu0 %8476
    %8478 = vrot.lane.b32.xlu0 %v8175, 112
    %v8479 = vpop.permute.xlu0 %8478
    %8480 = vrot.lane.b32.xlu0 %v8176, 112
    %v8481 = vpop.permute.xlu0 %8480
    %8482 = vrot.lane.b32.xlu0 %v8177, 112
    %v8483 = vpop.permute.xlu0 %8482
    %8484 = vrot.lane.b32.xlu0 %v8178, 112
    %v8485 = vpop.permute.xlu0 %8484
    %8486 = vrot.lane.b32.xlu0 %v8179, 112
    %v8487 = vpop.permute.xlu0 %8486
    %8488 = vrot.lane.b32.xlu0 %v8180, 112
    %v8489 = vpop.permute.xlu0 %8488
    %8490 = vrot.lane.b32.xlu0 %v8181, 112
    %v8491 = vpop.permute.xlu0 %8490
    %8492 = vrot.lane.b32.xlu0 %v8182, 112
    %v8493 = vpop.permute.xlu0 %8492
    %8494 = vrot.lane.b32.xlu0 %v8183, 112
    %v8495 = vpop.permute.xlu0 %8494
    %8496 = vrot.lane.b32.xlu0 %v8184, 112
    %v8497 = vpop.permute.xlu0 %8496
    %8498 = vrot.lane.b32.xlu0 %v8185, 112
    %v8499 = vpop.permute.xlu0 %8498
    %8500 = vrot.lane.b32.xlu0 %v8186, 112
    %v8501 = vpop.permute.xlu0 %8500
    %8502 = vrot.lane.b32.xlu0 %v8187, 112
    %v8503 = vpop.permute.xlu0 %8502
    %8504 = vrot.lane.b32.xlu0 %v8188, 112
    %v8505 = vpop.permute.xlu0 %8504
    %8506 = vrot.lane.b32.xlu0 %v8189, 112
    %v8507 = vpop.permute.xlu0 %8506
    %8508 = vrot.lane.b32.xlu0 %v8190, 112
    %v8509 = vpop.permute.xlu0 %8508
    %8510 = vrot.lane.b32.xlu0 %v8191, 112
    %v8511 = vpop.permute.xlu0 %8510
    %8544 = vmatprep.subr.mxu0 0.0
    %8545 = vmatpush1.msra.mxu0 %v8449
    %8546 = vmatprep.subr.mxu0 0.0
    %8547 = vmatpush1.msra.mxu0 %v8451
    %8548 = vmatprep.subr.mxu0 0.0
    %8549 = vmatpush1.msra.mxu0 %v8453
    %8550 = vmatprep.subr.mxu0 0.0
    %8551 = vmatpush1.msra.mxu0 %v8455
    %8552 = vmatprep.subr.mxu0 0.0
    %8553 = vmatpush1.msra.mxu0 %v8457
    %8554 = vmatprep.subr.mxu0 0.0
    %8555 = vmatpush1.msra.mxu0 %v8459
    %8556 = vmatprep.subr.mxu0 0.0
    %8557 = vmatpush1.msra.mxu0 %v8461
    %8558 = vmatprep.subr.mxu0 0.0
    %8559 = vmatpush1.msra.mxu0 %v8463
    %8560 = vmatprep.subr.mxu0 0.0
    %8561 = vmatpush1.msra.mxu0 %v8465
    %8562 = vmatprep.subr.mxu0 0.0
    %8563 = vmatpush1.msra.mxu0 %v8467
    %8564 = vmatprep.subr.mxu0 0.0
    %8565 = vmatpush1.msra.mxu0 %v8469
    %8566 = vmatprep.subr.mxu0 0.0
    %8567 = vmatpush1.msra.mxu0 %v8471
    %8568 = vmatprep.subr.mxu0 0.0
    %8569 = vmatpush1.msra.mxu0 %v8473
    %8570 = vmatprep.subr.mxu0 0.0
    %8571 = vmatpush1.msra.mxu0 %v8475
    %8572 = vmatprep.subr.mxu0 0.0
    %8573 = vmatpush1.msra.mxu0 %v8477
    %8574 = vmatprep.subr.mxu0 0.0
    %8575 = vmatpush1.msra.mxu0 %v8479
    %8576 = vmatprep.subr.mxu0 0.0
    %8577 = vmatpush1.msra.mxu0 %v8481
    %8578 = vmatprep.subr.mxu0 0.0
    %8579 = vmatpush1.msra.mxu0 %v8483
    %8580 = vmatprep.subr.mxu0 0.0
    %8581 = vmatpush1.msra.mxu0 %v8485
    %8582 = vmatprep.subr.mxu0 0.0
    %8583 = vmatpush1.msra.mxu0 %v8487
    %8584 = vmatprep.subr.mxu0 0.0
    %8585 = vmatpush1.msra.mxu0 %v8489
    %8586 = vmatprep.subr.mxu0 0.0
    %8587 = vmatpush1.msra.mxu0 %v8491
    %8588 = vmatprep.subr.mxu0 0.0
    %8589 = vmatpush1.msra.mxu0 %v8493
    %8590 = vmatprep.subr.mxu0 0.0
    %8591 = vmatpush1.msra.mxu0 %v8495
    %8592 = vmatprep.subr.mxu0 0.0
    %8593 = vmatpush1.msra.mxu0 %v8497
    %8594 = vmatprep.subr.mxu0 0.0
    %8595 = vmatpush1.msra.mxu0 %v8499
    %8596 = vmatprep.subr.mxu0 0.0
    %8597 = vmatpush1.msra.mxu0 %v8501
    %8598 = vmatprep.subr.mxu0 0.0
    %8599 = vmatpush1.msra.mxu0 %v8503
    %8600 = vmatprep.subr.mxu0 0.0
    %8601 = vmatpush1.msra.mxu0 %v8505
    %8602 = vmatprep.subr.mxu0 0.0
    %8603 = vmatpush1.msra.mxu0 %v8507
    %8604 = vmatprep.subr.mxu0 0.0
    %8605 = vmatpush1.msra.mxu0 %v8509
    %8606 = vmatprep.subr.mxu0 0.0
    %8607 = vmatpush1.msra.mxu0 %v8511
    %8608 = vmatprep.mubr.f32.mxu0 %v8400
    %8609 = vmatmul.mubr.f32.gmra.mrb[0].mxu0 %v8368
    %v8610 = vpop.f32.mrb[0].mxu0
    %v8611 = vadd.f32 0.0, %v8610
    %v8612 = vpop.f32.mrb[0].mxu0
    %8613 = vdwg.mxu0
    %8614 = vxpose.xlu0.b32.start [1/16] %v8127, 128
    %8615 = vxpose.xlu0.b32.cont [2/16] %v8128, 128
    %8616 = vxpose.xlu0.b32.cont [3/16] %v8129, 128
    %8617 = vxpose.xlu0.b32.cont [4/16] %v8130, 128
    %8618 = vxpose.xlu0.b32.cont [5/16] %v8131, 128
    %8619 = vxpose.xlu0.b32.cont [6/16] %v8132, 128
    %8620 = vxpose.xlu0.b32.cont [7/16] %v8133, 128
    %8621 = vxpose.xlu0.b32.cont [8/16] %v8134, 128
    %8622 = vxpose.xlu0.b32.cont [9/16] %v8135, 128
    %8623 = vxpose.xlu0.b32.cont [10/16] %v8136, 128
    %8624 = vxpose.xlu0.b32.cont [11/16] %v8137, 128
    %8625 = vxpose.xlu0.b32.cont [12/16] %v8138, 128
    %8626 = vxpose.xlu0.b32.cont [13/16] %v8139, 128
    %8627 = vxpose.xlu0.b32.cont [14/16] %v8140, 128
    %8628 = vxpose.xlu0.b32.cont [15/16] %v8141, 128
    %8629 = vxpose.xlu0.b32.end [16/16] %v8142, 128
    %v8630 = vpop.trf.xlu0
    %v8631 = vpop.trf.xlu0
    %v8632 = vpop.trf.xlu0
    %v8633 = vpop.trf.xlu0
    %v8634 = vpop.trf.xlu0
    %v8635 = vpop.trf.xlu0
    %v8636 = vpop.trf.xlu0
    %v8637 = vpop.trf.xlu0
    %v8638 = vpop.trf.xlu0
    %v8639 = vpop.trf.xlu0
    %v8640 = vpop.trf.xlu0
    %v8641 = vpop.trf.xlu0
    %v8642 = vpop.trf.xlu0
    %v8643 = vpop.trf.xlu0
    %v8644 = vpop.trf.xlu0
    %v8645 = vpop.trf.xlu0
    %8646 = vxpose.xlu0.b32.start [1/16] %v8143, 128
    %8647 = vxpose.xlu0.b32.cont [2/16] %v8144, 128
    %8648 = vxpose.xlu0.b32.cont [3/16] %v8145, 128
    %8649 = vxpose.xlu0.b32.cont [4/16] %v8146, 128
    %8650 = vxpose.xlu0.b32.cont [5/16] %v8147, 128
    %8651 = vxpose.xlu0.b32.cont [6/16] %v8148, 128
    %8652 = vxpose.xlu0.b32.cont [7/16] %v8149, 128
    %8653 = vxpose.xlu0.b32.cont [8/16] %v8150, 128
    %8654 = vxpose.xlu0.b32.cont [9/16] %v8151, 128
    %8655 = vxpose.xlu0.b32.cont [10/16] %v8152, 128
    %8656 = vxpose.xlu0.b32.cont [11/16] %v8153, 128
    %8657 = vxpose.xlu0.b32.cont [12/16] %v8154, 128
    %8658 = vxpose.xlu0.b32.cont [13/16] %v8155, 128
    %8659 = vxpose.xlu0.b32.cont [14/16] %v8156, 128
    %8660 = vxpose.xlu0.b32.cont [15/16] %v8157, 128
    %8661 = vxpose.xlu0.b32.end [16/16] %v8158, 128
    %v8662 = vpop.trf.xlu0
    %v8663 = vpop.trf.xlu0
    %v8664 = vpop.trf.xlu0
    %v8665 = vpop.trf.xlu0
    %v8666 = vpop.trf.xlu0
    %v8667 = vpop.trf.xlu0
    %v8668 = vpop.trf.xlu0
    %v8669 = vpop.trf.xlu0
    %v8670 = vpop.trf.xlu0
    %v8671 = vpop.trf.xlu0
    %v8672 = vpop.trf.xlu0
    %v8673 = vpop.trf.xlu0
    %v8674 = vpop.trf.xlu0
    %v8675 = vpop.trf.xlu0
    %v8676 = vpop.trf.xlu0
    %v8677 = vpop.trf.xlu0
    %8678 = vmatprep.subr.mxu0 0.0
    %8679 = vmatpush1.msra.mxu0 %v8160
    %8680 = vmatprep.subr.mxu0 0.0
    %8681 = vmatpush1.msra.mxu0 %v8161
    %8682 = vmatprep.subr.mxu0 0.0
    %8683 = vmatpush1.msra.mxu0 %v8162
    %8684 = vmatprep.subr.mxu0 0.0
    %8685 = vmatpush1.msra.mxu0 %v8163
    %8686 = vmatprep.subr.mxu0 0.0
    %8687 = vmatpush1.msra.mxu0 %v8164
    %8688 = vmatprep.subr.mxu0 0.0
    %8689 = vmatpush1.msra.mxu0 %v8165
    %8690 = vmatprep.subr.mxu0 0.0
    %8691 = vmatpush1.msra.mxu0 %v8166
    %8692 = vmatprep.subr.mxu0 0.0
    %8693 = vmatpush1.msra.mxu0 %v8167
    %8694 = vmatprep.subr.mxu0 0.0
    %8695 = vmatpush1.msra.mxu0 %v8168
    %8696 = vmatprep.subr.mxu0 0.0
    %8697 = vmatpush1.msra.mxu0 %v8169
    %8698 = vmatprep.subr.mxu0 0.0
    %8699 = vmatpush1.msra.mxu0 %v8170
    %8700 = vmatprep.subr.mxu0 0.0
    %8701 = vmatpush1.msra.mxu0 %v8171
    %8702 = vmatprep.subr.mxu0 0.0
    %8703 = vmatpush1.msra.mxu0 %v8172
    %8704 = vmatprep.subr.mxu0 0.0
    %8705 = vmatpush1.msra.mxu0 %v8173
    %8706 = vmatprep.subr.mxu0 0.0
    %8707 = vmatpush1.msra.mxu0 %v8174
    %8708 = vmatprep.subr.mxu0 0.0
    %8709 = vmatpush1.msra.mxu0 %v8175
    %8710 = vmatprep.subr.mxu0 0.0
    %8711 = vmatpush1.msra.mxu0 %v8176
    %8712 = vmatprep.subr.mxu0 0.0
    %8713 = vmatpush1.msra.mxu0 %v8177
    %8714 = vmatprep.subr.mxu0 0.0
    %8715 = vmatpush1.msra.mxu0 %v8178
    %8716 = vmatprep.subr.mxu0 0.0
    %8717 = vmatpush1.msra.mxu0 %v8179
    %8718 = vmatprep.subr.mxu0 0.0
    %8719 = vmatpush1.msra.mxu0 %v8180
    %8720 = vmatprep.subr.mxu0 0.0
    %8721 = vmatpush1.msra.mxu0 %v8181
    %8722 = vmatprep.subr.mxu0 0.0
    %8723 = vmatpush1.msra.mxu0 %v8182
    %8724 = vmatprep.subr.mxu0 0.0
    %8725 = vmatpush1.msra.mxu0 %v8183
    %8726 = vmatprep.subr.mxu0 0.0
    %8727 = vmatpush1.msra.mxu0 %v8184
    %8728 = vmatprep.subr.mxu0 0.0
    %8729 = vmatpush1.msra.mxu0 %v8185
    %8730 = vmatprep.subr.mxu0 0.0
    %8731 = vmatpush1.msra.mxu0 %v8186
    %8732 = vmatprep.subr.mxu0 0.0
    %8733 = vmatpush1.msra.mxu0 %v8187
    %8734 = vmatprep.subr.mxu0 0.0
    %8735 = vmatpush1.msra.mxu0 %v8188
    %8736 = vmatprep.subr.mxu0 0.0
    %8737 = vmatpush1.msra.mxu0 %v8189
    %8738 = vmatprep.subr.mxu0 0.0
    %8739 = vmatpush1.msra.mxu0 %v8190
    %8740 = vmatprep.subr.mxu0 0.0
    %8741 = vmatpush1.msra.mxu0 %v8191
    %8742 = vmatprep.mubr.f32.mxu0 %v8662
    %8743 = vmatmul.mubr.f32.gmra.mrb[0].mxu0 %v8630
    %v8744 = vpop.f32.mrb[0].mxu0
    %v8745 = vadd.f32 %v8611, %v8744
    %v8746 = vpop.f32.mrb[0].mxu0
    %8747 = vdwg.mxu0
    %v8748 = vadd.f32 %v8192, %v8257
    %v8749 = vadd.f32 %v8193, %v8259
    %v8750 = vadd.f32 %v8194, %v8261
    %v8751 = vadd.f32 %v8195, %v8263
    %v8752 = vadd.f32 %v8196, %v8265
    %v8753 = vadd.f32 %v8197, %v8267
    %v8754 = vadd.f32 %v8198, %v8269
    %v8755 = vadd.f32 %v8199, %v8271
    %v8756 = vadd.f32 %v8200, %v8273
    %v8757 = vadd.f32 %v8201, %v8275
    %v8758 = vadd.f32 %v8202, %v8277
    %v8759 = vadd.f32 %v8203, %v8279
    %v8760 = vadd.f32 %v8204, %v8281
    %v8761 = vadd.f32 %v8205, %v8283
    %v8762 = vadd.f32 %v8206, %v8285
    %v8763 = vadd.f32 %v8207, %v8287
    %v8764 = vadd.f32 %v8208, %v8289
    %v8765 = vadd.f32 %v8209, %v8291
    %v8766 = vadd.f32 %v8210, %v8293
    %v8767 = vadd.f32 %v8211, %v8295
    %v8768 = vadd.f32 %v8212, %v8297
    %v8769 = vadd.f32 %v8213, %v8299
    %v8770 = vadd.f32 %v8214, %v8301
    %v8771 = vadd.f32 %v8215, %v8303
    %v8772 = vadd.f32 %v8216, %v8305
    %v8773 = vadd.f32 %v8217, %v8307
    %v8774 = vadd.f32 %v8218, %v8309
    %v8775 = vadd.f32 %v8219, %v8311
    %v8776 = vadd.f32 %v8220, %v8313
    %v8777 = vadd.f32 %v8221, %v8315
    %v8778 = vadd.f32 %v8222, %v8317
    %v8779 = vadd.f32 %v8223, %v8319
    %8780 = vrot.lane.b32.xlu0 %v8127, 112
    %v8781 = vpop.permute.xlu0 %8780
    %8782 = vrot.lane.b32.xlu0 %v8128, 112
    %v8783 = vpop.permute.xlu0 %8782
    %8784 = vrot.lane.b32.xlu0 %v8129, 112
    %v8785 = vpop.permute.xlu0 %8784
    %8786 = vrot.lane.b32.xlu0 %v8130, 112
    %v8787 = vpop.permute.xlu0 %8786
    %8788 = vrot.lane.b32.xlu0 %v8131, 112
    %v8789 = vpop.permute.xlu0 %8788
    %8790 = vrot.lane.b32.xlu0 %v8132, 112
    %v8791 = vpop.permute.xlu0 %8790
    %8792 = vrot.lane.b32.xlu0 %v8133, 112
    %v8793 = vpop.permute.xlu0 %8792
    %8794 = vrot.lane.b32.xlu0 %v8134, 112
    %v8795 = vpop.permute.xlu0 %8794
    %8796 = vrot.lane.b32.xlu0 %v8135, 112
    %v8797 = vpop.permute.xlu0 %8796
    %8798 = vrot.lane.b32.xlu0 %v8136, 112
    %v8799 = vpop.permute.xlu0 %8798
    %8800 = vrot.lane.b32.xlu0 %v8137, 112
    %v8801 = vpop.permute.xlu0 %8800
    %8802 = vrot.lane.b32.xlu0 %v8138, 112
    %v8803 = vpop.permute.xlu0 %8802
    %8804 = vrot.lane.b32.xlu0 %v8139, 112
    %v8805 = vpop.permute.xlu0 %8804
    %8806 = vrot.lane.b32.xlu0 %v8140, 112
    %v8807 = vpop.permute.xlu0 %8806
    %8808 = vrot.lane.b32.xlu0 %v8141, 112
    %v8809 = vpop.permute.xlu0 %8808
    %8810 = vrot.lane.b32.xlu0 %v8142, 112
    %v8811 = vpop.permute.xlu0 %8810
    %8812 = vrot.lane.b32.xlu0 %v8143, 112
    %v8813 = vpop.permute.xlu0 %8812
    %8814 = vrot.lane.b32.xlu0 %v8144, 112
    %v8815 = vpop.permute.xlu0 %8814
    %8816 = vrot.lane.b32.xlu0 %v8145, 112
    %v8817 = vpop.permute.xlu0 %8816
    %8818 = vrot.lane.b32.xlu0 %v8146, 112
    %v8819 = vpop.permute.xlu0 %8818
    %8820 = vrot.lane.b32.xlu0 %v8147, 112
    %v8821 = vpop.permute.xlu0 %8820
    %8822 = vrot.lane.b32.xlu0 %v8148, 112
    %v8823 = vpop.permute.xlu0 %8822
    %8824 = vrot.lane.b32.xlu0 %v8149, 112
    %v8825 = vpop.permute.xlu0 %8824
    %8826 = vrot.lane.b32.xlu0 %v8150, 112
    %v8827 = vpop.permute.xlu0 %8826
    %8828 = vrot.lane.b32.xlu0 %v8151, 112
    %v8829 = vpop.permute.xlu0 %8828
    %8830 = vrot.lane.b32.xlu0 %v8152, 112
    %v8831 = vpop.permute.xlu0 %8830
    %8832 = vrot.lane.b32.xlu0 %v8153, 112
    %v8833 = vpop.permute.xlu0 %8832
    %8834 = vrot.lane.b32.xlu0 %v8154, 112
    %v8835 = vpop.permute.xlu0 %8834
    %8836 = vrot.lane.b32.xlu0 %v8155, 112
    %v8837 = vpop.permute.xlu0 %8836
    %8838 = vrot.lane.b32.xlu0 %v8156, 112
    %v8839 = vpop.permute.xlu0 %8838
    %8840 = vrot.lane.b32.xlu0 %v8157, 112
    %v8841 = vpop.permute.xlu0 %8840
    %8842 = vrot.lane.b32.xlu0 %v8158, 112
    %v8843 = vpop.permute.xlu0 %8842
    %8876 = vxpose.xlu0.b32.start [1/16] %v8781, 128
    %8877 = vxpose.xlu0.b32.cont [2/16] %v8783, 128
    %8878 = vxpose.xlu0.b32.cont [3/16] %v8785, 128
    %8879 = vxpose.xlu0.b32.cont [4/16] %v8787, 128
    %8880 = vxpose.xlu0.b32.cont [5/16] %v8789, 128
    %8881 = vxpose.xlu0.b32.cont [6/16] %v8791, 128
    %8882 = vxpose.xlu0.b32.cont [7/16] %v8793, 128
    %8883 = vxpose.xlu0.b32.cont [8/16] %v8795, 128
    %8884 = vxpose.xlu0.b32.cont [9/16] %v8797, 128
    %8885 = vxpose.xlu0.b32.cont [10/16] %v8799, 128
    %8886 = vxpose.xlu0.b32.cont [11/16] %v8801, 128
    %8887 = vxpose.xlu0.b32.cont [12/16] %v8803, 128
    %8888 = vxpose.xlu0.b32.cont [13/16] %v8805, 128
    %8889 = vxpose.xlu0.b32.cont [14/16] %v8807, 128
    %8890 = vxpose.xlu0.b32.cont [15/16] %v8809, 128
    %8891 = vxpose.xlu0.b32.end [16/16] %v8811, 128
    %v8892 = vpop.trf.xlu0
    %v8893 = vpop.trf.xlu0
    %v8894 = vpop.trf.xlu0
    %v8895 = vpop.trf.xlu0
    %v8896 = vpop.trf.xlu0
    %v8897 = vpop.trf.xlu0
    %v8898 = vpop.trf.xlu0
    %v8899 = vpop.trf.xlu0
    %v8900 = vpop.trf.xlu0
    %v8901 = vpop.trf.xlu0
    %v8902 = vpop.trf.xlu0
    %v8903 = vpop.trf.xlu0
    %v8904 = vpop.trf.xlu0
    %v8905 = vpop.trf.xlu0
    %v8906 = vpop.trf.xlu0
    %v8907 = vpop.trf.xlu0
    %8908 = vxpose.xlu0.b32.start [1/16] %v8813, 128
    %8909 = vxpose.xlu0.b32.cont [2/16] %v8815, 128
    %8910 = vxpose.xlu0.b32.cont [3/16] %v8817, 128
    %8911 = vxpose.xlu0.b32.cont [4/16] %v8819, 128
    %8912 = vxpose.xlu0.b32.cont [5/16] %v8821, 128
    %8913 = vxpose.xlu0.b32.cont [6/16] %v8823, 128
    %8914 = vxpose.xlu0.b32.cont [7/16] %v8825, 128
    %8915 = vxpose.xlu0.b32.cont [8/16] %v8827, 128
    %8916 = vxpose.xlu0.b32.cont [9/16] %v8829, 128
    %8917 = vxpose.xlu0.b32.cont [10/16] %v8831, 128
    %8918 = vxpose.xlu0.b32.cont [11/16] %v8833, 128
    %8919 = vxpose.xlu0.b32.cont [12/16] %v8835, 128
    %8920 = vxpose.xlu0.b32.cont [13/16] %v8837, 128
    %8921 = vxpose.xlu0.b32.cont [14/16] %v8839, 128
    %8922 = vxpose.xlu0.b32.cont [15/16] %v8841, 128
    %8923 = vxpose.xlu0.b32.end [16/16] %v8843, 128
    %v8924 = vpop.trf.xlu0
    %v8925 = vpop.trf.xlu0
    %v8926 = vpop.trf.xlu0
    %v8927 = vpop.trf.xlu0
    %v8928 = vpop.trf.xlu0
    %v8929 = vpop.trf.xlu0
    %v8930 = vpop.trf.xlu0
    %v8931 = vpop.trf.xlu0
    %v8932 = vpop.trf.xlu0
    %v8933 = vpop.trf.xlu0
    %v8934 = vpop.trf.xlu0
    %v8935 = vpop.trf.xlu0
    %v8936 = vpop.trf.xlu0
    %v8937 = vpop.trf.xlu0
    %v8938 = vpop.trf.xlu0
    %v8939 = vpop.trf.xlu0
    %8940 = vrot.lane.b32.xlu0 %v8160, 96
    %v8941 = vpop.permute.xlu0 %8940
    %8942 = vrot.lane.b32.xlu0 %v8161, 96
    %v8943 = vpop.permute.xlu0 %8942
    %8944 = vrot.lane.b32.xlu0 %v8162, 96
    %v8945 = vpop.permute.xlu0 %8944
    %8946 = vrot.lane.b32.xlu0 %v8163, 96
    %v8947 = vpop.permute.xlu0 %8946
    %8948 = vrot.lane.b32.xlu0 %v8164, 96
    %v8949 = vpop.permute.xlu0 %8948
    %8950 = vrot.lane.b32.xlu0 %v8165, 96
    %v8951 = vpop.permute.xlu0 %8950
    %8952 = vrot.lane.b32.xlu0 %v8166, 96
    %v8953 = vpop.permute.xlu0 %8952
    %8954 = vrot.lane.b32.xlu0 %v8167, 96
    %v8955 = vpop.permute.xlu0 %8954
    %8956 = vrot.lane.b32.xlu0 %v8168, 96
    %v8957 = vpop.permute.xlu0 %8956
    %8958 = vrot.lane.b32.xlu0 %v8169, 96
    %v8959 = vpop.permute.xlu0 %8958
    %8960 = vrot.lane.b32.xlu0 %v8170, 96
    %v8961 = vpop.permute.xlu0 %8960
    %8962 = vrot.lane.b32.xlu0 %v8171, 96
    %v8963 = vpop.permute.xlu0 %8962
    %8964 = vrot.lane.b32.xlu0 %v8172, 96
    %v8965 = vpop.permute.xlu0 %8964
    %8966 = vrot.lane.b32.xlu0 %v8173, 96
    %v8967 = vpop.permute.xlu0 %8966
    %8968 = vrot.lane.b32.xlu0 %v8174, 96
    %v8969 = vpop.permute.xlu0 %8968
    %8970 = vrot.lane.b32.xlu0 %v8175, 96
    %v8971 = vpop.permute.xlu0 %8970
    %8972 = vrot.lane.b32.xlu0 %v8176, 96
    %v8973 = vpop.permute.xlu0 %8972
    %8974 = vrot.lane.b32.xlu0 %v8177, 96
    %v8975 = vpop.permute.xlu0 %8974
    %8976 = vrot.lane.b32.xlu0 %v8178, 96
    %v8977 = vpop.permute.xlu0 %8976
    %8978 = vrot.lane.b32.xlu0 %v8179, 96
    %v8979 = vpop.permute.xlu0 %8978
    %8980 = vrot.lane.b32.xlu0 %v8180, 96
    %v8981 = vpop.permute.xlu0 %8980
    %8982 = vrot.lane.b32.xlu0 %v8181, 96
    %v8983 = vpop.permute.xlu0 %8982
    %8984 = vrot.lane.b32.xlu0 %v8182, 96
    %v8985 = vpop.permute.xlu0 %8984
    %8986 = vrot.lane.b32.xlu0 %v8183, 96
    %v8987 = vpop.permute.xlu0 %8986
    %8988 = vrot.lane.b32.xlu0 %v8184, 96
    %v8989 = vpop.permute.xlu0 %8988
    %8990 = vrot.lane.b32.xlu0 %v8185, 96
    %v8991 = vpop.permute.xlu0 %8990
    %8992 = vrot.lane.b32.xlu0 %v8186, 96
    %v8993 = vpop.permute.xlu0 %8992
    %8994 = vrot.lane.b32.xlu0 %v8187, 96
    %v8995 = vpop.permute.xlu0 %8994
    %8996 = vrot.lane.b32.xlu0 %v8188, 96
    %v8997 = vpop.permute.xlu0 %8996
    %8998 = vrot.lane.b32.xlu0 %v8189, 96
    %v8999 = vpop.permute.xlu0 %8998
    %9000 = vrot.lane.b32.xlu0 %v8190, 96
    %v9001 = vpop.permute.xlu0 %9000
    %9002 = vrot.lane.b32.xlu0 %v8191, 96
    %v9003 = vpop.permute.xlu0 %9002
    %9036 = vmatprep.subr.mxu0 0.0
    %9037 = vmatpush1.msra.mxu0 %v8941
    %9038 = vmatprep.subr.mxu0 0.0
    %9039 = vmatpush1.msra.mxu0 %v8943
    %9040 = vmatprep.subr.mxu0 0.0
    %9041 = vmatpush1.msra.mxu0 %v8945
    %9042 = vmatprep.subr.mxu0 0.0
    %9043 = vmatpush1.msra.mxu0 %v8947
    %9044 = vmatprep.subr.mxu0 0.0
    %9045 = vmatpush1.msra.mxu0 %v8949
    %9046 = vmatprep.subr.mxu0 0.0
    %9047 = vmatpush1.msra.mxu0 %v8951
    %9048 = vmatprep.subr.mxu0 0.0
    %9049 = vmatpush1.msra.mxu0 %v8953
    %9050 = vmatprep.subr.mxu0 0.0
    %9051 = vmatpush1.msra.mxu0 %v8955
    %9052 = vmatprep.subr.mxu0 0.0
    %9053 = vmatpush1.msra.mxu0 %v8957
    %9054 = vmatprep.subr.mxu0 0.0
    %9055 = vmatpush1.msra.mxu0 %v8959
    %9056 = vmatprep.subr.mxu0 0.0
    %9057 = vmatpush1.msra.mxu0 %v8961
    %9058 = vmatprep.subr.mxu0 0.0
    %9059 = vmatpush1.msra.mxu0 %v8963
    %9060 = vmatprep.subr.mxu0 0.0
    %9061 = vmatpush1.msra.mxu0 %v8965
    %9062 = vmatprep.subr.mxu0 0.0
    %9063 = vmatpush1.msra.mxu0 %v8967
    %9064 = vmatprep.subr.mxu0 0.0
    %9065 = vmatpush1.msra.mxu0 %v8969
    %9066 = vmatprep.subr.mxu0 0.0
    %9067 = vmatpush1.msra.mxu0 %v8971
    %9068 = vmatprep.subr.mxu0 0.0
    %9069 = vmatpush1.msra.mxu0 %v8973
    %9070 = vmatprep.subr.mxu0 0.0
    %9071 = vmatpush1.msra.mxu0 %v8975
    %9072 = vmatprep.subr.mxu0 0.0
    %9073 = vmatpush1.msra.mxu0 %v8977
    %9074 = vmatprep.subr.mxu0 0.0
    %9075 = vmatpush1.msra.mxu0 %v8979
    %9076 = vmatprep.subr.mxu0 0.0
    %9077 = vmatpush1.msra.mxu0 %v8981
    %9078 = vmatprep.subr.mxu0 0.0
    %9079 = vmatpush1.msra.mxu0 %v8983
    %9080 = vmatprep.subr.mxu0 0.0
    %9081 = vmatpush1.msra.mxu0 %v8985
    %9082 = vmatprep.subr.mxu0 0.0
    %9083 = vmatpush1.msra.mxu0 %v8987
    %9084 = vmatprep.subr.mxu0 0.0
    %9085 = vmatpush1.msra.mxu0 %v8989
    %9086 = vmatprep.subr.mxu0 0.0
    %9087 = vmatpush1.msra.mxu0 %v8991
    %9088 = vmatprep.subr.mxu0 0.0
    %9089 = vmatpush1.msra.mxu0 %v8993
    %9090 = vmatprep.subr.mxu0 0.0
    %9091 = vmatpush1.msra.mxu0 %v8995
    %9092 = vmatprep.subr.mxu0 0.0
    %9093 = vmatpush1.msra.mxu0 %v8997
    %9094 = vmatprep.subr.mxu0 0.0
    %9095 = vmatpush1.msra.mxu0 %v8999
    %9096 = vmatprep.subr.mxu0 0.0
    %9097 = vmatpush1.msra.mxu0 %v9001
    %9098 = vmatprep.subr.mxu0 0.0
    %9099 = vmatpush1.msra.mxu0 %v9003
    %9100 = vmatprep.mubr.f32.mxu0 %v8924
    %9101 = vmatmul.mubr.f32.gmra.mrb[0].mxu0 %v8892
    %v9102 = vpop.f32.mrb[0].mxu0
    %v9103 = vadd.f32 0.0, %v9102
    %v9104 = vpop.f32.mrb[0].mxu0
    %9105 = vdwg.mxu0
    %v9106 = vadd.f32 %v8745, %v9103
    %v9107 = vadd.f32 %v8748, %v8781
    %v9108 = vadd.f32 %v8749, %v8783
    %v9109 = vadd.f32 %v8750, %v8785
    %v9110 = vadd.f32 %v8751, %v8787
    %v9111 = vadd.f32 %v8752, %v8789
    %v9112 = vadd.f32 %v8753, %v8791
    %v9113 = vadd.f32 %v8754, %v8793
    %v9114 = vadd.f32 %v8755, %v8795
    %v9115 = vadd.f32 %v8756, %v8797
    %v9116 = vadd.f32 %v8757, %v8799
    %v9117 = vadd.f32 %v8758, %v8801
    %v9118 = vadd.f32 %v8759, %v8803
    %v9119 = vadd.f32 %v8760, %v8805
    %v9120 = vadd.f32 %v8761, %v8807
    %v9121 = vadd.f32 %v8762, %v8809
    %v9122 = vadd.f32 %v8763, %v8811
    %v9123 = vadd.f32 %v8764, %v8813
    %v9124 = vadd.f32 %v8765, %v8815
    %v9125 = vadd.f32 %v8766, %v8817
    %v9126 = vadd.f32 %v8767, %v8819
    %v9127 = vadd.f32 %v8768, %v8821
    %v9128 = vadd.f32 %v8769, %v8823
    %v9129 = vadd.f32 %v8770, %v8825
    %v9130 = vadd.f32 %v8771, %v8827
    %v9131 = vadd.f32 %v8772, %v8829
    %v9132 = vadd.f32 %v8773, %v8831
    %v9133 = vadd.f32 %v8774, %v8833
    %v9134 = vadd.f32 %v8775, %v8835
    %v9135 = vadd.f32 %v8776, %v8837
    %v9136 = vadd.f32 %v8777, %v8839
    %v9137 = vadd.f32 %v8778, %v8841
    %v9138 = vadd.f32 %v8779, %v8843
    %9139 = vrot.lane.b32.xlu0 %v8127, 104
    %v9140 = vpop.permute.xlu0 %9139
    %9141 = vrot.lane.b32.xlu0 %v8128, 104
    %v9142 = vpop.permute.xlu0 %9141
    %9143 = vrot.lane.b32.xlu0 %v8129, 104
    %v9144 = vpop.permute.xlu0 %9143
    %9145 = vrot.lane.b32.xlu0 %v8130, 104
    %v9146 = vpop.permute.xlu0 %9145
    %9147 = vrot.lane.b32.xlu0 %v8131, 104
    %v9148 = vpop.permute.xlu0 %9147
    %9149 = vrot.lane.b32.xlu0 %v8132, 104
    %v9150 = vpop.permute.xlu0 %9149
    %9151 = vrot.lane.b32.xlu0 %v8133, 104
    %v9152 = vpop.permute.xlu0 %9151
    %9153 = vrot.lane.b32.xlu0 %v8134, 104
    %v9154 = vpop.permute.xlu0 %9153
    %9155 = vrot.lane.b32.xlu0 %v8135, 104
    %v9156 = vpop.permute.xlu0 %9155
    %9157 = vrot.lane.b32.xlu0 %v8136, 104
    %v9158 = vpop.permute.xlu0 %9157
    %9159 = vrot.lane.b32.xlu0 %v8137, 104
    %v9160 = vpop.permute.xlu0 %9159
    %9161 = vrot.lane.b32.xlu0 %v8138, 104
    %v9162 = vpop.permute.xlu0 %9161
    %9163 = vrot.lane.b32.xlu0 %v8139, 104
    %v9164 = vpop.permute.xlu0 %9163
    %9165 = vrot.lane.b32.xlu0 %v8140, 104
    %v9166 = vpop.permute.xlu0 %9165
    %9167 = vrot.lane.b32.xlu0 %v8141, 104
    %v9168 = vpop.permute.xlu0 %9167
    %9169 = vrot.lane.b32.xlu0 %v8142, 104
    %v9170 = vpop.permute.xlu0 %9169
    %9171 = vrot.lane.b32.xlu0 %v8143, 104
    %v9172 = vpop.permute.xlu0 %9171
    %9173 = vrot.lane.b32.xlu0 %v8144, 104
    %v9174 = vpop.permute.xlu0 %9173
    %9175 = vrot.lane.b32.xlu0 %v8145, 104
    %v9176 = vpop.permute.xlu0 %9175
    %9177 = vrot.lane.b32.xlu0 %v8146, 104
    %v9178 = vpop.permute.xlu0 %9177
    %9179 = vrot.lane.b32.xlu0 %v8147, 104
    %v9180 = vpop.permute.xlu0 %9179
    %9181 = vrot.lane.b32.xlu0 %v8148, 104
    %v9182 = vpop.permute.xlu0 %9181
    %9183 = vrot.lane.b32.xlu0 %v8149, 104
    %v9184 = vpop.permute.xlu0 %9183
    %9185 = vrot.lane.b32.xlu0 %v8150, 104
    %v9186 = vpop.permute.xlu0 %9185
    %9187 = vrot.lane.b32.xlu0 %v8151, 104
    %v9188 = vpop.permute.xlu0 %9187
    %9189 = vrot.lane.b32.xlu0 %v8152, 104
    %v9190 = vpop.permute.xlu0 %9189
    %9191 = vrot.lane.b32.xlu0 %v8153, 104
    %v9192 = vpop.permute.xlu0 %9191
    %9193 = vrot.lane.b32.xlu0 %v8154, 104
    %v9194 = vpop.permute.xlu0 %9193
    %9195 = vrot.lane.b32.xlu0 %v8155, 104
    %v9196 = vpop.permute.xlu0 %9195
    %9197 = vrot.lane.b32.xlu0 %v8156, 104
    %v9198 = vpop.permute.xlu0 %9197
    %9199 = vrot.lane.b32.xlu0 %v8157, 104
    %v9200 = vpop.permute.xlu0 %9199
    %9201 = vrot.lane.b32.xlu0 %v8158, 104
    %v9202 = vpop.permute.xlu0 %9201
    %9235 = vxpose.xlu0.b32.start [1/16] %v9140, 128
    %9236 = vxpose.xlu0.b32.cont [2/16] %v9142, 128
    %9237 = vxpose.xlu0.b32.cont [3/16] %v9144, 128
    %9238 = vxpose.xlu0.b32.cont [4/16] %v9146, 128
    %9239 = vxpose.xlu0.b32.cont [5/16] %v9148, 128
    %9240 = vxpose.xlu0.b32.cont [6/16] %v9150, 128
    %9241 = vxpose.xlu0.b32.cont [7/16] %v9152, 128
    %9242 = vxpose.xlu0.b32.cont [8/16] %v9154, 128
    %9243 = vxpose.xlu0.b32.cont [9/16] %v9156, 128
    %9244 = vxpose.xlu0.b32.cont [10/16] %v9158, 128
    %9245 = vxpose.xlu0.b32.cont [11/16] %v9160, 128
    %9246 = vxpose.xlu0.b32.cont [12/16] %v9162, 128
    %9247 = vxpose.xlu0.b32.cont [13/16] %v9164, 128
    %9248 = vxpose.xlu0.b32.cont [14/16] %v9166, 128
    %9249 = vxpose.xlu0.b32.cont [15/16] %v9168, 128
    %9250 = vxpose.xlu0.b32.end [16/16] %v9170, 128
    %v9251 = vpop.trf.xlu0
    %v9252 = vpop.trf.xlu0
    %v9253 = vpop.trf.xlu0
    %v9254 = vpop.trf.xlu0
    %v9255 = vpop.trf.xlu0
    %v9256 = vpop.trf.xlu0
    %v9257 = vpop.trf.xlu0
    %v9258 = vpop.trf.xlu0
    %v9259 = vpop.trf.xlu0
    %v9260 = vpop.trf.xlu0
    %v9261 = vpop.trf.xlu0
    %v9262 = vpop.trf.xlu0
    %v9263 = vpop.trf.xlu0
    %v9264 = vpop.trf.xlu0
    %v9265 = vpop.trf.xlu0
    %v9266 = vpop.trf.xlu0
    %9267 = vxpose.xlu0.b32.start [1/16] %v9172, 128
    %9268 = vxpose.xlu0.b32.cont [2/16] %v9174, 128
    %9269 = vxpose.xlu0.b32.cont [3/16] %v9176, 128
    %9270 = vxpose.xlu0.b32.cont [4/16] %v9178, 128
    %9271 = vxpose.xlu0.b32.cont [5/16] %v9180, 128
    %9272 = vxpose.xlu0.b32.cont [6/16] %v9182, 128
    %9273 = vxpose.xlu0.b32.cont [7/16] %v9184, 128
    %9274 = vxpose.xlu0.b32.cont [8/16] %v9186, 128
    %9275 = vxpose.xlu0.b32.cont [9/16] %v9188, 128
    %9276 = vxpose.xlu0.b32.cont [10/16] %v9190, 128
    %9277 = vxpose.xlu0.b32.cont [11/16] %v9192, 128
    %9278 = vxpose.xlu0.b32.cont [12/16] %v9194, 128
    %9279 = vxpose.xlu0.b32.cont [13/16] %v9196, 128
    %9280 = vxpose.xlu0.b32.cont [14/16] %v9198, 128
    %9281 = vxpose.xlu0.b32.cont [15/16] %v9200, 128
    %9282 = vxpose.xlu0.b32.end [16/16] %v9202, 128
    %v9283 = vpop.trf.xlu0
    %v9284 = vpop.trf.xlu0
    %v9285 = vpop.trf.xlu0
    %v9286 = vpop.trf.xlu0
    %v9287 = vpop.trf.xlu0
    %v9288 = vpop.trf.xlu0
    %v9289 = vpop.trf.xlu0
    %v9290 = vpop.trf.xlu0
    %v9291 = vpop.trf.xlu0
    %v9292 = vpop.trf.xlu0
    %v9293 = vpop.trf.xlu0
    %v9294 = vpop.trf.xlu0
    %v9295 = vpop.trf.xlu0
    %v9296 = vpop.trf.xlu0
    %v9297 = vpop.trf.xlu0
    %v9298 = vpop.trf.xlu0
    %9299 = vrot.lane.b32.xlu0 %v8160, 80
    %v9300 = vpop.permute.xlu0 %9299
    %9301 = vrot.lane.b32.xlu0 %v8161, 80
    %v9302 = vpop.permute.xlu0 %9301
    %9303 = vrot.lane.b32.xlu0 %v8162, 80
    %v9304 = vpop.permute.xlu0 %9303
    %9305 = vrot.lane.b32.xlu0 %v8163, 80
    %v9306 = vpop.permute.xlu0 %9305
    %9307 = vrot.lane.b32.xlu0 %v8164, 80
    %v9308 = vpop.permute.xlu0 %9307
    %9309 = vrot.lane.b32.xlu0 %v8165, 80
    %v9310 = vpop.permute.xlu0 %9309
    %9311 = vrot.lane.b32.xlu0 %v8166, 80
    %v9312 = vpop.permute.xlu0 %9311
    %9313 = vrot.lane.b32.xlu0 %v8167, 80
    %v9314 = vpop.permute.xlu0 %9313
    %9315 = vrot.lane.b32.xlu0 %v8168, 80
    %v9316 = vpop.permute.xlu0 %9315
    %9317 = vrot.lane.b32.xlu0 %v8169, 80
    %v9318 = vpop.permute.xlu0 %9317
    %9319 = vrot.lane.b32.xlu0 %v8170, 80
    %v9320 = vpop.permute.xlu0 %9319
    %9321 = vrot.lane.b32.xlu0 %v8171, 80
    %v9322 = vpop.permute.xlu0 %9321
    %9323 = vrot.lane.b32.xlu0 %v8172, 80
    %v9324 = vpop.permute.xlu0 %9323
    %9325 = vrot.lane.b32.xlu0 %v8173, 80
    %v9326 = vpop.permute.xlu0 %9325
    %9327 = vrot.lane.b32.xlu0 %v8174, 80
    %v9328 = vpop.permute.xlu0 %9327
    %9329 = vrot.lane.b32.xlu0 %v8175, 80
    %v9330 = vpop.permute.xlu0 %9329
    %9331 = vrot.lane.b32.xlu0 %v8176, 80
    %v9332 = vpop.permute.xlu0 %9331
    %9333 = vrot.lane.b32.xlu0 %v8177, 80
    %v9334 = vpop.permute.xlu0 %9333
    %9335 = vrot.lane.b32.xlu0 %v8178, 80
    %v9336 = vpop.permute.xlu0 %9335
    %9337 = vrot.lane.b32.xlu0 %v8179, 80
    %v9338 = vpop.permute.xlu0 %9337
    %9339 = vrot.lane.b32.xlu0 %v8180, 80
    %v9340 = vpop.permute.xlu0 %9339
    %9341 = vrot.lane.b32.xlu0 %v8181, 80
    %v9342 = vpop.permute.xlu0 %9341
    %9343 = vrot.lane.b32.xlu0 %v8182, 80
    %v9344 = vpop.permute.xlu0 %9343
    %9345 = vrot.lane.b32.xlu0 %v8183, 80
    %v9346 = vpop.permute.xlu0 %9345
    %9347 = vrot.lane.b32.xlu0 %v8184, 80
    %v9348 = vpop.permute.xlu0 %9347
    %9349 = vrot.lane.b32.xlu0 %v8185, 80
    %v9350 = vpop.permute.xlu0 %9349
    %9351 = vrot.lane.b32.xlu0 %v8186, 80
    %v9352 = vpop.permute.xlu0 %9351
    %9353 = vrot.lane.b32.xlu0 %v8187, 80
    %v9354 = vpop.permute.xlu0 %9353
    %9355 = vrot.lane.b32.xlu0 %v8188, 80
    %v9356 = vpop.permute.xlu0 %9355
    %9357 = vrot.lane.b32.xlu0 %v8189, 80
    %v9358 = vpop.permute.xlu0 %9357
    %9359 = vrot.lane.b32.xlu0 %v8190, 80
    %v9360 = vpop.permute.xlu0 %9359
    %9361 = vrot.lane.b32.xlu0 %v8191, 80
    %v9362 = vpop.permute.xlu0 %9361
    %9395 = vmatprep.subr.mxu0 0.0
    %9396 = vmatpush1.msra.mxu0 %v9300
    %9397 = vmatprep.subr.mxu0 0.0
    %9398 = vmatpush1.msra.mxu0 %v9302
    %9399 = vmatprep.subr.mxu0 0.0
    %9400 = vmatpush1.msra.mxu0 %v9304
    %9401 = vmatprep.subr.mxu0 0.0
    %9402 = vmatpush1.msra.mxu0 %v9306
    %9403 = vmatprep.subr.mxu0 0.0
    %9404 = vmatpush1.msra.mxu0 %v9308
    %9405 = vmatprep.subr.mxu0 0.0
    %9406 = vmatpush1.msra.mxu0 %v9310
    %9407 = vmatprep.subr.mxu0 0.0
    %9408 = vmatpush1.msra.mxu0 %v9312
    %9409 = vmatprep.subr.mxu0 0.0
    %9410 = vmatpush1.msra.mxu0 %v9314
    %9411 = vmatprep.subr.mxu0 0.0
    %9412 = vmatpush1.msra.mxu0 %v9316
    %9413 = vmatprep.subr.mxu0 0.0
    %9414 = vmatpush1.msra.mxu0 %v9318
    %9415 = vmatprep.subr.mxu0 0.0
    %9416 = vmatpush1.msra.mxu0 %v9320
    %9417 = vmatprep.subr.mxu0 0.0
    %9418 = vmatpush1.msra.mxu0 %v9322
    %9419 = vmatprep.subr.mxu0 0.0
    %9420 = vmatpush1.msra.mxu0 %v9324
    %9421 = vmatprep.subr.mxu0 0.0
    %9422 = vmatpush1.msra.mxu0 %v9326
    %9423 = vmatprep.subr.mxu0 0.0
    %9424 = vmatpush1.msra.mxu0 %v9328
    %9425 = vmatprep.subr.mxu0 0.0
    %9426 = vmatpush1.msra.mxu0 %v9330
    %9427 = vmatprep.subr.mxu0 0.0
    %9428 = vmatpush1.msra.mxu0 %v9332
    %9429 = vmatprep.subr.mxu0 0.0
    %9430 = vmatpush1.msra.mxu0 %v9334
    %9431 = vmatprep.subr.mxu0 0.0
    %9432 = vmatpush1.msra.mxu0 %v9336
    %9433 = vmatprep.subr.mxu0 0.0
    %9434 = vmatpush1.msra.mxu0 %v9338
    %9435 = vmatprep.subr.mxu0 0.0
    %9436 = vmatpush1.msra.mxu0 %v9340
    %9437 = vmatprep.subr.mxu0 0.0
    %9438 = vmatpush1.msra.mxu0 %v9342
    %9439 = vmatprep.subr.mxu0 0.0
    %9440 = vmatpush1.msra.mxu0 %v9344
    %9441 = vmatprep.subr.mxu0 0.0
    %9442 = vmatpush1.msra.mxu0 %v9346
    %9443 = vmatprep.subr.mxu0 0.0
    %9444 = vmatpush1.msra.mxu0 %v9348
    %9445 = vmatprep.subr.mxu0 0.0
    %9446 = vmatpush1.msra.mxu0 %v9350
    %9447 = vmatprep.subr.mxu0 0.0
    %9448 = vmatpush1.msra.mxu0 %v9352
    %9449 = vmatprep.subr.mxu0 0.0
    %9450 = vmatpush1.msra.mxu0 %v9354
    %9451 = vmatprep.subr.mxu0 0.0
    %9452 = vmatpush1.msra.mxu0 %v9356
    %9453 = vmatprep.subr.mxu0 0.0
    %9454 = vmatpush1.msra.mxu0 %v9358
    %9455 = vmatprep.subr.mxu0 0.0
    %9456 = vmatpush1.msra.mxu0 %v9360
    %9457 = vmatprep.subr.mxu0 0.0
    %9458 = vmatpush1.msra.mxu0 %v9362
    %9459 = vmatprep.mubr.f32.mxu0 %v9283
    %9460 = vmatmul.mubr.f32.gmra.mrb[0].mxu0 %v9251
    %v9461 = vpop.f32.mrb[0].mxu0
    %v9462 = vadd.f32 0.0, %v9461
    %v9463 = vpop.f32.mrb[0].mxu0
    %9464 = vdwg.mxu0
    %v9465 = vadd.f32 %v9106, %v9462
    %v9466 = vadd.f32 %v9107, %v9140
    %v9467 = vadd.f32 %v9108, %v9142
    %v9468 = vadd.f32 %v9109, %v9144
    %v9469 = vadd.f32 %v9110, %v9146
    %v9470 = vadd.f32 %v9111, %v9148
    %v9471 = vadd.f32 %v9112, %v9150
    %v9472 = vadd.f32 %v9113, %v9152
    %v9473 = vadd.f32 %v9114, %v9154
    %v9474 = vadd.f32 %v9115, %v9156
    %v9475 = vadd.f32 %v9116, %v9158
    %v9476 = vadd.f32 %v9117, %v9160
    %v9477 = vadd.f32 %v9118, %v9162
    %v9478 = vadd.f32 %v9119, %v9164
    %v9479 = vadd.f32 %v9120, %v9166
    %v9480 = vadd.f32 %v9121, %v9168
    %v9481 = vadd.f32 %v9122, %v9170
    %v9482 = vadd.f32 %v9123, %v9172
    %v9483 = vadd.f32 %v9124, %v9174
    %v9484 = vadd.f32 %v9125, %v9176
    %v9485 = vadd.f32 %v9126, %v9178
    %v9486 = vadd.f32 %v9127, %v9180
    %v9487 = vadd.f32 %v9128, %v9182
    %v9488 = vadd.f32 %v9129, %v9184
    %v9489 = vadd.f32 %v9130, %v9186
    %v9490 = vadd.f32 %v9131, %v9188
    %v9491 = vadd.f32 %v9132, %v9190
    %v9492 = vadd.f32 %v9133, %v9192
    %v9493 = vadd.f32 %v9134, %v9194
    %v9494 = vadd.f32 %v9135, %v9196
    %v9495 = vadd.f32 %v9136, %v9198
    %v9496 = vadd.f32 %v9137, %v9200
    %v9497 = vadd.f32 %v9138, %v9202
    %9498 = vxpose.xlu0.b32.start [1/16] %v9466, 128
    %9499 = vxpose.xlu0.b32.cont [2/16] %v9467, 128
    %9500 = vxpose.xlu0.b32.cont [3/16] %v9468, 128
    %9501 = vxpose.xlu0.b32.cont [4/16] %v9469, 128
    %9502 = vxpose.xlu0.b32.cont [5/16] %v9470, 128
    %9503 = vxpose.xlu0.b32.cont [6/16] %v9471, 128
    %9504 = vxpose.xlu0.b32.cont [7/16] %v9472, 128
    %9505 = vxpose.xlu0.b32.cont [8/16] %v9473, 128
    %9506 = vxpose.xlu0.b32.cont [9/16] %v9474, 128
    %9507 = vxpose.xlu0.b32.cont [10/16] %v9475, 128
    %9508 = vxpose.xlu0.b32.cont [11/16] %v9476, 128
    %9509 = vxpose.xlu0.b32.cont [12/16] %v9477, 128
    %9510 = vxpose.xlu0.b32.cont [13/16] %v9478, 128
    %9511 = vxpose.xlu0.b32.cont [14/16] %v9479, 128
    %9512 = vxpose.xlu0.b32.cont [15/16] %v9480, 128
    %9513 = vxpose.xlu0.b32.end [16/16] %v9481, 128
    %v9514 = vpop.trf.xlu0
    %v9515 = vpop.trf.xlu0
    %v9516 = vpop.trf.xlu0
    %v9517 = vpop.trf.xlu0
    %v9518 = vpop.trf.xlu0
    %v9519 = vpop.trf.xlu0
    %v9520 = vpop.trf.xlu0
    %v9521 = vpop.trf.xlu0
    %v9522 = vpop.trf.xlu0
    %v9523 = vpop.trf.xlu0
    %v9524 = vpop.trf.xlu0
    %v9525 = vpop.trf.xlu0
    %v9526 = vpop.trf.xlu0
    %v9527 = vpop.trf.xlu0
    %v9528 = vpop.trf.xlu0
    %v9529 = vpop.trf.xlu0
    %9530 = vxpose.xlu0.b32.start [1/16] %v9482, 128
    %9531 = vxpose.xlu0.b32.cont [2/16] %v9483, 128
    %9532 = vxpose.xlu0.b32.cont [3/16] %v9484, 128
    %9533 = vxpose.xlu0.b32.cont [4/16] %v9485, 128
    %9534 = vxpose.xlu0.b32.cont [5/16] %v9486, 128
    %9535 = vxpose.xlu0.b32.cont [6/16] %v9487, 128
    %9536 = vxpose.xlu0.b32.cont [7/16] %v9488, 128
    %9537 = vxpose.xlu0.b32.cont [8/16] %v9489, 128
    %9538 = vxpose.xlu0.b32.cont [9/16] %v9490, 128
    %9539 = vxpose.xlu0.b32.cont [10/16] %v9491, 128
    %9540 = vxpose.xlu0.b32.cont [11/16] %v9492, 128
    %9541 = vxpose.xlu0.b32.cont [12/16] %v9493, 128
    %9542 = vxpose.xlu0.b32.cont [13/16] %v9494, 128
    %9543 = vxpose.xlu0.b32.cont [14/16] %v9495, 128
    %9544 = vxpose.xlu0.b32.cont [15/16] %v9496, 128
    %9545 = vxpose.xlu0.b32.end [16/16] %v9497, 128
    %v9546 = vpop.trf.xlu0
    %v9547 = vpop.trf.xlu0
    %v9548 = vpop.trf.xlu0
    %v9549 = vpop.trf.xlu0
    %v9550 = vpop.trf.xlu0
    %v9551 = vpop.trf.xlu0
    %v9552 = vpop.trf.xlu0
    %v9553 = vpop.trf.xlu0
    %v9554 = vpop.trf.xlu0
    %v9555 = vpop.trf.xlu0
    %v9556 = vpop.trf.xlu0
    %v9557 = vpop.trf.xlu0
    %v9558 = vpop.trf.xlu0
    %v9559 = vpop.trf.xlu0
    %v9560 = vpop.trf.xlu0
    %v9561 = vpop.trf.xlu0
    %9562 = vmatprep.subr.mxu0 0.0
    %9563 = vmatpush1.msra.mxu0 1.0
    %9564 = vmatprep.subr.mxu0 0.0
    %9565 = vmatpush1.msra.mxu0 1.0
    %9566 = vmatprep.subr.mxu0 0.0
    %9567 = vmatpush1.msra.mxu0 1.0
    %9568 = vmatprep.subr.mxu0 0.0
    %9569 = vmatpush1.msra.mxu0 1.0
    %9570 = vmatprep.subr.mxu0 0.0
    %9571 = vmatpush1.msra.mxu0 1.0
    %9572 = vmatprep.subr.mxu0 0.0
    %9573 = vmatpush1.msra.mxu0 1.0
    %9574 = vmatprep.subr.mxu0 0.0
    %9575 = vmatpush1.msra.mxu0 1.0
    %9576 = vmatprep.subr.mxu0 0.0
    %9577 = vmatpush1.msra.mxu0 1.0
    %9578 = vmatprep.subr.mxu0 0.0
    %9579 = vmatpush1.msra.mxu0 1.0
    %9580 = vmatprep.subr.mxu0 0.0
    %9581 = vmatpush1.msra.mxu0 1.0
    %9582 = vmatprep.subr.mxu0 0.0
    %9583 = vmatpush1.msra.mxu0 1.0
    %9584 = vmatprep.subr.mxu0 0.0
    %9585 = vmatpush1.msra.mxu0 1.0
    %9586 = vmatprep.subr.mxu0 0.0
    %9587 = vmatpush1.msra.mxu0 1.0
    %9588 = vmatprep.subr.mxu0 0.0
    %9589 = vmatpush1.msra.mxu0 1.0
    %9590 = vmatprep.subr.mxu0 0.0
    %9591 = vmatpush1.msra.mxu0 1.0
    %9592 = vmatprep.subr.mxu0 0.0
    %9593 = vmatpush1.msra.mxu0 1.0
    %9594 = vmatprep.subr.mxu0 0.0
    %9595 = vmatpush1.msra.mxu0 1.0
    %9596 = vmatprep.subr.mxu0 0.0
    %9597 = vmatpush1.msra.mxu0 1.0
    %9598 = vmatprep.subr.mxu0 0.0
    %9599 = vmatpush1.msra.mxu0 1.0
    %9600 = vmatprep.subr.mxu0 0.0
    %9601 = vmatpush1.msra.mxu0 1.0
    %9602 = vmatprep.subr.mxu0 0.0
    %9603 = vmatpush1.msra.mxu0 1.0
    %9604 = vmatprep.subr.mxu0 0.0
    %9605 = vmatpush1.msra.mxu0 1.0
    %9606 = vmatprep.subr.mxu0 0.0
    %9607 = vmatpush1.msra.mxu0 1.0
    %9608 = vmatprep.subr.mxu0 0.0
    %9609 = vmatpush1.msra.mxu0 1.0
    %9610 = vmatprep.subr.mxu0 0.0
    %9611 = vmatpush1.msra.mxu0 1.0
    %9612 = vmatprep.subr.mxu0 0.0
    %9613 = vmatpush1.msra.mxu0 1.0
    %9614 = vmatprep.subr.mxu0 0.0
    %9615 = vmatpush1.msra.mxu0 1.0
    %9616 = vmatprep.subr.mxu0 0.0
    %9617 = vmatpush1.msra.mxu0 1.0
    %9618 = vmatprep.subr.mxu0 0.0
    %9619 = vmatpush1.msra.mxu0 1.0
    %9620 = vmatprep.subr.mxu0 0.0
    %9621 = vmatpush1.msra.mxu0 1.0
    %9622 = vmatprep.subr.mxu0 0.0
    %9623 = vmatpush1.msra.mxu0 1.0
    %9624 = vmatprep.subr.mxu0 0.0
    %9625 = vmatpush1.msra.mxu0 1.0
    %9626 = vmatprep.mubr.f32.mxu0 %v9546
    %9627 = vmatmul.mubr.f32.gmra.mrb[0].mxu0 %v9514
    %v9628 = vpop.f32.mrb[0].mxu0
    %v9629 = vadd.f32 0.0, %v9628
    %v9630 = vpop.f32.mrb[0].mxu0
    %9631 = vdwg.mxu0
    %v9632 = vmul.f32 %v19, %v9629
    %v9633 = vsub.f32 %v9465, %v9632
    %s9634 = scalar_lea.vmem [#allocation4], 8
    %9635 = vst.msk [vmem:[%s9634] sm:$0xff] %vm6425, %v9633
    // Predicated region
    $region14: #{tpu_custom_call.1} parent=1 // pred_check
      _
    $region15: #{tpu_custom_call.1} parent=1 // pred_check_branch
      %9637 = sbr.rel (0) target = $region17
    $region16: #{tpu_custom_call.1} parent=1 // pred_region
      %s9639 = ssub.s32 256, 256
      %9640 = vsyncadd [#allocation5], %s9639
      %s9641 = sshll.u32 [#allocation4], 4
      %s9642 = int_to_ptr.vmem [resolvable:$true] %s9641
      %9647 = dma.vmem_to_hbm [thread:$0]  %s9642, 256, %s3, [#allocation5], 128, 128, 8
    $region17: #{tpu_custom_call.1} parent=1 // pred_fallthru
      _
    // Predicated region
    $region18: #{tpu_custom_call.1} parent=1 // pred_check
      _
    $region19: #{tpu_custom_call.1} parent=1 // pred_check_branch
      %9649 = sbr.rel (0) target = $region21
    $region20: #{tpu_custom_call.1} parent=1 // pred_region
      %9650 = dma.done [#allocation5], 256
    $region21: #{tpu_custom_call.1} parent=1 // pred_fallthru
      _
    %9651 = vsyncpa [#allocation5], 1

</llo_original>
